<compile_context>
chip_gen: v7x
topology: tpu7x:2x2x1
jax: 0.10.0
libtpu: 0.0.40
codegen_flags: <defaults>
</compile_context>

<pallas_src>
import functools

import jax
import jax.numpy as jnp
import numpy as np
from jax.experimental import pallas as pl
from jax.experimental.pallas import tpu as pltpu

EPS = 1e-5
LANES = 128


def _round_up(x, m):
    return (x + m - 1) // m * m


def _pick_row_tile(hout, target=8):
    tr = min(hout, target)
    while hout % tr:
        tr -= 1
    return tr


# ------------------------------ fused kernel ------------------------------- #

def _block_kernel(x_ref, w1_ref, s1_ref, b1_ref, w2_ref, s2_ref, b2_ref, *rest,
                  stride, H, W, Hout, Wout, TR, T, has_shortcut):
    """Skewed row-tile pipeline over grid axis t in [0, T]:
         t <  T : conv1(3x3, stride)+BN+ReLU for h rows [t*TR, t*TR+TR) -> hpad
         t >  0 : conv2(3x3)+BN, shortcut, residual add, ReLU for output
                  rows [(t-1)*TR, (t-1)*TR+TR)                          -> o_ref
    """
    if has_shortcut:
        ws_ref, ss_ref, bs_ref, o_ref, xpad_ref, hpad_ref = rest
    else:
        o_ref, xpad_ref, hpad_ref = rest

    cin_p = xpad_ref.shape[-1]
    cout_p = hpad_ref.shape[-1]
    s = stride
    t = pl.program_id(1)
    HWt = TR * Wout

    # ---- t == 0: stage this image's row-halo'd input in VMEM ---------------
    # Input is already column-halo'd + channel-padded (zeros), so all stores
    # here are full-width, lane-aligned; only the two thin row halos are zeroed.
    @pl.when(t == 0)
    def _():
        zx = jnp.zeros((1, W + 2, cin_p), xpad_ref.dtype)
        xpad_ref[0:1, :, :] = zx
        xpad_ref[H + 1:H + 2, :, :] = zx
        xpad_ref[1:H + 1, :, :] = x_ref[0].astype(xpad_ref.dtype)
        zh = jnp.zeros((1, Wout + 2, cout_p), hpad_ref.dtype)
        hpad_ref[0:1, :, :] = zh
        hpad_ref[Hout + 1:Hout + 2, :, :] = zh

    # ---- conv1 (3x3, stride s) + BN + ReLU for h-row tile t -----------------
    @pl.when(t < T)
    def _():
        r0 = t * TR                          # first h row produced by this tile
        acc = jnp.zeros((HWt, cout_p), jnp.float32)
        for kh in range(3):                  # static unrolled taps
            for kw in range(3):
                if s == 1:
                    patch = xpad_ref[pl.ds(r0 + kh, TR), pl.ds(kw, Wout), :]
                else:
                    patch = xpad_ref[pl.ds(s * r0 + kh, TR, stride=s),
                                     pl.ds(kw, Wout, stride=s), :]
                acc = acc + jnp.dot(
                    patch.reshape(HWt, cin_p).astype(jnp.bfloat16),
                    w1_ref[kh, kw], preferred_element_type=jnp.float32)
        h = jnp.maximum(acc * s1_ref[...] + b1_ref[...], 0.0)
        h = h.reshape(TR, Wout, cout_p)
        zc = jnp.zeros((TR, 1, cout_p), jnp.float32)
        # Full-width store (also re-zeroes the column halo) -> aligned store.
        hpad_ref[pl.ds(r0 + 1, TR), :, :] = (
            jnp.concatenate([zc, h, zc], axis=1).astype(hpad_ref.dtype))

    # ---- conv2 (3x3) + BN, shortcut, residual add, ReLU, tile store ---------
    @pl.when(t > 0)
    def _():
        r0 = (t - 1) * TR                    # first output row of this tile
        acc2 = jnp.zeros((HWt, cout_p), jnp.float32)
        for kh in range(3):
            for kw in range(3):
                patch = hpad_ref[pl.ds(r0 + kh, TR), pl.ds(kw, Wout), :]
                acc2 = acc2 + jnp.dot(
                    patch.reshape(HWt, cout_p).astype(jnp.bfloat16),
                    w2_ref[kh, kw], preferred_element_type=jnp.float32)
        y = acc2 * s2_ref[...] + b2_ref[...]

        if has_shortcut:                     # 1x1 conv + BN, strided
            if s == 1:
                sp = xpad_ref[pl.ds(r0 + 1, TR), pl.ds(1, Wout), :]
            else:
                sp = xpad_ref[pl.ds(s * r0 + 1, TR, stride=s),
                              pl.ds(1, Wout, stride=s), :]
            sc = jnp.dot(sp.reshape(HWt, cin_p).astype(jnp.bfloat16),
                         ws_ref[...], preferred_element_type=jnp.float32)
            sc = sc * ss_ref[...] + bs_ref[...]
        else:                                # identity (stride==1, cin==cout)
            sc = xpad_ref[pl.ds(r0 + 1, TR), pl.ds(1, Wout), :]
            sc = sc.reshape(HWt, cout_p).astype(jnp.float32)

        out = jnp.maximum(y + sc, 0.0)
        o_ref[0] = out.reshape(TR, Wout, cout_p).astype(o_ref.dtype)  # 128-lane vst


# -------------------------------- wrappers ---------------------------------- #

def prepare_params(params, *, cin, cout, stride):
    """Pad/convert weights & folded-BN params once (bf16 weights, f32 scale/bias)."""
    cin_p, cout_p = _round_up(cin, LANES), _round_up(cout, LANES)
    has_shortcut = (stride != 1) or (cin != cout)

    def pad_w(w, ci_p, co_p):                               # (k,k,Ci,Co) -> padded bf16
        return jnp.pad(w, ((0, 0), (0, 0),
                           (0, ci_p - w.shape[2]),
                           (0, co_p - w.shape[3]))).astype(jnp.bfloat16)

    def pad_v(v, c_p):                                      # (C,) -> (1, C_p) f32
        return jnp.pad(v, (0, c_p - v.shape[0])).reshape(1, c_p).astype(jnp.float32)

    prep = {
        "w1": pad_w(params["w1"], cin_p, cout_p),
        "s1": pad_v(params["s1"], cout_p), "b1": pad_v(params["b1"], cout_p),
        "w2": pad_w(params["w2"], cout_p, cout_p),
        "s2": pad_v(params["s2"], cout_p), "b2": pad_v(params["b2"], cout_p),
    }
    if has_shortcut:
        ws = params["ws"].reshape(cin, cout)                # 1x1 conv -> (Ci, Co)
        prep["ws"] = jnp.pad(ws, ((0, cin_p - cin),
                                  (0, cout_p - cout))).astype(jnp.bfloat16)
        prep["ss"] = pad_v(params["ss"], cout_p)
        prep["bs"] = pad_v(params["bs"], cout_p)
    return prep


def basic_block_forward_nhwc(x_nhwc, prep, *, stride, cin, cout):
    """Fast path.  x_nhwc: (N, H, W+2, cin_p) bf16, zero column halo + zero
    channel padding.  Returns (N, Hout, Wout, cout_p) bf16 (channel-padded)."""
    N, H, Wp2, cin_p = x_nhwc.shape
    W = Wp2 - 2
    Hout = (H - 1) // stride + 1
    Wout = (W - 1) // stride + 1
    cout_p = _round_up(cout, LANES)
    has_shortcut = (stride != 1) or (cin != cout)
    TR = _pick_row_tile(Hout, 8)
    T = Hout // TR

    # bf16 scratch where the packed access pattern is alignment-friendly;
    # otherwise keep the proven f32 layout (cast happens once at the MXU dot).
    x_scr_dtype = jnp.bfloat16 if (stride == 1 and Wout % 16 == 0) else jnp.float32
    h_scr_dtype = jnp.bfloat16 if (Wout % 16 == 0) else jnp.float32

    inputs = [x_nhwc, prep["w1"], prep["s1"], prep["b1"],
              prep["w2"], prep["s2"], prep["b2"]]
    in_specs = [
        pl.BlockSpec((1, H, Wp2, cin_p), lambda n, t: (n, 0, 0, 0)),
        pl.BlockSpec((3, 3, cin_p, cout_p), lambda n, t: (0, 0, 0, 0)),
        pl.BlockSpec((1, cout_p), lambda n, t: (0, 0)),
        pl.BlockSpec((1, cout_p), lambda n, t: (0, 0)),
        pl.BlockSpec((3, 3, cout_p, cout_p), lambda n, t: (0, 0, 0, 0)),
        pl.BlockSpec((1, cout_p), lambda n, t: (0, 0)),
        pl.BlockSpec((1, cout_p), lambda n, t: (0, 0)),
    ]
    if has_shortcut:
        inputs += [prep["ws"], prep["ss"], prep["bs"]]
        in_specs += [
            pl.BlockSpec((cin_p, cout_p), lambda n, t: (0, 0)),
            pl.BlockSpec((1, cout_p), lambda n, t: (0, 0)),
            pl.BlockSpec((1, cout_p), lambda n, t: (0, 0)),
        ]

    kern = functools.partial(_block_kernel, stride=stride, H=H, W=W,
                             Hout=Hout, Wout=Wout, TR=TR, T=T,
                             has_shortcut=has_shortcut)

    return pl.pallas_call(
        kern,
        out_shape=jax.ShapeDtypeStruct((N, Hout, Wout, cout_p), jnp.bfloat16),
        grid=(N, T + 1),
        in_specs=in_specs,
        out_specs=pl.BlockSpec((1, TR, Wout, cout_p),
                               lambda n, t: (n, jnp.maximum(t - 1, 0), 0, 0)),
        scratch_shapes=[
            pltpu.VMEM((H + 2, W + 2, cin_p), x_scr_dtype),       # row-halo'd input
            pltpu.VMEM((Hout + 2, Wout + 2, cout_p), h_scr_dtype),  # halo'd h
        ],
        compiler_params=pltpu.CompilerParams(
            dimension_semantics=("parallel", "arbitrary")),
    )(*inputs)


def basic_block_forward(x_nchw, params, *, stride, cin, cout):
    """PyTorch-interface compatibility wrapper (NCHW f32 in/out) for testing.
    Chained blocks should use basic_block_forward_nhwc directly and keep
    activations in padded NHWC bf16 between blocks."""
    N, C, H, W = x_nchw.shape
    cin_p = _round_up(cin, LANES)
    prep = prepare_params(params, cin=cin, cout=cout, stride=stride)
    x = jnp.transpose(x_nchw, (0, 2, 3, 1)).astype(jnp.bfloat16)   # NCHW -> NHWC bf16
    x = jnp.pad(x, ((0, 0), (0, 0), (1, 1), (0, cin_p - C)))       # col halo + chan pad
    out = basic_block_forward_nhwc(x, prep, stride=stride, cin=cin, cout=cout)
    out = out[..., :cout].astype(jnp.float32)
    return jnp.transpose(out, (0, 3, 1, 2))                        # NHWC -> NCHW


# ---------------------------- parameters / BN ------------------------------- #

def fold_bn(gamma, beta, mean, var):
    scale = gamma / jnp.sqrt(var + EPS)
    return scale, beta - mean * scale


def init_params(key, cin, cout, stride):
    """Deterministic synthetic parameters (BatchNorm folded to scale/bias)."""
    ks = jax.random.split(key, 16)

    def conv_w(k, co, ci, ksz):
        # PyTorch layout (Cout,Cin,kh,kw) -> kernel layout (kh,kw,Cin,Cout)
        w = jax.random.normal(k, (co, ci, ksz, ksz), jnp.float32) * 0.1
        return jnp.transpose(w, (2, 3, 1, 0))

    def bn(k0, k1, k2, k3, c):
        gamma = 0.5 + jax.random.uniform(k0, (c,), jnp.float32)
        beta = jax.random.normal(k1, (c,), jnp.float32) * 0.1
        mean = jax.random.normal(k2, (c,), jnp.float32) * 0.1
        var = 0.5 + jax.random.uniform(k3, (c,), jnp.float32)
        return fold_bn(gamma, beta, mean, var)

    p = {}
    p["w1"] = conv_w(ks[0], cout, cin, 3)
    p["s1"], p["b1"] = bn(ks[1], ks[2], ks[3], ks[4], cout)
    p["w2"] = conv_w(ks[5], cout, cout, 3)
    p["s2"], p["b2"] = bn(ks[6], ks[7], ks[8], ks[9], cout)
    if stride != 1 or cin != cout:
        p["ws"] = conv_w(ks[10], cout, cin, 1)
        p["ss"], p["bs"] = bn(ks[11], ks[12], ks[13], ks[14], cout)
    return p


# ----------------------------- Reference (JAX) ------------------------------ #

def _ref_conv_bn(x, w, scale, bias, stride, relu, pad):
    y = jax.lax.conv_general_dilated(
        x, w, (stride, stride), [(pad, pad), (pad, pad)],
        dimension_numbers=("NHWC", "HWIO", "NHWC"))
    y = y * scale + bias
    return jnp.maximum(y, 0.0) if relu else y


def ref_basic_block(x_nchw, params, *, stride, cin, cout):
    x = jnp.transpose(x_nchw, (0, 2, 3, 1))
    h = _ref_conv_bn(x, params["w1"], params["s1"], params["b1"], stride, True, 1)
    h = _ref_conv_bn(h, params["w2"], params["s2"], params["b2"], 1, False, 1)
    if stride != 1 or cin != cout:
        sc = _ref_conv_bn(x, params["ws"], params["ss"], params["bs"], stride, False, 0)
    else:
        sc = x
    return jnp.transpose(jnp.maximum(h + sc, 0.0), (0, 3, 1, 2))


# --------------------------------- Main ------------------------------------- #

if __name__ == "__main__":
    key = jax.random.PRNGKey(0)
    k_x, k_x2, k_p1, k_p2, k_p3 = jax.random.split(key, 5)

    N, CIN, H, W = 2, 4, 16, 16
    COUT = 8
    x = jax.random.normal(k_x, (N, CIN, H, W), jnp.float32)      # NCHW like PyTorch

    # bf16 activations + bf16 MXU inputs vs. f32 reference -> loose tolerance.
    RTOL, ATOL = 3e-2, 3e-2

    # Case 1: stride=1, inchannel != outchannel (shortcut = conv1x1 + BN)
    p1 = init_params(k_p1, CIN, COUT, stride=1)
    out1 = basic_block_forward(x, p1, stride=1, cin=CIN, cout=COUT)
    jax.block_until_ready(out1)
    ref1 = ref_basic_block(x, p1, stride=1, cin=CIN, cout=COUT)
    np.testing.assert_allclose(np.asarray(out1), np.asarray(ref1),
                               rtol=RTOL, atol=ATOL)

    # Case 2: stride=2 downsampling path (in-kernel strided conv)
    p2 = init_params(k_p2, CIN, COUT, stride=2)
    out2 = basic_block_forward(x, p2, stride=2, cin=CIN, cout=COUT)
    jax.block_until_ready(out2)
    ref2 = ref_basic_block(x, p2, stride=2, cin=CIN, cout=COUT)
    np.testing.assert_allclose(np.asarray(out2), np.asarray(ref2),
                               rtol=RTOL, atol=ATOL)

    # Case 3: stride=1, inchannel == outchannel (identity shortcut)
    x3 = jax.random.normal(k_x2, (N, COUT, H, W), jnp.float32)
    p3 = init_params(k_p3, COUT, COUT, stride=1)
    out3 = basic_block_forward(x3, p3, stride=1, cin=COUT, cout=COUT)
    jax.block_until_ready(out3)
    ref3 = ref_basic_block(x3, p3, stride=1, cin=COUT, cout=COUT)
    np.testing.assert_allclose(np.asarray(out3), np.asarray(ref3),
                               rtol=RTOL, atol=ATOL)

    # TODO(synk): BatchNorm is folded as inference-mode (running stats);
    # training-mode batch statistics are not computed in-kernel.
    print("KERNEL_OK")
</pallas_src>

<mosaic_0001>
module attributes {stable_mosaic.version = 11 : i64} {
  func.func @_block_kernel(%arg0: i32, %arg1: i32, %arg2: memref<1x16x18x128xbf16, #tpu.memory_space<vmem>>, %arg3: memref<3x3x128x128xbf16, #tpu.memory_space<vmem>>, %arg4: memref<1x128xf32, #tpu.memory_space<vmem>>, %arg5: memref<1x128xf32, #tpu.memory_space<vmem>>, %arg6: memref<3x3x128x128xbf16, #tpu.memory_space<vmem>>, %arg7: memref<1x128xf32, #tpu.memory_space<vmem>>, %arg8: memref<1x128xf32, #tpu.memory_space<vmem>>, %arg9: memref<128x128xbf16, #tpu.memory_space<vmem>>, %arg10: memref<1x128xf32, #tpu.memory_space<vmem>>, %arg11: memref<1x128xf32, #tpu.memory_space<vmem>>, %arg12: memref<1x8x16x128xbf16, #tpu.memory_space<vmem>>, %arg13: memref<18x18x128xbf16, #tpu.memory_space<vmem>>, %arg14: memref<18x18x128xbf16, #tpu.memory_space<vmem>>) attributes {dimension_semantics = [#tpu.dimension_semantics<parallel>, #tpu.dimension_semantics<arbitrary>], iteration_bounds = array<i64: 2, 3>, scalar_prefetch = 0 : i64, scratch_operands = 2 : i64, tpu.core_type = #tpu.core_type<tc>, window_params = [{transform_indices = @transform_0, window_bounds = array<i64: 1, 16, 18, 128>}, {pipeline_mode = #tpu.pipeline_mode<synchronous>, transform_indices = @transform_1, window_bounds = array<i64: 3, 3, 128, 128>}, {pipeline_mode = #tpu.pipeline_mode<synchronous>, transform_indices = @transform_2, window_bounds = array<i64: 1, 128>}, {pipeline_mode = #tpu.pipeline_mode<synchronous>, transform_indices = @transform_3, window_bounds = array<i64: 1, 128>}, {pipeline_mode = #tpu.pipeline_mode<synchronous>, transform_indices = @transform_4, window_bounds = array<i64: 3, 3, 128, 128>}, {pipeline_mode = #tpu.pipeline_mode<synchronous>, transform_indices = @transform_5, window_bounds = array<i64: 1, 128>}, {pipeline_mode = #tpu.pipeline_mode<synchronous>, transform_indices = @transform_6, window_bounds = array<i64: 1, 128>}, {pipeline_mode = #tpu.pipeline_mode<synchronous>, transform_indices = @transform_7, window_bounds = array<i64: 128, 128>}, {pipeline_mode = #tpu.pipeline_mode<synchronous>, transform_indices = @transform_8, window_bounds = array<i64: 1, 128>}, {pipeline_mode = #tpu.pipeline_mode<synchronous>, transform_indices = @transform_9, window_bounds = array<i64: 1, 128>}, {transform_indices = @transform_10, window_bounds = array<i64: 1, 8, 16, 128>}]} {
    %c0_i32 = arith.constant 0 : i32
    %0 = arith.cmpi eq, %arg1, %c0_i32 : i32
    %1 = arith.extui %0 : i1 to i32
    %c0_i32_0 = arith.constant 0 : i32
    %2 = arith.cmpi ne, %1, %c0_i32_0 : i32
    scf.if %2 {
      %cst = arith.constant 0.000000e+00 : bf16
      %9 = vector.broadcast %cst : bf16 to vector<1x18x128xbf16>
      %c0 = arith.constant 0 : index
      %c0_4 = arith.constant 0 : index
      %c0_5 = arith.constant 0 : index
      %10 = vector.load %arg13[%c0, %c0_4, %c0_5] : memref<18x18x128xbf16, #tpu.memory_space<vmem>>, vector<1x18x128xbf16>
      tpu.vector_store %arg13[%c0, %c0_4, %c0_5], %9 {strides = array<i32>} : memref<18x18x128xbf16, #tpu.memory_space<vmem>>, vector<1x18x128xbf16>,
      %c17 = arith.constant 17 : index
      %c0_6 = arith.constant 0 : index
      %c0_7 = arith.constant 0 : index
      %11 = vector.load %arg13[%c17, %c0_6, %c0_7] : memref<18x18x128xbf16, #tpu.memory_space<vmem>>, vector<1x18x128xbf16>
      tpu.vector_store %arg13[%c17, %c0_6, %c0_7], %9 {strides = array<i32>} : memref<18x18x128xbf16, #tpu.memory_space<vmem>>, vector<1x18x128xbf16>,
      %c0_8 = arith.constant 0 : index
      %c0_9 = arith.constant 0 : index
      %c0_10 = arith.constant 0 : index
      %c0_11 = arith.constant 0 : index
      %12 = vector.load %arg2[%c0_8, %c0_9, %c0_10, %c0_11] : memref<1x16x18x128xbf16, #tpu.memory_space<vmem>>, vector<1x16x18x128xbf16>
      %13 = vector.shape_cast %12 : vector<1x16x18x128xbf16> to vector<16x18x128xbf16>
      %c1 = arith.constant 1 : index
      %c0_12 = arith.constant 0 : index
      %c0_13 = arith.constant 0 : index
      %14 = vector.load %arg13[%c1, %c0_12, %c0_13] : memref<18x18x128xbf16, #tpu.memory_space<vmem>>, vector<16x18x128xbf16>
      tpu.vector_store %arg13[%c1, %c0_12, %c0_13], %13 {strides = array<i32>} : memref<18x18x128xbf16, #tpu.memory_space<vmem>>, vector<16x18x128xbf16>,
      %cst_14 = arith.constant 0.000000e+00 : bf16
      %15 = vector.broadcast %cst_14 : bf16 to vector<1x18x128xbf16>
      %c0_15 = arith.constant 0 : index
      %c0_16 = arith.constant 0 : index
      %c0_17 = arith.constant 0 : index
      %16 = vector.load %arg14[%c0_15, %c0_16, %c0_17] : memref<18x18x128xbf16, #tpu.memory_space<vmem>>, vector<1x18x128xbf16>
      tpu.vector_store %arg14[%c0_15, %c0_16, %c0_17], %15 {strides = array<i32>} : memref<18x18x128xbf16, #tpu.memory_space<vmem>>, vector<1x18x128xbf16>,
      %c17_18 = arith.constant 17 : index
      %c0_19 = arith.constant 0 : index
      %c0_20 = arith.constant 0 : index
      %17 = vector.load %arg14[%c17_18, %c0_19, %c0_20] : memref<18x18x128xbf16, #tpu.memory_space<vmem>>, vector<1x18x128xbf16>
      tpu.vector_store %arg14[%c17_18, %c0_19, %c0_20], %15 {strides = array<i32>} : memref<18x18x128xbf16, #tpu.memory_space<vmem>>, vector<1x18x128xbf16>,
    } else {
    }
    %c2_i32 = arith.constant 2 : i32
    %3 = arith.cmpi slt, %arg1, %c2_i32 : i32
    %4 = arith.extui %3 : i1 to i32
    %c0_i32_1 = arith.constant 0 : i32
    %5 = arith.cmpi ne, %4, %c0_i32_1 : i32
    scf.if %5 {
      %c8_i32 = arith.constant 8 : i32
      %9 = arith.muli %arg1, %c8_i32 : i32
      %cst = arith.constant 0.000000e+00 : f32
      %10 = vector.broadcast %cst : f32 to vector<128x128xf32>
      %c0_i32_4 = arith.constant 0 : i32
      %11 = arith.addi %9, %c0_i32_4 : i32
      %12 = arith.index_cast %11 : i32 to index
      %c0 = arith.constant 0 : index
      %c0_5 = arith.constant 0 : index
      %13 = vector.load %arg13[%12, %c0, %c0_5] : memref<18x18x128xbf16, #tpu.memory_space<vmem>>, vector<8x16x128xbf16>
      %14 = vector.shape_cast %13 : vector<8x16x128xbf16> to vector<128x128xbf16>
      %c0_6 = arith.constant 0 : index
      %c0_7 = arith.constant 0 : index
      %c0_8 = arith.constant 0 : index
      %c0_9 = arith.constant 0 : index
      %15 = vector.load %arg3[%c0_6, %c0_7, %c0_8, %c0_9] : memref<3x3x128x128xbf16, #tpu.memory_space<vmem>>, vector<1x1x128x128xbf16>
      %16 = vector.shape_cast %15 : vector<1x1x128x128xbf16> to vector<128x128xbf16>
      %cst_10 = arith.constant dense<0.000000e+00> : vector<128x128xf32>
      %17 = tpu.matmul %14, %16, %cst_10 {dimension_numbers = #tpu.dot_dimension_numbers<[1], [0], [0], [1], [0, 0, 1, 1], [], []>} : vector<128x128xbf16>, vector<128x128xbf16>, vector<128x128xf32> -> vector<128x128xf32>
      %18 = arith.addf %10, %17 : vector<128x128xf32>
      %c0_i32_11 = arith.constant 0 : i32
      %19 = arith.addi %9, %c0_i32_11 : i32
      %20 = arith.index_cast %19 : i32 to index
      %c1 = arith.constant 1 : index
      %c0_12 = arith.constant 0 : index
      %21 = vector.load %arg13[%20, %c1, %c0_12] : memref<18x18x128xbf16, #tpu.memory_space<vmem>>, vector<8x16x128xbf16>
      %22 = vector.shape_cast %21 : vector<8x16x128xbf16> to vector<128x128xbf16>
      %c0_13 = arith.constant 0 : index
      %c1_14 = arith.constant 1 : index
      %c0_15 = arith.constant 0 : index
      %c0_16 = arith.constant 0 : index
      %23 = vector.load %arg3[%c0_13, %c1_14, %c0_15, %c0_16] : memref<3x3x128x128xbf16, #tpu.memory_space<vmem>>, vector<1x1x128x128xbf16>
      %24 = vector.shape_cast %23 : vector<1x1x128x128xbf16> to vector<128x128xbf16>
      %cst_17 = arith.constant dense<0.000000e+00> : vector<128x128xf32>
      %25 = tpu.matmul %22, %24, %cst_17 {dimension_numbers = #tpu.dot_dimension_numbers<[1], [0], [0], [1], [0, 0, 1, 1], [], []>} : vector<128x128xbf16>, vector<128x128xbf16>, vector<128x128xf32> -> vector<128x128xf32>
      %26 = arith.addf %18, %25 : vector<128x128xf32>
      %c0_i32_18 = arith.constant 0 : i32
      %27 = arith.addi %9, %c0_i32_18 : i32
      %28 = arith.index_cast %27 : i32 to index
      %c2 = arith.constant 2 : index
      %c0_19 = arith.constant 0 : index
      %29 = vector.load %arg13[%28, %c2, %c0_19] : memref<18x18x128xbf16, #tpu.memory_space<vmem>>, vector<8x16x128xbf16>
      %30 = vector.shape_cast %29 : vector<8x16x128xbf16> to vector<128x128xbf16>
      %c0_20 = arith.constant 0 : index
      %c2_21 = arith.constant 2 : index
      %c0_22 = arith.constant 0 : index
      %c0_23 = arith.constant 0 : index
      %31 = vector.load %arg3[%c0_20, %c2_21, %c0_22, %c0_23] : memref<3x3x128x128xbf16, #tpu.memory_space<vmem>>, vector<1x1x128x128xbf16>
      %32 = vector.shape_cast %31 : vector<1x1x128x128xbf16> to vector<128x128xbf16>
      %cst_24 = arith.constant dense<0.000000e+00> : vector<128x128xf32>
      %33 = tpu.matmul %30, %32, %cst_24 {dimension_numbers = #tpu.dot_dimension_numbers<[1], [0], [0], [1], [0, 0, 1, 1], [], []>} : vector<128x128xbf16>, vector<128x128xbf16>, vector<128x128xf32> -> vector<128x128xf32>
      %34 = arith.addf %26, %33 : vector<128x128xf32>
      %c1_i32 = arith.constant 1 : i32
      %35 = arith.addi %9, %c1_i32 : i32
      %36 = arith.index_cast %35 : i32 to index
      %c0_25 = arith.constant 0 : index
      %c0_26 = arith.constant 0 : index
      %37 = vector.load %arg13[%36, %c0_25, %c0_26] : memref<18x18x128xbf16, #tpu.memory_space<vmem>>, vector<8x16x128xbf16>
      %38 = vector.shape_cast %37 : vector<8x16x128xbf16> to vector<128x128xbf16>
      %c1_27 = arith.constant 1 : index
      %c0_28 = arith.constant 0 : index
      %c0_29 = arith.constant 0 : index
      %c0_30 = arith.constant 0 : index
      %39 = vector.load %arg3[%c1_27, %c0_28, %c0_29, %c0_30] : memref<3x3x128x128xbf16, #tpu.memory_space<vmem>>, vector<1x1x128x128xbf16>
      %40 = vector.shape_cast %39 : vector<1x1x128x128xbf16> to vector<128x128xbf16>
      %cst_31 = arith.constant dense<0.000000e+00> : vector<128x128xf32>
      %41 = tpu.matmul %38, %40, %cst_31 {dimension_numbers = #tpu.dot_dimension_numbers<[1], [0], [0], [1], [0, 0, 1, 1], [], []>} : vector<128x128xbf16>, vector<128x128xbf16>, vector<128x128xf32> -> vector<128x128xf32>
      %42 = arith.addf %34, %41 : vector<128x128xf32>
      %c1_i32_32 = arith.constant 1 : i32
      %43 = arith.addi %9, %c1_i32_32 : i32
      %44 = arith.index_cast %43 : i32 to index
      %c1_33 = arith.constant 1 : index
      %c0_34 = arith.constant 0 : index
      %45 = vector.load %arg13[%44, %c1_33, %c0_34] : memref<18x18x128xbf16, #tpu.memory_space<vmem>>, vector<8x16x128xbf16>
      %46 = vector.shape_cast %45 : vector<8x16x128xbf16> to vector<128x128xbf16>
      %c1_35 = arith.constant 1 : index
      %c1_36 = arith.constant 1 : index
      %c0_37 = arith.constant 0 : index
      %c0_38 = arith.constant 0 : index
      %47 = vector.load %arg3[%c1_35, %c1_36, %c0_37, %c0_38] : memref<3x3x128x128xbf16, #tpu.memory_space<vmem>>, vector<1x1x128x128xbf16>
      %48 = vector.shape_cast %47 : vector<1x1x128x128xbf16> to vector<128x128xbf16>
      %cst_39 = arith.constant dense<0.000000e+00> : vector<128x128xf32>
      %49 = tpu.matmul %46, %48, %cst_39 {dimension_numbers = #tpu.dot_dimension_numbers<[1], [0], [0], [1], [0, 0, 1, 1], [], []>} : vector<128x128xbf16>, vector<128x128xbf16>, vector<128x128xf32> -> vector<128x128xf32>
      %50 = arith.addf %42, %49 : vector<128x128xf32>
      %c1_i32_40 = arith.constant 1 : i32
      %51 = arith.addi %9, %c1_i32_40 : i32
      %52 = arith.index_cast %51 : i32 to index
      %c2_41 = arith.constant 2 : index
      %c0_42 = arith.constant 0 : index
      %53 = vector.load %arg13[%52, %c2_41, %c0_42] : memref<18x18x128xbf16, #tpu.memory_space<vmem>>, vector<8x16x128xbf16>
      %54 = vector.shape_cast %53 : vector<8x16x128xbf16> to vector<128x128xbf16>
      %c1_43 = arith.constant 1 : index
      %c2_44 = arith.constant 2 : index
      %c0_45 = arith.constant 0 : index
      %c0_46 = arith.constant 0 : index
      %55 = vector.load %arg3[%c1_43, %c2_44, %c0_45, %c0_46] : memref<3x3x128x128xbf16, #tpu.memory_space<vmem>>, vector<1x1x128x128xbf16>
      %56 = vector.shape_cast %55 : vector<1x1x128x128xbf16> to vector<128x128xbf16>
      %cst_47 = arith.constant dense<0.000000e+00> : vector<128x128xf32>
      %57 = tpu.matmul %54, %56, %cst_47 {dimension_numbers = #tpu.dot_dimension_numbers<[1], [0], [0], [1], [0, 0, 1, 1], [], []>} : vector<128x128xbf16>, vector<128x128xbf16>, vector<128x128xf32> -> vector<128x128xf32>
      %58 = arith.addf %50, %57 : vector<128x128xf32>
      %c2_i32_48 = arith.constant 2 : i32
      %59 = arith.addi %9, %c2_i32_48 : i32
      %60 = arith.index_cast %59 : i32 to index
      %c0_49 = arith.constant 0 : index
      %c0_50 = arith.constant 0 : index
      %61 = vector.load %arg13[%60, %c0_49, %c0_50] : memref<18x18x128xbf16, #tpu.memory_space<vmem>>, vector<8x16x128xbf16>
      %62 = vector.shape_cast %61 : vector<8x16x128xbf16> to vector<128x128xbf16>
      %c2_51 = arith.constant 2 : index
      %c0_52 = arith.constant 0 : index
      %c0_53 = arith.constant 0 : index
      %c0_54 = arith.constant 0 : index
      %63 = vector.load %arg3[%c2_51, %c0_52, %c0_53, %c0_54] : memref<3x3x128x128xbf16, #tpu.memory_space<vmem>>, vector<1x1x128x128xbf16>
      %64 = vector.shape_cast %63 : vector<1x1x128x128xbf16> to vector<128x128xbf16>
      %cst_55 = arith.constant dense<0.000000e+00> : vector<128x128xf32>
      %65 = tpu.matmul %62, %64, %cst_55 {dimension_numbers = #tpu.dot_dimension_numbers<[1], [0], [0], [1], [0, 0, 1, 1], [], []>} : vector<128x128xbf16>, vector<128x128xbf16>, vector<128x128xf32> -> vector<128x128xf32>
      %66 = arith.addf %58, %65 : vector<128x128xf32>
      %c2_i32_56 = arith.constant 2 : i32
      %67 = arith.addi %9, %c2_i32_56 : i32
      %68 = arith.index_cast %67 : i32 to index
      %c1_57 = arith.constant 1 : index
      %c0_58 = arith.constant 0 : index
      %69 = vector.load %arg13[%68, %c1_57, %c0_58] : memref<18x18x128xbf16, #tpu.memory_space<vmem>>, vector<8x16x128xbf16>
      %70 = vector.shape_cast %69 : vector<8x16x128xbf16> to vector<128x128xbf16>
      %c2_59 = arith.constant 2 : index
      %c1_60 = arith.constant 1 : index
      %c0_61 = arith.constant 0 : index
      %c0_62 = arith.constant 0 : index
      %71 = vector.load %arg3[%c2_59, %c1_60, %c0_61, %c0_62] : memref<3x3x128x128xbf16, #tpu.memory_space<vmem>>, vector<1x1x128x128xbf16>
      %72 = vector.shape_cast %71 : vector<1x1x128x128xbf16> to vector<128x128xbf16>
      %cst_63 = arith.constant dense<0.000000e+00> : vector<128x128xf32>
      %73 = tpu.matmul %70, %72, %cst_63 {dimension_numbers = #tpu.dot_dimension_numbers<[1], [0], [0], [1], [0, 0, 1, 1], [], []>} : vector<128x128xbf16>, vector<128x128xbf16>, vector<128x128xf32> -> vector<128x128xf32>
      %74 = arith.addf %66, %73 : vector<128x128xf32>
      %c2_i32_64 = arith.constant 2 : i32
      %75 = arith.addi %9, %c2_i32_64 : i32
      %76 = arith.index_cast %75 : i32 to index
      %c2_65 = arith.constant 2 : index
      %c0_66 = arith.constant 0 : index
      %77 = vector.load %arg13[%76, %c2_65, %c0_66] : memref<18x18x128xbf16, #tpu.memory_space<vmem>>, vector<8x16x128xbf16>
      %78 = vector.shape_cast %77 : vector<8x16x128xbf16> to vector<128x128xbf16>
      %c2_67 = arith.constant 2 : index
      %c2_68 = arith.constant 2 : index
      %c0_69 = arith.constant 0 : index
      %c0_70 = arith.constant 0 : index
      %79 = vector.load %arg3[%c2_67, %c2_68, %c0_69, %c0_70] : memref<3x3x128x128xbf16, #tpu.memory_space<vmem>>, vector<1x1x128x128xbf16>
      %80 = vector.shape_cast %79 : vector<1x1x128x128xbf16> to vector<128x128xbf16>
      %cst_71 = arith.constant dense<0.000000e+00> : vector<128x128xf32>
      %81 = tpu.matmul %78, %80, %cst_71 {dimension_numbers = #tpu.dot_dimension_numbers<[1], [0], [0], [1], [0, 0, 1, 1], [], []>} : vector<128x128xbf16>, vector<128x128xbf16>, vector<128x128xf32> -> vector<128x128xf32>
      %82 = arith.addf %74, %81 : vector<128x128xf32>
      %c0_72 = arith.constant 0 : index
      %c0_73 = arith.constant 0 : index
      %83 = vector.load %arg4[%c0_72, %c0_73] : memref<1x128xf32, #tpu.memory_space<vmem>>, vector<1x128xf32>
      %84 = vector.broadcast %83 : vector<1x128xf32> to vector<128x128xf32>
      %85 = arith.mulf %82, %84 : vector<128x128xf32>
      %c0_74 = arith.constant 0 : index
      %c0_75 = arith.constant 0 : index
      %86 = vector.load %arg5[%c0_74, %c0_75] : memref<1x128xf32, #tpu.memory_space<vmem>>, vector<1x128xf32>
      %87 = vector.broadcast %86 : vector<1x128xf32> to vector<128x128xf32>
      %88 = arith.addf %85, %87 : vector<128x128xf32>
      %cst_76 = arith.constant 0.000000e+00 : f32
      %89 = vector.broadcast %cst_76 : f32 to vector<128x128xf32>
      %90 = arith.maximumf %88, %89 : vector<128x128xf32>
      %91 = vector.shape_cast %90 : vector<128x128xf32> to vector<8x16x128xf32>
      %cst_77 = arith.constant 0.000000e+00 : f32
      %92 = vector.broadcast %cst_77 : f32 to vector<8x1x128xf32>
      %93 = tpu.concatenate %92, %91, %92 in 1 : vector<8x1x128xf32>, vector<8x16x128xf32>, vector<8x1x128xf32> -> vector<8x18x128xf32>
      %94 = arith.truncf %93 : vector<8x18x128xf32> to vector<8x18x128xbf16>
      %c1_i32_78 = arith.constant 1 : i32
      %95 = arith.addi %9, %c1_i32_78 : i32
      %96 = arith.index_cast %95 : i32 to index
      %c0_79 = arith.constant 0 : index
      %c0_80 = arith.constant 0 : index
      %97 = vector.load %arg14[%96, %c0_79, %c0_80] : memref<18x18x128xbf16, #tpu.memory_space<vmem>>, vector<8x18x128xbf16>
      tpu.vector_store %arg14[%96, %c0_79, %c0_80], %94 {strides = array<i32>} : memref<18x18x128xbf16, #tpu.memory_space<vmem>>, vector<8x18x128xbf16>,
    } else {
    }
    %c0_i32_2 = arith.constant 0 : i32
    %6 = arith.cmpi sgt, %arg1, %c0_i32_2 : i32
    %7 = arith.extui %6 : i1 to i32
    %c0_i32_3 = arith.constant 0 : i32
    %8 = arith.cmpi ne, %7, %c0_i32_3 : i32
    scf.if %8 {
      %c1_i32 = arith.constant 1 : i32
      %9 = arith.subi %arg1, %c1_i32 : i32
      %c8_i32 = arith.constant 8 : i32
      %10 = arith.muli %9, %c8_i32 : i32
      %cst = arith.constant 0.000000e+00 : f32
      %11 = vector.broadcast %cst : f32 to vector<128x128xf32>
      %c0_i32_4 = arith.constant 0 : i32
      %12 = arith.addi %10, %c0_i32_4 : i32
      %13 = arith.index_cast %12 : i32 to index
      %c0 = arith.constant 0 : index
      %c0_5 = arith.constant 0 : index
      %14 = vector.load %arg14[%13, %c0, %c0_5] : memref<18x18x128xbf16, #tpu.memory_space<vmem>>, vector<8x16x128xbf16>
      %15 = vector.shape_cast %14 : vector<8x16x128xbf16> to vector<128x128xbf16>
      %c0_6 = arith.constant 0 : index
      %c0_7 = arith.constant 0 : index
      %c0_8 = arith.constant 0 : index
      %c0_9 = arith.constant 0 : index
      %16 = vector.load %arg6[%c0_6, %c0_7, %c0_8, %c0_9] : memref<3x3x128x128xbf16, #tpu.memory_space<vmem>>, vector<1x1x128x128xbf16>
      %17 = vector.shape_cast %16 : vector<1x1x128x128xbf16> to vector<128x128xbf16>
      %cst_10 = arith.constant dense<0.000000e+00> : vector<128x128xf32>
      %18 = tpu.matmul %15, %17, %cst_10 {dimension_numbers = #tpu.dot_dimension_numbers<[1], [0], [0], [1], [0, 0, 1, 1], [], []>} : vector<128x128xbf16>, vector<128x128xbf16>, vector<128x128xf32> -> vector<128x128xf32>
      %19 = arith.addf %11, %18 : vector<128x128xf32>
      %c0_i32_11 = arith.constant 0 : i32
      %20 = arith.addi %10, %c0_i32_11 : i32
      %21 = arith.index_cast %20 : i32 to index
      %c1 = arith.constant 1 : index
      %c0_12 = arith.constant 0 : index
      %22 = vector.load %arg14[%21, %c1, %c0_12] : memref<18x18x128xbf16, #tpu.memory_space<vmem>>, vector<8x16x128xbf16>
      %23 = vector.shape_cast %22 : vector<8x16x128xbf16> to vector<128x128xbf16>
      %c0_13 = arith.constant 0 : index
      %c1_14 = arith.constant 1 : index
      %c0_15 = arith.constant 0 : index
      %c0_16 = arith.constant 0 : index
      %24 = vector.load %arg6[%c0_13, %c1_14, %c0_15, %c0_16] : memref<3x3x128x128xbf16, #tpu.memory_space<vmem>>, vector<1x1x128x128xbf16>
      %25 = vector.shape_cast %24 : vector<1x1x128x128xbf16> to vector<128x128xbf16>
      %cst_17 = arith.constant dense<0.000000e+00> : vector<128x128xf32>
      %26 = tpu.matmul %23, %25, %cst_17 {dimension_numbers = #tpu.dot_dimension_numbers<[1], [0], [0], [1], [0, 0, 1, 1], [], []>} : vector<128x128xbf16>, vector<128x128xbf16>, vector<128x128xf32> -> vector<128x128xf32>
      %27 = arith.addf %19, %26 : vector<128x128xf32>
      %c0_i32_18 = arith.constant 0 : i32
      %28 = arith.addi %10, %c0_i32_18 : i32
      %29 = arith.index_cast %28 : i32 to index
      %c2 = arith.constant 2 : index
      %c0_19 = arith.constant 0 : index
      %30 = vector.load %arg14[%29, %c2, %c0_19] : memref<18x18x128xbf16, #tpu.memory_space<vmem>>, vector<8x16x128xbf16>
      %31 = vector.shape_cast %30 : vector<8x16x128xbf16> to vector<128x128xbf16>
      %c0_20 = arith.constant 0 : index
      %c2_21 = arith.constant 2 : index
      %c0_22 = arith.constant 0 : index
      %c0_23 = arith.constant 0 : index
      %32 = vector.load %arg6[%c0_20, %c2_21, %c0_22, %c0_23] : memref<3x3x128x128xbf16, #tpu.memory_space<vmem>>, vector<1x1x128x128xbf16>
      %33 = vector.shape_cast %32 : vector<1x1x128x128xbf16> to vector<128x128xbf16>
      %cst_24 = arith.constant dense<0.000000e+00> : vector<128x128xf32>
      %34 = tpu.matmul %31, %33, %cst_24 {dimension_numbers = #tpu.dot_dimension_numbers<[1], [0], [0], [1], [0, 0, 1, 1], [], []>} : vector<128x128xbf16>, vector<128x128xbf16>, vector<128x128xf32> -> vector<128x128xf32>
      %35 = arith.addf %27, %34 : vector<128x128xf32>
      %c1_i32_25 = arith.constant 1 : i32
      %36 = arith.addi %10, %c1_i32_25 : i32
      %37 = arith.index_cast %36 : i32 to index
      %c0_26 = arith.constant 0 : index
      %c0_27 = arith.constant 0 : index
      %38 = vector.load %arg14[%37, %c0_26, %c0_27] : memref<18x18x128xbf16, #tpu.memory_space<vmem>>, vector<8x16x128xbf16>
      %39 = vector.shape_cast %38 : vector<8x16x128xbf16> to vector<128x128xbf16>
      %c1_28 = arith.constant 1 : index
      %c0_29 = arith.constant 0 : index
      %c0_30 = arith.constant 0 : index
      %c0_31 = arith.constant 0 : index
      %40 = vector.load %arg6[%c1_28, %c0_29, %c0_30, %c0_31] : memref<3x3x128x128xbf16, #tpu.memory_space<vmem>>, vector<1x1x128x128xbf16>
      %41 = vector.shape_cast %40 : vector<1x1x128x128xbf16> to vector<128x128xbf16>
      %cst_32 = arith.constant dense<0.000000e+00> : vector<128x128xf32>
      %42 = tpu.matmul %39, %41, %cst_32 {dimension_numbers = #tpu.dot_dimension_numbers<[1], [0], [0], [1], [0, 0, 1, 1], [], []>} : vector<128x128xbf16>, vector<128x128xbf16>, vector<128x128xf32> -> vector<128x128xf32>
      %43 = arith.addf %35, %42 : vector<128x128xf32>
      %c1_i32_33 = arith.constant 1 : i32
      %44 = arith.addi %10, %c1_i32_33 : i32
      %45 = arith.index_cast %44 : i32 to index
      %c1_34 = arith.constant 1 : index
      %c0_35 = arith.constant 0 : index
      %46 = vector.load %arg14[%45, %c1_34, %c0_35] : memref<18x18x128xbf16, #tpu.memory_space<vmem>>, vector<8x16x128xbf16>
      %47 = vector.shape_cast %46 : vector<8x16x128xbf16> to vector<128x128xbf16>
      %c1_36 = arith.constant 1 : index
      %c1_37 = arith.constant 1 : index
      %c0_38 = arith.constant 0 : index
      %c0_39 = arith.constant 0 : index
      %48 = vector.load %arg6[%c1_36, %c1_37, %c0_38, %c0_39] : memref<3x3x128x128xbf16, #tpu.memory_space<vmem>>, vector<1x1x128x128xbf16>
      %49 = vector.shape_cast %48 : vector<1x1x128x128xbf16> to vector<128x128xbf16>
      %cst_40 = arith.constant dense<0.000000e+00> : vector<128x128xf32>
      %50 = tpu.matmul %47, %49, %cst_40 {dimension_numbers = #tpu.dot_dimension_numbers<[1], [0], [0], [1], [0, 0, 1, 1], [], []>} : vector<128x128xbf16>, vector<128x128xbf16>, vector<128x128xf32> -> vector<128x128xf32>
      %51 = arith.addf %43, %50 : vector<128x128xf32>
      %c1_i32_41 = arith.constant 1 : i32
      %52 = arith.addi %10, %c1_i32_41 : i32
      %53 = arith.index_cast %52 : i32 to index
      %c2_42 = arith.constant 2 : index
      %c0_43 = arith.constant 0 : index
      %54 = vector.load %arg14[%53, %c2_42, %c0_43] : memref<18x18x128xbf16, #tpu.memory_space<vmem>>, vector<8x16x128xbf16>
      %55 = vector.shape_cast %54 : vector<8x16x128xbf16> to vector<128x128xbf16>
      %c1_44 = arith.constant 1 : index
      %c2_45 = arith.constant 2 : index
      %c0_46 = arith.constant 0 : index
      %c0_47 = arith.constant 0 : index
      %56 = vector.load %arg6[%c1_44, %c2_45, %c0_46, %c0_47] : memref<3x3x128x128xbf16, #tpu.memory_space<vmem>>, vector<1x1x128x128xbf16>
      %57 = vector.shape_cast %56 : vector<1x1x128x128xbf16> to vector<128x128xbf16>
      %cst_48 = arith.constant dense<0.000000e+00> : vector<128x128xf32>
      %58 = tpu.matmul %55, %57, %cst_48 {dimension_numbers = #tpu.dot_dimension_numbers<[1], [0], [0], [1], [0, 0, 1, 1], [], []>} : vector<128x128xbf16>, vector<128x128xbf16>, vector<128x128xf32> -> vector<128x128xf32>
      %59 = arith.addf %51, %58 : vector<128x128xf32>
      %c2_i32_49 = arith.constant 2 : i32
      %60 = arith.addi %10, %c2_i32_49 : i32
      %61 = arith.index_cast %60 : i32 to index
      %c0_50 = arith.constant 0 : index
      %c0_51 = arith.constant 0 : index
      %62 = vector.load %arg14[%61, %c0_50, %c0_51] : memref<18x18x128xbf16, #tpu.memory_space<vmem>>, vector<8x16x128xbf16>
      %63 = vector.shape_cast %62 : vector<8x16x128xbf16> to vector<128x128xbf16>
      %c2_52 = arith.constant 2 : index
      %c0_53 = arith.constant 0 : index
      %c0_54 = arith.constant 0 : index
      %c0_55 = arith.constant 0 : index
      %64 = vector.load %arg6[%c2_52, %c0_53, %c0_54, %c0_55] : memref<3x3x128x128xbf16, #tpu.memory_space<vmem>>, vector<1x1x128x128xbf16>
      %65 = vector.shape_cast %64 : vector<1x1x128x128xbf16> to vector<128x128xbf16>
      %cst_56 = arith.constant dense<0.000000e+00> : vector<128x128xf32>
      %66 = tpu.matmul %63, %65, %cst_56 {dimension_numbers = #tpu.dot_dimension_numbers<[1], [0], [0], [1], [0, 0, 1, 1], [], []>} : vector<128x128xbf16>, vector<128x128xbf16>, vector<128x128xf32> -> vector<128x128xf32>
      %67 = arith.addf %59, %66 : vector<128x128xf32>
      %c2_i32_57 = arith.constant 2 : i32
      %68 = arith.addi %10, %c2_i32_57 : i32
      %69 = arith.index_cast %68 : i32 to index
      %c1_58 = arith.constant 1 : index
      %c0_59 = arith.constant 0 : index
      %70 = vector.load %arg14[%69, %c1_58, %c0_59] : memref<18x18x128xbf16, #tpu.memory_space<vmem>>, vector<8x16x128xbf16>
      %71 = vector.shape_cast %70 : vector<8x16x128xbf16> to vector<128x128xbf16>
      %c2_60 = arith.constant 2 : index
      %c1_61 = arith.constant 1 : index
      %c0_62 = arith.constant 0 : index
      %c0_63 = arith.constant 0 : index
      %72 = vector.load %arg6[%c2_60, %c1_61, %c0_62, %c0_63] : memref<3x3x128x128xbf16, #tpu.memory_space<vmem>>, vector<1x1x128x128xbf16>
      %73 = vector.shape_cast %72 : vector<1x1x128x128xbf16> to vector<128x128xbf16>
      %cst_64 = arith.constant dense<0.000000e+00> : vector<128x128xf32>
      %74 = tpu.matmul %71, %73, %cst_64 {dimension_numbers = #tpu.dot_dimension_numbers<[1], [0], [0], [1], [0, 0, 1, 1], [], []>} : vector<128x128xbf16>, vector<128x128xbf16>, vector<128x128xf32> -> vector<128x128xf32>
      %75 = arith.addf %67, %74 : vector<128x128xf32>
      %c2_i32_65 = arith.constant 2 : i32
      %76 = arith.addi %10, %c2_i32_65 : i32
      %77 = arith.index_cast %76 : i32 to index
      %c2_66 = arith.constant 2 : index
      %c0_67 = arith.constant 0 : index
      %78 = vector.load %arg14[%77, %c2_66, %c0_67] : memref<18x18x128xbf16, #tpu.memory_space<vmem>>, vector<8x16x128xbf16>
      %79 = vector.shape_cast %78 : vector<8x16x128xbf16> to vector<128x128xbf16>
      %c2_68 = arith.constant 2 : index
      %c2_69 = arith.constant 2 : index
      %c0_70 = arith.constant 0 : index
      %c0_71 = arith.constant 0 : index
      %80 = vector.load %arg6[%c2_68, %c2_69, %c0_70, %c0_71] : memref<3x3x128x128xbf16, #tpu.memory_space<vmem>>, vector<1x1x128x128xbf16>
      %81 = vector.shape_cast %80 : vector<1x1x128x128xbf16> to vector<128x128xbf16>
      %cst_72 = arith.constant dense<0.000000e+00> : vector<128x128xf32>
      %82 = tpu.matmul %79, %81, %cst_72 {dimension_numbers = #tpu.dot_dimension_numbers<[1], [0], [0], [1], [0, 0, 1, 1], [], []>} : vector<128x128xbf16>, vector<128x128xbf16>, vector<128x128xf32> -> vector<128x128xf32>
      %83 = arith.addf %75, %82 : vector<128x128xf32>
      %c0_73 = arith.constant 0 : index
      %c0_74 = arith.constant 0 : index
      %84 = vector.load %arg7[%c0_73, %c0_74] : memref<1x128xf32, #tpu.memory_space<vmem>>, vector<1x128xf32>
      %85 = vector.broadcast %84 : vector<1x128xf32> to vector<128x128xf32>
      %86 = arith.mulf %83, %85 : vector<128x128xf32>
      %c0_75 = arith.constant 0 : index
      %c0_76 = arith.constant 0 : index
      %87 = vector.load %arg8[%c0_75, %c0_76] : memref<1x128xf32, #tpu.memory_space<vmem>>, vector<1x128xf32>
      %88 = vector.broadcast %87 : vector<1x128xf32> to vector<128x128xf32>
      %89 = arith.addf %86, %88 : vector<128x128xf32>
      %c1_i32_77 = arith.constant 1 : i32
      %90 = arith.addi %10, %c1_i32_77 : i32
      %91 = arith.index_cast %90 : i32 to index
      %c1_78 = arith.constant 1 : index
      %c0_79 = arith.constant 0 : index
      %92 = vector.load %arg13[%91, %c1_78, %c0_79] : memref<18x18x128xbf16, #tpu.memory_space<vmem>>, vector<8x16x128xbf16>
      %93 = vector.shape_cast %92 : vector<8x16x128xbf16> to vector<128x128xbf16>
      %c0_80 = arith.constant 0 : index
      %c0_81 = arith.constant 0 : index
      %94 = vector.load %arg9[%c0_80, %c0_81] : memref<128x128xbf16, #tpu.memory_space<vmem>>, vector<128x128xbf16>
      %cst_82 = arith.constant dense<0.000000e+00> : vector<128x128xf32>
      %95 = tpu.matmul %93, %94, %cst_82 {dimension_numbers = #tpu.dot_dimension_numbers<[1], [0], [0], [1], [0, 0, 1, 1], [], []>} : vector<128x128xbf16>, vector<128x128xbf16>, vector<128x128xf32> -> vector<128x128xf32>
      %c0_83 = arith.constant 0 : index
      %c0_84 = arith.constant 0 : index
      %96 = vector.load %arg10[%c0_83, %c0_84] : memref<1x128xf32, #tpu.memory_space<vmem>>, vector<1x128xf32>
      %97 = vector.broadcast %96 : vector<1x128xf32> to vector<128x128xf32>
      %98 = arith.mulf %95, %97 : vector<128x128xf32>
      %c0_85 = arith.constant 0 : index
      %c0_86 = arith.constant 0 : index
      %99 = vector.load %arg11[%c0_85, %c0_86] : memref<1x128xf32, #tpu.memory_space<vmem>>, vector<1x128xf32>
      %100 = vector.broadcast %99 : vector<1x128xf32> to vector<128x128xf32>
      %101 = arith.addf %98, %100 : vector<128x128xf32>
      %102 = arith.addf %89, %101 : vector<128x128xf32>
      %cst_87 = arith.constant 0.000000e+00 : f32
      %103 = vector.broadcast %cst_87 : f32 to vector<128x128xf32>
      %104 = arith.maximumf %102, %103 : vector<128x128xf32>
      %105 = vector.shape_cast %104 : vector<128x128xf32> to vector<8x16x128xf32>
      %106 = arith.truncf %105 : vector<8x16x128xf32> to vector<8x16x128xbf16>
      %c0_88 = arith.constant 0 : index
      %c0_89 = arith.constant 0 : index
      %c0_90 = arith.constant 0 : index
      %c0_91 = arith.constant 0 : index
      %107 = vector.load %arg12[%c0_88, %c0_89, %c0_90, %c0_91] : memref<1x8x16x128xbf16, #tpu.memory_space<vmem>>, vector<1x8x16x128xbf16>
      %108 = vector.shape_cast %107 : vector<1x8x16x128xbf16> to vector<8x16x128xbf16>
      %109 = vector.shape_cast %106 : vector<8x16x128xbf16> to vector<1x8x16x128xbf16>
      tpu.vector_store %arg12[%c0_88, %c0_89, %c0_90, %c0_91], %109 {strides = array<i32>} : memref<1x8x16x128xbf16, #tpu.memory_space<vmem>>, vector<1x8x16x128xbf16>,
    } else {
    }
    return
  }
  func.func @transform_0(%arg0: i32, %arg1: i32) -> (i32, i32, i32, i32) {
    %c0_i32 = arith.constant 0 : i32
    %c0_i32_0 = arith.constant 0 : i32
    %c0_i32_1 = arith.constant 0 : i32
    %c0_i32_2 = arith.constant 0 : i32
    return %arg0, %c0_i32, %c0_i32_0, %c0_i32_1 : i32, i32, i32, i32
  }
  func.func @transform_1(%arg0: i32, %arg1: i32) -> (i32, i32, i32, i32) {
    %c0_i32 = arith.constant 0 : i32
    %c0_i32_0 = arith.constant 0 : i32
    %c0_i32_1 = arith.constant 0 : i32
    %c0_i32_2 = arith.constant 0 : i32
    %c0_i32_3 = arith.constant 0 : i32
    return %c0_i32, %c0_i32_0, %c0_i32_1, %c0_i32_2 : i32, i32, i32, i32
  }
  func.func @transform_2(%arg0: i32, %arg1: i32) -> (i32, i32) {
    %c0_i32 = arith.constant 0 : i32
    %c0_i32_0 = arith.constant 0 : i32
    %c0_i32_1 = arith.constant 0 : i32
    return %c0_i32, %c0_i32_0 : i32, i32
  }
  func.func @transform_3(%arg0: i32, %arg1: i32) -> (i32, i32) {
    %c0_i32 = arith.constant 0 : i32
    %c0_i32_0 = arith.constant 0 : i32
    %c0_i32_1 = arith.constant 0 : i32
    return %c0_i32, %c0_i32_0 : i32, i32
  }
  func.func @transform_4(%arg0: i32, %arg1: i32) -> (i32, i32, i32, i32) {
    %c0_i32 = arith.constant 0 : i32
    %c0_i32_0 = arith.constant 0 : i32
    %c0_i32_1 = arith.constant 0 : i32
    %c0_i32_2 = arith.constant 0 : i32
    %c0_i32_3 = arith.constant 0 : i32
    return %c0_i32, %c0_i32_0, %c0_i32_1, %c0_i32_2 : i32, i32, i32, i32
  }
  func.func @transform_5(%arg0: i32, %arg1: i32) -> (i32, i32) {
    %c0_i32 = arith.constant 0 : i32
    %c0_i32_0 = arith.constant 0 : i32
    %c0_i32_1 = arith.constant 0 : i32
    return %c0_i32, %c0_i32_0 : i32, i32
  }
  func.func @transform_6(%arg0: i32, %arg1: i32) -> (i32, i32) {
    %c0_i32 = arith.constant 0 : i32
    %c0_i32_0 = arith.constant 0 : i32
    %c0_i32_1 = arith.constant 0 : i32
    return %c0_i32, %c0_i32_0 : i32, i32
  }
  func.func @transform_7(%arg0: i32, %arg1: i32) -> (i32, i32) {
    %c0_i32 = arith.constant 0 : i32
    %c0_i32_0 = arith.constant 0 : i32
    %c0_i32_1 = arith.constant 0 : i32
    return %c0_i32, %c0_i32_0 : i32, i32
  }
  func.func @transform_8(%arg0: i32, %arg1: i32) -> (i32, i32) {
    %c0_i32 = arith.constant 0 : i32
    %c0_i32_0 = arith.constant 0 : i32
    %c0_i32_1 = arith.constant 0 : i32
    return %c0_i32, %c0_i32_0 : i32, i32
  }
  func.func @transform_9(%arg0: i32, %arg1: i32) -> (i32, i32) {
    %c0_i32 = arith.constant 0 : i32
    %c0_i32_0 = arith.constant 0 : i32
    %c0_i32_1 = arith.constant 0 : i32
    return %c0_i32, %c0_i32_0 : i32, i32
  }
  func.func @transform_10(%arg0: i32, %arg1: i32) -> (i32, i32, i32, i32) {
    %c1_i32 = arith.constant 1 : i32
    %0 = arith.subi %arg1, %c1_i32 : i32
    %c0_i32 = arith.constant 0 : i32
    %1 = arith.maxsi %0, %c0_i32 : i32
    %c0_i32_0 = arith.constant 0 : i32
    %c0_i32_1 = arith.constant 0 : i32
    %c0_i32_2 = arith.constant 0 : i32
    return %arg0, %1, %c0_i32_0, %c0_i32_1 : i32, i32, i32, i32
  }
}

</mosaic_0001>

<llo_original>
// kernel: tpu_custom_call.1
$region0: #{tpu_custom_call.1}
  #allocation0 [shape = 'u32[]', space=smem, size = 0x4, offset = 0x4, fixed_abs, tag = 'smem constant byte address 0x4 - core index']
  #allocation1 [shape = 'u32[144,128]{1,0:T(1,128)}', space=vmem, size = 0x12000, scoped, tag = 'internal scratch']
  #allocation2 [shape = 'bf16[18,18,128]{2,1,0:T(8,128)(2,1)}', space=vmem, size = 0x1b000, scoped, tag = 'scratch operand']
  #allocation3 [shape = 'bf16[18,18,128]{2,1,0:T(8,128)(2,1)}', space=vmem, size = 0x1b000, scoped, tag = 'scratch operand']
  %s0 = inlined_call_operand.vmem [shape: bf16[2,16,18,128], index: 0, kind: input, shape index: {}]
  %s1 = inlined_call_operand.vmem [shape: bf16[3,3,128,128], index: 1, kind: input, shape index: {}]
  %s2 = inlined_call_operand.vmem [shape: f32[1,128], index: 2, kind: input, shape index: {}]
  %s3 = inlined_call_operand.vmem [shape: f32[1,128], index: 3, kind: input, shape index: {}]
  %s4 = inlined_call_operand.hbm [shape: bf16[3,3,128,128], index: 4, kind: input, shape index: {}]
  %s5 = inlined_call_operand.vmem [shape: f32[1,128], index: 5, kind: input, shape index: {}]
  %s6 = inlined_call_operand.vmem [shape: f32[1,128], index: 6, kind: input, shape index: {}]
  %s7 = inlined_call_operand.vmem [shape: bf16[128,128], index: 7, kind: input, shape index: {}]
  %s8 = inlined_call_operand.vmem [shape: f32[1,128], index: 8, kind: input, shape index: {}]
  %s9 = inlined_call_operand.vmem [shape: f32[1,128], index: 9, kind: input, shape index: {}]
  %s10 = inlined_call_operand.hbm [shape: bf16[2,16,16,128], index: 10, kind: output, shape index: {}]
  %s11 = sld [smem:[#allocation0]]
  $region89: #{tpu_custom_call.1} parent=0
    _
  %s13 = ssub.s32 1, %s11
  %s14 = scalar_select 0, %s13, %s11
  $region1: #{tpu_custom_call.1} parent=0
    #allocation4 [shape = 'u8[294912]{0}', space=vmem, size = 0x48000, scoped, tag = 'input window, operand 4, single buffered']
    #allocation5 [shape = 's32[2]{0}', space=sflag, size = 0x8, scoped, tag = 'scoped memory for tpu_custom_call.1']
    #allocation6 [shape = 's32[2]{0}', space=sflag, size = 0x8, scoped, tag = 'scoped memory for tpu_custom_call.1']
    #allocation7 [shape = 'u8[65536]{0}', space=vmem, size = 0x10000, scoped, tag = 'output window, operand 0']
    %15 = vsyncpa [#allocation5], 0
    %16 = vsyncpa [#allocation6], 0
    %s17 = scalar_lea.sflag [#allocation6], 1
    %18 = vsyncpa %s17, 0
    loop: start=0, step=1, limit=8
    $region2: #{tpu_custom_call.1} parent=1 // loop_pre_header
      _
    $region3: #{tpu_custom_call.1} parent=1 // loop_header
      %s20 = sphi 0, %s24
      %p21 = scmp.ge.s32.totalorder %s20, 8
      %s27 = sphi 0, %s39
      %s28 = sphi 0, %s35
      %s29 = sphi 0, %s27
      %s30 = sphi 0, %s28
      %s31 = sphi 0, %s29
      %s32 = sphi 0, %s30
      %s42 = sphi 0, %s44
      %s45 = sphi 0, %s42
      %s46 = sphi 0, %s45
      %s62 = sphi 0, %s46
      %s66 = sphi 0, %s66
      %s68 = sphi 0, %s66
      %s69 = sphi 0, %s68
      %s83 = sphi 0, %s69
      %s87 = sphi 0, %s87
      %s89 = sphi 0, %s87
      %s90 = sphi 0, %s89
      %s104 = sphi 0, %s90
      %s108 = sphi 0, %s108
      %s110 = sphi 0, %s108
      %s111 = sphi 0, %s110
      %s125 = sphi 0, %s111
      %s129 = sphi 0, %s129
      %s131 = sphi 0, %s129
      %s132 = sphi 0, %s131
      %s146 = sphi 0, %s132
      %s150 = sphi 0, %s150
      %s152 = sphi 0, %s150
      %s153 = sphi 0, %s152
      %s167 = sphi 0, %s153
      %s171 = sphi 0, %s171
      %s173 = sphi 0, %s171
      %s174 = sphi 0, %s173
      %s188 = sphi 0, %s174
      %s192 = sphi 0, %s192
      %s194 = sphi 0, %s192
      %s195 = sphi 0, %s194
      %s209 = sphi 0, %s195
      %s213 = sphi 0, %s213
      %s215 = sphi 0, %s213
      %s216 = sphi 0, %s215
      %s230 = sphi 0, %s216
      %s234 = sphi 0, %s234
      %s236 = sphi 0, %s234
      %s237 = sphi 0, %s236
      %s251 = sphi 0, %s237
      %s265 = sphi 0, %s267
      %s268 = sphi 0, %s265
      %s269 = sphi 0, %s268
      %s285 = sphi 0, %s269
    $region4: #{tpu_custom_call.1} parent=1 // loop_header_branch
      %23 = sbr.rel (%p21) target = $region8
    $region5: #{tpu_custom_call.1} parent=1 // loop_body
      %s25 = ssub.s32 %s20, 1
      %s26 = ssub.s32 %s20, 2
      %s33 = sadd.s32 1, %s28
      %p34 = scmp.ge.s32.totalorder %s33, 3
      %s35 = scalar_select %p34, 0, %s33
      %s36 = sadd.s32 1, %s27
      %s37 = scalar_select %p34, %s36, %s27
      %p38 = scmp.ge.s32.totalorder %s37, 2
      %s39 = scalar_select %p38, 0, %s37
      %s40 = ssub.s32 %s27, %s39
      %p41 = scmp.eq.s32.totalorder %s40, 0
      %s43 = sadd.s32 %s42, 1
      %s44 = scalar_select %p41, %s42, %s43
      %p47 = pneg %p41
      %p48 = scmp.eq.s32.totalorder %s20, 5
      %p49 = por %p47, %p48
      %p50 = scmp.ne.s32.totalorder %s42, %s45
      %p51 = scmp.eq.s32.totalorder %s20, 0
      %p52 = por %p50, %p51
      %p53 = scmp.ne.s32.totalorder %s42, %s45
      %p54 = scmp.eq.s32.totalorder %s25, 5
      %p55 = por %p53, %p54
      %p56 = scmp.ne.s32.totalorder %s45, %s46
      %p57 = scmp.eq.s32.totalorder %s25, 0
      %p58 = por %p56, %p57
      %p59 = scmp.ne.s32.totalorder %s45, %s46
      %p60 = scmp.eq.s32.totalorder %s26, 5
      %p61 = por %p59, %p60
      %p63 = scmp.ne.s32.totalorder %s46, %s62
      %p64 = scmp.eq.s32.totalorder %s26, 0
      %p65 = por %p63, %p64
      %s67 = sadd.s32 %s66, 1
      %p70 = scmp.eq.s32.totalorder %s20, 5
      %p71 = scmp.ne.s32.totalorder %s66, %s68
      %p72 = scmp.eq.s32.totalorder %s20, 0
      %p73 = por %p71, %p72
      %p74 = scmp.ne.s32.totalorder %s66, %s68
      %p75 = scmp.eq.s32.totalorder %s25, 5
      %p76 = por %p74, %p75
      %p77 = scmp.ne.s32.totalorder %s68, %s69
      %p78 = scmp.eq.s32.totalorder %s25, 0
      %p79 = por %p77, %p78
      %p80 = scmp.ne.s32.totalorder %s68, %s69
      %p81 = scmp.eq.s32.totalorder %s26, 5
      %p82 = por %p80, %p81
      %p84 = scmp.ne.s32.totalorder %s69, %s83
      %p85 = scmp.eq.s32.totalorder %s26, 0
      %p86 = por %p84, %p85
      %s88 = sadd.s32 %s87, 1
      %p91 = scmp.eq.s32.totalorder %s20, 5
      %p92 = scmp.ne.s32.totalorder %s87, %s89
      %p93 = scmp.eq.s32.totalorder %s20, 0
      %p94 = por %p92, %p93
      %p95 = scmp.ne.s32.totalorder %s87, %s89
      %p96 = scmp.eq.s32.totalorder %s25, 5
      %p97 = por %p95, %p96
      %p98 = scmp.ne.s32.totalorder %s89, %s90
      %p99 = scmp.eq.s32.totalorder %s25, 0
      %p100 = por %p98, %p99
      %p101 = scmp.ne.s32.totalorder %s89, %s90
      %p102 = scmp.eq.s32.totalorder %s26, 5
      %p103 = por %p101, %p102
      %p105 = scmp.ne.s32.totalorder %s90, %s104
      %p106 = scmp.eq.s32.totalorder %s26, 0
      %p107 = por %p105, %p106
      %s109 = sadd.s32 %s108, 1
      %p112 = scmp.eq.s32.totalorder %s20, 5
      %p113 = scmp.ne.s32.totalorder %s108, %s110
      %p114 = scmp.eq.s32.totalorder %s20, 0
      %p115 = por %p113, %p114
      %p116 = scmp.ne.s32.totalorder %s108, %s110
      %p117 = scmp.eq.s32.totalorder %s25, 5
      %p118 = por %p116, %p117
      %p119 = scmp.ne.s32.totalorder %s110, %s111
      %p120 = scmp.eq.s32.totalorder %s25, 0
      %p121 = por %p119, %p120
      %p122 = scmp.ne.s32.totalorder %s110, %s111
      %p123 = scmp.eq.s32.totalorder %s26, 5
      %p124 = por %p122, %p123
      %p126 = scmp.ne.s32.totalorder %s111, %s125
      %p127 = scmp.eq.s32.totalorder %s26, 0
      %p128 = por %p126, %p127
      %s130 = sadd.s32 %s129, 1
      %p133 = scmp.eq.s32.totalorder %s20, 5
      %p134 = scmp.ne.s32.totalorder %s129, %s131
      %p135 = scmp.eq.s32.totalorder %s20, 0
      %p136 = por %p134, %p135
      %p137 = scmp.ne.s32.totalorder %s129, %s131
      %p138 = scmp.eq.s32.totalorder %s25, 5
      %p139 = por %p137, %p138
      %p140 = scmp.ne.s32.totalorder %s131, %s132
      %p141 = scmp.eq.s32.totalorder %s25, 0
      %p142 = por %p140, %p141
      %p143 = scmp.ne.s32.totalorder %s131, %s132
      %p144 = scmp.eq.s32.totalorder %s26, 5
      %p145 = por %p143, %p144
      %p147 = scmp.ne.s32.totalorder %s132, %s146
      %p148 = scmp.eq.s32.totalorder %s26, 0
      %p149 = por %p147, %p148
      %s151 = sadd.s32 %s150, 1
      %p154 = scmp.eq.s32.totalorder %s20, 5
      %p155 = scmp.ne.s32.totalorder %s150, %s152
      %p156 = scmp.eq.s32.totalorder %s20, 0
      %p157 = por %p155, %p156
      %p158 = scmp.ne.s32.totalorder %s150, %s152
      %p159 = scmp.eq.s32.totalorder %s25, 5
      %p160 = por %p158, %p159
      %p161 = scmp.ne.s32.totalorder %s152, %s153
      %p162 = scmp.eq.s32.totalorder %s25, 0
      %p163 = por %p161, %p162
      %p164 = scmp.ne.s32.totalorder %s152, %s153
      %p165 = scmp.eq.s32.totalorder %s26, 5
      %p166 = por %p164, %p165
      %p168 = scmp.ne.s32.totalorder %s153, %s167
      %p169 = scmp.eq.s32.totalorder %s26, 0
      %p170 = por %p168, %p169
      %s172 = sadd.s32 %s171, 1
      %p175 = scmp.eq.s32.totalorder %s20, 5
      %p176 = scmp.ne.s32.totalorder %s171, %s173
      %p177 = scmp.eq.s32.totalorder %s20, 0
      %p178 = por %p176, %p177
      %p179 = scmp.ne.s32.totalorder %s171, %s173
      %p180 = scmp.eq.s32.totalorder %s25, 5
      %p181 = por %p179, %p180
      %p182 = scmp.ne.s32.totalorder %s173, %s174
      %p183 = scmp.eq.s32.totalorder %s25, 0
      %p184 = por %p182, %p183
      %p185 = scmp.ne.s32.totalorder %s173, %s174
      %p186 = scmp.eq.s32.totalorder %s26, 5
      %p187 = por %p185, %p186
      %p189 = scmp.ne.s32.totalorder %s174, %s188
      %p190 = scmp.eq.s32.totalorder %s26, 0
      %p191 = por %p189, %p190
      %s193 = sadd.s32 %s192, 1
      %p196 = scmp.eq.s32.totalorder %s20, 5
      %p197 = scmp.ne.s32.totalorder %s192, %s194
      %p198 = scmp.eq.s32.totalorder %s20, 0
      %p199 = por %p197, %p198
      %p200 = scmp.ne.s32.totalorder %s192, %s194
      %p201 = scmp.eq.s32.totalorder %s25, 5
      %p202 = por %p200, %p201
      %p203 = scmp.ne.s32.totalorder %s194, %s195
      %p204 = scmp.eq.s32.totalorder %s25, 0
      %p205 = por %p203, %p204
      %p206 = scmp.ne.s32.totalorder %s194, %s195
      %p207 = scmp.eq.s32.totalorder %s26, 5
      %p208 = por %p206, %p207
      %p210 = scmp.ne.s32.totalorder %s195, %s209
      %p211 = scmp.eq.s32.totalorder %s26, 0
      %p212 = por %p210, %p211
      %s214 = sadd.s32 %s213, 1
      %p217 = scmp.eq.s32.totalorder %s20, 5
      %p218 = scmp.ne.s32.totalorder %s213, %s215
      %p219 = scmp.eq.s32.totalorder %s20, 0
      %p220 = por %p218, %p219
      %p221 = scmp.ne.s32.totalorder %s213, %s215
      %p222 = scmp.eq.s32.totalorder %s25, 5
      %p223 = por %p221, %p222
      %p224 = scmp.ne.s32.totalorder %s215, %s216
      %p225 = scmp.eq.s32.totalorder %s25, 0
      %p226 = por %p224, %p225
      %p227 = scmp.ne.s32.totalorder %s215, %s216
      %p228 = scmp.eq.s32.totalorder %s26, 5
      %p229 = por %p227, %p228
      %p231 = scmp.ne.s32.totalorder %s216, %s230
      %p232 = scmp.eq.s32.totalorder %s26, 0
      %p233 = por %p231, %p232
      %s235 = sadd.s32 %s234, 1
      %p238 = scmp.eq.s32.totalorder %s20, 5
      %p239 = scmp.ne.s32.totalorder %s234, %s236
      %p240 = scmp.eq.s32.totalorder %s20, 0
      %p241 = por %p239, %p240
      %p242 = scmp.ne.s32.totalorder %s234, %s236
      %p243 = scmp.eq.s32.totalorder %s25, 5
      %p244 = por %p242, %p243
      %p245 = scmp.ne.s32.totalorder %s236, %s237
      %p246 = scmp.eq.s32.totalorder %s25, 0
      %p247 = por %p245, %p246
      %p248 = scmp.ne.s32.totalorder %s236, %s237
      %p249 = scmp.eq.s32.totalorder %s26, 5
      %p250 = por %p248, %p249
      %p252 = scmp.ne.s32.totalorder %s237, %s251
      %p253 = scmp.eq.s32.totalorder %s26, 0
      %p254 = por %p252, %p253
      %s255 = ssub.s32 %s28, 1
      %p256 = scmp.gt.s32.totalorder %s255, 0
      %s257 = scalar_select %p256, %s255, 0
      %s258 = ssub.s32 %s35, 1
      %p259 = scmp.gt.s32.totalorder %s258, 0
      %s260 = scalar_select %p259, %s258, 0
      %s261 = ssub.s32 %s27, %s39
      %s262 = ssub.s32 %s257, %s260
      %s263 = sor.u32 %s261, %s262
      %p264 = scmp.eq.s32.totalorder %s263, 0
      %s266 = sadd.s32 %s265, 1
      %s267 = scalar_select %p264, %s265, %s266
      %p270 = pneg %p264
      %p271 = scmp.eq.s32.totalorder %s20, 5
      %p272 = por %p270, %p271
      %p273 = scmp.ne.s32.totalorder %s265, %s268
      %p274 = scmp.eq.s32.totalorder %s20, 0
      %p275 = por %p273, %p274
      %p276 = scmp.ne.s32.totalorder %s265, %s268
      %p277 = scmp.eq.s32.totalorder %s25, 5
      %p278 = por %p276, %p277
      %p279 = scmp.ne.s32.totalorder %s268, %s269
      %p280 = scmp.eq.s32.totalorder %s25, 0
      %p281 = por %p279, %p280
      %p282 = scmp.ne.s32.totalorder %s268, %s269
      %p283 = scmp.eq.s32.totalorder %s26, 5
      %p284 = por %p282, %p283
      %p286 = scmp.ne.s32.totalorder %s269, %s285
      %p287 = scmp.eq.s32.totalorder %s26, 0
      %p288 = por %p286, %p287
      %p289 = scmp.le.s32.totalorder 1, %s20
      %p290 = scmp.lt.s32.totalorder %s20, 7
      %p291 = pnand %p289, %p290
      %p292 = pneg %p291
      // Predicated region
      $region9: #{tpu_custom_call.1} parent=5 // pred_check
        _
      $region10: #{tpu_custom_call.1} parent=5 // pred_check_branch
        %294 = sbr.rel (%p291) target = $region12
      $region11: #{tpu_custom_call.1} parent=5 // pred_region
        %s295 = ssub.s32 %s20, 1
        // Predicated region
        $region13: #{tpu_custom_call.1} parent=11 // pred_check
          %p296 = pneg %p79
        $region14: #{tpu_custom_call.1} parent=11 // pred_check_branch
          %298 = sbr.rel (%p296) target = $region16
        $region15: #{tpu_custom_call.1} parent=11 // pred_region
          _
        $region16: #{tpu_custom_call.1} parent=11 // pred_fallthru
          _
        // Predicated region
        $region17: #{tpu_custom_call.1} parent=11 // pred_check
          %p299 = pneg %p100
        $region18: #{tpu_custom_call.1} parent=11 // pred_check_branch
          %301 = sbr.rel (%p299) target = $region20
        $region19: #{tpu_custom_call.1} parent=11 // pred_region
          _
        $region20: #{tpu_custom_call.1} parent=11 // pred_fallthru
          _
        // Predicated region
        $region21: #{tpu_custom_call.1} parent=11 // pred_check
          %p302 = pneg %p121
        $region22: #{tpu_custom_call.1} parent=11 // pred_check_branch
          %304 = sbr.rel (%p302) target = $region24
        $region23: #{tpu_custom_call.1} parent=11 // pred_region
          _
        $region24: #{tpu_custom_call.1} parent=11 // pred_fallthru
          _
        // Predicated region
        $region25: #{tpu_custom_call.1} parent=11 // pred_check
          %p305 = pneg %p142
        $region26: #{tpu_custom_call.1} parent=11 // pred_check_branch
          %307 = sbr.rel (%p305) target = $region28
        $region27: #{tpu_custom_call.1} parent=11 // pred_region
          %s309 = ssub.s32 9216, 9216
          %310 = vsyncadd [#allocation5], %s309
          %s311 = sshll.u32 [#allocation4], 4
          %s312 = int_to_ptr.vmem [resolvable:$true] %s311
          %317 = dma.hbm_to_vmem [thread:$0]  %s4, 9216, %s312, [#allocation5], 64, 64, 4
        $region28: #{tpu_custom_call.1} parent=11 // pred_fallthru
          _
        // Predicated region
        $region29: #{tpu_custom_call.1} parent=11 // pred_check
          %p318 = pneg %p163
        $region30: #{tpu_custom_call.1} parent=11 // pred_check_branch
          %320 = sbr.rel (%p318) target = $region32
        $region31: #{tpu_custom_call.1} parent=11 // pred_region
          _
        $region32: #{tpu_custom_call.1} parent=11 // pred_fallthru
          _
        // Predicated region
        $region33: #{tpu_custom_call.1} parent=11 // pred_check
          %p321 = pneg %p184
        $region34: #{tpu_custom_call.1} parent=11 // pred_check_branch
          %323 = sbr.rel (%p321) target = $region36
        $region35: #{tpu_custom_call.1} parent=11 // pred_region
          _
        $region36: #{tpu_custom_call.1} parent=11 // pred_fallthru
          _
        // Predicated region
        $region37: #{tpu_custom_call.1} parent=11 // pred_check
          %p324 = pneg %p205
        $region38: #{tpu_custom_call.1} parent=11 // pred_check_branch
          %326 = sbr.rel (%p324) target = $region40
        $region39: #{tpu_custom_call.1} parent=11 // pred_region
          _
        $region40: #{tpu_custom_call.1} parent=11 // pred_fallthru
          _
        // Predicated region
        $region41: #{tpu_custom_call.1} parent=11 // pred_check
          %p327 = pneg %p226
        $region42: #{tpu_custom_call.1} parent=11 // pred_check_branch
          %329 = sbr.rel (%p327) target = $region44
        $region43: #{tpu_custom_call.1} parent=11 // pred_region
          _
        $region44: #{tpu_custom_call.1} parent=11 // pred_fallthru
          _
        // Predicated region
        $region45: #{tpu_custom_call.1} parent=11 // pred_check
          %p330 = pneg %p247
        $region46: #{tpu_custom_call.1} parent=11 // pred_check_branch
          %332 = sbr.rel (%p330) target = $region48
        $region47: #{tpu_custom_call.1} parent=11 // pred_region
          _
        $region48: #{tpu_custom_call.1} parent=11 // pred_fallthru
          _
      $region12: #{tpu_custom_call.1} parent=5 // pred_fallthru
        _
      %p333 = scmp.lt.s32.totalorder %s20, 6
      // Predicated region
      $region49: #{tpu_custom_call.1} parent=5 // pred_check
        %p334 = pneg %p333
      $region50: #{tpu_custom_call.1} parent=5 // pred_check_branch
        %336 = sbr.rel (%p334) target = $region52
      $region51: #{tpu_custom_call.1} parent=5 // pred_region
        // Predicated region
        $region53: #{tpu_custom_call.1} parent=51 // pred_check
          %p337 = pneg %p52
        $region54: #{tpu_custom_call.1} parent=51 // pred_check_branch
          %339 = sbr.rel (%p337) target = $region56
        $region55: #{tpu_custom_call.1} parent=51 // pred_region
          %p340 = scmp.lt.s32.totalorder %s27, 1
          %s341 = scalar_select %p340, %s27, 1
          %s342 = smul.addr %s341, 48
          %s343 = smul.addr %s342, 4
          %s344 = scalar_lea.vmem %s0, %s343
        $region56: #{tpu_custom_call.1} parent=51 // pred_fallthru
          _
      $region52: #{tpu_custom_call.1} parent=5 // pred_fallthru
        _
      %p345 = scmp.le.s32.totalorder 1, %s20
      %p346 = scmp.lt.s32.totalorder %s20, 7
      %p347 = pnand %p345, %p346
      %p348 = pneg %p347
      // Predicated region
      $region57: #{tpu_custom_call.1} parent=5 // pred_check
        _
      $region58: #{tpu_custom_call.1} parent=5 // pred_check_branch
        %350 = sbr.rel (%p347) target = $region60
      $region59: #{tpu_custom_call.1} parent=5 // pred_region
        %s351 = ssub.s32 %s20, 1
        // Predicated region
        $region61: #{tpu_custom_call.1} parent=59 // pred_check
          %p352 = pneg %p142
        $region62: #{tpu_custom_call.1} parent=59 // pred_check_branch
          %354 = sbr.rel (%p352) target = $region64
        $region63: #{tpu_custom_call.1} parent=59 // pred_region
          %355 = dma.done [#allocation5], 9216
        $region64: #{tpu_custom_call.1} parent=59 // pred_fallthru
          _
        %p356 = scmp.lt.s32.totalorder %s29, 1
        %s357 = scalar_select %p356, %s29, 1
        %s358 = smul.addr %s357, 48
        %s359 = smul.addr %s358, 4
        %s360 = scalar_lea.vmem %s0, %s359
        %p361 = pneg %p58
        %p362 = pneg %p55
        %p363 = pneg %p79
        %p364 = pneg %p76
        %p365 = pneg %p100
        %p366 = pneg %p97
        %p367 = pneg %p121
        %p368 = pneg %p118
        %p369 = pneg %p142
        %p370 = pneg %p139
        %p371 = pneg %p163
        %p372 = pneg %p160
        %p373 = pneg %p184
        %p374 = pneg %p181
        %p375 = pneg %p205
        %p376 = pneg %p202
        %p377 = pneg %p226
        %p378 = pneg %p223
        %p379 = pneg %p247
        %p380 = pneg %p244
        %p381 = pneg %p281
        %p382 = pneg %p278
        %s383 = sand.u32 %s268, 1
        %s384 = scalar_lea.sflag [#allocation6], %s383
        %s385 = sand.u32 %s268, 1
        %s386 = smul.addr %s385, 64
        %s387 = scalar_lea.vmem [#allocation7], %s386
        %p388 = scmp.lt.s32.totalorder %s29, 1
        %s389 = scalar_select %p388, %s29, 1
        %s390 = smul.addr %s389, 48
        %s391 = smul.addr %s390, 4
        %s392 = scalar_lea.vmem %s0, %s391
        %s393 = ssub.s32 %s30, 1
        %p394 = scmp.gt.s32.totalorder %s393, 0
        %s395 = scalar_select %p394, %s393, 0
        %s396 = smul.u32 8, %s395
        %p398 = scmp.eq.s32.totalorder %s30, 0
        // Predicated region
        $region65: #{tpu_custom_call.1} parent=59 // pred_check
          %p399 = pneg %p398
        $region66: #{tpu_custom_call.1} parent=59 // pred_check_branch
          %401 = sbr.rel (%p399) target = $region68
        $region67: #{tpu_custom_call.1} parent=59 // pred_region
          %402 = vst [vmem:[#allocation2] sm:$0xf] 0
          %403 = vst [vmem:[#allocation2 + $0x4] sm:$0xf] 0
          %404 = vst [vmem:[#allocation2 + $0x8] sm:$0x1] 0
          %s405 = scalar_lea.vmem [#allocation2], 204
          %406 = vst [vmem:[%s405] sm:$0xf] 0
          %407 = vst [vmem:[%s405 + $0x4] sm:$0xf] 0
          %408 = vst [vmem:[%s405 + $0x8] sm:$0x1] 0
          %v409 = vld [vmem:[%s392] sm:$0xf]
          %v410 = vld [vmem:[%s392 + $0x4] sm:$0xf]
          %v411 = vld [vmem:[%s392 + $0x8] sm:$0x1]
          %v412 = vld [vmem:[%s392 + $0xc] sm:$0xf]
          %v413 = vld [vmem:[%s392 + $0x10] sm:$0xf]
          %v414 = vld [vmem:[%s392 + $0x14] sm:$0x1]
          %v415 = vld [vmem:[%s392 + $0x18] sm:$0xf]
          %v416 = vld [vmem:[%s392 + $0x1c] sm:$0xf]
          %v417 = vld [vmem:[%s392 + $0x20] sm:$0x1]
          %v418 = vld [vmem:[%s392 + $0x24] sm:$0xf]
          %v419 = vld [vmem:[%s392 + $0x28] sm:$0xf]
          %v420 = vld [vmem:[%s392 + $0x2c] sm:$0x1]
          %v421 = vld [vmem:[%s392 + $0x30] sm:$0xf]
          %v422 = vld [vmem:[%s392 + $0x34] sm:$0xf]
          %v423 = vld [vmem:[%s392 + $0x38] sm:$0x1]
          %v424 = vld [vmem:[%s392 + $0x3c] sm:$0xf]
          %v425 = vld [vmem:[%s392 + $0x40] sm:$0xf]
          %v426 = vld [vmem:[%s392 + $0x44] sm:$0x1]
          %v427 = vld [vmem:[%s392 + $0x48] sm:$0xf]
          %v428 = vld [vmem:[%s392 + $0x4c] sm:$0xf]
          %v429 = vld [vmem:[%s392 + $0x50] sm:$0x1]
          %v430 = vld [vmem:[%s392 + $0x54] sm:$0xf]
          %v431 = vld [vmem:[%s392 + $0x58] sm:$0xf]
          %v432 = vld [vmem:[%s392 + $0x5c] sm:$0x1]
          %v433 = vld [vmem:[%s392 + $0x60] sm:$0xf]
          %v434 = vld [vmem:[%s392 + $0x64] sm:$0xf]
          %v435 = vld [vmem:[%s392 + $0x68] sm:$0x1]
          %v436 = vld [vmem:[%s392 + $0x6c] sm:$0xf]
          %v437 = vld [vmem:[%s392 + $0x70] sm:$0xf]
          %v438 = vld [vmem:[%s392 + $0x74] sm:$0x1]
          %v439 = vld [vmem:[%s392 + $0x78] sm:$0xf]
          %v440 = vld [vmem:[%s392 + $0x7c] sm:$0xf]
          %v441 = vld [vmem:[%s392 + $0x80] sm:$0x1]
          %v442 = vld [vmem:[%s392 + $0x84] sm:$0xf]
          %v443 = vld [vmem:[%s392 + $0x88] sm:$0xf]
          %v444 = vld [vmem:[%s392 + $0x8c] sm:$0x1]
          %v445 = vld [vmem:[%s392 + $0x90] sm:$0xf]
          %v446 = vld [vmem:[%s392 + $0x94] sm:$0xf]
          %v447 = vld [vmem:[%s392 + $0x98] sm:$0x1]
          %v448 = vld [vmem:[%s392 + $0x9c] sm:$0xf]
          %v449 = vld [vmem:[%s392 + $0xa0] sm:$0xf]
          %v450 = vld [vmem:[%s392 + $0xa4] sm:$0x1]
          %v451 = vld [vmem:[%s392 + $0xa8] sm:$0xf]
          %v452 = vld [vmem:[%s392 + $0xac] sm:$0xf]
          %v453 = vld [vmem:[%s392 + $0xb0] sm:$0x1]
          %v454 = vld [vmem:[%s392 + $0xb4] sm:$0xf]
          %v455 = vld [vmem:[%s392 + $0xb8] sm:$0xf]
          %v456 = vld [vmem:[%s392 + $0xbc] sm:$0x1]
          %s457 = scalar_lea.vmem [#allocation2], 12
          %458 = vst [vmem:[%s457] sm:$0xf] %v409
          %459 = vst [vmem:[%s457 + $0x4] sm:$0xf] %v410
          %460 = vst [vmem:[%s457 + $0x8] sm:$0x1] %v411
          %461 = vst [vmem:[%s457 + $0xc] sm:$0xf] %v412
          %462 = vst [vmem:[%s457 + $0x10] sm:$0xf] %v413
          %463 = vst [vmem:[%s457 + $0x14] sm:$0x1] %v414
          %464 = vst [vmem:[%s457 + $0x18] sm:$0xf] %v415
          %465 = vst [vmem:[%s457 + $0x1c] sm:$0xf] %v416
          %466 = vst [vmem:[%s457 + $0x20] sm:$0x1] %v417
          %467 = vst [vmem:[%s457 + $0x24] sm:$0xf] %v418
          %468 = vst [vmem:[%s457 + $0x28] sm:$0xf] %v419
          %469 = vst [vmem:[%s457 + $0x2c] sm:$0x1] %v420
          %470 = vst [vmem:[%s457 + $0x30] sm:$0xf] %v421
          %471 = vst [vmem:[%s457 + $0x34] sm:$0xf] %v422
          %472 = vst [vmem:[%s457 + $0x38] sm:$0x1] %v423
          %473 = vst [vmem:[%s457 + $0x3c] sm:$0xf] %v424
          %474 = vst [vmem:[%s457 + $0x40] sm:$0xf] %v425
          %475 = vst [vmem:[%s457 + $0x44] sm:$0x1] %v426
          %476 = vst [vmem:[%s457 + $0x48] sm:$0xf] %v427
          %477 = vst [vmem:[%s457 + $0x4c] sm:$0xf] %v428
          %478 = vst [vmem:[%s457 + $0x50] sm:$0x1] %v429
          %479 = vst [vmem:[%s457 + $0x54] sm:$0xf] %v430
          %480 = vst [vmem:[%s457 + $0x58] sm:$0xf] %v431
          %481 = vst [vmem:[%s457 + $0x5c] sm:$0x1] %v432
          %482 = vst [vmem:[%s457 + $0x60] sm:$0xf] %v433
          %483 = vst [vmem:[%s457 + $0x64] sm:$0xf] %v434
          %484 = vst [vmem:[%s457 + $0x68] sm:$0x1] %v435
          %485 = vst [vmem:[%s457 + $0x6c] sm:$0xf] %v436
          %486 = vst [vmem:[%s457 + $0x70] sm:$0xf] %v437
          %487 = vst [vmem:[%s457 + $0x74] sm:$0x1] %v438
          %488 = vst [vmem:[%s457 + $0x78] sm:$0xf] %v439
          %489 = vst [vmem:[%s457 + $0x7c] sm:$0xf] %v440
          %490 = vst [vmem:[%s457 + $0x80] sm:$0x1] %v441
          %491 = vst [vmem:[%s457 + $0x84] sm:$0xf] %v442
          %492 = vst [vmem:[%s457 + $0x88] sm:$0xf] %v443
          %493 = vst [vmem:[%s457 + $0x8c] sm:$0x1] %v444
          %494 = vst [vmem:[%s457 + $0x90] sm:$0xf] %v445
          %495 = vst [vmem:[%s457 + $0x94] sm:$0xf] %v446
          %496 = vst [vmem:[%s457 + $0x98] sm:$0x1] %v447
          %497 = vst [vmem:[%s457 + $0x9c] sm:$0xf] %v448
          %498 = vst [vmem:[%s457 + $0xa0] sm:$0xf] %v449
          %499 = vst [vmem:[%s457 + $0xa4] sm:$0x1] %v450
          %500 = vst [vmem:[%s457 + $0xa8] sm:$0xf] %v451
          %501 = vst [vmem:[%s457 + $0xac] sm:$0xf] %v452
          %502 = vst [vmem:[%s457 + $0xb0] sm:$0x1] %v453
          %503 = vst [vmem:[%s457 + $0xb4] sm:$0xf] %v454
          %504 = vst [vmem:[%s457 + $0xb8] sm:$0xf] %v455
          %505 = vst [vmem:[%s457 + $0xbc] sm:$0x1] %v456
          %506 = vst [vmem:[#allocation3] sm:$0xf] 0
          %507 = vst [vmem:[#allocation3 + $0x4] sm:$0xf] 0
          %508 = vst [vmem:[#allocation3 + $0x8] sm:$0x1] 0
          %s509 = scalar_lea.vmem [#allocation3], 204
          %510 = vst [vmem:[%s509] sm:$0xf] 0
          %511 = vst [vmem:[%s509 + $0x4] sm:$0xf] 0
          %512 = vst [vmem:[%s509 + $0x8] sm:$0x1] 0
        $region68: #{tpu_custom_call.1} parent=59 // pred_fallthru
          _
        %p513 = scmp.lt.s32.totalorder %s30, 2
        // Predicated region
        $region69: #{tpu_custom_call.1} parent=59 // pred_check
          %p514 = pneg %p513
        $region70: #{tpu_custom_call.1} parent=59 // pred_check_branch
          %516 = sbr.rel (%p514) target = $region72
        $region71: #{tpu_custom_call.1} parent=59 // pred_region
          %s517 = smul.u32 %s30, 8
          %s518 = smul.u32 %s517, 3
          %s519 = smul.addr %s518, 4
          %s520 = scalar_lea.vmem [#allocation2], %s519
          %v521 = vld [vmem:[%s520] sm:$0xf]
          %v522 = vld [vmem:[%s520 + $0x4] sm:$0xf]
          %v523 = vld [vmem:[%s520 + $0xc] sm:$0xf]
          %v524 = vld [vmem:[%s520 + $0x10] sm:$0xf]
          %v525 = vld [vmem:[%s520 + $0x18] sm:$0xf]
          %v526 = vld [vmem:[%s520 + $0x1c] sm:$0xf]
          %v527 = vld [vmem:[%s520 + $0x24] sm:$0xf]
          %v528 = vld [vmem:[%s520 + $0x28] sm:$0xf]
          %v529 = vld [vmem:[%s520 + $0x30] sm:$0xf]
          %v530 = vld [vmem:[%s520 + $0x34] sm:$0xf]
          %v531 = vld [vmem:[%s520 + $0x3c] sm:$0xf]
          %v532 = vld [vmem:[%s520 + $0x40] sm:$0xf]
          %v533 = vld [vmem:[%s520 + $0x48] sm:$0xf]
          %v534 = vld [vmem:[%s520 + $0x4c] sm:$0xf]
          %v535 = vld [vmem:[%s520 + $0x54] sm:$0xf]
          %v536 = vld [vmem:[%s520 + $0x58] sm:$0xf]
          %v537 = vld [vmem:[%s1] sm:$0xf]
          %v538 = vld [vmem:[%s1 + $0x4] sm:$0xf]
          %v539 = vld [vmem:[%s1 + $0x8] sm:$0xf]
          %v540 = vld [vmem:[%s1 + $0xc] sm:$0xf]
          %v541 = vld [vmem:[%s1 + $0x10] sm:$0xf]
          %v542 = vld [vmem:[%s1 + $0x14] sm:$0xf]
          %v543 = vld [vmem:[%s1 + $0x18] sm:$0xf]
          %v544 = vld [vmem:[%s1 + $0x1c] sm:$0xf]
          %v545 = vld [vmem:[%s1 + $0x20] sm:$0xf]
          %v546 = vld [vmem:[%s1 + $0x24] sm:$0xf]
          %v547 = vld [vmem:[%s1 + $0x28] sm:$0xf]
          %v548 = vld [vmem:[%s1 + $0x2c] sm:$0xf]
          %v549 = vld [vmem:[%s1 + $0x30] sm:$0xf]
          %v550 = vld [vmem:[%s1 + $0x34] sm:$0xf]
          %v551 = vld [vmem:[%s1 + $0x38] sm:$0xf]
          %v552 = vld [vmem:[%s1 + $0x3c] sm:$0xf]
          %v553 = vld [vmem:[%s520 + $0x8] sm:$0x1]
          %v554 = vld [vmem:[%s520 + $0x14] sm:$0x1]
          %v555 = vld [vmem:[%s520 + $0x20] sm:$0x1]
          %v556 = vld [vmem:[%s520 + $0x2c] sm:$0x1]
          %v557 = vld [vmem:[%s520 + $0x38] sm:$0x1]
          %v558 = vld [vmem:[%s520 + $0x44] sm:$0x1]
          %v559 = vld [vmem:[%s520 + $0x50] sm:$0x1]
          %v560 = vld [vmem:[%s520 + $0x5c] sm:$0x1]
          %vm561 = vsmask.f32 3328
          %vm562 = vsmask.f32 7440
          %vm563 = vmor %vm561, %vm562
          %v565 = vshrl.u32 %v521, 16
          %v567 = vrot.slane %v565, 4
          %v568 = vshll.u32 %v521, 16
          %v570 = vrot.slane %v568, 5
          %v571 = vor.u32 %v567, %v570
          %v572 = vrot.slane %v571, 4
          %v574 = vshll.u32 %v522, 16
          %v576 = vrot.slane %v574, 5
          %v577 = vsel %vm563, %v572, %v576
          %v578 = vshrl.u32 %v522, 16
          %v580 = vrot.slane %v578, 4
          %v581 = vor.u32 %v580, %v576
          %v582 = vrot.slane %v581, 4
          %v584 = vshll.u32 %v553, 16
          %v586 = vrot.slane %v584, 5
          %v587 = vsel %vm563, %v582, %v586
          %v589 = vshrl.u32 %v523, 16
          %v591 = vrot.slane %v589, 4
          %v592 = vshll.u32 %v523, 16
          %v594 = vrot.slane %v592, 5
          %v595 = vor.u32 %v591, %v594
          %v596 = vrot.slane %v595, 4
          %v598 = vshll.u32 %v524, 16
          %v600 = vrot.slane %v598, 5
          %v601 = vsel %vm563, %v596, %v600
          %v602 = vshrl.u32 %v524, 16
          %v604 = vrot.slane %v602, 4
          %v605 = vor.u32 %v604, %v600
          %v606 = vrot.slane %v605, 4
          %v608 = vshll.u32 %v554, 16
          %v610 = vrot.slane %v608, 5
          %v611 = vsel %vm563, %v606, %v610
          %v613 = vshrl.u32 %v525, 16
          %v615 = vrot.slane %v613, 4
          %v616 = vshll.u32 %v525, 16
          %v618 = vrot.slane %v616, 5
          %v619 = vor.u32 %v615, %v618
          %v620 = vrot.slane %v619, 4
          %v622 = vshll.u32 %v526, 16
          %v624 = vrot.slane %v622, 5
          %v625 = vsel %vm563, %v620, %v624
          %v626 = vshrl.u32 %v526, 16
          %v628 = vrot.slane %v626, 4
          %v629 = vor.u32 %v628, %v624
          %v630 = vrot.slane %v629, 4
          %v632 = vshll.u32 %v555, 16
          %v634 = vrot.slane %v632, 5
          %v635 = vsel %vm563, %v630, %v634
          %v637 = vshrl.u32 %v527, 16
          %v639 = vrot.slane %v637, 4
          %v640 = vshll.u32 %v527, 16
          %v642 = vrot.slane %v640, 5
          %v643 = vor.u32 %v639, %v642
          %v644 = vrot.slane %v643, 4
          %v646 = vshll.u32 %v528, 16
          %v648 = vrot.slane %v646, 5
          %v649 = vsel %vm563, %v644, %v648
          %v650 = vshrl.u32 %v528, 16
          %v652 = vrot.slane %v650, 4
          %v653 = vor.u32 %v652, %v648
          %v654 = vrot.slane %v653, 4
          %v656 = vshll.u32 %v556, 16
          %v658 = vrot.slane %v656, 5
          %v659 = vsel %vm563, %v654, %v658
          %v661 = vshrl.u32 %v529, 16
          %v663 = vrot.slane %v661, 4
          %v664 = vshll.u32 %v529, 16
          %v666 = vrot.slane %v664, 5
          %v667 = vor.u32 %v663, %v666
          %v668 = vrot.slane %v667, 4
          %v670 = vshll.u32 %v530, 16
          %v672 = vrot.slane %v670, 5
          %v673 = vsel %vm563, %v668, %v672
          %v674 = vshrl.u32 %v530, 16
          %v676 = vrot.slane %v674, 4
          %v677 = vor.u32 %v676, %v672
          %v678 = vrot.slane %v677, 4
          %v680 = vshll.u32 %v557, 16
          %v682 = vrot.slane %v680, 5
          %v683 = vsel %vm563, %v678, %v682
          %v685 = vshrl.u32 %v531, 16
          %v687 = vrot.slane %v685, 4
          %v688 = vshll.u32 %v531, 16
          %v690 = vrot.slane %v688, 5
          %v691 = vor.u32 %v687, %v690
          %v692 = vrot.slane %v691, 4
          %v694 = vshll.u32 %v532, 16
          %v696 = vrot.slane %v694, 5
          %v697 = vsel %vm563, %v692, %v696
          %v698 = vshrl.u32 %v532, 16
          %v700 = vrot.slane %v698, 4
          %v701 = vor.u32 %v700, %v696
          %v702 = vrot.slane %v701, 4
          %v704 = vshll.u32 %v558, 16
          %v706 = vrot.slane %v704, 5
          %v707 = vsel %vm563, %v702, %v706
          %v709 = vshrl.u32 %v533, 16
          %v711 = vrot.slane %v709, 4
          %v712 = vshll.u32 %v533, 16
          %v714 = vrot.slane %v712, 5
          %v715 = vor.u32 %v711, %v714
          %v716 = vrot.slane %v715, 4
          %v718 = vshll.u32 %v534, 16
          %v720 = vrot.slane %v718, 5
          %v721 = vsel %vm563, %v716, %v720
          %v722 = vshrl.u32 %v534, 16
          %v724 = vrot.slane %v722, 4
          %v725 = vor.u32 %v724, %v720
          %v726 = vrot.slane %v725, 4
          %v728 = vshll.u32 %v559, 16
          %v730 = vrot.slane %v728, 5
          %v731 = vsel %vm563, %v726, %v730
          %v733 = vshrl.u32 %v535, 16
          %v735 = vrot.slane %v733, 4
          %v736 = vshll.u32 %v535, 16
          %v738 = vrot.slane %v736, 5
          %v739 = vor.u32 %v735, %v738
          %v740 = vrot.slane %v739, 4
          %v742 = vshll.u32 %v536, 16
          %v744 = vrot.slane %v742, 5
          %v745 = vsel %vm563, %v740, %v744
          %v746 = vshrl.u32 %v536, 16
          %v748 = vrot.slane %v746, 4
          %v749 = vor.u32 %v748, %v744
          %v750 = vrot.slane %v749, 4
          %v752 = vshll.u32 %v560, 16
          %v754 = vrot.slane %v752, 5
          %v755 = vsel %vm563, %v750, %v754
          %s756 = scalar_lea.vmem %s1, 64
          %v757 = vld [vmem:[%s756] sm:$0xf]
          %v758 = vld [vmem:[%s756 + $0x4] sm:$0xf]
          %v759 = vld [vmem:[%s756 + $0x8] sm:$0xf]
          %v760 = vld [vmem:[%s756 + $0xc] sm:$0xf]
          %v761 = vld [vmem:[%s756 + $0x10] sm:$0xf]
          %v762 = vld [vmem:[%s756 + $0x14] sm:$0xf]
          %v763 = vld [vmem:[%s756 + $0x18] sm:$0xf]
          %v764 = vld [vmem:[%s756 + $0x1c] sm:$0xf]
          %v765 = vld [vmem:[%s756 + $0x20] sm:$0xf]
          %v766 = vld [vmem:[%s756 + $0x24] sm:$0xf]
          %v767 = vld [vmem:[%s756 + $0x28] sm:$0xf]
          %v768 = vld [vmem:[%s756 + $0x2c] sm:$0xf]
          %v769 = vld [vmem:[%s756 + $0x30] sm:$0xf]
          %v770 = vld [vmem:[%s756 + $0x34] sm:$0xf]
          %v771 = vld [vmem:[%s756 + $0x38] sm:$0xf]
          %v772 = vld [vmem:[%s756 + $0x3c] sm:$0xf]
          %v773 = vunpack.c.l.b16 %v577
          %v774 = vunpack.c.l.b16 %v587
          %v775 = vunpack.c.l.b16 %v601
          %v776 = vunpack.c.l.b16 %v611
          %v777 = vunpack.c.l.b16 %v625
          %v778 = vunpack.c.l.b16 %v635
          %v779 = vunpack.c.l.b16 %v649
          %v780 = vunpack.c.l.b16 %v659
          %v781 = vunpack.c.l.b16 %v673
          %v782 = vunpack.c.l.b16 %v683
          %v783 = vunpack.c.l.b16 %v697
          %v784 = vunpack.c.l.b16 %v707
          %v785 = vunpack.c.l.b16 %v721
          %v786 = vunpack.c.l.b16 %v731
          %v787 = vunpack.c.l.b16 %v745
          %v788 = vunpack.c.l.b16 %v755
          %v789 = vpack.c.b16 %v774, %v773
          %v790 = vpack.c.b16 %v776, %v775
          %v791 = vpack.c.b16 %v778, %v777
          %v792 = vpack.c.b16 %v780, %v779
          %v793 = vpack.c.b16 %v782, %v781
          %v794 = vpack.c.b16 %v784, %v783
          %v795 = vpack.c.b16 %v786, %v785
          %v796 = vpack.c.b16 %v788, %v787
          %v821 = vunpack.c.l.b16 %v757
          %v822 = vunpack.c.l.b16 %v758
          %v823 = vunpack.c.l.b16 %v759
          %v824 = vunpack.c.l.b16 %v760
          %v825 = vunpack.c.l.b16 %v761
          %v826 = vunpack.c.l.b16 %v762
          %v827 = vunpack.c.l.b16 %v763
          %v828 = vunpack.c.l.b16 %v764
          %v829 = vunpack.c.l.b16 %v765
          %v830 = vunpack.c.l.b16 %v766
          %v831 = vunpack.c.l.b16 %v767
          %v832 = vunpack.c.l.b16 %v768
          %v833 = vunpack.c.l.b16 %v769
          %v834 = vunpack.c.l.b16 %v770
          %v835 = vunpack.c.l.b16 %v771
          %v836 = vunpack.c.l.b16 %v772
          %v837 = vpack.c.b16 %v822, %v821
          %v838 = vpack.c.b16 %v824, %v823
          %v839 = vpack.c.b16 %v826, %v825
          %v840 = vpack.c.b16 %v828, %v827
          %v841 = vpack.c.b16 %v830, %v829
          %v842 = vpack.c.b16 %v832, %v831
          %v843 = vpack.c.b16 %v834, %v833
          %v844 = vpack.c.b16 %v836, %v835
          %853 = vmatprep.subr.bf16.mxu0 0
          %854 = vmatpush1.bf16.msra.mxu0 %v837
          %855 = vmatprep.subr.bf16.mxu0 0
          %856 = vmatpush1.bf16.msra.mxu0 %v838
          %857 = vmatprep.subr.bf16.mxu0 0
          %858 = vmatpush1.bf16.msra.mxu0 %v839
          %859 = vmatprep.subr.bf16.mxu0 0
          %860 = vmatpush1.bf16.msra.mxu0 %v840
          %861 = vmatprep.subr.bf16.mxu0 0
          %862 = vmatpush1.bf16.msra.mxu0 %v841
          %863 = vmatprep.subr.bf16.mxu0 0
          %864 = vmatpush1.bf16.msra.mxu0 %v842
          %865 = vmatprep.subr.bf16.mxu0 0
          %866 = vmatpush1.bf16.msra.mxu0 %v843
          %867 = vmatprep.subr.bf16.mxu0 0
          %868 = vmatpush1.bf16.msra.mxu0 %v844
          %869 = vmatprep.subr.bf16.mxu0 0
          %870 = vmatpush1.bf16.msra.mxu0 0
          %871 = vmatprep.subr.bf16.mxu0 0
          %872 = vmatpush1.bf16.msra.mxu0 0
          %873 = vmatprep.subr.bf16.mxu0 0
          %874 = vmatpush1.bf16.msra.mxu0 0
          %875 = vmatprep.subr.bf16.mxu0 0
          %876 = vmatpush1.bf16.msra.mxu0 0
          %877 = vmatprep.subr.bf16.mxu0 0
          %878 = vmatpush1.bf16.msra.mxu0 0
          %879 = vmatprep.subr.bf16.mxu0 0
          %880 = vmatpush1.bf16.msra.mxu0 0
          %881 = vmatprep.subr.bf16.mxu0 0
          %882 = vmatpush1.bf16.msra.mxu0 0
          %883 = vmatprep.subr.bf16.mxu0 0
          %884 = vmatpush1.bf16.msra.mxu0 0
          %885 = vmatprep.mubr.bf16.mxu0 0
          %886 = vmatmul.mubr.bf16.gmra.mrb[0].mxu0 %v789
          %v887 = vpop.f32.mrb[0].mxu0
          %v888 = vadd.f32 0.0, %v887
          %v889 = vpop.f32.mrb[0].mxu0
          %v890 = vpop.f32.mrb[0].mxu0
          %v891 = vadd.f32 0.0, %v890
          %v892 = vpop.f32.mrb[0].mxu0
          %893 = vmatprep.mubr.bf16.mxu0 0
          %894 = vmatmul.mubr.bf16.gmra.mrb[0].mxu0 %v790
          %v895 = vpop.f32.mrb[0].mxu0
          %v896 = vadd.f32 0.0, %v895
          %v897 = vpop.f32.mrb[0].mxu0
          %v898 = vpop.f32.mrb[0].mxu0
          %v899 = vadd.f32 0.0, %v898
          %v900 = vpop.f32.mrb[0].mxu0
          %901 = vmatprep.mubr.bf16.mxu0 0
          %902 = vmatmul.mubr.bf16.gmra.mrb[0].mxu0 %v791
          %v903 = vpop.f32.mrb[0].mxu0
          %v904 = vadd.f32 0.0, %v903
          %v905 = vpop.f32.mrb[0].mxu0
          %v906 = vpop.f32.mrb[0].mxu0
          %v907 = vadd.f32 0.0, %v906
          %v908 = vpop.f32.mrb[0].mxu0
          %909 = vmatprep.mubr.bf16.mxu0 0
          %910 = vmatmul.mubr.bf16.gmra.mrb[0].mxu0 %v792
          %v911 = vpop.f32.mrb[0].mxu0
          %v912 = vadd.f32 0.0, %v911
          %v913 = vpop.f32.mrb[0].mxu0
          %v914 = vpop.f32.mrb[0].mxu0
          %v915 = vadd.f32 0.0, %v914
          %v916 = vpop.f32.mrb[0].mxu0
          %917 = vmatprep.mubr.bf16.mxu0 0
          %918 = vmatmul.mubr.bf16.gmra.mrb[0].mxu0 %v793
          %v919 = vpop.f32.mrb[0].mxu0
          %v920 = vadd.f32 0.0, %v919
          %v921 = vpop.f32.mrb[0].mxu0
          %v922 = vpop.f32.mrb[0].mxu0
          %v923 = vadd.f32 0.0, %v922
          %v924 = vpop.f32.mrb[0].mxu0
          %925 = vmatprep.mubr.bf16.mxu0 0
          %926 = vmatmul.mubr.bf16.gmra.mrb[0].mxu0 %v794
          %v927 = vpop.f32.mrb[0].mxu0
          %v928 = vadd.f32 0.0, %v927
          %v929 = vpop.f32.mrb[0].mxu0
          %v930 = vpop.f32.mrb[0].mxu0
          %v931 = vadd.f32 0.0, %v930
          %v932 = vpop.f32.mrb[0].mxu0
          %933 = vmatprep.mubr.bf16.mxu0 0
          %934 = vmatmul.mubr.bf16.gmra.mrb[0].mxu0 %v795
          %v935 = vpop.f32.mrb[0].mxu0
          %v936 = vadd.f32 0.0, %v935
          %v937 = vpop.f32.mrb[0].mxu0
          %v938 = vpop.f32.mrb[0].mxu0
          %v939 = vadd.f32 0.0, %v938
          %v940 = vpop.f32.mrb[0].mxu0
          %941 = vmatprep.mubr.bf16.mxu0 0
          %942 = vmatmul.mubr.bf16.gmra.mrb[0].mxu0 %v796
          %v943 = vpop.f32.mrb[0].mxu0
          %v944 = vadd.f32 0.0, %v943
          %v945 = vpop.f32.mrb[0].mxu0
          %v946 = vpop.f32.mrb[0].mxu0
          %v947 = vadd.f32 0.0, %v946
          %v948 = vpop.f32.mrb[0].mxu0
          %949 = vdwg.mxu0
          %v966 = vunpack.c.l.b16 %v521
          %v967 = vunpack.c.l.b16 %v522
          %v968 = vunpack.c.l.b16 %v523
          %v969 = vunpack.c.l.b16 %v524
          %v970 = vunpack.c.l.b16 %v525
          %v971 = vunpack.c.l.b16 %v526
          %v972 = vunpack.c.l.b16 %v527
          %v973 = vunpack.c.l.b16 %v528
          %v974 = vunpack.c.l.b16 %v529
          %v975 = vunpack.c.l.b16 %v530
          %v976 = vunpack.c.l.b16 %v531
          %v977 = vunpack.c.l.b16 %v532
          %v978 = vunpack.c.l.b16 %v533
          %v979 = vunpack.c.l.b16 %v534
          %v980 = vunpack.c.l.b16 %v535
          %v981 = vunpack.c.l.b16 %v536
          %v982 = vpack.c.b16 %v967, %v966
          %v983 = vpack.c.b16 %v969, %v968
          %v984 = vpack.c.b16 %v971, %v970
          %v985 = vpack.c.b16 %v973, %v972
          %v986 = vpack.c.b16 %v975, %v974
          %v987 = vpack.c.b16 %v977, %v976
          %v988 = vpack.c.b16 %v979, %v978
          %v989 = vpack.c.b16 %v981, %v980
          %v1014 = vunpack.c.l.b16 %v537
          %v1015 = vunpack.c.l.b16 %v538
          %v1016 = vunpack.c.l.b16 %v539
          %v1017 = vunpack.c.l.b16 %v540
          %v1018 = vunpack.c.l.b16 %v541
          %v1019 = vunpack.c.l.b16 %v542
          %v1020 = vunpack.c.l.b16 %v543
          %v1021 = vunpack.c.l.b16 %v544
          %v1022 = vunpack.c.l.b16 %v545
          %v1023 = vunpack.c.l.b16 %v546
          %v1024 = vunpack.c.l.b16 %v547
          %v1025 = vunpack.c.l.b16 %v548
          %v1026 = vunpack.c.l.b16 %v549
          %v1027 = vunpack.c.l.b16 %v550
          %v1028 = vunpack.c.l.b16 %v551
          %v1029 = vunpack.c.l.b16 %v552
          %v1030 = vpack.c.b16 %v1015, %v1014
          %v1031 = vpack.c.b16 %v1017, %v1016
          %v1032 = vpack.c.b16 %v1019, %v1018
          %v1033 = vpack.c.b16 %v1021, %v1020
          %v1034 = vpack.c.b16 %v1023, %v1022
          %v1035 = vpack.c.b16 %v1025, %v1024
          %v1036 = vpack.c.b16 %v1027, %v1026
          %v1037 = vpack.c.b16 %v1029, %v1028
          %1046 = vmatprep.subr.bf16.mxu0 0
          %1047 = vmatpush1.bf16.msra.mxu0 %v1030
          %1048 = vmatprep.subr.bf16.mxu0 0
          %1049 = vmatpush1.bf16.msra.mxu0 %v1031
          %1050 = vmatprep.subr.bf16.mxu0 0
          %1051 = vmatpush1.bf16.msra.mxu0 %v1032
          %1052 = vmatprep.subr.bf16.mxu0 0
          %1053 = vmatpush1.bf16.msra.mxu0 %v1033
          %1054 = vmatprep.subr.bf16.mxu0 0
          %1055 = vmatpush1.bf16.msra.mxu0 %v1034
          %1056 = vmatprep.subr.bf16.mxu0 0
          %1057 = vmatpush1.bf16.msra.mxu0 %v1035
          %1058 = vmatprep.subr.bf16.mxu0 0
          %1059 = vmatpush1.bf16.msra.mxu0 %v1036
          %1060 = vmatprep.subr.bf16.mxu0 0
          %1061 = vmatpush1.bf16.msra.mxu0 %v1037
          %1062 = vmatprep.subr.bf16.mxu0 0
          %1063 = vmatpush1.bf16.msra.mxu0 0
          %1064 = vmatprep.subr.bf16.mxu0 0
          %1065 = vmatpush1.bf16.msra.mxu0 0
          %1066 = vmatprep.subr.bf16.mxu0 0
          %1067 = vmatpush1.bf16.msra.mxu0 0
          %1068 = vmatprep.subr.bf16.mxu0 0
          %1069 = vmatpush1.bf16.msra.mxu0 0
          %1070 = vmatprep.subr.bf16.mxu0 0
          %1071 = vmatpush1.bf16.msra.mxu0 0
          %1072 = vmatprep.subr.bf16.mxu0 0
          %1073 = vmatpush1.bf16.msra.mxu0 0
          %1074 = vmatprep.subr.bf16.mxu0 0
          %1075 = vmatpush1.bf16.msra.mxu0 0
          %1076 = vmatprep.subr.bf16.mxu0 0
          %1077 = vmatpush1.bf16.msra.mxu0 0
          %1078 = vmatprep.mubr.bf16.mxu0 0
          %1079 = vmatmul.mubr.bf16.gmra.mrb[0].mxu0 %v982
          %v1080 = vpop.f32.mrb[0].mxu0
          %v1081 = vadd.f32 %v888, %v1080
          %v1082 = vpop.f32.mrb[0].mxu0
          %v1083 = vpop.f32.mrb[0].mxu0
          %v1084 = vadd.f32 %v891, %v1083
          %v1085 = vpop.f32.mrb[0].mxu0
          %1086 = vmatprep.mubr.bf16.mxu0 0
          %1087 = vmatmul.mubr.bf16.gmra.mrb[0].mxu0 %v983
          %v1088 = vpop.f32.mrb[0].mxu0
          %v1089 = vadd.f32 %v896, %v1088
          %v1090 = vpop.f32.mrb[0].mxu0
          %v1091 = vpop.f32.mrb[0].mxu0
          %v1092 = vadd.f32 %v899, %v1091
          %v1093 = vpop.f32.mrb[0].mxu0
          %1094 = vmatprep.mubr.bf16.mxu0 0
          %1095 = vmatmul.mubr.bf16.gmra.mrb[0].mxu0 %v984
          %v1096 = vpop.f32.mrb[0].mxu0
          %v1097 = vadd.f32 %v904, %v1096
          %v1098 = vpop.f32.mrb[0].mxu0
          %v1099 = vpop.f32.mrb[0].mxu0
          %v1100 = vadd.f32 %v907, %v1099
          %v1101 = vpop.f32.mrb[0].mxu0
          %1102 = vmatprep.mubr.bf16.mxu0 0
          %1103 = vmatmul.mubr.bf16.gmra.mrb[0].mxu0 %v985
          %v1104 = vpop.f32.mrb[0].mxu0
          %v1105 = vadd.f32 %v912, %v1104
          %v1106 = vpop.f32.mrb[0].mxu0
          %v1107 = vpop.f32.mrb[0].mxu0
          %v1108 = vadd.f32 %v915, %v1107
          %v1109 = vpop.f32.mrb[0].mxu0
          %1110 = vmatprep.mubr.bf16.mxu0 0
          %1111 = vmatmul.mubr.bf16.gmra.mrb[0].mxu0 %v986
          %v1112 = vpop.f32.mrb[0].mxu0
          %v1113 = vadd.f32 %v920, %v1112
          %v1114 = vpop.f32.mrb[0].mxu0
          %v1115 = vpop.f32.mrb[0].mxu0
          %v1116 = vadd.f32 %v923, %v1115
          %v1117 = vpop.f32.mrb[0].mxu0
          %1118 = vmatprep.mubr.bf16.mxu0 0
          %1119 = vmatmul.mubr.bf16.gmra.mrb[0].mxu0 %v987
          %v1120 = vpop.f32.mrb[0].mxu0
          %v1121 = vadd.f32 %v928, %v1120
          %v1122 = vpop.f32.mrb[0].mxu0
          %v1123 = vpop.f32.mrb[0].mxu0
          %v1124 = vadd.f32 %v931, %v1123
          %v1125 = vpop.f32.mrb[0].mxu0
          %1126 = vmatprep.mubr.bf16.mxu0 0
          %1127 = vmatmul.mubr.bf16.gmra.mrb[0].mxu0 %v988
          %v1128 = vpop.f32.mrb[0].mxu0
          %v1129 = vadd.f32 %v936, %v1128
          %v1130 = vpop.f32.mrb[0].mxu0
          %v1131 = vpop.f32.mrb[0].mxu0
          %v1132 = vadd.f32 %v939, %v1131
          %v1133 = vpop.f32.mrb[0].mxu0
          %1134 = vmatprep.mubr.bf16.mxu0 0
          %1135 = vmatmul.mubr.bf16.gmra.mrb[0].mxu0 %v989
          %v1136 = vpop.f32.mrb[0].mxu0
          %v1137 = vadd.f32 %v944, %v1136
          %v1138 = vpop.f32.mrb[0].mxu0
          %v1139 = vpop.f32.mrb[0].mxu0
          %v1140 = vadd.f32 %v947, %v1139
          %v1141 = vpop.f32.mrb[0].mxu0
          %1142 = vdwg.mxu0
          %v1143 = vld [vmem:[%s520] sm:$0xe]
          %v1144 = vld [vmem:[%s520 + $0xc] sm:$0xe]
          %v1145 = vld [vmem:[%s520 + $0x18] sm:$0xe]
          %v1146 = vld [vmem:[%s520 + $0x24] sm:$0xe]
          %v1147 = vld [vmem:[%s520 + $0x30] sm:$0xe]
          %v1148 = vld [vmem:[%s520 + $0x3c] sm:$0xe]
          %v1149 = vld [vmem:[%s520 + $0x48] sm:$0xe]
          %v1150 = vld [vmem:[%s520 + $0x54] sm:$0xe]
          %vm1167 = vcmask 1042432
          %vm1168 = vcmask 1046532
          %vm1169 = vmor %vm1167, %vm1168
          %v1170 = vrot.slane %v1143, 5
          %v1171 = vrot.slane %v1170, 4
          %v1172 = vrot.slane %v522, 5
          %v1173 = vsel %vm1169, %v1171, %v1172
          %v1174 = vrot.slane %v1172, 4
          %v1175 = vrot.slane %v553, 5
          %v1176 = vsel %vm1169, %v1174, %v1175
          %v1177 = vrot.slane %v1144, 5
          %v1178 = vrot.slane %v1177, 4
          %v1179 = vrot.slane %v524, 5
          %v1180 = vsel %vm1169, %v1178, %v1179
          %v1181 = vrot.slane %v1179, 4
          %v1182 = vrot.slane %v554, 5
          %v1183 = vsel %vm1169, %v1181, %v1182
          %v1184 = vrot.slane %v1145, 5
          %v1185 = vrot.slane %v1184, 4
          %v1186 = vrot.slane %v526, 5
          %v1187 = vsel %vm1169, %v1185, %v1186
          %v1188 = vrot.slane %v1186, 4
          %v1189 = vrot.slane %v555, 5
          %v1190 = vsel %vm1169, %v1188, %v1189
          %v1191 = vrot.slane %v1146, 5
          %v1192 = vrot.slane %v1191, 4
          %v1193 = vrot.slane %v528, 5
          %v1194 = vsel %vm1169, %v1192, %v1193
          %v1195 = vrot.slane %v1193, 4
          %v1196 = vrot.slane %v556, 5
          %v1197 = vsel %vm1169, %v1195, %v1196
          %v1198 = vrot.slane %v1147, 5
          %v1199 = vrot.slane %v1198, 4
          %v1200 = vrot.slane %v530, 5
          %v1201 = vsel %vm1169, %v1199, %v1200
          %v1202 = vrot.slane %v1200, 4
          %v1203 = vrot.slane %v557, 5
          %v1204 = vsel %vm1169, %v1202, %v1203
          %v1205 = vrot.slane %v1148, 5
          %v1206 = vrot.slane %v1205, 4
          %v1207 = vrot.slane %v532, 5
          %v1208 = vsel %vm1169, %v1206, %v1207
          %v1209 = vrot.slane %v1207, 4
          %v1210 = vrot.slane %v558, 5
          %v1211 = vsel %vm1169, %v1209, %v1210
          %v1212 = vrot.slane %v1149, 5
          %v1213 = vrot.slane %v1212, 4
          %v1214 = vrot.slane %v534, 5
          %v1215 = vsel %vm1169, %v1213, %v1214
          %v1216 = vrot.slane %v1214, 4
          %v1217 = vrot.slane %v559, 5
          %v1218 = vsel %vm1169, %v1216, %v1217
          %v1219 = vrot.slane %v1150, 5
          %v1220 = vrot.slane %v1219, 4
          %v1221 = vrot.slane %v536, 5
          %v1222 = vsel %vm1169, %v1220, %v1221
          %v1223 = vrot.slane %v1221, 4
          %v1224 = vrot.slane %v560, 5
          %v1225 = vsel %vm1169, %v1223, %v1224
          %s1226 = scalar_lea.vmem %s1, 128
          %v1227 = vld [vmem:[%s1226] sm:$0xf]
          %v1228 = vld [vmem:[%s1226 + $0x4] sm:$0xf]
          %v1229 = vld [vmem:[%s1226 + $0x8] sm:$0xf]
          %v1230 = vld [vmem:[%s1226 + $0xc] sm:$0xf]
          %v1231 = vld [vmem:[%s1226 + $0x10] sm:$0xf]
          %v1232 = vld [vmem:[%s1226 + $0x14] sm:$0xf]
          %v1233 = vld [vmem:[%s1226 + $0x18] sm:$0xf]
          %v1234 = vld [vmem:[%s1226 + $0x1c] sm:$0xf]
          %v1235 = vld [vmem:[%s1226 + $0x20] sm:$0xf]
          %v1236 = vld [vmem:[%s1226 + $0x24] sm:$0xf]
          %v1237 = vld [vmem:[%s1226 + $0x28] sm:$0xf]
          %v1238 = vld [vmem:[%s1226 + $0x2c] sm:$0xf]
          %v1239 = vld [vmem:[%s1226 + $0x30] sm:$0xf]
          %v1240 = vld [vmem:[%s1226 + $0x34] sm:$0xf]
          %v1241 = vld [vmem:[%s1226 + $0x38] sm:$0xf]
          %v1242 = vld [vmem:[%s1226 + $0x3c] sm:$0xf]
          %v1243 = vunpack.c.l.b16 %v1173
          %v1244 = vunpack.c.l.b16 %v1176
          %v1245 = vunpack.c.l.b16 %v1180
          %v1246 = vunpack.c.l.b16 %v1183
          %v1247 = vunpack.c.l.b16 %v1187
          %v1248 = vunpack.c.l.b16 %v1190
          %v1249 = vunpack.c.l.b16 %v1194
          %v1250 = vunpack.c.l.b16 %v1197
          %v1251 = vunpack.c.l.b16 %v1201
          %v1252 = vunpack.c.l.b16 %v1204
          %v1253 = vunpack.c.l.b16 %v1208
          %v1254 = vunpack.c.l.b16 %v1211
          %v1255 = vunpack.c.l.b16 %v1215
          %v1256 = vunpack.c.l.b16 %v1218
          %v1257 = vunpack.c.l.b16 %v1222
          %v1258 = vunpack.c.l.b16 %v1225
          %v1259 = vpack.c.b16 %v1244, %v1243
          %v1260 = vpack.c.b16 %v1246, %v1245
          %v1261 = vpack.c.b16 %v1248, %v1247
          %v1262 = vpack.c.b16 %v1250, %v1249
          %v1263 = vpack.c.b16 %v1252, %v1251
          %v1264 = vpack.c.b16 %v1254, %v1253
          %v1265 = vpack.c.b16 %v1256, %v1255
          %v1266 = vpack.c.b16 %v1258, %v1257
          %v1291 = vunpack.c.l.b16 %v1227
          %v1292 = vunpack.c.l.b16 %v1228
          %v1293 = vunpack.c.l.b16 %v1229
          %v1294 = vunpack.c.l.b16 %v1230
          %v1295 = vunpack.c.l.b16 %v1231
          %v1296 = vunpack.c.l.b16 %v1232
          %v1297 = vunpack.c.l.b16 %v1233
          %v1298 = vunpack.c.l.b16 %v1234
          %v1299 = vunpack.c.l.b16 %v1235
          %v1300 = vunpack.c.l.b16 %v1236
          %v1301 = vunpack.c.l.b16 %v1237
          %v1302 = vunpack.c.l.b16 %v1238
          %v1303 = vunpack.c.l.b16 %v1239
          %v1304 = vunpack.c.l.b16 %v1240
          %v1305 = vunpack.c.l.b16 %v1241
          %v1306 = vunpack.c.l.b16 %v1242
          %v1307 = vpack.c.b16 %v1292, %v1291
          %v1308 = vpack.c.b16 %v1294, %v1293
          %v1309 = vpack.c.b16 %v1296, %v1295
          %v1310 = vpack.c.b16 %v1298, %v1297
          %v1311 = vpack.c.b16 %v1300, %v1299
          %v1312 = vpack.c.b16 %v1302, %v1301
          %v1313 = vpack.c.b16 %v1304, %v1303
          %v1314 = vpack.c.b16 %v1306, %v1305
          %1323 = vmatprep.subr.bf16.mxu0 0
          %1324 = vmatpush1.bf16.msra.mxu0 %v1307
          %1325 = vmatprep.subr.bf16.mxu0 0
          %1326 = vmatpush1.bf16.msra.mxu0 %v1308
          %1327 = vmatprep.subr.bf16.mxu0 0
          %1328 = vmatpush1.bf16.msra.mxu0 %v1309
          %1329 = vmatprep.subr.bf16.mxu0 0
          %1330 = vmatpush1.bf16.msra.mxu0 %v1310
          %1331 = vmatprep.subr.bf16.mxu0 0
          %1332 = vmatpush1.bf16.msra.mxu0 %v1311
          %1333 = vmatprep.subr.bf16.mxu0 0
          %1334 = vmatpush1.bf16.msra.mxu0 %v1312
          %1335 = vmatprep.subr.bf16.mxu0 0
          %1336 = vmatpush1.bf16.msra.mxu0 %v1313
          %1337 = vmatprep.subr.bf16.mxu0 0
          %1338 = vmatpush1.bf16.msra.mxu0 %v1314
          %1339 = vmatprep.subr.bf16.mxu0 0
          %1340 = vmatpush1.bf16.msra.mxu0 0
          %1341 = vmatprep.subr.bf16.mxu0 0
          %1342 = vmatpush1.bf16.msra.mxu0 0
          %1343 = vmatprep.subr.bf16.mxu0 0
          %1344 = vmatpush1.bf16.msra.mxu0 0
          %1345 = vmatprep.subr.bf16.mxu0 0
          %1346 = vmatpush1.bf16.msra.mxu0 0
          %1347 = vmatprep.subr.bf16.mxu0 0
          %1348 = vmatpush1.bf16.msra.mxu0 0
          %1349 = vmatprep.subr.bf16.mxu0 0
          %1350 = vmatpush1.bf16.msra.mxu0 0
          %1351 = vmatprep.subr.bf16.mxu0 0
          %1352 = vmatpush1.bf16.msra.mxu0 0
          %1353 = vmatprep.subr.bf16.mxu0 0
          %1354 = vmatpush1.bf16.msra.mxu0 0
          %1355 = vmatprep.mubr.bf16.mxu0 0
          %1356 = vmatmul.mubr.bf16.gmra.mrb[0].mxu0 %v1259
          %v1357 = vpop.f32.mrb[0].mxu0
          %v1358 = vadd.f32 0.0, %v1357
          %v1359 = vpop.f32.mrb[0].mxu0
          %v1360 = vpop.f32.mrb[0].mxu0
          %v1361 = vadd.f32 0.0, %v1360
          %v1362 = vpop.f32.mrb[0].mxu0
          %1363 = vmatprep.mubr.bf16.mxu0 0
          %1364 = vmatmul.mubr.bf16.gmra.mrb[0].mxu0 %v1260
          %v1365 = vpop.f32.mrb[0].mxu0
          %v1366 = vadd.f32 0.0, %v1365
          %v1367 = vpop.f32.mrb[0].mxu0
          %v1368 = vpop.f32.mrb[0].mxu0
          %v1369 = vadd.f32 0.0, %v1368
          %v1370 = vpop.f32.mrb[0].mxu0
          %1371 = vmatprep.mubr.bf16.mxu0 0
          %1372 = vmatmul.mubr.bf16.gmra.mrb[0].mxu0 %v1261
          %v1373 = vpop.f32.mrb[0].mxu0
          %v1374 = vadd.f32 0.0, %v1373
          %v1375 = vpop.f32.mrb[0].mxu0
          %v1376 = vpop.f32.mrb[0].mxu0
          %v1377 = vadd.f32 0.0, %v1376
          %v1378 = vpop.f32.mrb[0].mxu0
          %1379 = vmatprep.mubr.bf16.mxu0 0
          %1380 = vmatmul.mubr.bf16.gmra.mrb[0].mxu0 %v1262
          %v1381 = vpop.f32.mrb[0].mxu0
          %v1382 = vadd.f32 0.0, %v1381
          %v1383 = vpop.f32.mrb[0].mxu0
          %v1384 = vpop.f32.mrb[0].mxu0
          %v1385 = vadd.f32 0.0, %v1384
          %v1386 = vpop.f32.mrb[0].mxu0
          %1387 = vmatprep.mubr.bf16.mxu0 0
          %1388 = vmatmul.mubr.bf16.gmra.mrb[0].mxu0 %v1263
          %v1389 = vpop.f32.mrb[0].mxu0
          %v1390 = vadd.f32 0.0, %v1389
          %v1391 = vpop.f32.mrb[0].mxu0
          %v1392 = vpop.f32.mrb[0].mxu0
          %v1393 = vadd.f32 0.0, %v1392
          %v1394 = vpop.f32.mrb[0].mxu0
          %1395 = vmatprep.mubr.bf16.mxu0 0
          %1396 = vmatmul.mubr.bf16.gmra.mrb[0].mxu0 %v1264
          %v1397 = vpop.f32.mrb[0].mxu0
          %v1398 = vadd.f32 0.0, %v1397
          %v1399 = vpop.f32.mrb[0].mxu0
          %v1400 = vpop.f32.mrb[0].mxu0
          %v1401 = vadd.f32 0.0, %v1400
          %v1402 = vpop.f32.mrb[0].mxu0
          %1403 = vmatprep.mubr.bf16.mxu0 0
          %1404 = vmatmul.mubr.bf16.gmra.mrb[0].mxu0 %v1265
          %v1405 = vpop.f32.mrb[0].mxu0
          %v1406 = vadd.f32 0.0, %v1405
          %v1407 = vpop.f32.mrb[0].mxu0
          %v1408 = vpop.f32.mrb[0].mxu0
          %v1409 = vadd.f32 0.0, %v1408
          %v1410 = vpop.f32.mrb[0].mxu0
          %1411 = vmatprep.mubr.bf16.mxu0 0
          %1412 = vmatmul.mubr.bf16.gmra.mrb[0].mxu0 %v1266
          %v1413 = vpop.f32.mrb[0].mxu0
          %v1414 = vadd.f32 0.0, %v1413
          %v1415 = vpop.f32.mrb[0].mxu0
          %v1416 = vpop.f32.mrb[0].mxu0
          %v1417 = vadd.f32 0.0, %v1416
          %v1418 = vpop.f32.mrb[0].mxu0
          %1419 = vdwg.mxu0
          %v1420 = vadd.f32 %v1081, %v1358
          %v1421 = vadd.f32 %v1084, %v1361
          %v1422 = vadd.f32 %v1089, %v1366
          %v1423 = vadd.f32 %v1092, %v1369
          %v1424 = vadd.f32 %v1097, %v1374
          %v1425 = vadd.f32 %v1100, %v1377
          %v1426 = vadd.f32 %v1105, %v1382
          %v1427 = vadd.f32 %v1108, %v1385
          %v1428 = vadd.f32 %v1113, %v1390
          %v1429 = vadd.f32 %v1116, %v1393
          %v1430 = vadd.f32 %v1121, %v1398
          %v1431 = vadd.f32 %v1124, %v1401
          %v1432 = vadd.f32 %v1129, %v1406
          %v1433 = vadd.f32 %v1132, %v1409
          %v1434 = vadd.f32 %v1137, %v1414
          %v1435 = vadd.f32 %v1140, %v1417
          %s1436 = sadd.s32 %s517, 1
          %s1437 = smul.u32 %s1436, 3
          %s1438 = smul.addr %s1437, 4
          %s1439 = scalar_lea.vmem [#allocation2], %s1438
          %v1440 = vld [vmem:[%s1439] sm:$0xf]
          %v1441 = vld [vmem:[%s1439 + $0x4] sm:$0xf]
          %v1442 = vld [vmem:[%s1439 + $0xc] sm:$0xf]
          %v1443 = vld [vmem:[%s1439 + $0x10] sm:$0xf]
          %v1444 = vld [vmem:[%s1439 + $0x18] sm:$0xf]
          %v1445 = vld [vmem:[%s1439 + $0x1c] sm:$0xf]
          %v1446 = vld [vmem:[%s1439 + $0x24] sm:$0xf]
          %v1447 = vld [vmem:[%s1439 + $0x28] sm:$0xf]
          %v1448 = vld [vmem:[%s1439 + $0x30] sm:$0xf]
          %v1449 = vld [vmem:[%s1439 + $0x34] sm:$0xf]
          %v1450 = vld [vmem:[%s1439 + $0x3c] sm:$0xf]
          %v1451 = vld [vmem:[%s1439 + $0x40] sm:$0xf]
          %v1452 = vld [vmem:[%s1439 + $0x48] sm:$0xf]
          %v1453 = vld [vmem:[%s1439 + $0x4c] sm:$0xf]
          %v1454 = vld [vmem:[%s1439 + $0x54] sm:$0xf]
          %v1455 = vld [vmem:[%s1439 + $0x58] sm:$0xf]
          %s1456 = scalar_lea.vmem %s1, 192
          %v1457 = vld [vmem:[%s1456] sm:$0xf]
          %v1458 = vld [vmem:[%s1456 + $0x4] sm:$0xf]
          %v1459 = vld [vmem:[%s1456 + $0x8] sm:$0xf]
          %v1460 = vld [vmem:[%s1456 + $0xc] sm:$0xf]
          %v1461 = vld [vmem:[%s1456 + $0x10] sm:$0xf]
          %v1462 = vld [vmem:[%s1456 + $0x14] sm:$0xf]
          %v1463 = vld [vmem:[%s1456 + $0x18] sm:$0xf]
          %v1464 = vld [vmem:[%s1456 + $0x1c] sm:$0xf]
          %v1465 = vld [vmem:[%s1456 + $0x20] sm:$0xf]
          %v1466 = vld [vmem:[%s1456 + $0x24] sm:$0xf]
          %v1467 = vld [vmem:[%s1456 + $0x28] sm:$0xf]
          %v1468 = vld [vmem:[%s1456 + $0x2c] sm:$0xf]
          %v1469 = vld [vmem:[%s1456 + $0x30] sm:$0xf]
          %v1470 = vld [vmem:[%s1456 + $0x34] sm:$0xf]
          %v1471 = vld [vmem:[%s1456 + $0x38] sm:$0xf]
          %v1472 = vld [vmem:[%s1456 + $0x3c] sm:$0xf]
          %v1489 = vunpack.c.l.b16 %v1440
          %v1490 = vunpack.c.l.b16 %v1441
          %v1491 = vunpack.c.l.b16 %v1442
          %v1492 = vunpack.c.l.b16 %v1443
          %v1493 = vunpack.c.l.b16 %v1444
          %v1494 = vunpack.c.l.b16 %v1445
          %v1495 = vunpack.c.l.b16 %v1446
          %v1496 = vunpack.c.l.b16 %v1447
          %v1497 = vunpack.c.l.b16 %v1448
          %v1498 = vunpack.c.l.b16 %v1449
          %v1499 = vunpack.c.l.b16 %v1450
          %v1500 = vunpack.c.l.b16 %v1451
          %v1501 = vunpack.c.l.b16 %v1452
          %v1502 = vunpack.c.l.b16 %v1453
          %v1503 = vunpack.c.l.b16 %v1454
          %v1504 = vunpack.c.l.b16 %v1455
          %v1505 = vpack.c.b16 %v1490, %v1489
          %v1506 = vpack.c.b16 %v1492, %v1491
          %v1507 = vpack.c.b16 %v1494, %v1493
          %v1508 = vpack.c.b16 %v1496, %v1495
          %v1509 = vpack.c.b16 %v1498, %v1497
          %v1510 = vpack.c.b16 %v1500, %v1499
          %v1511 = vpack.c.b16 %v1502, %v1501
          %v1512 = vpack.c.b16 %v1504, %v1503
          %v1537 = vunpack.c.l.b16 %v1457
          %v1538 = vunpack.c.l.b16 %v1458
          %v1539 = vunpack.c.l.b16 %v1459
          %v1540 = vunpack.c.l.b16 %v1460
          %v1541 = vunpack.c.l.b16 %v1461
          %v1542 = vunpack.c.l.b16 %v1462
          %v1543 = vunpack.c.l.b16 %v1463
          %v1544 = vunpack.c.l.b16 %v1464
          %v1545 = vunpack.c.l.b16 %v1465
          %v1546 = vunpack.c.l.b16 %v1466
          %v1547 = vunpack.c.l.b16 %v1467
          %v1548 = vunpack.c.l.b16 %v1468
          %v1549 = vunpack.c.l.b16 %v1469
          %v1550 = vunpack.c.l.b16 %v1470
          %v1551 = vunpack.c.l.b16 %v1471
          %v1552 = vunpack.c.l.b16 %v1472
          %v1553 = vpack.c.b16 %v1538, %v1537
          %v1554 = vpack.c.b16 %v1540, %v1539
          %v1555 = vpack.c.b16 %v1542, %v1541
          %v1556 = vpack.c.b16 %v1544, %v1543
          %v1557 = vpack.c.b16 %v1546, %v1545
          %v1558 = vpack.c.b16 %v1548, %v1547
          %v1559 = vpack.c.b16 %v1550, %v1549
          %v1560 = vpack.c.b16 %v1552, %v1551
          %1569 = vmatprep.subr.bf16.mxu0 0
          %1570 = vmatpush1.bf16.msra.mxu0 %v1553
          %1571 = vmatprep.subr.bf16.mxu0 0
          %1572 = vmatpush1.bf16.msra.mxu0 %v1554
          %1573 = vmatprep.subr.bf16.mxu0 0
          %1574 = vmatpush1.bf16.msra.mxu0 %v1555
          %1575 = vmatprep.subr.bf16.mxu0 0
          %1576 = vmatpush1.bf16.msra.mxu0 %v1556
          %1577 = vmatprep.subr.bf16.mxu0 0
          %1578 = vmatpush1.bf16.msra.mxu0 %v1557
          %1579 = vmatprep.subr.bf16.mxu0 0
          %1580 = vmatpush1.bf16.msra.mxu0 %v1558
          %1581 = vmatprep.subr.bf16.mxu0 0
          %1582 = vmatpush1.bf16.msra.mxu0 %v1559
          %1583 = vmatprep.subr.bf16.mxu0 0
          %1584 = vmatpush1.bf16.msra.mxu0 %v1560
          %1585 = vmatprep.subr.bf16.mxu0 0
          %1586 = vmatpush1.bf16.msra.mxu0 0
          %1587 = vmatprep.subr.bf16.mxu0 0
          %1588 = vmatpush1.bf16.msra.mxu0 0
          %1589 = vmatprep.subr.bf16.mxu0 0
          %1590 = vmatpush1.bf16.msra.mxu0 0
          %1591 = vmatprep.subr.bf16.mxu0 0
          %1592 = vmatpush1.bf16.msra.mxu0 0
          %1593 = vmatprep.subr.bf16.mxu0 0
          %1594 = vmatpush1.bf16.msra.mxu0 0
          %1595 = vmatprep.subr.bf16.mxu0 0
          %1596 = vmatpush1.bf16.msra.mxu0 0
          %1597 = vmatprep.subr.bf16.mxu0 0
          %1598 = vmatpush1.bf16.msra.mxu0 0
          %1599 = vmatprep.subr.bf16.mxu0 0
          %1600 = vmatpush1.bf16.msra.mxu0 0
          %1601 = vmatprep.mubr.bf16.mxu0 0
          %1602 = vmatmul.mubr.bf16.gmra.mrb[0].mxu0 %v1505
          %v1603 = vpop.f32.mrb[0].mxu0
          %v1604 = vadd.f32 0.0, %v1603
          %v1605 = vpop.f32.mrb[0].mxu0
          %v1606 = vpop.f32.mrb[0].mxu0
          %v1607 = vadd.f32 0.0, %v1606
          %v1608 = vpop.f32.mrb[0].mxu0
          %1609 = vmatprep.mubr.bf16.mxu0 0
          %1610 = vmatmul.mubr.bf16.gmra.mrb[0].mxu0 %v1506
          %v1611 = vpop.f32.mrb[0].mxu0
          %v1612 = vadd.f32 0.0, %v1611
          %v1613 = vpop.f32.mrb[0].mxu0
          %v1614 = vpop.f32.mrb[0].mxu0
          %v1615 = vadd.f32 0.0, %v1614
          %v1616 = vpop.f32.mrb[0].mxu0
          %1617 = vmatprep.mubr.bf16.mxu0 0
          %1618 = vmatmul.mubr.bf16.gmra.mrb[0].mxu0 %v1507
          %v1619 = vpop.f32.mrb[0].mxu0
          %v1620 = vadd.f32 0.0, %v1619
          %v1621 = vpop.f32.mrb[0].mxu0
          %v1622 = vpop.f32.mrb[0].mxu0
          %v1623 = vadd.f32 0.0, %v1622
          %v1624 = vpop.f32.mrb[0].mxu0
          %1625 = vmatprep.mubr.bf16.mxu0 0
          %1626 = vmatmul.mubr.bf16.gmra.mrb[0].mxu0 %v1508
          %v1627 = vpop.f32.mrb[0].mxu0
          %v1628 = vadd.f32 0.0, %v1627
          %v1629 = vpop.f32.mrb[0].mxu0
          %v1630 = vpop.f32.mrb[0].mxu0
          %v1631 = vadd.f32 0.0, %v1630
          %v1632 = vpop.f32.mrb[0].mxu0
          %1633 = vmatprep.mubr.bf16.mxu0 0
          %1634 = vmatmul.mubr.bf16.gmra.mrb[0].mxu0 %v1509
          %v1635 = vpop.f32.mrb[0].mxu0
          %v1636 = vadd.f32 0.0, %v1635
          %v1637 = vpop.f32.mrb[0].mxu0
          %v1638 = vpop.f32.mrb[0].mxu0
          %v1639 = vadd.f32 0.0, %v1638
          %v1640 = vpop.f32.mrb[0].mxu0
          %1641 = vmatprep.mubr.bf16.mxu0 0
          %1642 = vmatmul.mubr.bf16.gmra.mrb[0].mxu0 %v1510
          %v1643 = vpop.f32.mrb[0].mxu0
          %v1644 = vadd.f32 0.0, %v1643
          %v1645 = vpop.f32.mrb[0].mxu0
          %v1646 = vpop.f32.mrb[0].mxu0
          %v1647 = vadd.f32 0.0, %v1646
          %v1648 = vpop.f32.mrb[0].mxu0
          %1649 = vmatprep.mubr.bf16.mxu0 0
          %1650 = vmatmul.mubr.bf16.gmra.mrb[0].mxu0 %v1511
          %v1651 = vpop.f32.mrb[0].mxu0
          %v1652 = vadd.f32 0.0, %v1651
          %v1653 = vpop.f32.mrb[0].mxu0
          %v1654 = vpop.f32.mrb[0].mxu0
          %v1655 = vadd.f32 0.0, %v1654
          %v1656 = vpop.f32.mrb[0].mxu0
          %1657 = vmatprep.mubr.bf16.mxu0 0
          %1658 = vmatmul.mubr.bf16.gmra.mrb[0].mxu0 %v1512
          %v1659 = vpop.f32.mrb[0].mxu0
          %v1660 = vadd.f32 0.0, %v1659
          %v1661 = vpop.f32.mrb[0].mxu0
          %v1662 = vpop.f32.mrb[0].mxu0
          %v1663 = vadd.f32 0.0, %v1662
          %v1664 = vpop.f32.mrb[0].mxu0
          %1665 = vdwg.mxu0
          %v1666 = vadd.f32 %v1420, %v1604
          %v1667 = vadd.f32 %v1421, %v1607
          %v1668 = vadd.f32 %v1422, %v1612
          %v1669 = vadd.f32 %v1423, %v1615
          %v1670 = vadd.f32 %v1424, %v1620
          %v1671 = vadd.f32 %v1425, %v1623
          %v1672 = vadd.f32 %v1426, %v1628
          %v1673 = vadd.f32 %v1427, %v1631
          %v1674 = vadd.f32 %v1428, %v1636
          %v1675 = vadd.f32 %v1429, %v1639
          %v1676 = vadd.f32 %v1430, %v1644
          %v1677 = vadd.f32 %v1431, %v1647
          %v1678 = vadd.f32 %v1432, %v1652
          %v1679 = vadd.f32 %v1433, %v1655
          %v1680 = vadd.f32 %v1434, %v1660
          %v1681 = vadd.f32 %v1435, %v1663
          %v1682 = vld [vmem:[%s1439] sm:$0xf]
          %v1683 = vld [vmem:[%s1439 + $0x4] sm:$0xf]
          %v1684 = vld [vmem:[%s1439 + $0x8] sm:$0x1]
          %v1685 = vld [vmem:[%s1439 + $0xc] sm:$0xf]
          %v1686 = vld [vmem:[%s1439 + $0x10] sm:$0xf]
          %v1687 = vld [vmem:[%s1439 + $0x14] sm:$0x1]
          %v1688 = vld [vmem:[%s1439 + $0x18] sm:$0xf]
          %v1689 = vld [vmem:[%s1439 + $0x1c] sm:$0xf]
          %v1690 = vld [vmem:[%s1439 + $0x20] sm:$0x1]
          %v1691 = vld [vmem:[%s1439 + $0x24] sm:$0xf]
          %v1692 = vld [vmem:[%s1439 + $0x28] sm:$0xf]
          %v1693 = vld [vmem:[%s1439 + $0x2c] sm:$0x1]
          %v1694 = vld [vmem:[%s1439 + $0x30] sm:$0xf]
          %v1695 = vld [vmem:[%s1439 + $0x34] sm:$0xf]
          %v1696 = vld [vmem:[%s1439 + $0x38] sm:$0x1]
          %v1697 = vld [vmem:[%s1439 + $0x3c] sm:$0xf]
          %v1698 = vld [vmem:[%s1439 + $0x40] sm:$0xf]
          %v1699 = vld [vmem:[%s1439 + $0x44] sm:$0x1]
          %v1700 = vld [vmem:[%s1439 + $0x48] sm:$0xf]
          %v1701 = vld [vmem:[%s1439 + $0x4c] sm:$0xf]
          %v1702 = vld [vmem:[%s1439 + $0x50] sm:$0x1]
          %v1703 = vld [vmem:[%s1439 + $0x54] sm:$0xf]
          %v1704 = vld [vmem:[%s1439 + $0x58] sm:$0xf]
          %v1705 = vld [vmem:[%s1439 + $0x5c] sm:$0x1]
          %v1707 = vshrl.u32 %v1682, 16
          %v1709 = vrot.slane %v1707, 4
          %v1710 = vshll.u32 %v1682, 16
          %v1712 = vrot.slane %v1710, 5
          %v1713 = vor.u32 %v1709, %v1712
          %v1714 = vrot.slane %v1713, 4
          %v1716 = vshll.u32 %v1683, 16
          %v1718 = vrot.slane %v1716, 5
          %v1719 = vsel %vm563, %v1714, %v1718
          %v1720 = vshrl.u32 %v1683, 16
          %v1722 = vrot.slane %v1720, 4
          %v1723 = vor.u32 %v1722, %v1718
          %v1724 = vrot.slane %v1723, 4
          %v1726 = vshll.u32 %v1684, 16
          %v1728 = vrot.slane %v1726, 5
          %v1729 = vsel %vm563, %v1724, %v1728
          %v1731 = vshrl.u32 %v1685, 16
          %v1733 = vrot.slane %v1731, 4
          %v1734 = vshll.u32 %v1685, 16
          %v1736 = vrot.slane %v1734, 5
          %v1737 = vor.u32 %v1733, %v1736
          %v1738 = vrot.slane %v1737, 4
          %v1740 = vshll.u32 %v1686, 16
          %v1742 = vrot.slane %v1740, 5
          %v1743 = vsel %vm563, %v1738, %v1742
          %v1744 = vshrl.u32 %v1686, 16
          %v1746 = vrot.slane %v1744, 4
          %v1747 = vor.u32 %v1746, %v1742
          %v1748 = vrot.slane %v1747, 4
          %v1750 = vshll.u32 %v1687, 16
          %v1752 = vrot.slane %v1750, 5
          %v1753 = vsel %vm563, %v1748, %v1752
          %v1755 = vshrl.u32 %v1688, 16
          %v1757 = vrot.slane %v1755, 4
          %v1758 = vshll.u32 %v1688, 16
          %v1760 = vrot.slane %v1758, 5
          %v1761 = vor.u32 %v1757, %v1760
          %v1762 = vrot.slane %v1761, 4
          %v1764 = vshll.u32 %v1689, 16
          %v1766 = vrot.slane %v1764, 5
          %v1767 = vsel %vm563, %v1762, %v1766
          %v1768 = vshrl.u32 %v1689, 16
          %v1770 = vrot.slane %v1768, 4
          %v1771 = vor.u32 %v1770, %v1766
          %v1772 = vrot.slane %v1771, 4
          %v1774 = vshll.u32 %v1690, 16
          %v1776 = vrot.slane %v1774, 5
          %v1777 = vsel %vm563, %v1772, %v1776
          %v1779 = vshrl.u32 %v1691, 16
          %v1781 = vrot.slane %v1779, 4
          %v1782 = vshll.u32 %v1691, 16
          %v1784 = vrot.slane %v1782, 5
          %v1785 = vor.u32 %v1781, %v1784
          %v1786 = vrot.slane %v1785, 4
          %v1788 = vshll.u32 %v1692, 16
          %v1790 = vrot.slane %v1788, 5
          %v1791 = vsel %vm563, %v1786, %v1790
          %v1792 = vshrl.u32 %v1692, 16
          %v1794 = vrot.slane %v1792, 4
          %v1795 = vor.u32 %v1794, %v1790
          %v1796 = vrot.slane %v1795, 4
          %v1798 = vshll.u32 %v1693, 16
          %v1800 = vrot.slane %v1798, 5
          %v1801 = vsel %vm563, %v1796, %v1800
          %v1803 = vshrl.u32 %v1694, 16
          %v1805 = vrot.slane %v1803, 4
          %v1806 = vshll.u32 %v1694, 16
          %v1808 = vrot.slane %v1806, 5
          %v1809 = vor.u32 %v1805, %v1808
          %v1810 = vrot.slane %v1809, 4
          %v1812 = vshll.u32 %v1695, 16
          %v1814 = vrot.slane %v1812, 5
          %v1815 = vsel %vm563, %v1810, %v1814
          %v1816 = vshrl.u32 %v1695, 16
          %v1818 = vrot.slane %v1816, 4
          %v1819 = vor.u32 %v1818, %v1814
          %v1820 = vrot.slane %v1819, 4
          %v1822 = vshll.u32 %v1696, 16
          %v1824 = vrot.slane %v1822, 5
          %v1825 = vsel %vm563, %v1820, %v1824
          %v1827 = vshrl.u32 %v1697, 16
          %v1829 = vrot.slane %v1827, 4
          %v1830 = vshll.u32 %v1697, 16
          %v1832 = vrot.slane %v1830, 5
          %v1833 = vor.u32 %v1829, %v1832
          %v1834 = vrot.slane %v1833, 4
          %v1836 = vshll.u32 %v1698, 16
          %v1838 = vrot.slane %v1836, 5
          %v1839 = vsel %vm563, %v1834, %v1838
          %v1840 = vshrl.u32 %v1698, 16
          %v1842 = vrot.slane %v1840, 4
          %v1843 = vor.u32 %v1842, %v1838
          %v1844 = vrot.slane %v1843, 4
          %v1846 = vshll.u32 %v1699, 16
          %v1848 = vrot.slane %v1846, 5
          %v1849 = vsel %vm563, %v1844, %v1848
          %v1851 = vshrl.u32 %v1700, 16
          %v1853 = vrot.slane %v1851, 4
          %v1854 = vshll.u32 %v1700, 16
          %v1856 = vrot.slane %v1854, 5
          %v1857 = vor.u32 %v1853, %v1856
          %v1858 = vrot.slane %v1857, 4
          %v1860 = vshll.u32 %v1701, 16
          %v1862 = vrot.slane %v1860, 5
          %v1863 = vsel %vm563, %v1858, %v1862
          %v1864 = vshrl.u32 %v1701, 16
          %v1866 = vrot.slane %v1864, 4
          %v1867 = vor.u32 %v1866, %v1862
          %v1868 = vrot.slane %v1867, 4
          %v1870 = vshll.u32 %v1702, 16
          %v1872 = vrot.slane %v1870, 5
          %v1873 = vsel %vm563, %v1868, %v1872
          %v1875 = vshrl.u32 %v1703, 16
          %v1877 = vrot.slane %v1875, 4
          %v1878 = vshll.u32 %v1703, 16
          %v1880 = vrot.slane %v1878, 5
          %v1881 = vor.u32 %v1877, %v1880
          %v1882 = vrot.slane %v1881, 4
          %v1884 = vshll.u32 %v1704, 16
          %v1886 = vrot.slane %v1884, 5
          %v1887 = vsel %vm563, %v1882, %v1886
          %v1888 = vshrl.u32 %v1704, 16
          %v1890 = vrot.slane %v1888, 4
          %v1891 = vor.u32 %v1890, %v1886
          %v1892 = vrot.slane %v1891, 4
          %v1894 = vshll.u32 %v1705, 16
          %v1896 = vrot.slane %v1894, 5
          %v1897 = vsel %vm563, %v1892, %v1896
          %s1898 = scalar_lea.vmem %s1, 256
          %v1899 = vld [vmem:[%s1898] sm:$0xf]
          %v1900 = vld [vmem:[%s1898 + $0x4] sm:$0xf]
          %v1901 = vld [vmem:[%s1898 + $0x8] sm:$0xf]
          %v1902 = vld [vmem:[%s1898 + $0xc] sm:$0xf]
          %v1903 = vld [vmem:[%s1898 + $0x10] sm:$0xf]
          %v1904 = vld [vmem:[%s1898 + $0x14] sm:$0xf]
          %v1905 = vld [vmem:[%s1898 + $0x18] sm:$0xf]
          %v1906 = vld [vmem:[%s1898 + $0x1c] sm:$0xf]
          %v1907 = vld [vmem:[%s1898 + $0x20] sm:$0xf]
          %v1908 = vld [vmem:[%s1898 + $0x24] sm:$0xf]
          %v1909 = vld [vmem:[%s1898 + $0x28] sm:$0xf]
          %v1910 = vld [vmem:[%s1898 + $0x2c] sm:$0xf]
          %v1911 = vld [vmem:[%s1898 + $0x30] sm:$0xf]
          %v1912 = vld [vmem:[%s1898 + $0x34] sm:$0xf]
          %v1913 = vld [vmem:[%s1898 + $0x38] sm:$0xf]
          %v1914 = vld [vmem:[%s1898 + $0x3c] sm:$0xf]
          %v1915 = vunpack.c.l.b16 %v1719
          %v1916 = vunpack.c.l.b16 %v1729
          %v1917 = vunpack.c.l.b16 %v1743
          %v1918 = vunpack.c.l.b16 %v1753
          %v1919 = vunpack.c.l.b16 %v1767
          %v1920 = vunpack.c.l.b16 %v1777
          %v1921 = vunpack.c.l.b16 %v1791
          %v1922 = vunpack.c.l.b16 %v1801
          %v1923 = vunpack.c.l.b16 %v1815
          %v1924 = vunpack.c.l.b16 %v1825
          %v1925 = vunpack.c.l.b16 %v1839
          %v1926 = vunpack.c.l.b16 %v1849
          %v1927 = vunpack.c.l.b16 %v1863
          %v1928 = vunpack.c.l.b16 %v1873
          %v1929 = vunpack.c.l.b16 %v1887
          %v1930 = vunpack.c.l.b16 %v1897
          %v1931 = vpack.c.b16 %v1916, %v1915
          %v1932 = vpack.c.b16 %v1918, %v1917
          %v1933 = vpack.c.b16 %v1920, %v1919
          %v1934 = vpack.c.b16 %v1922, %v1921
          %v1935 = vpack.c.b16 %v1924, %v1923
          %v1936 = vpack.c.b16 %v1926, %v1925
          %v1937 = vpack.c.b16 %v1928, %v1927
          %v1938 = vpack.c.b16 %v1930, %v1929
          %v1963 = vunpack.c.l.b16 %v1899
          %v1964 = vunpack.c.l.b16 %v1900
          %v1965 = vunpack.c.l.b16 %v1901
          %v1966 = vunpack.c.l.b16 %v1902
          %v1967 = vunpack.c.l.b16 %v1903
          %v1968 = vunpack.c.l.b16 %v1904
          %v1969 = vunpack.c.l.b16 %v1905
          %v1970 = vunpack.c.l.b16 %v1906
          %v1971 = vunpack.c.l.b16 %v1907
          %v1972 = vunpack.c.l.b16 %v1908
          %v1973 = vunpack.c.l.b16 %v1909
          %v1974 = vunpack.c.l.b16 %v1910
          %v1975 = vunpack.c.l.b16 %v1911
          %v1976 = vunpack.c.l.b16 %v1912
          %v1977 = vunpack.c.l.b16 %v1913
          %v1978 = vunpack.c.l.b16 %v1914
          %v1979 = vpack.c.b16 %v1964, %v1963
          %v1980 = vpack.c.b16 %v1966, %v1965
          %v1981 = vpack.c.b16 %v1968, %v1967
          %v1982 = vpack.c.b16 %v1970, %v1969
          %v1983 = vpack.c.b16 %v1972, %v1971
          %v1984 = vpack.c.b16 %v1974, %v1973
          %v1985 = vpack.c.b16 %v1976, %v1975
          %v1986 = vpack.c.b16 %v1978, %v1977
          %1995 = vmatprep.subr.bf16.mxu0 0
          %1996 = vmatpush1.bf16.msra.mxu0 %v1979
          %1997 = vmatprep.subr.bf16.mxu0 0
          %1998 = vmatpush1.bf16.msra.mxu0 %v1980
          %1999 = vmatprep.subr.bf16.mxu0 0
          %2000 = vmatpush1.bf16.msra.mxu0 %v1981
          %2001 = vmatprep.subr.bf16.mxu0 0
          %2002 = vmatpush1.bf16.msra.mxu0 %v1982
          %2003 = vmatprep.subr.bf16.mxu0 0
          %2004 = vmatpush1.bf16.msra.mxu0 %v1983
          %2005 = vmatprep.subr.bf16.mxu0 0
          %2006 = vmatpush1.bf16.msra.mxu0 %v1984
          %2007 = vmatprep.subr.bf16.mxu0 0
          %2008 = vmatpush1.bf16.msra.mxu0 %v1985
          %2009 = vmatprep.subr.bf16.mxu0 0
          %2010 = vmatpush1.bf16.msra.mxu0 %v1986
          %2011 = vmatprep.subr.bf16.mxu0 0
          %2012 = vmatpush1.bf16.msra.mxu0 0
          %2013 = vmatprep.subr.bf16.mxu0 0
          %2014 = vmatpush1.bf16.msra.mxu0 0
          %2015 = vmatprep.subr.bf16.mxu0 0
          %2016 = vmatpush1.bf16.msra.mxu0 0
          %2017 = vmatprep.subr.bf16.mxu0 0
          %2018 = vmatpush1.bf16.msra.mxu0 0
          %2019 = vmatprep.subr.bf16.mxu0 0
          %2020 = vmatpush1.bf16.msra.mxu0 0
          %2021 = vmatprep.subr.bf16.mxu0 0
          %2022 = vmatpush1.bf16.msra.mxu0 0
          %2023 = vmatprep.subr.bf16.mxu0 0
          %2024 = vmatpush1.bf16.msra.mxu0 0
          %2025 = vmatprep.subr.bf16.mxu0 0
          %2026 = vmatpush1.bf16.msra.mxu0 0
          %2027 = vmatprep.mubr.bf16.mxu0 0
          %2028 = vmatmul.mubr.bf16.gmra.mrb[0].mxu0 %v1931
          %v2029 = vpop.f32.mrb[0].mxu0
          %v2030 = vadd.f32 0.0, %v2029
          %v2031 = vpop.f32.mrb[0].mxu0
          %v2032 = vpop.f32.mrb[0].mxu0
          %v2033 = vadd.f32 0.0, %v2032
          %v2034 = vpop.f32.mrb[0].mxu0
          %2035 = vmatprep.mubr.bf16.mxu0 0
          %2036 = vmatmul.mubr.bf16.gmra.mrb[0].mxu0 %v1932
          %v2037 = vpop.f32.mrb[0].mxu0
          %v2038 = vadd.f32 0.0, %v2037
          %v2039 = vpop.f32.mrb[0].mxu0
          %v2040 = vpop.f32.mrb[0].mxu0
          %v2041 = vadd.f32 0.0, %v2040
          %v2042 = vpop.f32.mrb[0].mxu0
          %2043 = vmatprep.mubr.bf16.mxu0 0
          %2044 = vmatmul.mubr.bf16.gmra.mrb[0].mxu0 %v1933
          %v2045 = vpop.f32.mrb[0].mxu0
          %v2046 = vadd.f32 0.0, %v2045
          %v2047 = vpop.f32.mrb[0].mxu0
          %v2048 = vpop.f32.mrb[0].mxu0
          %v2049 = vadd.f32 0.0, %v2048
          %v2050 = vpop.f32.mrb[0].mxu0
          %2051 = vmatprep.mubr.bf16.mxu0 0
          %2052 = vmatmul.mubr.bf16.gmra.mrb[0].mxu0 %v1934
          %v2053 = vpop.f32.mrb[0].mxu0
          %v2054 = vadd.f32 0.0, %v2053
          %v2055 = vpop.f32.mrb[0].mxu0
          %v2056 = vpop.f32.mrb[0].mxu0
          %v2057 = vadd.f32 0.0, %v2056
          %v2058 = vpop.f32.mrb[0].mxu0
          %2059 = vmatprep.mubr.bf16.mxu0 0
          %2060 = vmatmul.mubr.bf16.gmra.mrb[0].mxu0 %v1935
          %v2061 = vpop.f32.mrb[0].mxu0
          %v2062 = vadd.f32 0.0, %v2061
          %v2063 = vpop.f32.mrb[0].mxu0
          %v2064 = vpop.f32.mrb[0].mxu0
          %v2065 = vadd.f32 0.0, %v2064
          %v2066 = vpop.f32.mrb[0].mxu0
          %2067 = vmatprep.mubr.bf16.mxu0 0
          %2068 = vmatmul.mubr.bf16.gmra.mrb[0].mxu0 %v1936
          %v2069 = vpop.f32.mrb[0].mxu0
          %v2070 = vadd.f32 0.0, %v2069
          %v2071 = vpop.f32.mrb[0].mxu0
          %v2072 = vpop.f32.mrb[0].mxu0
          %v2073 = vadd.f32 0.0, %v2072
          %v2074 = vpop.f32.mrb[0].mxu0
          %2075 = vmatprep.mubr.bf16.mxu0 0
          %2076 = vmatmul.mubr.bf16.gmra.mrb[0].mxu0 %v1937
          %v2077 = vpop.f32.mrb[0].mxu0
          %v2078 = vadd.f32 0.0, %v2077
          %v2079 = vpop.f32.mrb[0].mxu0
          %v2080 = vpop.f32.mrb[0].mxu0
          %v2081 = vadd.f32 0.0, %v2080
          %v2082 = vpop.f32.mrb[0].mxu0
          %2083 = vmatprep.mubr.bf16.mxu0 0
          %2084 = vmatmul.mubr.bf16.gmra.mrb[0].mxu0 %v1938
          %v2085 = vpop.f32.mrb[0].mxu0
          %v2086 = vadd.f32 0.0, %v2085
          %v2087 = vpop.f32.mrb[0].mxu0
          %v2088 = vpop.f32.mrb[0].mxu0
          %v2089 = vadd.f32 0.0, %v2088
          %v2090 = vpop.f32.mrb[0].mxu0
          %2091 = vdwg.mxu0
          %v2092 = vadd.f32 %v1666, %v2030
          %v2093 = vadd.f32 %v1667, %v2033
          %v2094 = vadd.f32 %v1668, %v2038
          %v2095 = vadd.f32 %v1669, %v2041
          %v2096 = vadd.f32 %v1670, %v2046
          %v2097 = vadd.f32 %v1671, %v2049
          %v2098 = vadd.f32 %v1672, %v2054
          %v2099 = vadd.f32 %v1673, %v2057
          %v2100 = vadd.f32 %v1674, %v2062
          %v2101 = vadd.f32 %v1675, %v2065
          %v2102 = vadd.f32 %v1676, %v2070
          %v2103 = vadd.f32 %v1677, %v2073
          %v2104 = vadd.f32 %v1678, %v2078
          %v2105 = vadd.f32 %v1679, %v2081
          %v2106 = vadd.f32 %v1680, %v2086
          %v2107 = vadd.f32 %v1681, %v2089
          %v2108 = vld [vmem:[%s1439] sm:$0xe]
          %v2109 = vld [vmem:[%s1439 + $0xc] sm:$0xe]
          %v2110 = vld [vmem:[%s1439 + $0x18] sm:$0xe]
          %v2111 = vld [vmem:[%s1439 + $0x24] sm:$0xe]
          %v2112 = vld [vmem:[%s1439 + $0x30] sm:$0xe]
          %v2113 = vld [vmem:[%s1439 + $0x3c] sm:$0xe]
          %v2114 = vld [vmem:[%s1439 + $0x48] sm:$0xe]
          %v2115 = vld [vmem:[%s1439 + $0x54] sm:$0xe]
          %v2140 = vrot.slane %v2108, 5
          %v2141 = vrot.slane %v2140, 4
          %v2142 = vrot.slane %v1683, 5
          %v2143 = vsel %vm1169, %v2141, %v2142
          %v2144 = vrot.slane %v2142, 4
          %v2145 = vrot.slane %v1684, 5
          %v2146 = vsel %vm1169, %v2144, %v2145
          %v2147 = vrot.slane %v2109, 5
          %v2148 = vrot.slane %v2147, 4
          %v2149 = vrot.slane %v1686, 5
          %v2150 = vsel %vm1169, %v2148, %v2149
          %v2151 = vrot.slane %v2149, 4
          %v2152 = vrot.slane %v1687, 5
          %v2153 = vsel %vm1169, %v2151, %v2152
          %v2154 = vrot.slane %v2110, 5
          %v2155 = vrot.slane %v2154, 4
          %v2156 = vrot.slane %v1689, 5
          %v2157 = vsel %vm1169, %v2155, %v2156
          %v2158 = vrot.slane %v2156, 4
          %v2159 = vrot.slane %v1690, 5
          %v2160 = vsel %vm1169, %v2158, %v2159
          %v2161 = vrot.slane %v2111, 5
          %v2162 = vrot.slane %v2161, 4
          %v2163 = vrot.slane %v1692, 5
          %v2164 = vsel %vm1169, %v2162, %v2163
          %v2165 = vrot.slane %v2163, 4
          %v2166 = vrot.slane %v1693, 5
          %v2167 = vsel %vm1169, %v2165, %v2166
          %v2168 = vrot.slane %v2112, 5
          %v2169 = vrot.slane %v2168, 4
          %v2170 = vrot.slane %v1695, 5
          %v2171 = vsel %vm1169, %v2169, %v2170
          %v2172 = vrot.slane %v2170, 4
          %v2173 = vrot.slane %v1696, 5
          %v2174 = vsel %vm1169, %v2172, %v2173
          %v2175 = vrot.slane %v2113, 5
          %v2176 = vrot.slane %v2175, 4
          %v2177 = vrot.slane %v1698, 5
          %v2178 = vsel %vm1169, %v2176, %v2177
          %v2179 = vrot.slane %v2177, 4
          %v2180 = vrot.slane %v1699, 5
          %v2181 = vsel %vm1169, %v2179, %v2180
          %v2182 = vrot.slane %v2114, 5
          %v2183 = vrot.slane %v2182, 4
          %v2184 = vrot.slane %v1701, 5
          %v2185 = vsel %vm1169, %v2183, %v2184
          %v2186 = vrot.slane %v2184, 4
          %v2187 = vrot.slane %v1702, 5
          %v2188 = vsel %vm1169, %v2186, %v2187
          %v2189 = vrot.slane %v2115, 5
          %v2190 = vrot.slane %v2189, 4
          %v2191 = vrot.slane %v1704, 5
          %v2192 = vsel %vm1169, %v2190, %v2191
          %v2193 = vrot.slane %v2191, 4
          %v2194 = vrot.slane %v1705, 5
          %v2195 = vsel %vm1169, %v2193, %v2194
          %s2196 = scalar_lea.vmem %s1, 320
          %v2197 = vld [vmem:[%s2196] sm:$0xf]
          %v2198 = vld [vmem:[%s2196 + $0x4] sm:$0xf]
          %v2199 = vld [vmem:[%s2196 + $0x8] sm:$0xf]
          %v2200 = vld [vmem:[%s2196 + $0xc] sm:$0xf]
          %v2201 = vld [vmem:[%s2196 + $0x10] sm:$0xf]
          %v2202 = vld [vmem:[%s2196 + $0x14] sm:$0xf]
          %v2203 = vld [vmem:[%s2196 + $0x18] sm:$0xf]
          %v2204 = vld [vmem:[%s2196 + $0x1c] sm:$0xf]
          %v2205 = vld [vmem:[%s2196 + $0x20] sm:$0xf]
          %v2206 = vld [vmem:[%s2196 + $0x24] sm:$0xf]
          %v2207 = vld [vmem:[%s2196 + $0x28] sm:$0xf]
          %v2208 = vld [vmem:[%s2196 + $0x2c] sm:$0xf]
          %v2209 = vld [vmem:[%s2196 + $0x30] sm:$0xf]
          %v2210 = vld [vmem:[%s2196 + $0x34] sm:$0xf]
          %v2211 = vld [vmem:[%s2196 + $0x38] sm:$0xf]
          %v2212 = vld [vmem:[%s2196 + $0x3c] sm:$0xf]
          %v2213 = vunpack.c.l.b16 %v2143
          %v2214 = vunpack.c.l.b16 %v2146
          %v2215 = vunpack.c.l.b16 %v2150
          %v2216 = vunpack.c.l.b16 %v2153
          %v2217 = vunpack.c.l.b16 %v2157
          %v2218 = vunpack.c.l.b16 %v2160
          %v2219 = vunpack.c.l.b16 %v2164
          %v2220 = vunpack.c.l.b16 %v2167
          %v2221 = vunpack.c.l.b16 %v2171
          %v2222 = vunpack.c.l.b16 %v2174
          %v2223 = vunpack.c.l.b16 %v2178
          %v2224 = vunpack.c.l.b16 %v2181
          %v2225 = vunpack.c.l.b16 %v2185
          %v2226 = vunpack.c.l.b16 %v2188
          %v2227 = vunpack.c.l.b16 %v2192
          %v2228 = vunpack.c.l.b16 %v2195
          %v2229 = vpack.c.b16 %v2214, %v2213
          %v2230 = vpack.c.b16 %v2216, %v2215
          %v2231 = vpack.c.b16 %v2218, %v2217
          %v2232 = vpack.c.b16 %v2220, %v2219
          %v2233 = vpack.c.b16 %v2222, %v2221
          %v2234 = vpack.c.b16 %v2224, %v2223
          %v2235 = vpack.c.b16 %v2226, %v2225
          %v2236 = vpack.c.b16 %v2228, %v2227
          %v2261 = vunpack.c.l.b16 %v2197
          %v2262 = vunpack.c.l.b16 %v2198
          %v2263 = vunpack.c.l.b16 %v2199
          %v2264 = vunpack.c.l.b16 %v2200
          %v2265 = vunpack.c.l.b16 %v2201
          %v2266 = vunpack.c.l.b16 %v2202
          %v2267 = vunpack.c.l.b16 %v2203
          %v2268 = vunpack.c.l.b16 %v2204
          %v2269 = vunpack.c.l.b16 %v2205
          %v2270 = vunpack.c.l.b16 %v2206
          %v2271 = vunpack.c.l.b16 %v2207
          %v2272 = vunpack.c.l.b16 %v2208
          %v2273 = vunpack.c.l.b16 %v2209
          %v2274 = vunpack.c.l.b16 %v2210
          %v2275 = vunpack.c.l.b16 %v2211
          %v2276 = vunpack.c.l.b16 %v2212
          %v2277 = vpack.c.b16 %v2262, %v2261
          %v2278 = vpack.c.b16 %v2264, %v2263
          %v2279 = vpack.c.b16 %v2266, %v2265
          %v2280 = vpack.c.b16 %v2268, %v2267
          %v2281 = vpack.c.b16 %v2270, %v2269
          %v2282 = vpack.c.b16 %v2272, %v2271
          %v2283 = vpack.c.b16 %v2274, %v2273
          %v2284 = vpack.c.b16 %v2276, %v2275
          %2293 = vmatprep.subr.bf16.mxu0 0
          %2294 = vmatpush1.bf16.msra.mxu0 %v2277
          %2295 = vmatprep.subr.bf16.mxu0 0
          %2296 = vmatpush1.bf16.msra.mxu0 %v2278
          %2297 = vmatprep.subr.bf16.mxu0 0
          %2298 = vmatpush1.bf16.msra.mxu0 %v2279
          %2299 = vmatprep.subr.bf16.mxu0 0
          %2300 = vmatpush1.bf16.msra.mxu0 %v2280
          %2301 = vmatprep.subr.bf16.mxu0 0
          %2302 = vmatpush1.bf16.msra.mxu0 %v2281
          %2303 = vmatprep.subr.bf16.mxu0 0
          %2304 = vmatpush1.bf16.msra.mxu0 %v2282
          %2305 = vmatprep.subr.bf16.mxu0 0
          %2306 = vmatpush1.bf16.msra.mxu0 %v2283
          %2307 = vmatprep.subr.bf16.mxu0 0
          %2308 = vmatpush1.bf16.msra.mxu0 %v2284
          %2309 = vmatprep.subr.bf16.mxu0 0
          %2310 = vmatpush1.bf16.msra.mxu0 0
          %2311 = vmatprep.subr.bf16.mxu0 0
          %2312 = vmatpush1.bf16.msra.mxu0 0
          %2313 = vmatprep.subr.bf16.mxu0 0
          %2314 = vmatpush1.bf16.msra.mxu0 0
          %2315 = vmatprep.subr.bf16.mxu0 0
          %2316 = vmatpush1.bf16.msra.mxu0 0
          %2317 = vmatprep.subr.bf16.mxu0 0
          %2318 = vmatpush1.bf16.msra.mxu0 0
          %2319 = vmatprep.subr.bf16.mxu0 0
          %2320 = vmatpush1.bf16.msra.mxu0 0
          %2321 = vmatprep.subr.bf16.mxu0 0
          %2322 = vmatpush1.bf16.msra.mxu0 0
          %2323 = vmatprep.subr.bf16.mxu0 0
          %2324 = vmatpush1.bf16.msra.mxu0 0
          %2325 = vmatprep.mubr.bf16.mxu0 0
          %2326 = vmatmul.mubr.bf16.gmra.mrb[0].mxu0 %v2229
          %v2327 = vpop.f32.mrb[0].mxu0
          %v2328 = vadd.f32 0.0, %v2327
          %v2329 = vpop.f32.mrb[0].mxu0
          %v2330 = vpop.f32.mrb[0].mxu0
          %v2331 = vadd.f32 0.0, %v2330
          %v2332 = vpop.f32.mrb[0].mxu0
          %2333 = vmatprep.mubr.bf16.mxu0 0
          %2334 = vmatmul.mubr.bf16.gmra.mrb[0].mxu0 %v2230
          %v2335 = vpop.f32.mrb[0].mxu0
          %v2336 = vadd.f32 0.0, %v2335
          %v2337 = vpop.f32.mrb[0].mxu0
          %v2338 = vpop.f32.mrb[0].mxu0
          %v2339 = vadd.f32 0.0, %v2338
          %v2340 = vpop.f32.mrb[0].mxu0
          %2341 = vmatprep.mubr.bf16.mxu0 0
          %2342 = vmatmul.mubr.bf16.gmra.mrb[0].mxu0 %v2231
          %v2343 = vpop.f32.mrb[0].mxu0
          %v2344 = vadd.f32 0.0, %v2343
          %v2345 = vpop.f32.mrb[0].mxu0
          %v2346 = vpop.f32.mrb[0].mxu0
          %v2347 = vadd.f32 0.0, %v2346
          %v2348 = vpop.f32.mrb[0].mxu0
          %2349 = vmatprep.mubr.bf16.mxu0 0
          %2350 = vmatmul.mubr.bf16.gmra.mrb[0].mxu0 %v2232
          %v2351 = vpop.f32.mrb[0].mxu0
          %v2352 = vadd.f32 0.0, %v2351
          %v2353 = vpop.f32.mrb[0].mxu0
          %v2354 = vpop.f32.mrb[0].mxu0
          %v2355 = vadd.f32 0.0, %v2354
          %v2356 = vpop.f32.mrb[0].mxu0
          %2357 = vmatprep.mubr.bf16.mxu0 0
          %2358 = vmatmul.mubr.bf16.gmra.mrb[0].mxu0 %v2233
          %v2359 = vpop.f32.mrb[0].mxu0
          %v2360 = vadd.f32 0.0, %v2359
          %v2361 = vpop.f32.mrb[0].mxu0
          %v2362 = vpop.f32.mrb[0].mxu0
          %v2363 = vadd.f32 0.0, %v2362
          %v2364 = vpop.f32.mrb[0].mxu0
          %2365 = vmatprep.mubr.bf16.mxu0 0
          %2366 = vmatmul.mubr.bf16.gmra.mrb[0].mxu0 %v2234
          %v2367 = vpop.f32.mrb[0].mxu0
          %v2368 = vadd.f32 0.0, %v2367
          %v2369 = vpop.f32.mrb[0].mxu0
          %v2370 = vpop.f32.mrb[0].mxu0
          %v2371 = vadd.f32 0.0, %v2370
          %v2372 = vpop.f32.mrb[0].mxu0
          %2373 = vmatprep.mubr.bf16.mxu0 0
          %2374 = vmatmul.mubr.bf16.gmra.mrb[0].mxu0 %v2235
          %v2375 = vpop.f32.mrb[0].mxu0
          %v2376 = vadd.f32 0.0, %v2375
          %v2377 = vpop.f32.mrb[0].mxu0
          %v2378 = vpop.f32.mrb[0].mxu0
          %v2379 = vadd.f32 0.0, %v2378
          %v2380 = vpop.f32.mrb[0].mxu0
          %2381 = vmatprep.mubr.bf16.mxu0 0
          %2382 = vmatmul.mubr.bf16.gmra.mrb[0].mxu0 %v2236
          %v2383 = vpop.f32.mrb[0].mxu0
          %v2384 = vadd.f32 0.0, %v2383
          %v2385 = vpop.f32.mrb[0].mxu0
          %v2386 = vpop.f32.mrb[0].mxu0
          %v2387 = vadd.f32 0.0, %v2386
          %v2388 = vpop.f32.mrb[0].mxu0
          %2389 = vdwg.mxu0
          %v2390 = vadd.f32 %v2092, %v2328
          %v2391 = vadd.f32 %v2093, %v2331
          %v2392 = vadd.f32 %v2094, %v2336
          %v2393 = vadd.f32 %v2095, %v2339
          %v2394 = vadd.f32 %v2096, %v2344
          %v2395 = vadd.f32 %v2097, %v2347
          %v2396 = vadd.f32 %v2098, %v2352
          %v2397 = vadd.f32 %v2099, %v2355
          %v2398 = vadd.f32 %v2100, %v2360
          %v2399 = vadd.f32 %v2101, %v2363
          %v2400 = vadd.f32 %v2102, %v2368
          %v2401 = vadd.f32 %v2103, %v2371
          %v2402 = vadd.f32 %v2104, %v2376
          %v2403 = vadd.f32 %v2105, %v2379
          %v2404 = vadd.f32 %v2106, %v2384
          %v2405 = vadd.f32 %v2107, %v2387
          %s2406 = sadd.s32 %s517, 2
          %s2407 = smul.u32 %s2406, 3
          %s2408 = smul.addr %s2407, 4
          %s2409 = scalar_lea.vmem [#allocation2], %s2408
          %v2410 = vld [vmem:[%s2409] sm:$0xf]
          %v2411 = vld [vmem:[%s2409 + $0x4] sm:$0xf]
          %v2412 = vld [vmem:[%s2409 + $0xc] sm:$0xf]
          %v2413 = vld [vmem:[%s2409 + $0x10] sm:$0xf]
          %v2414 = vld [vmem:[%s2409 + $0x18] sm:$0xf]
          %v2415 = vld [vmem:[%s2409 + $0x1c] sm:$0xf]
          %v2416 = vld [vmem:[%s2409 + $0x24] sm:$0xf]
          %v2417 = vld [vmem:[%s2409 + $0x28] sm:$0xf]
          %v2418 = vld [vmem:[%s2409 + $0x30] sm:$0xf]
          %v2419 = vld [vmem:[%s2409 + $0x34] sm:$0xf]
          %v2420 = vld [vmem:[%s2409 + $0x3c] sm:$0xf]
          %v2421 = vld [vmem:[%s2409 + $0x40] sm:$0xf]
          %v2422 = vld [vmem:[%s2409 + $0x48] sm:$0xf]
          %v2423 = vld [vmem:[%s2409 + $0x4c] sm:$0xf]
          %v2424 = vld [vmem:[%s2409 + $0x54] sm:$0xf]
          %v2425 = vld [vmem:[%s2409 + $0x58] sm:$0xf]
          %s2426 = scalar_lea.vmem %s1, 384
          %v2427 = vld [vmem:[%s2426] sm:$0xf]
          %v2428 = vld [vmem:[%s2426 + $0x4] sm:$0xf]
          %v2429 = vld [vmem:[%s2426 + $0x8] sm:$0xf]
          %v2430 = vld [vmem:[%s2426 + $0xc] sm:$0xf]
          %v2431 = vld [vmem:[%s2426 + $0x10] sm:$0xf]
          %v2432 = vld [vmem:[%s2426 + $0x14] sm:$0xf]
          %v2433 = vld [vmem:[%s2426 + $0x18] sm:$0xf]
          %v2434 = vld [vmem:[%s2426 + $0x1c] sm:$0xf]
          %v2435 = vld [vmem:[%s2426 + $0x20] sm:$0xf]
          %v2436 = vld [vmem:[%s2426 + $0x24] sm:$0xf]
          %v2437 = vld [vmem:[%s2426 + $0x28] sm:$0xf]
          %v2438 = vld [vmem:[%s2426 + $0x2c] sm:$0xf]
          %v2439 = vld [vmem:[%s2426 + $0x30] sm:$0xf]
          %v2440 = vld [vmem:[%s2426 + $0x34] sm:$0xf]
          %v2441 = vld [vmem:[%s2426 + $0x38] sm:$0xf]
          %v2442 = vld [vmem:[%s2426 + $0x3c] sm:$0xf]
          %v2459 = vunpack.c.l.b16 %v2410
          %v2460 = vunpack.c.l.b16 %v2411
          %v2461 = vunpack.c.l.b16 %v2412
          %v2462 = vunpack.c.l.b16 %v2413
          %v2463 = vunpack.c.l.b16 %v2414
          %v2464 = vunpack.c.l.b16 %v2415
          %v2465 = vunpack.c.l.b16 %v2416
          %v2466 = vunpack.c.l.b16 %v2417
          %v2467 = vunpack.c.l.b16 %v2418
          %v2468 = vunpack.c.l.b16 %v2419
          %v2469 = vunpack.c.l.b16 %v2420
          %v2470 = vunpack.c.l.b16 %v2421
          %v2471 = vunpack.c.l.b16 %v2422
          %v2472 = vunpack.c.l.b16 %v2423
          %v2473 = vunpack.c.l.b16 %v2424
          %v2474 = vunpack.c.l.b16 %v2425
          %v2475 = vpack.c.b16 %v2460, %v2459
          %v2476 = vpack.c.b16 %v2462, %v2461
          %v2477 = vpack.c.b16 %v2464, %v2463
          %v2478 = vpack.c.b16 %v2466, %v2465
          %v2479 = vpack.c.b16 %v2468, %v2467
          %v2480 = vpack.c.b16 %v2470, %v2469
          %v2481 = vpack.c.b16 %v2472, %v2471
          %v2482 = vpack.c.b16 %v2474, %v2473
          %v2507 = vunpack.c.l.b16 %v2427
          %v2508 = vunpack.c.l.b16 %v2428
          %v2509 = vunpack.c.l.b16 %v2429
          %v2510 = vunpack.c.l.b16 %v2430
          %v2511 = vunpack.c.l.b16 %v2431
          %v2512 = vunpack.c.l.b16 %v2432
          %v2513 = vunpack.c.l.b16 %v2433
          %v2514 = vunpack.c.l.b16 %v2434
          %v2515 = vunpack.c.l.b16 %v2435
          %v2516 = vunpack.c.l.b16 %v2436
          %v2517 = vunpack.c.l.b16 %v2437
          %v2518 = vunpack.c.l.b16 %v2438
          %v2519 = vunpack.c.l.b16 %v2439
          %v2520 = vunpack.c.l.b16 %v2440
          %v2521 = vunpack.c.l.b16 %v2441
          %v2522 = vunpack.c.l.b16 %v2442
          %v2523 = vpack.c.b16 %v2508, %v2507
          %v2524 = vpack.c.b16 %v2510, %v2509
          %v2525 = vpack.c.b16 %v2512, %v2511
          %v2526 = vpack.c.b16 %v2514, %v2513
          %v2527 = vpack.c.b16 %v2516, %v2515
          %v2528 = vpack.c.b16 %v2518, %v2517
          %v2529 = vpack.c.b16 %v2520, %v2519
          %v2530 = vpack.c.b16 %v2522, %v2521
          %2539 = vmatprep.subr.bf16.mxu0 0
          %2540 = vmatpush1.bf16.msra.mxu0 %v2523
          %2541 = vmatprep.subr.bf16.mxu0 0
          %2542 = vmatpush1.bf16.msra.mxu0 %v2524
          %2543 = vmatprep.subr.bf16.mxu0 0
          %2544 = vmatpush1.bf16.msra.mxu0 %v2525
          %2545 = vmatprep.subr.bf16.mxu0 0
          %2546 = vmatpush1.bf16.msra.mxu0 %v2526
          %2547 = vmatprep.subr.bf16.mxu0 0
          %2548 = vmatpush1.bf16.msra.mxu0 %v2527
          %2549 = vmatprep.subr.bf16.mxu0 0
          %2550 = vmatpush1.bf16.msra.mxu0 %v2528
          %2551 = vmatprep.subr.bf16.mxu0 0
          %2552 = vmatpush1.bf16.msra.mxu0 %v2529
          %2553 = vmatprep.subr.bf16.mxu0 0
          %2554 = vmatpush1.bf16.msra.mxu0 %v2530
          %2555 = vmatprep.subr.bf16.mxu0 0
          %2556 = vmatpush1.bf16.msra.mxu0 0
          %2557 = vmatprep.subr.bf16.mxu0 0
          %2558 = vmatpush1.bf16.msra.mxu0 0
          %2559 = vmatprep.subr.bf16.mxu0 0
          %2560 = vmatpush1.bf16.msra.mxu0 0
          %2561 = vmatprep.subr.bf16.mxu0 0
          %2562 = vmatpush1.bf16.msra.mxu0 0
          %2563 = vmatprep.subr.bf16.mxu0 0
          %2564 = vmatpush1.bf16.msra.mxu0 0
          %2565 = vmatprep.subr.bf16.mxu0 0
          %2566 = vmatpush1.bf16.msra.mxu0 0
          %2567 = vmatprep.subr.bf16.mxu0 0
          %2568 = vmatpush1.bf16.msra.mxu0 0
          %2569 = vmatprep.subr.bf16.mxu0 0
          %2570 = vmatpush1.bf16.msra.mxu0 0
          %2571 = vmatprep.mubr.bf16.mxu0 0
          %2572 = vmatmul.mubr.bf16.gmra.mrb[0].mxu0 %v2475
          %v2573 = vpop.f32.mrb[0].mxu0
          %v2574 = vadd.f32 0.0, %v2573
          %v2575 = vpop.f32.mrb[0].mxu0
          %v2576 = vpop.f32.mrb[0].mxu0
          %v2577 = vadd.f32 0.0, %v2576
          %v2578 = vpop.f32.mrb[0].mxu0
          %2579 = vmatprep.mubr.bf16.mxu0 0
          %2580 = vmatmul.mubr.bf16.gmra.mrb[0].mxu0 %v2476
          %v2581 = vpop.f32.mrb[0].mxu0
          %v2582 = vadd.f32 0.0, %v2581
          %v2583 = vpop.f32.mrb[0].mxu0
          %v2584 = vpop.f32.mrb[0].mxu0
          %v2585 = vadd.f32 0.0, %v2584
          %v2586 = vpop.f32.mrb[0].mxu0
          %2587 = vmatprep.mubr.bf16.mxu0 0
          %2588 = vmatmul.mubr.bf16.gmra.mrb[0].mxu0 %v2477
          %v2589 = vpop.f32.mrb[0].mxu0
          %v2590 = vadd.f32 0.0, %v2589
          %v2591 = vpop.f32.mrb[0].mxu0
          %v2592 = vpop.f32.mrb[0].mxu0
          %v2593 = vadd.f32 0.0, %v2592
          %v2594 = vpop.f32.mrb[0].mxu0
          %2595 = vmatprep.mubr.bf16.mxu0 0
          %2596 = vmatmul.mubr.bf16.gmra.mrb[0].mxu0 %v2478
          %v2597 = vpop.f32.mrb[0].mxu0
          %v2598 = vadd.f32 0.0, %v2597
          %v2599 = vpop.f32.mrb[0].mxu0
          %v2600 = vpop.f32.mrb[0].mxu0
          %v2601 = vadd.f32 0.0, %v2600
          %v2602 = vpop.f32.mrb[0].mxu0
          %2603 = vmatprep.mubr.bf16.mxu0 0
          %2604 = vmatmul.mubr.bf16.gmra.mrb[0].mxu0 %v2479
          %v2605 = vpop.f32.mrb[0].mxu0
          %v2606 = vadd.f32 0.0, %v2605
          %v2607 = vpop.f32.mrb[0].mxu0
          %v2608 = vpop.f32.mrb[0].mxu0
          %v2609 = vadd.f32 0.0, %v2608
          %v2610 = vpop.f32.mrb[0].mxu0
          %2611 = vmatprep.mubr.bf16.mxu0 0
          %2612 = vmatmul.mubr.bf16.gmra.mrb[0].mxu0 %v2480
          %v2613 = vpop.f32.mrb[0].mxu0
          %v2614 = vadd.f32 0.0, %v2613
          %v2615 = vpop.f32.mrb[0].mxu0
          %v2616 = vpop.f32.mrb[0].mxu0
          %v2617 = vadd.f32 0.0, %v2616
          %v2618 = vpop.f32.mrb[0].mxu0
          %2619 = vmatprep.mubr.bf16.mxu0 0
          %2620 = vmatmul.mubr.bf16.gmra.mrb[0].mxu0 %v2481
          %v2621 = vpop.f32.mrb[0].mxu0
          %v2622 = vadd.f32 0.0, %v2621
          %v2623 = vpop.f32.mrb[0].mxu0
          %v2624 = vpop.f32.mrb[0].mxu0
          %v2625 = vadd.f32 0.0, %v2624
          %v2626 = vpop.f32.mrb[0].mxu0
          %2627 = vmatprep.mubr.bf16.mxu0 0
          %2628 = vmatmul.mubr.bf16.gmra.mrb[0].mxu0 %v2482
          %v2629 = vpop.f32.mrb[0].mxu0
          %v2630 = vadd.f32 0.0, %v2629
          %v2631 = vpop.f32.mrb[0].mxu0
          %v2632 = vpop.f32.mrb[0].mxu0
          %v2633 = vadd.f32 0.0, %v2632
          %v2634 = vpop.f32.mrb[0].mxu0
          %2635 = vdwg.mxu0
          %v2636 = vadd.f32 %v2390, %v2574
          %v2637 = vadd.f32 %v2391, %v2577
          %v2638 = vadd.f32 %v2392, %v2582
          %v2639 = vadd.f32 %v2393, %v2585
          %v2640 = vadd.f32 %v2394, %v2590
          %v2641 = vadd.f32 %v2395, %v2593
          %v2642 = vadd.f32 %v2396, %v2598
          %v2643 = vadd.f32 %v2397, %v2601
          %v2644 = vadd.f32 %v2398, %v2606
          %v2645 = vadd.f32 %v2399, %v2609
          %v2646 = vadd.f32 %v2400, %v2614
          %v2647 = vadd.f32 %v2401, %v2617
          %v2648 = vadd.f32 %v2402, %v2622
          %v2649 = vadd.f32 %v2403, %v2625
          %v2650 = vadd.f32 %v2404, %v2630
          %v2651 = vadd.f32 %v2405, %v2633
          %v2652 = vld [vmem:[%s2409] sm:$0xf]
          %v2653 = vld [vmem:[%s2409 + $0x4] sm:$0xf]
          %v2654 = vld [vmem:[%s2409 + $0x8] sm:$0x1]
          %v2655 = vld [vmem:[%s2409 + $0xc] sm:$0xf]
          %v2656 = vld [vmem:[%s2409 + $0x10] sm:$0xf]
          %v2657 = vld [vmem:[%s2409 + $0x14] sm:$0x1]
          %v2658 = vld [vmem:[%s2409 + $0x18] sm:$0xf]
          %v2659 = vld [vmem:[%s2409 + $0x1c] sm:$0xf]
          %v2660 = vld [vmem:[%s2409 + $0x20] sm:$0x1]
          %v2661 = vld [vmem:[%s2409 + $0x24] sm:$0xf]
          %v2662 = vld [vmem:[%s2409 + $0x28] sm:$0xf]
          %v2663 = vld [vmem:[%s2409 + $0x2c] sm:$0x1]
          %v2664 = vld [vmem:[%s2409 + $0x30] sm:$0xf]
          %v2665 = vld [vmem:[%s2409 + $0x34] sm:$0xf]
          %v2666 = vld [vmem:[%s2409 + $0x38] sm:$0x1]
          %v2667 = vld [vmem:[%s2409 + $0x3c] sm:$0xf]
          %v2668 = vld [vmem:[%s2409 + $0x40] sm:$0xf]
          %v2669 = vld [vmem:[%s2409 + $0x44] sm:$0x1]
          %v2670 = vld [vmem:[%s2409 + $0x48] sm:$0xf]
          %v2671 = vld [vmem:[%s2409 + $0x4c] sm:$0xf]
          %v2672 = vld [vmem:[%s2409 + $0x50] sm:$0x1]
          %v2673 = vld [vmem:[%s2409 + $0x54] sm:$0xf]
          %v2674 = vld [vmem:[%s2409 + $0x58] sm:$0xf]
          %v2675 = vld [vmem:[%s2409 + $0x5c] sm:$0x1]
          %v2677 = vshrl.u32 %v2652, 16
          %v2679 = vrot.slane %v2677, 4
          %v2680 = vshll.u32 %v2652, 16
          %v2682 = vrot.slane %v2680, 5
          %v2683 = vor.u32 %v2679, %v2682
          %v2684 = vrot.slane %v2683, 4
          %v2686 = vshll.u32 %v2653, 16
          %v2688 = vrot.slane %v2686, 5
          %v2689 = vsel %vm563, %v2684, %v2688
          %v2690 = vshrl.u32 %v2653, 16
          %v2692 = vrot.slane %v2690, 4
          %v2693 = vor.u32 %v2692, %v2688
          %v2694 = vrot.slane %v2693, 4
          %v2696 = vshll.u32 %v2654, 16
          %v2698 = vrot.slane %v2696, 5
          %v2699 = vsel %vm563, %v2694, %v2698
          %v2701 = vshrl.u32 %v2655, 16
          %v2703 = vrot.slane %v2701, 4
          %v2704 = vshll.u32 %v2655, 16
          %v2706 = vrot.slane %v2704, 5
          %v2707 = vor.u32 %v2703, %v2706
          %v2708 = vrot.slane %v2707, 4
          %v2710 = vshll.u32 %v2656, 16
          %v2712 = vrot.slane %v2710, 5
          %v2713 = vsel %vm563, %v2708, %v2712
          %v2714 = vshrl.u32 %v2656, 16
          %v2716 = vrot.slane %v2714, 4
          %v2717 = vor.u32 %v2716, %v2712
          %v2718 = vrot.slane %v2717, 4
          %v2720 = vshll.u32 %v2657, 16
          %v2722 = vrot.slane %v2720, 5
          %v2723 = vsel %vm563, %v2718, %v2722
          %v2725 = vshrl.u32 %v2658, 16
          %v2727 = vrot.slane %v2725, 4
          %v2728 = vshll.u32 %v2658, 16
          %v2730 = vrot.slane %v2728, 5
          %v2731 = vor.u32 %v2727, %v2730
          %v2732 = vrot.slane %v2731, 4
          %v2734 = vshll.u32 %v2659, 16
          %v2736 = vrot.slane %v2734, 5
          %v2737 = vsel %vm563, %v2732, %v2736
          %v2738 = vshrl.u32 %v2659, 16
          %v2740 = vrot.slane %v2738, 4
          %v2741 = vor.u32 %v2740, %v2736
          %v2742 = vrot.slane %v2741, 4
          %v2744 = vshll.u32 %v2660, 16
          %v2746 = vrot.slane %v2744, 5
          %v2747 = vsel %vm563, %v2742, %v2746
          %v2749 = vshrl.u32 %v2661, 16
          %v2751 = vrot.slane %v2749, 4
          %v2752 = vshll.u32 %v2661, 16
          %v2754 = vrot.slane %v2752, 5
          %v2755 = vor.u32 %v2751, %v2754
          %v2756 = vrot.slane %v2755, 4
          %v2758 = vshll.u32 %v2662, 16
          %v2760 = vrot.slane %v2758, 5
          %v2761 = vsel %vm563, %v2756, %v2760
          %v2762 = vshrl.u32 %v2662, 16
          %v2764 = vrot.slane %v2762, 4
          %v2765 = vor.u32 %v2764, %v2760
          %v2766 = vrot.slane %v2765, 4
          %v2768 = vshll.u32 %v2663, 16
          %v2770 = vrot.slane %v2768, 5
          %v2771 = vsel %vm563, %v2766, %v2770
          %v2773 = vshrl.u32 %v2664, 16
          %v2775 = vrot.slane %v2773, 4
          %v2776 = vshll.u32 %v2664, 16
          %v2778 = vrot.slane %v2776, 5
          %v2779 = vor.u32 %v2775, %v2778
          %v2780 = vrot.slane %v2779, 4
          %v2782 = vshll.u32 %v2665, 16
          %v2784 = vrot.slane %v2782, 5
          %v2785 = vsel %vm563, %v2780, %v2784
          %v2786 = vshrl.u32 %v2665, 16
          %v2788 = vrot.slane %v2786, 4
          %v2789 = vor.u32 %v2788, %v2784
          %v2790 = vrot.slane %v2789, 4
          %v2792 = vshll.u32 %v2666, 16
          %v2794 = vrot.slane %v2792, 5
          %v2795 = vsel %vm563, %v2790, %v2794
          %v2797 = vshrl.u32 %v2667, 16
          %v2799 = vrot.slane %v2797, 4
          %v2800 = vshll.u32 %v2667, 16
          %v2802 = vrot.slane %v2800, 5
          %v2803 = vor.u32 %v2799, %v2802
          %v2804 = vrot.slane %v2803, 4
          %v2806 = vshll.u32 %v2668, 16
          %v2808 = vrot.slane %v2806, 5
          %v2809 = vsel %vm563, %v2804, %v2808
          %v2810 = vshrl.u32 %v2668, 16
          %v2812 = vrot.slane %v2810, 4
          %v2813 = vor.u32 %v2812, %v2808
          %v2814 = vrot.slane %v2813, 4
          %v2816 = vshll.u32 %v2669, 16
          %v2818 = vrot.slane %v2816, 5
          %v2819 = vsel %vm563, %v2814, %v2818
          %v2821 = vshrl.u32 %v2670, 16
          %v2823 = vrot.slane %v2821, 4
          %v2824 = vshll.u32 %v2670, 16
          %v2826 = vrot.slane %v2824, 5
          %v2827 = vor.u32 %v2823, %v2826
          %v2828 = vrot.slane %v2827, 4
          %v2830 = vshll.u32 %v2671, 16
          %v2832 = vrot.slane %v2830, 5
          %v2833 = vsel %vm563, %v2828, %v2832
          %v2834 = vshrl.u32 %v2671, 16
          %v2836 = vrot.slane %v2834, 4
          %v2837 = vor.u32 %v2836, %v2832
          %v2838 = vrot.slane %v2837, 4
          %v2840 = vshll.u32 %v2672, 16
          %v2842 = vrot.slane %v2840, 5
          %v2843 = vsel %vm563, %v2838, %v2842
          %v2845 = vshrl.u32 %v2673, 16
          %v2847 = vrot.slane %v2845, 4
          %v2848 = vshll.u32 %v2673, 16
          %v2850 = vrot.slane %v2848, 5
          %v2851 = vor.u32 %v2847, %v2850
          %v2852 = vrot.slane %v2851, 4
          %v2854 = vshll.u32 %v2674, 16
          %v2856 = vrot.slane %v2854, 5
          %v2857 = vsel %vm563, %v2852, %v2856
          %v2858 = vshrl.u32 %v2674, 16
          %v2860 = vrot.slane %v2858, 4
          %v2861 = vor.u32 %v2860, %v2856
          %v2862 = vrot.slane %v2861, 4
          %v2864 = vshll.u32 %v2675, 16
          %v2866 = vrot.slane %v2864, 5
          %v2867 = vsel %vm563, %v2862, %v2866
          %s2868 = scalar_lea.vmem %s1, 448
          %v2869 = vld [vmem:[%s2868] sm:$0xf]
          %v2870 = vld [vmem:[%s2868 + $0x4] sm:$0xf]
          %v2871 = vld [vmem:[%s2868 + $0x8] sm:$0xf]
          %v2872 = vld [vmem:[%s2868 + $0xc] sm:$0xf]
          %v2873 = vld [vmem:[%s2868 + $0x10] sm:$0xf]
          %v2874 = vld [vmem:[%s2868 + $0x14] sm:$0xf]
          %v2875 = vld [vmem:[%s2868 + $0x18] sm:$0xf]
          %v2876 = vld [vmem:[%s2868 + $0x1c] sm:$0xf]
          %v2877 = vld [vmem:[%s2868 + $0x20] sm:$0xf]
          %v2878 = vld [vmem:[%s2868 + $0x24] sm:$0xf]
          %v2879 = vld [vmem:[%s2868 + $0x28] sm:$0xf]
          %v2880 = vld [vmem:[%s2868 + $0x2c] sm:$0xf]
          %v2881 = vld [vmem:[%s2868 + $0x30] sm:$0xf]
          %v2882 = vld [vmem:[%s2868 + $0x34] sm:$0xf]
          %v2883 = vld [vmem:[%s2868 + $0x38] sm:$0xf]
          %v2884 = vld [vmem:[%s2868 + $0x3c] sm:$0xf]
          %v2885 = vunpack.c.l.b16 %v2689
          %v2886 = vunpack.c.l.b16 %v2699
          %v2887 = vunpack.c.l.b16 %v2713
          %v2888 = vunpack.c.l.b16 %v2723
          %v2889 = vunpack.c.l.b16 %v2737
          %v2890 = vunpack.c.l.b16 %v2747
          %v2891 = vunpack.c.l.b16 %v2761
          %v2892 = vunpack.c.l.b16 %v2771
          %v2893 = vunpack.c.l.b16 %v2785
          %v2894 = vunpack.c.l.b16 %v2795
          %v2895 = vunpack.c.l.b16 %v2809
          %v2896 = vunpack.c.l.b16 %v2819
          %v2897 = vunpack.c.l.b16 %v2833
          %v2898 = vunpack.c.l.b16 %v2843
          %v2899 = vunpack.c.l.b16 %v2857
          %v2900 = vunpack.c.l.b16 %v2867
          %v2901 = vpack.c.b16 %v2886, %v2885
          %v2902 = vpack.c.b16 %v2888, %v2887
          %v2903 = vpack.c.b16 %v2890, %v2889
          %v2904 = vpack.c.b16 %v2892, %v2891
          %v2905 = vpack.c.b16 %v2894, %v2893
          %v2906 = vpack.c.b16 %v2896, %v2895
          %v2907 = vpack.c.b16 %v2898, %v2897
          %v2908 = vpack.c.b16 %v2900, %v2899
          %v2933 = vunpack.c.l.b16 %v2869
          %v2934 = vunpack.c.l.b16 %v2870
          %v2935 = vunpack.c.l.b16 %v2871
          %v2936 = vunpack.c.l.b16 %v2872
          %v2937 = vunpack.c.l.b16 %v2873
          %v2938 = vunpack.c.l.b16 %v2874
          %v2939 = vunpack.c.l.b16 %v2875
          %v2940 = vunpack.c.l.b16 %v2876
          %v2941 = vunpack.c.l.b16 %v2877
          %v2942 = vunpack.c.l.b16 %v2878
          %v2943 = vunpack.c.l.b16 %v2879
          %v2944 = vunpack.c.l.b16 %v2880
          %v2945 = vunpack.c.l.b16 %v2881
          %v2946 = vunpack.c.l.b16 %v2882
          %v2947 = vunpack.c.l.b16 %v2883
          %v2948 = vunpack.c.l.b16 %v2884
          %v2949 = vpack.c.b16 %v2934, %v2933
          %v2950 = vpack.c.b16 %v2936, %v2935
          %v2951 = vpack.c.b16 %v2938, %v2937
          %v2952 = vpack.c.b16 %v2940, %v2939
          %v2953 = vpack.c.b16 %v2942, %v2941
          %v2954 = vpack.c.b16 %v2944, %v2943
          %v2955 = vpack.c.b16 %v2946, %v2945
          %v2956 = vpack.c.b16 %v2948, %v2947
          %2965 = vmatprep.subr.bf16.mxu0 0
          %2966 = vmatpush1.bf16.msra.mxu0 %v2949
          %2967 = vmatprep.subr.bf16.mxu0 0
          %2968 = vmatpush1.bf16.msra.mxu0 %v2950
          %2969 = vmatprep.subr.bf16.mxu0 0
          %2970 = vmatpush1.bf16.msra.mxu0 %v2951
          %2971 = vmatprep.subr.bf16.mxu0 0
          %2972 = vmatpush1.bf16.msra.mxu0 %v2952
          %2973 = vmatprep.subr.bf16.mxu0 0
          %2974 = vmatpush1.bf16.msra.mxu0 %v2953
          %2975 = vmatprep.subr.bf16.mxu0 0
          %2976 = vmatpush1.bf16.msra.mxu0 %v2954
          %2977 = vmatprep.subr.bf16.mxu0 0
          %2978 = vmatpush1.bf16.msra.mxu0 %v2955
          %2979 = vmatprep.subr.bf16.mxu0 0
          %2980 = vmatpush1.bf16.msra.mxu0 %v2956
          %2981 = vmatprep.subr.bf16.mxu0 0
          %2982 = vmatpush1.bf16.msra.mxu0 0
          %2983 = vmatprep.subr.bf16.mxu0 0
          %2984 = vmatpush1.bf16.msra.mxu0 0
          %2985 = vmatprep.subr.bf16.mxu0 0
          %2986 = vmatpush1.bf16.msra.mxu0 0
          %2987 = vmatprep.subr.bf16.mxu0 0
          %2988 = vmatpush1.bf16.msra.mxu0 0
          %2989 = vmatprep.subr.bf16.mxu0 0
          %2990 = vmatpush1.bf16.msra.mxu0 0
          %2991 = vmatprep.subr.bf16.mxu0 0
          %2992 = vmatpush1.bf16.msra.mxu0 0
          %2993 = vmatprep.subr.bf16.mxu0 0
          %2994 = vmatpush1.bf16.msra.mxu0 0
          %2995 = vmatprep.subr.bf16.mxu0 0
          %2996 = vmatpush1.bf16.msra.mxu0 0
          %2997 = vmatprep.mubr.bf16.mxu0 0
          %2998 = vmatmul.mubr.bf16.gmra.mrb[0].mxu0 %v2901
          %v2999 = vpop.f32.mrb[0].mxu0
          %v3000 = vadd.f32 0.0, %v2999
          %v3001 = vpop.f32.mrb[0].mxu0
          %v3002 = vpop.f32.mrb[0].mxu0
          %v3003 = vadd.f32 0.0, %v3002
          %v3004 = vpop.f32.mrb[0].mxu0
          %3005 = vmatprep.mubr.bf16.mxu0 0
          %3006 = vmatmul.mubr.bf16.gmra.mrb[0].mxu0 %v2902
          %v3007 = vpop.f32.mrb[0].mxu0
          %v3008 = vadd.f32 0.0, %v3007
          %v3009 = vpop.f32.mrb[0].mxu0
          %v3010 = vpop.f32.mrb[0].mxu0
          %v3011 = vadd.f32 0.0, %v3010
          %v3012 = vpop.f32.mrb[0].mxu0
          %3013 = vmatprep.mubr.bf16.mxu0 0
          %3014 = vmatmul.mubr.bf16.gmra.mrb[0].mxu0 %v2903
          %v3015 = vpop.f32.mrb[0].mxu0
          %v3016 = vadd.f32 0.0, %v3015
          %v3017 = vpop.f32.mrb[0].mxu0
          %v3018 = vpop.f32.mrb[0].mxu0
          %v3019 = vadd.f32 0.0, %v3018
          %v3020 = vpop.f32.mrb[0].mxu0
          %3021 = vmatprep.mubr.bf16.mxu0 0
          %3022 = vmatmul.mubr.bf16.gmra.mrb[0].mxu0 %v2904
          %v3023 = vpop.f32.mrb[0].mxu0
          %v3024 = vadd.f32 0.0, %v3023
          %v3025 = vpop.f32.mrb[0].mxu0
          %v3026 = vpop.f32.mrb[0].mxu0
          %v3027 = vadd.f32 0.0, %v3026
          %v3028 = vpop.f32.mrb[0].mxu0
          %3029 = vmatprep.mubr.bf16.mxu0 0
          %3030 = vmatmul.mubr.bf16.gmra.mrb[0].mxu0 %v2905
          %v3031 = vpop.f32.mrb[0].mxu0
          %v3032 = vadd.f32 0.0, %v3031
          %v3033 = vpop.f32.mrb[0].mxu0
          %v3034 = vpop.f32.mrb[0].mxu0
          %v3035 = vadd.f32 0.0, %v3034
          %v3036 = vpop.f32.mrb[0].mxu0
          %3037 = vmatprep.mubr.bf16.mxu0 0
          %3038 = vmatmul.mubr.bf16.gmra.mrb[0].mxu0 %v2906
          %v3039 = vpop.f32.mrb[0].mxu0
          %v3040 = vadd.f32 0.0, %v3039
          %v3041 = vpop.f32.mrb[0].mxu0
          %v3042 = vpop.f32.mrb[0].mxu0
          %v3043 = vadd.f32 0.0, %v3042
          %v3044 = vpop.f32.mrb[0].mxu0
          %3045 = vmatprep.mubr.bf16.mxu0 0
          %3046 = vmatmul.mubr.bf16.gmra.mrb[0].mxu0 %v2907
          %v3047 = vpop.f32.mrb[0].mxu0
          %v3048 = vadd.f32 0.0, %v3047
          %v3049 = vpop.f32.mrb[0].mxu0
          %v3050 = vpop.f32.mrb[0].mxu0
          %v3051 = vadd.f32 0.0, %v3050
          %v3052 = vpop.f32.mrb[0].mxu0
          %3053 = vmatprep.mubr.bf16.mxu0 0
          %3054 = vmatmul.mubr.bf16.gmra.mrb[0].mxu0 %v2908
          %v3055 = vpop.f32.mrb[0].mxu0
          %v3056 = vadd.f32 0.0, %v3055
          %v3057 = vpop.f32.mrb[0].mxu0
          %v3058 = vpop.f32.mrb[0].mxu0
          %v3059 = vadd.f32 0.0, %v3058
          %v3060 = vpop.f32.mrb[0].mxu0
          %3061 = vdwg.mxu0
          %v3062 = vadd.f32 %v2636, %v3000
          %v3063 = vadd.f32 %v2637, %v3003
          %v3064 = vadd.f32 %v2638, %v3008
          %v3065 = vadd.f32 %v2639, %v3011
          %v3066 = vadd.f32 %v2640, %v3016
          %v3067 = vadd.f32 %v2641, %v3019
          %v3068 = vadd.f32 %v2642, %v3024
          %v3069 = vadd.f32 %v2643, %v3027
          %v3070 = vadd.f32 %v2644, %v3032
          %v3071 = vadd.f32 %v2645, %v3035
          %v3072 = vadd.f32 %v2646, %v3040
          %v3073 = vadd.f32 %v2647, %v3043
          %v3074 = vadd.f32 %v2648, %v3048
          %v3075 = vadd.f32 %v2649, %v3051
          %v3076 = vadd.f32 %v2650, %v3056
          %v3077 = vadd.f32 %v2651, %v3059
          %v3078 = vld [vmem:[%s2409] sm:$0xe]
          %v3079 = vld [vmem:[%s2409 + $0xc] sm:$0xe]
          %v3080 = vld [vmem:[%s2409 + $0x18] sm:$0xe]
          %v3081 = vld [vmem:[%s2409 + $0x24] sm:$0xe]
          %v3082 = vld [vmem:[%s2409 + $0x30] sm:$0xe]
          %v3083 = vld [vmem:[%s2409 + $0x3c] sm:$0xe]
          %v3084 = vld [vmem:[%s2409 + $0x48] sm:$0xe]
          %v3085 = vld [vmem:[%s2409 + $0x54] sm:$0xe]
          %v3110 = vrot.slane %v3078, 5
          %v3111 = vrot.slane %v3110, 4
          %v3112 = vrot.slane %v2653, 5
          %v3113 = vsel %vm1169, %v3111, %v3112
          %v3114 = vrot.slane %v3112, 4
          %v3115 = vrot.slane %v2654, 5
          %v3116 = vsel %vm1169, %v3114, %v3115
          %v3117 = vrot.slane %v3079, 5
          %v3118 = vrot.slane %v3117, 4
          %v3119 = vrot.slane %v2656, 5
          %v3120 = vsel %vm1169, %v3118, %v3119
          %v3121 = vrot.slane %v3119, 4
          %v3122 = vrot.slane %v2657, 5
          %v3123 = vsel %vm1169, %v3121, %v3122
          %v3124 = vrot.slane %v3080, 5
          %v3125 = vrot.slane %v3124, 4
          %v3126 = vrot.slane %v2659, 5
          %v3127 = vsel %vm1169, %v3125, %v3126
          %v3128 = vrot.slane %v3126, 4
          %v3129 = vrot.slane %v2660, 5
          %v3130 = vsel %vm1169, %v3128, %v3129
          %v3131 = vrot.slane %v3081, 5
          %v3132 = vrot.slane %v3131, 4
          %v3133 = vrot.slane %v2662, 5
          %v3134 = vsel %vm1169, %v3132, %v3133
          %v3135 = vrot.slane %v3133, 4
          %v3136 = vrot.slane %v2663, 5
          %v3137 = vsel %vm1169, %v3135, %v3136
          %v3138 = vrot.slane %v3082, 5
          %v3139 = vrot.slane %v3138, 4
          %v3140 = vrot.slane %v2665, 5
          %v3141 = vsel %vm1169, %v3139, %v3140
          %v3142 = vrot.slane %v3140, 4
          %v3143 = vrot.slane %v2666, 5
          %v3144 = vsel %vm1169, %v3142, %v3143
          %v3145 = vrot.slane %v3083, 5
          %v3146 = vrot.slane %v3145, 4
          %v3147 = vrot.slane %v2668, 5
          %v3148 = vsel %vm1169, %v3146, %v3147
          %v3149 = vrot.slane %v3147, 4
          %v3150 = vrot.slane %v2669, 5
          %v3151 = vsel %vm1169, %v3149, %v3150
          %v3152 = vrot.slane %v3084, 5
          %v3153 = vrot.slane %v3152, 4
          %v3154 = vrot.slane %v2671, 5
          %v3155 = vsel %vm1169, %v3153, %v3154
          %v3156 = vrot.slane %v3154, 4
          %v3157 = vrot.slane %v2672, 5
          %v3158 = vsel %vm1169, %v3156, %v3157
          %v3159 = vrot.slane %v3085, 5
          %v3160 = vrot.slane %v3159, 4
          %v3161 = vrot.slane %v2674, 5
          %v3162 = vsel %vm1169, %v3160, %v3161
          %v3163 = vrot.slane %v3161, 4
          %v3164 = vrot.slane %v2675, 5
          %v3165 = vsel %vm1169, %v3163, %v3164
          %s3166 = scalar_lea.vmem %s1, 512
          %v3167 = vld [vmem:[%s3166] sm:$0xf]
          %v3168 = vld [vmem:[%s3166 + $0x4] sm:$0xf]
          %v3169 = vld [vmem:[%s3166 + $0x8] sm:$0xf]
          %v3170 = vld [vmem:[%s3166 + $0xc] sm:$0xf]
          %v3171 = vld [vmem:[%s3166 + $0x10] sm:$0xf]
          %v3172 = vld [vmem:[%s3166 + $0x14] sm:$0xf]
          %v3173 = vld [vmem:[%s3166 + $0x18] sm:$0xf]
          %v3174 = vld [vmem:[%s3166 + $0x1c] sm:$0xf]
          %v3175 = vld [vmem:[%s3166 + $0x20] sm:$0xf]
          %v3176 = vld [vmem:[%s3166 + $0x24] sm:$0xf]
          %v3177 = vld [vmem:[%s3166 + $0x28] sm:$0xf]
          %v3178 = vld [vmem:[%s3166 + $0x2c] sm:$0xf]
          %v3179 = vld [vmem:[%s3166 + $0x30] sm:$0xf]
          %v3180 = vld [vmem:[%s3166 + $0x34] sm:$0xf]
          %v3181 = vld [vmem:[%s3166 + $0x38] sm:$0xf]
          %v3182 = vld [vmem:[%s3166 + $0x3c] sm:$0xf]
          %v3183 = vunpack.c.l.b16 %v3113
          %v3184 = vunpack.c.l.b16 %v3116
          %v3185 = vunpack.c.l.b16 %v3120
          %v3186 = vunpack.c.l.b16 %v3123
          %v3187 = vunpack.c.l.b16 %v3127
          %v3188 = vunpack.c.l.b16 %v3130
          %v3189 = vunpack.c.l.b16 %v3134
          %v3190 = vunpack.c.l.b16 %v3137
          %v3191 = vunpack.c.l.b16 %v3141
          %v3192 = vunpack.c.l.b16 %v3144
          %v3193 = vunpack.c.l.b16 %v3148
          %v3194 = vunpack.c.l.b16 %v3151
          %v3195 = vunpack.c.l.b16 %v3155
          %v3196 = vunpack.c.l.b16 %v3158
          %v3197 = vunpack.c.l.b16 %v3162
          %v3198 = vunpack.c.l.b16 %v3165
          %v3199 = vpack.c.b16 %v3184, %v3183
          %v3200 = vpack.c.b16 %v3186, %v3185
          %v3201 = vpack.c.b16 %v3188, %v3187
          %v3202 = vpack.c.b16 %v3190, %v3189
          %v3203 = vpack.c.b16 %v3192, %v3191
          %v3204 = vpack.c.b16 %v3194, %v3193
          %v3205 = vpack.c.b16 %v3196, %v3195
          %v3206 = vpack.c.b16 %v3198, %v3197
          %v3231 = vunpack.c.l.b16 %v3167
          %v3232 = vunpack.c.l.b16 %v3168
          %v3233 = vunpack.c.l.b16 %v3169
          %v3234 = vunpack.c.l.b16 %v3170
          %v3235 = vunpack.c.l.b16 %v3171
          %v3236 = vunpack.c.l.b16 %v3172
          %v3237 = vunpack.c.l.b16 %v3173
          %v3238 = vunpack.c.l.b16 %v3174
          %v3239 = vunpack.c.l.b16 %v3175
          %v3240 = vunpack.c.l.b16 %v3176
          %v3241 = vunpack.c.l.b16 %v3177
          %v3242 = vunpack.c.l.b16 %v3178
          %v3243 = vunpack.c.l.b16 %v3179
          %v3244 = vunpack.c.l.b16 %v3180
          %v3245 = vunpack.c.l.b16 %v3181
          %v3246 = vunpack.c.l.b16 %v3182
          %v3247 = vpack.c.b16 %v3232, %v3231
          %v3248 = vpack.c.b16 %v3234, %v3233
          %v3249 = vpack.c.b16 %v3236, %v3235
          %v3250 = vpack.c.b16 %v3238, %v3237
          %v3251 = vpack.c.b16 %v3240, %v3239
          %v3252 = vpack.c.b16 %v3242, %v3241
          %v3253 = vpack.c.b16 %v3244, %v3243
          %v3254 = vpack.c.b16 %v3246, %v3245
          %3263 = vmatprep.subr.bf16.mxu0 0
          %3264 = vmatpush1.bf16.msra.mxu0 %v3247
          %3265 = vmatprep.subr.bf16.mxu0 0
          %3266 = vmatpush1.bf16.msra.mxu0 %v3248
          %3267 = vmatprep.subr.bf16.mxu0 0
          %3268 = vmatpush1.bf16.msra.mxu0 %v3249
          %3269 = vmatprep.subr.bf16.mxu0 0
          %3270 = vmatpush1.bf16.msra.mxu0 %v3250
          %3271 = vmatprep.subr.bf16.mxu0 0
          %3272 = vmatpush1.bf16.msra.mxu0 %v3251
          %3273 = vmatprep.subr.bf16.mxu0 0
          %3274 = vmatpush1.bf16.msra.mxu0 %v3252
          %3275 = vmatprep.subr.bf16.mxu0 0
          %3276 = vmatpush1.bf16.msra.mxu0 %v3253
          %3277 = vmatprep.subr.bf16.mxu0 0
          %3278 = vmatpush1.bf16.msra.mxu0 %v3254
          %3279 = vmatprep.subr.bf16.mxu0 0
          %3280 = vmatpush1.bf16.msra.mxu0 0
          %3281 = vmatprep.subr.bf16.mxu0 0
          %3282 = vmatpush1.bf16.msra.mxu0 0
          %3283 = vmatprep.subr.bf16.mxu0 0
          %3284 = vmatpush1.bf16.msra.mxu0 0
          %3285 = vmatprep.subr.bf16.mxu0 0
          %3286 = vmatpush1.bf16.msra.mxu0 0
          %3287 = vmatprep.subr.bf16.mxu0 0
          %3288 = vmatpush1.bf16.msra.mxu0 0
          %3289 = vmatprep.subr.bf16.mxu0 0
          %3290 = vmatpush1.bf16.msra.mxu0 0
          %3291 = vmatprep.subr.bf16.mxu0 0
          %3292 = vmatpush1.bf16.msra.mxu0 0
          %3293 = vmatprep.subr.bf16.mxu0 0
          %3294 = vmatpush1.bf16.msra.mxu0 0
          %3295 = vmatprep.mubr.bf16.mxu0 0
          %3296 = vmatmul.mubr.bf16.gmra.mrb[0].mxu0 %v3199
          %v3297 = vpop.f32.mrb[0].mxu0
          %v3298 = vadd.f32 0.0, %v3297
          %v3299 = vpop.f32.mrb[0].mxu0
          %v3300 = vpop.f32.mrb[0].mxu0
          %v3301 = vadd.f32 0.0, %v3300
          %v3302 = vpop.f32.mrb[0].mxu0
          %3303 = vmatprep.mubr.bf16.mxu0 0
          %3304 = vmatmul.mubr.bf16.gmra.mrb[0].mxu0 %v3200
          %v3305 = vpop.f32.mrb[0].mxu0
          %v3306 = vadd.f32 0.0, %v3305
          %v3307 = vpop.f32.mrb[0].mxu0
          %v3308 = vpop.f32.mrb[0].mxu0
          %v3309 = vadd.f32 0.0, %v3308
          %v3310 = vpop.f32.mrb[0].mxu0
          %3311 = vmatprep.mubr.bf16.mxu0 0
          %3312 = vmatmul.mubr.bf16.gmra.mrb[0].mxu0 %v3201
          %v3313 = vpop.f32.mrb[0].mxu0
          %v3314 = vadd.f32 0.0, %v3313
          %v3315 = vpop.f32.mrb[0].mxu0
          %v3316 = vpop.f32.mrb[0].mxu0
          %v3317 = vadd.f32 0.0, %v3316
          %v3318 = vpop.f32.mrb[0].mxu0
          %3319 = vmatprep.mubr.bf16.mxu0 0
          %3320 = vmatmul.mubr.bf16.gmra.mrb[0].mxu0 %v3202
          %v3321 = vpop.f32.mrb[0].mxu0
          %v3322 = vadd.f32 0.0, %v3321
          %v3323 = vpop.f32.mrb[0].mxu0
          %v3324 = vpop.f32.mrb[0].mxu0
          %v3325 = vadd.f32 0.0, %v3324
          %v3326 = vpop.f32.mrb[0].mxu0
          %3327 = vmatprep.mubr.bf16.mxu0 0
          %3328 = vmatmul.mubr.bf16.gmra.mrb[0].mxu0 %v3203
          %v3329 = vpop.f32.mrb[0].mxu0
          %v3330 = vadd.f32 0.0, %v3329
          %v3331 = vpop.f32.mrb[0].mxu0
          %v3332 = vpop.f32.mrb[0].mxu0
          %v3333 = vadd.f32 0.0, %v3332
          %v3334 = vpop.f32.mrb[0].mxu0
          %3335 = vmatprep.mubr.bf16.mxu0 0
          %3336 = vmatmul.mubr.bf16.gmra.mrb[0].mxu0 %v3204
          %v3337 = vpop.f32.mrb[0].mxu0
          %v3338 = vadd.f32 0.0, %v3337
          %v3339 = vpop.f32.mrb[0].mxu0
          %v3340 = vpop.f32.mrb[0].mxu0
          %v3341 = vadd.f32 0.0, %v3340
          %v3342 = vpop.f32.mrb[0].mxu0
          %3343 = vmatprep.mubr.bf16.mxu0 0
          %3344 = vmatmul.mubr.bf16.gmra.mrb[0].mxu0 %v3205
          %v3345 = vpop.f32.mrb[0].mxu0
          %v3346 = vadd.f32 0.0, %v3345
          %v3347 = vpop.f32.mrb[0].mxu0
          %v3348 = vpop.f32.mrb[0].mxu0
          %v3349 = vadd.f32 0.0, %v3348
          %v3350 = vpop.f32.mrb[0].mxu0
          %3351 = vmatprep.mubr.bf16.mxu0 0
          %3352 = vmatmul.mubr.bf16.gmra.mrb[0].mxu0 %v3206
          %v3353 = vpop.f32.mrb[0].mxu0
          %v3354 = vadd.f32 0.0, %v3353
          %v3355 = vpop.f32.mrb[0].mxu0
          %v3356 = vpop.f32.mrb[0].mxu0
          %v3357 = vadd.f32 0.0, %v3356
          %v3358 = vpop.f32.mrb[0].mxu0
          %3359 = vdwg.mxu0
          %v3360 = vadd.f32 %v3062, %v3298
          %v3361 = vadd.f32 %v3063, %v3301
          %v3362 = vadd.f32 %v3064, %v3306
          %v3363 = vadd.f32 %v3065, %v3309
          %v3364 = vadd.f32 %v3066, %v3314
          %v3365 = vadd.f32 %v3067, %v3317
          %v3366 = vadd.f32 %v3068, %v3322
          %v3367 = vadd.f32 %v3069, %v3325
          %v3368 = vadd.f32 %v3070, %v3330
          %v3369 = vadd.f32 %v3071, %v3333
          %v3370 = vadd.f32 %v3072, %v3338
          %v3371 = vadd.f32 %v3073, %v3341
          %v3372 = vadd.f32 %v3074, %v3346
          %v3373 = vadd.f32 %v3075, %v3349
          %v3374 = vadd.f32 %v3076, %v3354
          %v3375 = vadd.f32 %v3077, %v3357
          %v3376 = vld [vmem:[%s2] sm:$0x1]
          %v3378 = vlaneseq
          %v3379 = vshrl.u32 %v3378, 7
          %v3380 = vsub.s32 0, %v3379
          %v3381 = vrot.slane %v3376, %v3380
          %v3383 = vmul.f32 %v3360, %v3381
          %v3384 = vmul.f32 %v3361, %v3381
          %v3385 = vmul.f32 %v3362, %v3381
          %v3386 = vmul.f32 %v3363, %v3381
          %v3387 = vmul.f32 %v3364, %v3381
          %v3388 = vmul.f32 %v3365, %v3381
          %v3389 = vmul.f32 %v3366, %v3381
          %v3390 = vmul.f32 %v3367, %v3381
          %v3391 = vmul.f32 %v3368, %v3381
          %v3392 = vmul.f32 %v3369, %v3381
          %v3393 = vmul.f32 %v3370, %v3381
          %v3394 = vmul.f32 %v3371, %v3381
          %v3395 = vmul.f32 %v3372, %v3381
          %v3396 = vmul.f32 %v3373, %v3381
          %v3397 = vmul.f32 %v3374, %v3381
          %v3398 = vmul.f32 %v3375, %v3381
          %v3399 = vld [vmem:[%s3] sm:$0x1]
          %v3401 = vlaneseq
          %v3402 = vshrl.u32 %v3401, 7
          %v3403 = vsub.s32 0, %v3402
          %v3404 = vrot.slane %v3399, %v3403
          %v3406 = vadd.f32 %v3383, %v3404
          %v3407 = vadd.f32 %v3384, %v3404
          %v3408 = vadd.f32 %v3385, %v3404
          %v3409 = vadd.f32 %v3386, %v3404
          %v3410 = vadd.f32 %v3387, %v3404
          %v3411 = vadd.f32 %v3388, %v3404
          %v3412 = vadd.f32 %v3389, %v3404
          %v3413 = vadd.f32 %v3390, %v3404
          %v3414 = vadd.f32 %v3391, %v3404
          %v3415 = vadd.f32 %v3392, %v3404
          %v3416 = vadd.f32 %v3393, %v3404
          %v3417 = vadd.f32 %v3394, %v3404
          %v3418 = vadd.f32 %v3395, %v3404
          %v3419 = vadd.f32 %v3396, %v3404
          %v3420 = vadd.f32 %v3397, %v3404
          %v3421 = vadd.f32 %v3398, %v3404
          %v3422 = vmax.f32 %v3406, 0.0
          %v3423 = vmax.f32 %v3407, 0.0
          %v3424 = vmax.f32 %v3408, 0.0
          %v3425 = vmax.f32 %v3409, 0.0
          %v3426 = vmax.f32 %v3410, 0.0
          %v3427 = vmax.f32 %v3411, 0.0
          %v3428 = vmax.f32 %v3412, 0.0
          %v3429 = vmax.f32 %v3413, 0.0
          %v3430 = vmax.f32 %v3414, 0.0
          %v3431 = vmax.f32 %v3415, 0.0
          %v3432 = vmax.f32 %v3416, 0.0
          %v3433 = vmax.f32 %v3417, 0.0
          %v3434 = vmax.f32 %v3418, 0.0
          %v3435 = vmax.f32 %v3419, 0.0
          %v3436 = vmax.f32 %v3420, 0.0
          %v3437 = vmax.f32 %v3421, 0.0
          %vm3454 = vcmask 1040384
          %v3455 = vrot.slane %v3422, 7
          %v3456 = vrot.slane %v3423, 7
          %v3457 = vsel %vm3454, %v3455, %v3456
          %v3458 = vrot.slane %v3424, 7
          %v3459 = vrot.slane %v3425, 7
          %v3460 = vsel %vm3454, %v3458, %v3459
          %v3461 = vrot.slane %v3426, 7
          %v3462 = vrot.slane %v3427, 7
          %v3463 = vsel %vm3454, %v3461, %v3462
          %v3464 = vrot.slane %v3428, 7
          %v3465 = vrot.slane %v3429, 7
          %v3466 = vsel %vm3454, %v3464, %v3465
          %v3467 = vrot.slane %v3430, 7
          %v3468 = vrot.slane %v3431, 7
          %v3469 = vsel %vm3454, %v3467, %v3468
          %v3470 = vrot.slane %v3432, 7
          %v3471 = vrot.slane %v3433, 7
          %v3472 = vsel %vm3454, %v3470, %v3471
          %v3473 = vrot.slane %v3434, 7
          %v3474 = vrot.slane %v3435, 7
          %v3475 = vsel %vm3454, %v3473, %v3474
          %v3476 = vrot.slane %v3436, 7
          %v3477 = vrot.slane %v3437, 7
          %v3478 = vsel %vm3454, %v3476, %v3477
          %v3503 = vsel %vm3454, 0.0, %v3455
          %v3504 = vsel %vm3454, 0.0, %v3458
          %v3505 = vsel %vm3454, 0.0, %v3461
          %v3506 = vsel %vm3454, 0.0, %v3464
          %v3507 = vsel %vm3454, 0.0, %v3467
          %v3508 = vsel %vm3454, 0.0, %v3470
          %v3509 = vsel %vm3454, 0.0, %v3473
          %v3510 = vsel %vm3454, 0.0, %v3476
          %v3511 = vsel %vm3454, %v3456, 0.0
          %v3512 = vsel %vm3454, %v3459, 0.0
          %v3513 = vsel %vm3454, %v3462, 0.0
          %v3514 = vsel %vm3454, %v3465, 0.0
          %v3515 = vsel %vm3454, %v3468, 0.0
          %v3516 = vsel %vm3454, %v3471, 0.0
          %v3517 = vsel %vm3454, %v3474, 0.0
          %v3518 = vsel %vm3454, %v3477, 0.0
          %v3519 = vpack.c.bf16 %v3457, %v3503
          %v3520 = vpack.c.bf16 %v3511, %v3511
          %v3521 = vpack.c.bf16 %v3460, %v3504
          %v3522 = vpack.c.bf16 %v3512, %v3512
          %v3523 = vpack.c.bf16 %v3463, %v3505
          %v3524 = vpack.c.bf16 %v3513, %v3513
          %v3525 = vpack.c.bf16 %v3466, %v3506
          %v3526 = vpack.c.bf16 %v3514, %v3514
          %v3527 = vpack.c.bf16 %v3469, %v3507
          %v3528 = vpack.c.bf16 %v3515, %v3515
          %v3529 = vpack.c.bf16 %v3472, %v3508
          %v3530 = vpack.c.bf16 %v3516, %v3516
          %v3531 = vpack.c.bf16 %v3475, %v3509
          %v3532 = vpack.c.bf16 %v3517, %v3517
          %v3533 = vpack.c.bf16 %v3478, %v3510
          %v3534 = vpack.c.bf16 %v3518, %v3518
          %v3551 = vunpack.c.l.b16 %v3519
          %v3552 = vunpack.c.h.b16 %v3519
          %v3553 = vunpack.c.l.b16 %v3520
          %v3554 = vunpack.c.l.b16 %v3521
          %v3555 = vunpack.c.h.b16 %v3521
          %v3556 = vunpack.c.l.b16 %v3522
          %v3557 = vunpack.c.l.b16 %v3523
          %v3558 = vunpack.c.h.b16 %v3523
          %v3559 = vunpack.c.l.b16 %v3524
          %v3560 = vunpack.c.l.b16 %v3525
          %v3561 = vunpack.c.h.b16 %v3525
          %v3562 = vunpack.c.l.b16 %v3526
          %v3563 = vunpack.c.l.b16 %v3527
          %v3564 = vunpack.c.h.b16 %v3527
          %v3565 = vunpack.c.l.b16 %v3528
          %v3566 = vunpack.c.l.b16 %v3529
          %v3567 = vunpack.c.h.b16 %v3529
          %v3568 = vunpack.c.l.b16 %v3530
          %v3569 = vunpack.c.l.b16 %v3531
          %v3570 = vunpack.c.h.b16 %v3531
          %v3571 = vunpack.c.l.b16 %v3532
          %v3572 = vunpack.c.l.b16 %v3533
          %v3573 = vunpack.c.h.b16 %v3533
          %v3574 = vunpack.c.l.b16 %v3534
          %v3575 = vpack.c.b16 %v3551, %v3551
          %v3576 = vpack.c.b16 %v3552, %v3552
          %v3577 = vpack.c.b16 %v3553, %v3553
          %v3578 = vpack.c.b16 %v3554, %v3554
          %v3579 = vpack.c.b16 %v3555, %v3555
          %v3580 = vpack.c.b16 %v3556, %v3556
          %v3581 = vpack.c.b16 %v3557, %v3557
          %v3582 = vpack.c.b16 %v3558, %v3558
          %v3583 = vpack.c.b16 %v3559, %v3559
          %v3584 = vpack.c.b16 %v3560, %v3560
          %v3585 = vpack.c.b16 %v3561, %v3561
          %v3586 = vpack.c.b16 %v3562, %v3562
          %v3587 = vpack.c.b16 %v3563, %v3563
          %v3588 = vpack.c.b16 %v3564, %v3564
          %v3589 = vpack.c.b16 %v3565, %v3565
          %v3590 = vpack.c.b16 %v3566, %v3566
          %v3591 = vpack.c.b16 %v3567, %v3567
          %v3592 = vpack.c.b16 %v3568, %v3568
          %v3593 = vpack.c.b16 %v3569, %v3569
          %v3594 = vpack.c.b16 %v3570, %v3570
          %v3595 = vpack.c.b16 %v3571, %v3571
          %v3596 = vpack.c.b16 %v3572, %v3572
          %v3597 = vpack.c.b16 %v3573, %v3573
          %v3598 = vpack.c.b16 %v3574, %v3574
          %s3623 = smul.addr %s1437, 4
          %s3624 = scalar_lea.vmem [#allocation3], %s3623
          %3625 = vst [vmem:[%s3624] sm:$0xf] %v3575
          %3626 = vst [vmem:[%s3624 + $0x4] sm:$0xf] %v3576
          %3627 = vst [vmem:[%s3624 + $0x8] sm:$0x1] %v3577
          %3628 = vst [vmem:[%s3624 + $0xc] sm:$0xf] %v3578
          %3629 = vst [vmem:[%s3624 + $0x10] sm:$0xf] %v3579
          %3630 = vst [vmem:[%s3624 + $0x14] sm:$0x1] %v3580
          %3631 = vst [vmem:[%s3624 + $0x18] sm:$0xf] %v3581
          %3632 = vst [vmem:[%s3624 + $0x1c] sm:$0xf] %v3582
          %3633 = vst [vmem:[%s3624 + $0x20] sm:$0x1] %v3583
          %3634 = vst [vmem:[%s3624 + $0x24] sm:$0xf] %v3584
          %3635 = vst [vmem:[%s3624 + $0x28] sm:$0xf] %v3585
          %3636 = vst [vmem:[%s3624 + $0x2c] sm:$0x1] %v3586
          %3637 = vst [vmem:[%s3624 + $0x30] sm:$0xf] %v3587
          %3638 = vst [vmem:[%s3624 + $0x34] sm:$0xf] %v3588
          %3639 = vst [vmem:[%s3624 + $0x38] sm:$0x1] %v3589
          %3640 = vst [vmem:[%s3624 + $0x3c] sm:$0xf] %v3590
          %3641 = vst [vmem:[%s3624 + $0x40] sm:$0xf] %v3591
          %3642 = vst [vmem:[%s3624 + $0x44] sm:$0x1] %v3592
          %3643 = vst [vmem:[%s3624 + $0x48] sm:$0xf] %v3593
          %3644 = vst [vmem:[%s3624 + $0x4c] sm:$0xf] %v3594
          %3645 = vst [vmem:[%s3624 + $0x50] sm:$0x1] %v3595
          %3646 = vst [vmem:[%s3624 + $0x54] sm:$0xf] %v3596
          %3647 = vst [vmem:[%s3624 + $0x58] sm:$0xf] %v3597
          %3648 = vst [vmem:[%s3624 + $0x5c] sm:$0x1] %v3598
        $region72: #{tpu_custom_call.1} parent=59 // pred_fallthru
          _
        %p3649 = scmp.gt.s32.totalorder %s30, 0
        // Predicated region
        $region73: #{tpu_custom_call.1} parent=59 // pred_check
          %p3650 = pneg %p3649
        $region74: #{tpu_custom_call.1} parent=59 // pred_check_branch
          %3652 = sbr.rel (%p3650) target = $region76
        $region75: #{tpu_custom_call.1} parent=59 // pred_region
          %s3653 = ssub.s32 %s30, 1
          %s3654 = smul.u32 %s3653, 8
          %s3655 = smul.u32 %s3654, 3
          %s3656 = smul.addr %s3655, 4
          %s3657 = scalar_lea.vmem [#allocation3], %s3656
          %v3658 = vld [vmem:[%s3657] sm:$0xf]
          %v3659 = vld [vmem:[%s3657 + $0x4] sm:$0xf]
          %v3660 = vld [vmem:[%s3657 + $0xc] sm:$0xf]
          %v3661 = vld [vmem:[%s3657 + $0x10] sm:$0xf]
          %v3662 = vld [vmem:[%s3657 + $0x18] sm:$0xf]
          %v3663 = vld [vmem:[%s3657 + $0x1c] sm:$0xf]
          %v3664 = vld [vmem:[%s3657 + $0x24] sm:$0xf]
          %v3665 = vld [vmem:[%s3657 + $0x28] sm:$0xf]
          %v3666 = vld [vmem:[%s3657 + $0x30] sm:$0xf]
          %v3667 = vld [vmem:[%s3657 + $0x34] sm:$0xf]
          %v3668 = vld [vmem:[%s3657 + $0x3c] sm:$0xf]
          %v3669 = vld [vmem:[%s3657 + $0x40] sm:$0xf]
          %v3670 = vld [vmem:[%s3657 + $0x48] sm:$0xf]
          %v3671 = vld [vmem:[%s3657 + $0x4c] sm:$0xf]
          %v3672 = vld [vmem:[%s3657 + $0x54] sm:$0xf]
          %v3673 = vld [vmem:[%s3657 + $0x58] sm:$0xf]
          %v3674 = vld [vmem:[#allocation4] sm:$0xf]
          %v3675 = vld [vmem:[#allocation4 + $0x4] sm:$0xf]
          %v3676 = vld [vmem:[#allocation4 + $0x8] sm:$0xf]
          %v3677 = vld [vmem:[#allocation4 + $0xc] sm:$0xf]
          %v3678 = vld [vmem:[#allocation4 + $0x10] sm:$0xf]
          %v3679 = vld [vmem:[#allocation4 + $0x14] sm:$0xf]
          %v3680 = vld [vmem:[#allocation4 + $0x18] sm:$0xf]
          %v3681 = vld [vmem:[#allocation4 + $0x1c] sm:$0xf]
          %v3682 = vld [vmem:[#allocation4 + $0x20] sm:$0xf]
          %v3683 = vld [vmem:[#allocation4 + $0x24] sm:$0xf]
          %v3684 = vld [vmem:[#allocation4 + $0x28] sm:$0xf]
          %v3685 = vld [vmem:[#allocation4 + $0x2c] sm:$0xf]
          %v3686 = vld [vmem:[#allocation4 + $0x30] sm:$0xf]
          %v3687 = vld [vmem:[#allocation4 + $0x34] sm:$0xf]
          %v3688 = vld [vmem:[#allocation4 + $0x38] sm:$0xf]
          %v3689 = vld [vmem:[#allocation4 + $0x3c] sm:$0xf]
          %v3690 = vld [vmem:[%s3657 + $0x8] sm:$0x1]
          %v3691 = vld [vmem:[%s3657 + $0x14] sm:$0x1]
          %v3692 = vld [vmem:[%s3657 + $0x20] sm:$0x1]
          %v3693 = vld [vmem:[%s3657 + $0x2c] sm:$0x1]
          %v3694 = vld [vmem:[%s3657 + $0x38] sm:$0x1]
          %v3695 = vld [vmem:[%s3657 + $0x44] sm:$0x1]
          %v3696 = vld [vmem:[%s3657 + $0x50] sm:$0x1]
          %v3697 = vld [vmem:[%s3657 + $0x5c] sm:$0x1]
          %vm3698 = vsmask.f32 3328
          %vm3699 = vsmask.f32 7440
          %vm3700 = vmor %vm3698, %vm3699
          %v3702 = vshrl.u32 %v3658, 16
          %v3704 = vrot.slane %v3702, 4
          %v3705 = vshll.u32 %v3658, 16
          %v3707 = vrot.slane %v3705, 5
          %v3708 = vor.u32 %v3704, %v3707
          %v3709 = vrot.slane %v3708, 4
          %v3711 = vshll.u32 %v3659, 16
          %v3713 = vrot.slane %v3711, 5
          %v3714 = vsel %vm3700, %v3709, %v3713
          %v3715 = vshrl.u32 %v3659, 16
          %v3717 = vrot.slane %v3715, 4
          %v3718 = vor.u32 %v3717, %v3713
          %v3719 = vrot.slane %v3718, 4
          %v3721 = vshll.u32 %v3690, 16
          %v3723 = vrot.slane %v3721, 5
          %v3724 = vsel %vm3700, %v3719, %v3723
          %v3726 = vshrl.u32 %v3660, 16
          %v3728 = vrot.slane %v3726, 4
          %v3729 = vshll.u32 %v3660, 16
          %v3731 = vrot.slane %v3729, 5
          %v3732 = vor.u32 %v3728, %v3731
          %v3733 = vrot.slane %v3732, 4
          %v3735 = vshll.u32 %v3661, 16
          %v3737 = vrot.slane %v3735, 5
          %v3738 = vsel %vm3700, %v3733, %v3737
          %v3739 = vshrl.u32 %v3661, 16
          %v3741 = vrot.slane %v3739, 4
          %v3742 = vor.u32 %v3741, %v3737
          %v3743 = vrot.slane %v3742, 4
          %v3745 = vshll.u32 %v3691, 16
          %v3747 = vrot.slane %v3745, 5
          %v3748 = vsel %vm3700, %v3743, %v3747
          %v3750 = vshrl.u32 %v3662, 16
          %v3752 = vrot.slane %v3750, 4
          %v3753 = vshll.u32 %v3662, 16
          %v3755 = vrot.slane %v3753, 5
          %v3756 = vor.u32 %v3752, %v3755
          %v3757 = vrot.slane %v3756, 4
          %v3759 = vshll.u32 %v3663, 16
          %v3761 = vrot.slane %v3759, 5
          %v3762 = vsel %vm3700, %v3757, %v3761
          %v3763 = vshrl.u32 %v3663, 16
          %v3765 = vrot.slane %v3763, 4
          %v3766 = vor.u32 %v3765, %v3761
          %v3767 = vrot.slane %v3766, 4
          %v3769 = vshll.u32 %v3692, 16
          %v3771 = vrot.slane %v3769, 5
          %v3772 = vsel %vm3700, %v3767, %v3771
          %v3774 = vshrl.u32 %v3664, 16
          %v3776 = vrot.slane %v3774, 4
          %v3777 = vshll.u32 %v3664, 16
          %v3779 = vrot.slane %v3777, 5
          %v3780 = vor.u32 %v3776, %v3779
          %v3781 = vrot.slane %v3780, 4
          %v3783 = vshll.u32 %v3665, 16
          %v3785 = vrot.slane %v3783, 5
          %v3786 = vsel %vm3700, %v3781, %v3785
          %v3787 = vshrl.u32 %v3665, 16
          %v3789 = vrot.slane %v3787, 4
          %v3790 = vor.u32 %v3789, %v3785
          %v3791 = vrot.slane %v3790, 4
          %v3793 = vshll.u32 %v3693, 16
          %v3795 = vrot.slane %v3793, 5
          %v3796 = vsel %vm3700, %v3791, %v3795
          %v3798 = vshrl.u32 %v3666, 16
          %v3800 = vrot.slane %v3798, 4
          %v3801 = vshll.u32 %v3666, 16
          %v3803 = vrot.slane %v3801, 5
          %v3804 = vor.u32 %v3800, %v3803
          %v3805 = vrot.slane %v3804, 4
          %v3807 = vshll.u32 %v3667, 16
          %v3809 = vrot.slane %v3807, 5
          %v3810 = vsel %vm3700, %v3805, %v3809
          %v3811 = vshrl.u32 %v3667, 16
          %v3813 = vrot.slane %v3811, 4
          %v3814 = vor.u32 %v3813, %v3809
          %v3815 = vrot.slane %v3814, 4
          %v3817 = vshll.u32 %v3694, 16
          %v3819 = vrot.slane %v3817, 5
          %v3820 = vsel %vm3700, %v3815, %v3819
          %v3822 = vshrl.u32 %v3668, 16
          %v3824 = vrot.slane %v3822, 4
          %v3825 = vshll.u32 %v3668, 16
          %v3827 = vrot.slane %v3825, 5
          %v3828 = vor.u32 %v3824, %v3827
          %v3829 = vrot.slane %v3828, 4
          %v3831 = vshll.u32 %v3669, 16
          %v3833 = vrot.slane %v3831, 5
          %v3834 = vsel %vm3700, %v3829, %v3833
          %v3835 = vshrl.u32 %v3669, 16
          %v3837 = vrot.slane %v3835, 4
          %v3838 = vor.u32 %v3837, %v3833
          %v3839 = vrot.slane %v3838, 4
          %v3841 = vshll.u32 %v3695, 16
          %v3843 = vrot.slane %v3841, 5
          %v3844 = vsel %vm3700, %v3839, %v3843
          %v3846 = vshrl.u32 %v3670, 16
          %v3848 = vrot.slane %v3846, 4
          %v3849 = vshll.u32 %v3670, 16
          %v3851 = vrot.slane %v3849, 5
          %v3852 = vor.u32 %v3848, %v3851
          %v3853 = vrot.slane %v3852, 4
          %v3855 = vshll.u32 %v3671, 16
          %v3857 = vrot.slane %v3855, 5
          %v3858 = vsel %vm3700, %v3853, %v3857
          %v3859 = vshrl.u32 %v3671, 16
          %v3861 = vrot.slane %v3859, 4
          %v3862 = vor.u32 %v3861, %v3857
          %v3863 = vrot.slane %v3862, 4
          %v3865 = vshll.u32 %v3696, 16
          %v3867 = vrot.slane %v3865, 5
          %v3868 = vsel %vm3700, %v3863, %v3867
          %v3870 = vshrl.u32 %v3672, 16
          %v3872 = vrot.slane %v3870, 4
          %v3873 = vshll.u32 %v3672, 16
          %v3875 = vrot.slane %v3873, 5
          %v3876 = vor.u32 %v3872, %v3875
          %v3877 = vrot.slane %v3876, 4
          %v3879 = vshll.u32 %v3673, 16
          %v3881 = vrot.slane %v3879, 5
          %v3882 = vsel %vm3700, %v3877, %v3881
          %v3883 = vshrl.u32 %v3673, 16
          %v3885 = vrot.slane %v3883, 4
          %v3886 = vor.u32 %v3885, %v3881
          %v3887 = vrot.slane %v3886, 4
          %v3889 = vshll.u32 %v3697, 16
          %v3891 = vrot.slane %v3889, 5
          %v3892 = vsel %vm3700, %v3887, %v3891
          %s3893 = scalar_lea.vmem [#allocation4], 64
          %v3894 = vld [vmem:[%s3893] sm:$0xf]
          %v3895 = vld [vmem:[%s3893 + $0x4] sm:$0xf]
          %v3896 = vld [vmem:[%s3893 + $0x8] sm:$0xf]
          %v3897 = vld [vmem:[%s3893 + $0xc] sm:$0xf]
          %v3898 = vld [vmem:[%s3893 + $0x10] sm:$0xf]
          %v3899 = vld [vmem:[%s3893 + $0x14] sm:$0xf]
          %v3900 = vld [vmem:[%s3893 + $0x18] sm:$0xf]
          %v3901 = vld [vmem:[%s3893 + $0x1c] sm:$0xf]
          %v3902 = vld [vmem:[%s3893 + $0x20] sm:$0xf]
          %v3903 = vld [vmem:[%s3893 + $0x24] sm:$0xf]
          %v3904 = vld [vmem:[%s3893 + $0x28] sm:$0xf]
          %v3905 = vld [vmem:[%s3893 + $0x2c] sm:$0xf]
          %v3906 = vld [vmem:[%s3893 + $0x30] sm:$0xf]
          %v3907 = vld [vmem:[%s3893 + $0x34] sm:$0xf]
          %v3908 = vld [vmem:[%s3893 + $0x38] sm:$0xf]
          %v3909 = vld [vmem:[%s3893 + $0x3c] sm:$0xf]
          %v3910 = vunpack.c.l.b16 %v3714
          %v3911 = vunpack.c.l.b16 %v3724
          %v3912 = vunpack.c.l.b16 %v3738
          %v3913 = vunpack.c.l.b16 %v3748
          %v3914 = vunpack.c.l.b16 %v3762
          %v3915 = vunpack.c.l.b16 %v3772
          %v3916 = vunpack.c.l.b16 %v3786
          %v3917 = vunpack.c.l.b16 %v3796
          %v3918 = vunpack.c.l.b16 %v3810
          %v3919 = vunpack.c.l.b16 %v3820
          %v3920 = vunpack.c.l.b16 %v3834
          %v3921 = vunpack.c.l.b16 %v3844
          %v3922 = vunpack.c.l.b16 %v3858
          %v3923 = vunpack.c.l.b16 %v3868
          %v3924 = vunpack.c.l.b16 %v3882
          %v3925 = vunpack.c.l.b16 %v3892
          %v3926 = vpack.c.b16 %v3911, %v3910
          %v3927 = vpack.c.b16 %v3913, %v3912
          %v3928 = vpack.c.b16 %v3915, %v3914
          %v3929 = vpack.c.b16 %v3917, %v3916
          %v3930 = vpack.c.b16 %v3919, %v3918
          %v3931 = vpack.c.b16 %v3921, %v3920
          %v3932 = vpack.c.b16 %v3923, %v3922
          %v3933 = vpack.c.b16 %v3925, %v3924
          %v3958 = vunpack.c.l.b16 %v3894
          %v3959 = vunpack.c.l.b16 %v3895
          %v3960 = vunpack.c.l.b16 %v3896
          %v3961 = vunpack.c.l.b16 %v3897
          %v3962 = vunpack.c.l.b16 %v3898
          %v3963 = vunpack.c.l.b16 %v3899
          %v3964 = vunpack.c.l.b16 %v3900
          %v3965 = vunpack.c.l.b16 %v3901
          %v3966 = vunpack.c.l.b16 %v3902
          %v3967 = vunpack.c.l.b16 %v3903
          %v3968 = vunpack.c.l.b16 %v3904
          %v3969 = vunpack.c.l.b16 %v3905
          %v3970 = vunpack.c.l.b16 %v3906
          %v3971 = vunpack.c.l.b16 %v3907
          %v3972 = vunpack.c.l.b16 %v3908
          %v3973 = vunpack.c.l.b16 %v3909
          %v3974 = vpack.c.b16 %v3959, %v3958
          %v3975 = vpack.c.b16 %v3961, %v3960
          %v3976 = vpack.c.b16 %v3963, %v3962
          %v3977 = vpack.c.b16 %v3965, %v3964
          %v3978 = vpack.c.b16 %v3967, %v3966
          %v3979 = vpack.c.b16 %v3969, %v3968
          %v3980 = vpack.c.b16 %v3971, %v3970
          %v3981 = vpack.c.b16 %v3973, %v3972
          %3990 = vmatprep.subr.bf16.mxu0 0
          %3991 = vmatpush1.bf16.msra.mxu0 %v3974
          %3992 = vmatprep.subr.bf16.mxu0 0
          %3993 = vmatpush1.bf16.msra.mxu0 %v3975
          %3994 = vmatprep.subr.bf16.mxu0 0
          %3995 = vmatpush1.bf16.msra.mxu0 %v3976
          %3996 = vmatprep.subr.bf16.mxu0 0
          %3997 = vmatpush1.bf16.msra.mxu0 %v3977
          %3998 = vmatprep.subr.bf16.mxu0 0
          %3999 = vmatpush1.bf16.msra.mxu0 %v3978
          %4000 = vmatprep.subr.bf16.mxu0 0
          %4001 = vmatpush1.bf16.msra.mxu0 %v3979
          %4002 = vmatprep.subr.bf16.mxu0 0
          %4003 = vmatpush1.bf16.msra.mxu0 %v3980
          %4004 = vmatprep.subr.bf16.mxu0 0
          %4005 = vmatpush1.bf16.msra.mxu0 %v3981
          %4006 = vmatprep.subr.bf16.mxu0 0
          %4007 = vmatpush1.bf16.msra.mxu0 0
          %4008 = vmatprep.subr.bf16.mxu0 0
          %4009 = vmatpush1.bf16.msra.mxu0 0
          %4010 = vmatprep.subr.bf16.mxu0 0
          %4011 = vmatpush1.bf16.msra.mxu0 0
          %4012 = vmatprep.subr.bf16.mxu0 0
          %4013 = vmatpush1.bf16.msra.mxu0 0
          %4014 = vmatprep.subr.bf16.mxu0 0
          %4015 = vmatpush1.bf16.msra.mxu0 0
          %4016 = vmatprep.subr.bf16.mxu0 0
          %4017 = vmatpush1.bf16.msra.mxu0 0
          %4018 = vmatprep.subr.bf16.mxu0 0
          %4019 = vmatpush1.bf16.msra.mxu0 0
          %4020 = vmatprep.subr.bf16.mxu0 0
          %4021 = vmatpush1.bf16.msra.mxu0 0
          %4022 = vmatprep.mubr.bf16.mxu0 0
          %4023 = vmatmul.mubr.bf16.gmra.mrb[0].mxu0 %v3926
          %v4024 = vpop.f32.mrb[0].mxu0
          %v4025 = vadd.f32 0.0, %v4024
          %v4026 = vpop.f32.mrb[0].mxu0
          %v4027 = vpop.f32.mrb[0].mxu0
          %v4028 = vadd.f32 0.0, %v4027
          %v4029 = vpop.f32.mrb[0].mxu0
          %4030 = vmatprep.mubr.bf16.mxu0 0
          %4031 = vmatmul.mubr.bf16.gmra.mrb[0].mxu0 %v3927
          %v4032 = vpop.f32.mrb[0].mxu0
          %v4033 = vadd.f32 0.0, %v4032
          %v4034 = vpop.f32.mrb[0].mxu0
          %v4035 = vpop.f32.mrb[0].mxu0
          %v4036 = vadd.f32 0.0, %v4035
          %v4037 = vpop.f32.mrb[0].mxu0
          %4038 = vmatprep.mubr.bf16.mxu0 0
          %4039 = vmatmul.mubr.bf16.gmra.mrb[0].mxu0 %v3928
          %v4040 = vpop.f32.mrb[0].mxu0
          %v4041 = vadd.f32 0.0, %v4040
          %v4042 = vpop.f32.mrb[0].mxu0
          %v4043 = vpop.f32.mrb[0].mxu0
          %v4044 = vadd.f32 0.0, %v4043
          %v4045 = vpop.f32.mrb[0].mxu0
          %4046 = vmatprep.mubr.bf16.mxu0 0
          %4047 = vmatmul.mubr.bf16.gmra.mrb[0].mxu0 %v3929
          %v4048 = vpop.f32.mrb[0].mxu0
          %v4049 = vadd.f32 0.0, %v4048
          %v4050 = vpop.f32.mrb[0].mxu0
          %v4051 = vpop.f32.mrb[0].mxu0
          %v4052 = vadd.f32 0.0, %v4051
          %v4053 = vpop.f32.mrb[0].mxu0
          %4054 = vmatprep.mubr.bf16.mxu0 0
          %4055 = vmatmul.mubr.bf16.gmra.mrb[0].mxu0 %v3930
          %v4056 = vpop.f32.mrb[0].mxu0
          %v4057 = vadd.f32 0.0, %v4056
          %v4058 = vpop.f32.mrb[0].mxu0
          %v4059 = vpop.f32.mrb[0].mxu0
          %v4060 = vadd.f32 0.0, %v4059
          %v4061 = vpop.f32.mrb[0].mxu0
          %4062 = vmatprep.mubr.bf16.mxu0 0
          %4063 = vmatmul.mubr.bf16.gmra.mrb[0].mxu0 %v3931
          %v4064 = vpop.f32.mrb[0].mxu0
          %v4065 = vadd.f32 0.0, %v4064
          %v4066 = vpop.f32.mrb[0].mxu0
          %v4067 = vpop.f32.mrb[0].mxu0
          %v4068 = vadd.f32 0.0, %v4067
          %v4069 = vpop.f32.mrb[0].mxu0
          %4070 = vmatprep.mubr.bf16.mxu0 0
          %4071 = vmatmul.mubr.bf16.gmra.mrb[0].mxu0 %v3932
          %v4072 = vpop.f32.mrb[0].mxu0
          %v4073 = vadd.f32 0.0, %v4072
          %v4074 = vpop.f32.mrb[0].mxu0
          %v4075 = vpop.f32.mrb[0].mxu0
          %v4076 = vadd.f32 0.0, %v4075
          %v4077 = vpop.f32.mrb[0].mxu0
          %4078 = vmatprep.mubr.bf16.mxu0 0
          %4079 = vmatmul.mubr.bf16.gmra.mrb[0].mxu0 %v3933
          %v4080 = vpop.f32.mrb[0].mxu0
          %v4081 = vadd.f32 0.0, %v4080
          %v4082 = vpop.f32.mrb[0].mxu0
          %v4083 = vpop.f32.mrb[0].mxu0
          %v4084 = vadd.f32 0.0, %v4083
          %v4085 = vpop.f32.mrb[0].mxu0
          %4086 = vdwg.mxu0
          %v4103 = vunpack.c.l.b16 %v3658
          %v4104 = vunpack.c.l.b16 %v3659
          %v4105 = vunpack.c.l.b16 %v3660
          %v4106 = vunpack.c.l.b16 %v3661
          %v4107 = vunpack.c.l.b16 %v3662
          %v4108 = vunpack.c.l.b16 %v3663
          %v4109 = vunpack.c.l.b16 %v3664
          %v4110 = vunpack.c.l.b16 %v3665
          %v4111 = vunpack.c.l.b16 %v3666
          %v4112 = vunpack.c.l.b16 %v3667
          %v4113 = vunpack.c.l.b16 %v3668
          %v4114 = vunpack.c.l.b16 %v3669
          %v4115 = vunpack.c.l.b16 %v3670
          %v4116 = vunpack.c.l.b16 %v3671
          %v4117 = vunpack.c.l.b16 %v3672
          %v4118 = vunpack.c.l.b16 %v3673
          %v4119 = vpack.c.b16 %v4104, %v4103
          %v4120 = vpack.c.b16 %v4106, %v4105
          %v4121 = vpack.c.b16 %v4108, %v4107
          %v4122 = vpack.c.b16 %v4110, %v4109
          %v4123 = vpack.c.b16 %v4112, %v4111
          %v4124 = vpack.c.b16 %v4114, %v4113
          %v4125 = vpack.c.b16 %v4116, %v4115
          %v4126 = vpack.c.b16 %v4118, %v4117
          %v4151 = vunpack.c.l.b16 %v3674
          %v4152 = vunpack.c.l.b16 %v3675
          %v4153 = vunpack.c.l.b16 %v3676
          %v4154 = vunpack.c.l.b16 %v3677
          %v4155 = vunpack.c.l.b16 %v3678
          %v4156 = vunpack.c.l.b16 %v3679
          %v4157 = vunpack.c.l.b16 %v3680
          %v4158 = vunpack.c.l.b16 %v3681
          %v4159 = vunpack.c.l.b16 %v3682
          %v4160 = vunpack.c.l.b16 %v3683
          %v4161 = vunpack.c.l.b16 %v3684
          %v4162 = vunpack.c.l.b16 %v3685
          %v4163 = vunpack.c.l.b16 %v3686
          %v4164 = vunpack.c.l.b16 %v3687
          %v4165 = vunpack.c.l.b16 %v3688
          %v4166 = vunpack.c.l.b16 %v3689
          %v4167 = vpack.c.b16 %v4152, %v4151
          %v4168 = vpack.c.b16 %v4154, %v4153
          %v4169 = vpack.c.b16 %v4156, %v4155
          %v4170 = vpack.c.b16 %v4158, %v4157
          %v4171 = vpack.c.b16 %v4160, %v4159
          %v4172 = vpack.c.b16 %v4162, %v4161
          %v4173 = vpack.c.b16 %v4164, %v4163
          %v4174 = vpack.c.b16 %v4166, %v4165
          %4183 = vmatprep.subr.bf16.mxu0 0
          %4184 = vmatpush1.bf16.msra.mxu0 %v4167
          %4185 = vmatprep.subr.bf16.mxu0 0
          %4186 = vmatpush1.bf16.msra.mxu0 %v4168
          %4187 = vmatprep.subr.bf16.mxu0 0
          %4188 = vmatpush1.bf16.msra.mxu0 %v4169
          %4189 = vmatprep.subr.bf16.mxu0 0
          %4190 = vmatpush1.bf16.msra.mxu0 %v4170
          %4191 = vmatprep.subr.bf16.mxu0 0
          %4192 = vmatpush1.bf16.msra.mxu0 %v4171
          %4193 = vmatprep.subr.bf16.mxu0 0
          %4194 = vmatpush1.bf16.msra.mxu0 %v4172
          %4195 = vmatprep.subr.bf16.mxu0 0
          %4196 = vmatpush1.bf16.msra.mxu0 %v4173
          %4197 = vmatprep.subr.bf16.mxu0 0
          %4198 = vmatpush1.bf16.msra.mxu0 %v4174
          %4199 = vmatprep.subr.bf16.mxu0 0
          %4200 = vmatpush1.bf16.msra.mxu0 0
          %4201 = vmatprep.subr.bf16.mxu0 0
          %4202 = vmatpush1.bf16.msra.mxu0 0
          %4203 = vmatprep.subr.bf16.mxu0 0
          %4204 = vmatpush1.bf16.msra.mxu0 0
          %4205 = vmatprep.subr.bf16.mxu0 0
          %4206 = vmatpush1.bf16.msra.mxu0 0
          %4207 = vmatprep.subr.bf16.mxu0 0
          %4208 = vmatpush1.bf16.msra.mxu0 0
          %4209 = vmatprep.subr.bf16.mxu0 0
          %4210 = vmatpush1.bf16.msra.mxu0 0
          %4211 = vmatprep.subr.bf16.mxu0 0
          %4212 = vmatpush1.bf16.msra.mxu0 0
          %4213 = vmatprep.subr.bf16.mxu0 0
          %4214 = vmatpush1.bf16.msra.mxu0 0
          %4215 = vmatprep.mubr.bf16.mxu0 0
          %4216 = vmatmul.mubr.bf16.gmra.mrb[0].mxu0 %v4119
          %v4217 = vpop.f32.mrb[0].mxu0
          %v4218 = vadd.f32 %v4025, %v4217
          %v4219 = vpop.f32.mrb[0].mxu0
          %v4220 = vpop.f32.mrb[0].mxu0
          %v4221 = vadd.f32 %v4028, %v4220
          %v4222 = vpop.f32.mrb[0].mxu0
          %4223 = vmatprep.mubr.bf16.mxu0 0
          %4224 = vmatmul.mubr.bf16.gmra.mrb[0].mxu0 %v4120
          %v4225 = vpop.f32.mrb[0].mxu0
          %v4226 = vadd.f32 %v4033, %v4225
          %v4227 = vpop.f32.mrb[0].mxu0
          %v4228 = vpop.f32.mrb[0].mxu0
          %v4229 = vadd.f32 %v4036, %v4228
          %v4230 = vpop.f32.mrb[0].mxu0
          %4231 = vmatprep.mubr.bf16.mxu0 0
          %4232 = vmatmul.mubr.bf16.gmra.mrb[0].mxu0 %v4121
          %v4233 = vpop.f32.mrb[0].mxu0
          %v4234 = vadd.f32 %v4041, %v4233
          %v4235 = vpop.f32.mrb[0].mxu0
          %v4236 = vpop.f32.mrb[0].mxu0
          %v4237 = vadd.f32 %v4044, %v4236
          %v4238 = vpop.f32.mrb[0].mxu0
          %4239 = vmatprep.mubr.bf16.mxu0 0
          %4240 = vmatmul.mubr.bf16.gmra.mrb[0].mxu0 %v4122
          %v4241 = vpop.f32.mrb[0].mxu0
          %v4242 = vadd.f32 %v4049, %v4241
          %v4243 = vpop.f32.mrb[0].mxu0
          %v4244 = vpop.f32.mrb[0].mxu0
          %v4245 = vadd.f32 %v4052, %v4244
          %v4246 = vpop.f32.mrb[0].mxu0
          %4247 = vmatprep.mubr.bf16.mxu0 0
          %4248 = vmatmul.mubr.bf16.gmra.mrb[0].mxu0 %v4123
          %v4249 = vpop.f32.mrb[0].mxu0
          %v4250 = vadd.f32 %v4057, %v4249
          %v4251 = vpop.f32.mrb[0].mxu0
          %v4252 = vpop.f32.mrb[0].mxu0
          %v4253 = vadd.f32 %v4060, %v4252
          %v4254 = vpop.f32.mrb[0].mxu0
          %4255 = vmatprep.mubr.bf16.mxu0 0
          %4256 = vmatmul.mubr.bf16.gmra.mrb[0].mxu0 %v4124
          %v4257 = vpop.f32.mrb[0].mxu0
          %v4258 = vadd.f32 %v4065, %v4257
          %v4259 = vpop.f32.mrb[0].mxu0
          %v4260 = vpop.f32.mrb[0].mxu0
          %v4261 = vadd.f32 %v4068, %v4260
          %v4262 = vpop.f32.mrb[0].mxu0
          %4263 = vmatprep.mubr.bf16.mxu0 0
          %4264 = vmatmul.mubr.bf16.gmra.mrb[0].mxu0 %v4125
          %v4265 = vpop.f32.mrb[0].mxu0
          %v4266 = vadd.f32 %v4073, %v4265
          %v4267 = vpop.f32.mrb[0].mxu0
          %v4268 = vpop.f32.mrb[0].mxu0
          %v4269 = vadd.f32 %v4076, %v4268
          %v4270 = vpop.f32.mrb[0].mxu0
          %4271 = vmatprep.mubr.bf16.mxu0 0
          %4272 = vmatmul.mubr.bf16.gmra.mrb[0].mxu0 %v4126
          %v4273 = vpop.f32.mrb[0].mxu0
          %v4274 = vadd.f32 %v4081, %v4273
          %v4275 = vpop.f32.mrb[0].mxu0
          %v4276 = vpop.f32.mrb[0].mxu0
          %v4277 = vadd.f32 %v4084, %v4276
          %v4278 = vpop.f32.mrb[0].mxu0
          %4279 = vdwg.mxu0
          %v4280 = vld [vmem:[%s3657] sm:$0xe]
          %v4281 = vld [vmem:[%s3657 + $0xc] sm:$0xe]
          %v4282 = vld [vmem:[%s3657 + $0x18] sm:$0xe]
          %v4283 = vld [vmem:[%s3657 + $0x24] sm:$0xe]
          %v4284 = vld [vmem:[%s3657 + $0x30] sm:$0xe]
          %v4285 = vld [vmem:[%s3657 + $0x3c] sm:$0xe]
          %v4286 = vld [vmem:[%s3657 + $0x48] sm:$0xe]
          %v4287 = vld [vmem:[%s3657 + $0x54] sm:$0xe]
          %vm4304 = vcmask 1042432
          %vm4305 = vcmask 1046532
          %vm4306 = vmor %vm4304, %vm4305
          %v4307 = vrot.slane %v4280, 5
          %v4308 = vrot.slane %v4307, 4
          %v4309 = vrot.slane %v3659, 5
          %v4310 = vsel %vm4306, %v4308, %v4309
          %v4311 = vrot.slane %v4309, 4
          %v4312 = vrot.slane %v3690, 5
          %v4313 = vsel %vm4306, %v4311, %v4312
          %v4314 = vrot.slane %v4281, 5
          %v4315 = vrot.slane %v4314, 4
          %v4316 = vrot.slane %v3661, 5
          %v4317 = vsel %vm4306, %v4315, %v4316
          %v4318 = vrot.slane %v4316, 4
          %v4319 = vrot.slane %v3691, 5
          %v4320 = vsel %vm4306, %v4318, %v4319
          %v4321 = vrot.slane %v4282, 5
          %v4322 = vrot.slane %v4321, 4
          %v4323 = vrot.slane %v3663, 5
          %v4324 = vsel %vm4306, %v4322, %v4323
          %v4325 = vrot.slane %v4323, 4
          %v4326 = vrot.slane %v3692, 5
          %v4327 = vsel %vm4306, %v4325, %v4326
          %v4328 = vrot.slane %v4283, 5
          %v4329 = vrot.slane %v4328, 4
          %v4330 = vrot.slane %v3665, 5
          %v4331 = vsel %vm4306, %v4329, %v4330
          %v4332 = vrot.slane %v4330, 4
          %v4333 = vrot.slane %v3693, 5
          %v4334 = vsel %vm4306, %v4332, %v4333
          %v4335 = vrot.slane %v4284, 5
          %v4336 = vrot.slane %v4335, 4
          %v4337 = vrot.slane %v3667, 5
          %v4338 = vsel %vm4306, %v4336, %v4337
          %v4339 = vrot.slane %v4337, 4
          %v4340 = vrot.slane %v3694, 5
          %v4341 = vsel %vm4306, %v4339, %v4340
          %v4342 = vrot.slane %v4285, 5
          %v4343 = vrot.slane %v4342, 4
          %v4344 = vrot.slane %v3669, 5
          %v4345 = vsel %vm4306, %v4343, %v4344
          %v4346 = vrot.slane %v4344, 4
          %v4347 = vrot.slane %v3695, 5
          %v4348 = vsel %vm4306, %v4346, %v4347
          %v4349 = vrot.slane %v4286, 5
          %v4350 = vrot.slane %v4349, 4
          %v4351 = vrot.slane %v3671, 5
          %v4352 = vsel %vm4306, %v4350, %v4351
          %v4353 = vrot.slane %v4351, 4
          %v4354 = vrot.slane %v3696, 5
          %v4355 = vsel %vm4306, %v4353, %v4354
          %v4356 = vrot.slane %v4287, 5
          %v4357 = vrot.slane %v4356, 4
          %v4358 = vrot.slane %v3673, 5
          %v4359 = vsel %vm4306, %v4357, %v4358
          %v4360 = vrot.slane %v4358, 4
          %v4361 = vrot.slane %v3697, 5
          %v4362 = vsel %vm4306, %v4360, %v4361
          %s4363 = scalar_lea.vmem [#allocation4], 128
          %v4364 = vld [vmem:[%s4363] sm:$0xf]
          %v4365 = vld [vmem:[%s4363 + $0x4] sm:$0xf]
          %v4366 = vld [vmem:[%s4363 + $0x8] sm:$0xf]
          %v4367 = vld [vmem:[%s4363 + $0xc] sm:$0xf]
          %v4368 = vld [vmem:[%s4363 + $0x10] sm:$0xf]
          %v4369 = vld [vmem:[%s4363 + $0x14] sm:$0xf]
          %v4370 = vld [vmem:[%s4363 + $0x18] sm:$0xf]
          %v4371 = vld [vmem:[%s4363 + $0x1c] sm:$0xf]
          %v4372 = vld [vmem:[%s4363 + $0x20] sm:$0xf]
          %v4373 = vld [vmem:[%s4363 + $0x24] sm:$0xf]
          %v4374 = vld [vmem:[%s4363 + $0x28] sm:$0xf]
          %v4375 = vld [vmem:[%s4363 + $0x2c] sm:$0xf]
          %v4376 = vld [vmem:[%s4363 + $0x30] sm:$0xf]
          %v4377 = vld [vmem:[%s4363 + $0x34] sm:$0xf]
          %v4378 = vld [vmem:[%s4363 + $0x38] sm:$0xf]
          %v4379 = vld [vmem:[%s4363 + $0x3c] sm:$0xf]
          %v4380 = vunpack.c.l.b16 %v4310
          %v4381 = vunpack.c.l.b16 %v4313
          %v4382 = vunpack.c.l.b16 %v4317
          %v4383 = vunpack.c.l.b16 %v4320
          %v4384 = vunpack.c.l.b16 %v4324
          %v4385 = vunpack.c.l.b16 %v4327
          %v4386 = vunpack.c.l.b16 %v4331
          %v4387 = vunpack.c.l.b16 %v4334
          %v4388 = vunpack.c.l.b16 %v4338
          %v4389 = vunpack.c.l.b16 %v4341
          %v4390 = vunpack.c.l.b16 %v4345
          %v4391 = vunpack.c.l.b16 %v4348
          %v4392 = vunpack.c.l.b16 %v4352
          %v4393 = vunpack.c.l.b16 %v4355
          %v4394 = vunpack.c.l.b16 %v4359
          %v4395 = vunpack.c.l.b16 %v4362
          %v4396 = vpack.c.b16 %v4381, %v4380
          %v4397 = vpack.c.b16 %v4383, %v4382
          %v4398 = vpack.c.b16 %v4385, %v4384
          %v4399 = vpack.c.b16 %v4387, %v4386
          %v4400 = vpack.c.b16 %v4389, %v4388
          %v4401 = vpack.c.b16 %v4391, %v4390
          %v4402 = vpack.c.b16 %v4393, %v4392
          %v4403 = vpack.c.b16 %v4395, %v4394
          %v4428 = vunpack.c.l.b16 %v4364
          %v4429 = vunpack.c.l.b16 %v4365
          %v4430 = vunpack.c.l.b16 %v4366
          %v4431 = vunpack.c.l.b16 %v4367
          %v4432 = vunpack.c.l.b16 %v4368
          %v4433 = vunpack.c.l.b16 %v4369
          %v4434 = vunpack.c.l.b16 %v4370
          %v4435 = vunpack.c.l.b16 %v4371
          %v4436 = vunpack.c.l.b16 %v4372
          %v4437 = vunpack.c.l.b16 %v4373
          %v4438 = vunpack.c.l.b16 %v4374
          %v4439 = vunpack.c.l.b16 %v4375
          %v4440 = vunpack.c.l.b16 %v4376
          %v4441 = vunpack.c.l.b16 %v4377
          %v4442 = vunpack.c.l.b16 %v4378
          %v4443 = vunpack.c.l.b16 %v4379
          %v4444 = vpack.c.b16 %v4429, %v4428
          %v4445 = vpack.c.b16 %v4431, %v4430
          %v4446 = vpack.c.b16 %v4433, %v4432
          %v4447 = vpack.c.b16 %v4435, %v4434
          %v4448 = vpack.c.b16 %v4437, %v4436
          %v4449 = vpack.c.b16 %v4439, %v4438
          %v4450 = vpack.c.b16 %v4441, %v4440
          %v4451 = vpack.c.b16 %v4443, %v4442
          %4460 = vmatprep.subr.bf16.mxu0 0
          %4461 = vmatpush1.bf16.msra.mxu0 %v4444
          %4462 = vmatprep.subr.bf16.mxu0 0
          %4463 = vmatpush1.bf16.msra.mxu0 %v4445
          %4464 = vmatprep.subr.bf16.mxu0 0
          %4465 = vmatpush1.bf16.msra.mxu0 %v4446
          %4466 = vmatprep.subr.bf16.mxu0 0
          %4467 = vmatpush1.bf16.msra.mxu0 %v4447
          %4468 = vmatprep.subr.bf16.mxu0 0
          %4469 = vmatpush1.bf16.msra.mxu0 %v4448
          %4470 = vmatprep.subr.bf16.mxu0 0
          %4471 = vmatpush1.bf16.msra.mxu0 %v4449
          %4472 = vmatprep.subr.bf16.mxu0 0
          %4473 = vmatpush1.bf16.msra.mxu0 %v4450
          %4474 = vmatprep.subr.bf16.mxu0 0
          %4475 = vmatpush1.bf16.msra.mxu0 %v4451
          %4476 = vmatprep.subr.bf16.mxu0 0
          %4477 = vmatpush1.bf16.msra.mxu0 0
          %4478 = vmatprep.subr.bf16.mxu0 0
          %4479 = vmatpush1.bf16.msra.mxu0 0
          %4480 = vmatprep.subr.bf16.mxu0 0
          %4481 = vmatpush1.bf16.msra.mxu0 0
          %4482 = vmatprep.subr.bf16.mxu0 0
          %4483 = vmatpush1.bf16.msra.mxu0 0
          %4484 = vmatprep.subr.bf16.mxu0 0
          %4485 = vmatpush1.bf16.msra.mxu0 0
          %4486 = vmatprep.subr.bf16.mxu0 0
          %4487 = vmatpush1.bf16.msra.mxu0 0
          %4488 = vmatprep.subr.bf16.mxu0 0
          %4489 = vmatpush1.bf16.msra.mxu0 0
          %4490 = vmatprep.subr.bf16.mxu0 0
          %4491 = vmatpush1.bf16.msra.mxu0 0
          %4492 = vmatprep.mubr.bf16.mxu0 0
          %4493 = vmatmul.mubr.bf16.gmra.mrb[0].mxu0 %v4396
          %v4494 = vpop.f32.mrb[0].mxu0
          %v4495 = vadd.f32 0.0, %v4494
          %v4496 = vpop.f32.mrb[0].mxu0
          %v4497 = vpop.f32.mrb[0].mxu0
          %v4498 = vadd.f32 0.0, %v4497
          %v4499 = vpop.f32.mrb[0].mxu0
          %4500 = vmatprep.mubr.bf16.mxu0 0
          %4501 = vmatmul.mubr.bf16.gmra.mrb[0].mxu0 %v4397
          %v4502 = vpop.f32.mrb[0].mxu0
          %v4503 = vadd.f32 0.0, %v4502
          %v4504 = vpop.f32.mrb[0].mxu0
          %v4505 = vpop.f32.mrb[0].mxu0
          %v4506 = vadd.f32 0.0, %v4505
          %v4507 = vpop.f32.mrb[0].mxu0
          %4508 = vmatprep.mubr.bf16.mxu0 0
          %4509 = vmatmul.mubr.bf16.gmra.mrb[0].mxu0 %v4398
          %v4510 = vpop.f32.mrb[0].mxu0
          %v4511 = vadd.f32 0.0, %v4510
          %v4512 = vpop.f32.mrb[0].mxu0
          %v4513 = vpop.f32.mrb[0].mxu0
          %v4514 = vadd.f32 0.0, %v4513
          %v4515 = vpop.f32.mrb[0].mxu0
          %4516 = vmatprep.mubr.bf16.mxu0 0
          %4517 = vmatmul.mubr.bf16.gmra.mrb[0].mxu0 %v4399
          %v4518 = vpop.f32.mrb[0].mxu0
          %v4519 = vadd.f32 0.0, %v4518
          %v4520 = vpop.f32.mrb[0].mxu0
          %v4521 = vpop.f32.mrb[0].mxu0
          %v4522 = vadd.f32 0.0, %v4521
          %v4523 = vpop.f32.mrb[0].mxu0
          %4524 = vmatprep.mubr.bf16.mxu0 0
          %4525 = vmatmul.mubr.bf16.gmra.mrb[0].mxu0 %v4400
          %v4526 = vpop.f32.mrb[0].mxu0
          %v4527 = vadd.f32 0.0, %v4526
          %v4528 = vpop.f32.mrb[0].mxu0
          %v4529 = vpop.f32.mrb[0].mxu0
          %v4530 = vadd.f32 0.0, %v4529
          %v4531 = vpop.f32.mrb[0].mxu0
          %4532 = vmatprep.mubr.bf16.mxu0 0
          %4533 = vmatmul.mubr.bf16.gmra.mrb[0].mxu0 %v4401
          %v4534 = vpop.f32.mrb[0].mxu0
          %v4535 = vadd.f32 0.0, %v4534
          %v4536 = vpop.f32.mrb[0].mxu0
          %v4537 = vpop.f32.mrb[0].mxu0
          %v4538 = vadd.f32 0.0, %v4537
          %v4539 = vpop.f32.mrb[0].mxu0
          %4540 = vmatprep.mubr.bf16.mxu0 0
          %4541 = vmatmul.mubr.bf16.gmra.mrb[0].mxu0 %v4402
          %v4542 = vpop.f32.mrb[0].mxu0
          %v4543 = vadd.f32 0.0, %v4542
          %v4544 = vpop.f32.mrb[0].mxu0
          %v4545 = vpop.f32.mrb[0].mxu0
          %v4546 = vadd.f32 0.0, %v4545
          %v4547 = vpop.f32.mrb[0].mxu0
          %4548 = vmatprep.mubr.bf16.mxu0 0
          %4549 = vmatmul.mubr.bf16.gmra.mrb[0].mxu0 %v4403
          %v4550 = vpop.f32.mrb[0].mxu0
          %v4551 = vadd.f32 0.0, %v4550
          %v4552 = vpop.f32.mrb[0].mxu0
          %v4553 = vpop.f32.mrb[0].mxu0
          %v4554 = vadd.f32 0.0, %v4553
          %v4555 = vpop.f32.mrb[0].mxu0
          %4556 = vdwg.mxu0
          %v4557 = vadd.f32 %v4218, %v4495
          %v4558 = vadd.f32 %v4221, %v4498
          %v4559 = vadd.f32 %v4226, %v4503
          %v4560 = vadd.f32 %v4229, %v4506
          %v4561 = vadd.f32 %v4234, %v4511
          %v4562 = vadd.f32 %v4237, %v4514
          %v4563 = vadd.f32 %v4242, %v4519
          %v4564 = vadd.f32 %v4245, %v4522
          %v4565 = vadd.f32 %v4250, %v4527
          %v4566 = vadd.f32 %v4253, %v4530
          %v4567 = vadd.f32 %v4258, %v4535
          %v4568 = vadd.f32 %v4261, %v4538
          %v4569 = vadd.f32 %v4266, %v4543
          %v4570 = vadd.f32 %v4269, %v4546
          %v4571 = vadd.f32 %v4274, %v4551
          %v4572 = vadd.f32 %v4277, %v4554
          %s4573 = sadd.s32 %s3654, 1
          %s4574 = smul.u32 %s4573, 3
          %s4575 = smul.addr %s4574, 4
          %s4576 = scalar_lea.vmem [#allocation3], %s4575
          %v4577 = vld [vmem:[%s4576] sm:$0xf]
          %v4578 = vld [vmem:[%s4576 + $0x4] sm:$0xf]
          %v4579 = vld [vmem:[%s4576 + $0xc] sm:$0xf]
          %v4580 = vld [vmem:[%s4576 + $0x10] sm:$0xf]
          %v4581 = vld [vmem:[%s4576 + $0x18] sm:$0xf]
          %v4582 = vld [vmem:[%s4576 + $0x1c] sm:$0xf]
          %v4583 = vld [vmem:[%s4576 + $0x24] sm:$0xf]
          %v4584 = vld [vmem:[%s4576 + $0x28] sm:$0xf]
          %v4585 = vld [vmem:[%s4576 + $0x30] sm:$0xf]
          %v4586 = vld [vmem:[%s4576 + $0x34] sm:$0xf]
          %v4587 = vld [vmem:[%s4576 + $0x3c] sm:$0xf]
          %v4588 = vld [vmem:[%s4576 + $0x40] sm:$0xf]
          %v4589 = vld [vmem:[%s4576 + $0x48] sm:$0xf]
          %v4590 = vld [vmem:[%s4576 + $0x4c] sm:$0xf]
          %v4591 = vld [vmem:[%s4576 + $0x54] sm:$0xf]
          %v4592 = vld [vmem:[%s4576 + $0x58] sm:$0xf]
          %s4593 = scalar_lea.vmem [#allocation4], 192
          %v4594 = vld [vmem:[%s4593] sm:$0xf]
          %v4595 = vld [vmem:[%s4593 + $0x4] sm:$0xf]
          %v4596 = vld [vmem:[%s4593 + $0x8] sm:$0xf]
          %v4597 = vld [vmem:[%s4593 + $0xc] sm:$0xf]
          %v4598 = vld [vmem:[%s4593 + $0x10] sm:$0xf]
          %v4599 = vld [vmem:[%s4593 + $0x14] sm:$0xf]
          %v4600 = vld [vmem:[%s4593 + $0x18] sm:$0xf]
          %v4601 = vld [vmem:[%s4593 + $0x1c] sm:$0xf]
          %v4602 = vld [vmem:[%s4593 + $0x20] sm:$0xf]
          %v4603 = vld [vmem:[%s4593 + $0x24] sm:$0xf]
          %v4604 = vld [vmem:[%s4593 + $0x28] sm:$0xf]
          %v4605 = vld [vmem:[%s4593 + $0x2c] sm:$0xf]
          %v4606 = vld [vmem:[%s4593 + $0x30] sm:$0xf]
          %v4607 = vld [vmem:[%s4593 + $0x34] sm:$0xf]
          %v4608 = vld [vmem:[%s4593 + $0x38] sm:$0xf]
          %v4609 = vld [vmem:[%s4593 + $0x3c] sm:$0xf]
          %v4626 = vunpack.c.l.b16 %v4577
          %v4627 = vunpack.c.l.b16 %v4578
          %v4628 = vunpack.c.l.b16 %v4579
          %v4629 = vunpack.c.l.b16 %v4580
          %v4630 = vunpack.c.l.b16 %v4581
          %v4631 = vunpack.c.l.b16 %v4582
          %v4632 = vunpack.c.l.b16 %v4583
          %v4633 = vunpack.c.l.b16 %v4584
          %v4634 = vunpack.c.l.b16 %v4585
          %v4635 = vunpack.c.l.b16 %v4586
          %v4636 = vunpack.c.l.b16 %v4587
          %v4637 = vunpack.c.l.b16 %v4588
          %v4638 = vunpack.c.l.b16 %v4589
          %v4639 = vunpack.c.l.b16 %v4590
          %v4640 = vunpack.c.l.b16 %v4591
          %v4641 = vunpack.c.l.b16 %v4592
          %v4642 = vpack.c.b16 %v4627, %v4626
          %v4643 = vpack.c.b16 %v4629, %v4628
          %v4644 = vpack.c.b16 %v4631, %v4630
          %v4645 = vpack.c.b16 %v4633, %v4632
          %v4646 = vpack.c.b16 %v4635, %v4634
          %v4647 = vpack.c.b16 %v4637, %v4636
          %v4648 = vpack.c.b16 %v4639, %v4638
          %v4649 = vpack.c.b16 %v4641, %v4640
          %v4674 = vunpack.c.l.b16 %v4594
          %v4675 = vunpack.c.l.b16 %v4595
          %v4676 = vunpack.c.l.b16 %v4596
          %v4677 = vunpack.c.l.b16 %v4597
          %v4678 = vunpack.c.l.b16 %v4598
          %v4679 = vunpack.c.l.b16 %v4599
          %v4680 = vunpack.c.l.b16 %v4600
          %v4681 = vunpack.c.l.b16 %v4601
          %v4682 = vunpack.c.l.b16 %v4602
          %v4683 = vunpack.c.l.b16 %v4603
          %v4684 = vunpack.c.l.b16 %v4604
          %v4685 = vunpack.c.l.b16 %v4605
          %v4686 = vunpack.c.l.b16 %v4606
          %v4687 = vunpack.c.l.b16 %v4607
          %v4688 = vunpack.c.l.b16 %v4608
          %v4689 = vunpack.c.l.b16 %v4609
          %v4690 = vpack.c.b16 %v4675, %v4674
          %v4691 = vpack.c.b16 %v4677, %v4676
          %v4692 = vpack.c.b16 %v4679, %v4678
          %v4693 = vpack.c.b16 %v4681, %v4680
          %v4694 = vpack.c.b16 %v4683, %v4682
          %v4695 = vpack.c.b16 %v4685, %v4684
          %v4696 = vpack.c.b16 %v4687, %v4686
          %v4697 = vpack.c.b16 %v4689, %v4688
          %4706 = vmatprep.subr.bf16.mxu0 0
          %4707 = vmatpush1.bf16.msra.mxu0 %v4690
          %4708 = vmatprep.subr.bf16.mxu0 0
          %4709 = vmatpush1.bf16.msra.mxu0 %v4691
          %4710 = vmatprep.subr.bf16.mxu0 0
          %4711 = vmatpush1.bf16.msra.mxu0 %v4692
          %4712 = vmatprep.subr.bf16.mxu0 0
          %4713 = vmatpush1.bf16.msra.mxu0 %v4693
          %4714 = vmatprep.subr.bf16.mxu0 0
          %4715 = vmatpush1.bf16.msra.mxu0 %v4694
          %4716 = vmatprep.subr.bf16.mxu0 0
          %4717 = vmatpush1.bf16.msra.mxu0 %v4695
          %4718 = vmatprep.subr.bf16.mxu0 0
          %4719 = vmatpush1.bf16.msra.mxu0 %v4696
          %4720 = vmatprep.subr.bf16.mxu0 0
          %4721 = vmatpush1.bf16.msra.mxu0 %v4697
          %4722 = vmatprep.subr.bf16.mxu0 0
          %4723 = vmatpush1.bf16.msra.mxu0 0
          %4724 = vmatprep.subr.bf16.mxu0 0
          %4725 = vmatpush1.bf16.msra.mxu0 0
          %4726 = vmatprep.subr.bf16.mxu0 0
          %4727 = vmatpush1.bf16.msra.mxu0 0
          %4728 = vmatprep.subr.bf16.mxu0 0
          %4729 = vmatpush1.bf16.msra.mxu0 0
          %4730 = vmatprep.subr.bf16.mxu0 0
          %4731 = vmatpush1.bf16.msra.mxu0 0
          %4732 = vmatprep.subr.bf16.mxu0 0
          %4733 = vmatpush1.bf16.msra.mxu0 0
          %4734 = vmatprep.subr.bf16.mxu0 0
          %4735 = vmatpush1.bf16.msra.mxu0 0
          %4736 = vmatprep.subr.bf16.mxu0 0
          %4737 = vmatpush1.bf16.msra.mxu0 0
          %4738 = vmatprep.mubr.bf16.mxu0 0
          %4739 = vmatmul.mubr.bf16.gmra.mrb[0].mxu0 %v4642
          %v4740 = vpop.f32.mrb[0].mxu0
          %v4741 = vadd.f32 0.0, %v4740
          %v4742 = vpop.f32.mrb[0].mxu0
          %v4743 = vpop.f32.mrb[0].mxu0
          %v4744 = vadd.f32 0.0, %v4743
          %v4745 = vpop.f32.mrb[0].mxu0
          %4746 = vmatprep.mubr.bf16.mxu0 0
          %4747 = vmatmul.mubr.bf16.gmra.mrb[0].mxu0 %v4643
          %v4748 = vpop.f32.mrb[0].mxu0
          %v4749 = vadd.f32 0.0, %v4748
          %v4750 = vpop.f32.mrb[0].mxu0
          %v4751 = vpop.f32.mrb[0].mxu0
          %v4752 = vadd.f32 0.0, %v4751
          %v4753 = vpop.f32.mrb[0].mxu0
          %4754 = vmatprep.mubr.bf16.mxu0 0
          %4755 = vmatmul.mubr.bf16.gmra.mrb[0].mxu0 %v4644
          %v4756 = vpop.f32.mrb[0].mxu0
          %v4757 = vadd.f32 0.0, %v4756
          %v4758 = vpop.f32.mrb[0].mxu0
          %v4759 = vpop.f32.mrb[0].mxu0
          %v4760 = vadd.f32 0.0, %v4759
          %v4761 = vpop.f32.mrb[0].mxu0
          %4762 = vmatprep.mubr.bf16.mxu0 0
          %4763 = vmatmul.mubr.bf16.gmra.mrb[0].mxu0 %v4645
          %v4764 = vpop.f32.mrb[0].mxu0
          %v4765 = vadd.f32 0.0, %v4764
          %v4766 = vpop.f32.mrb[0].mxu0
          %v4767 = vpop.f32.mrb[0].mxu0
          %v4768 = vadd.f32 0.0, %v4767
          %v4769 = vpop.f32.mrb[0].mxu0
          %4770 = vmatprep.mubr.bf16.mxu0 0
          %4771 = vmatmul.mubr.bf16.gmra.mrb[0].mxu0 %v4646
          %v4772 = vpop.f32.mrb[0].mxu0
          %v4773 = vadd.f32 0.0, %v4772
          %v4774 = vpop.f32.mrb[0].mxu0
          %v4775 = vpop.f32.mrb[0].mxu0
          %v4776 = vadd.f32 0.0, %v4775
          %v4777 = vpop.f32.mrb[0].mxu0
          %4778 = vmatprep.mubr.bf16.mxu0 0
          %4779 = vmatmul.mubr.bf16.gmra.mrb[0].mxu0 %v4647
          %v4780 = vpop.f32.mrb[0].mxu0
          %v4781 = vadd.f32 0.0, %v4780
          %v4782 = vpop.f32.mrb[0].mxu0
          %v4783 = vpop.f32.mrb[0].mxu0
          %v4784 = vadd.f32 0.0, %v4783
          %v4785 = vpop.f32.mrb[0].mxu0
          %4786 = vmatprep.mubr.bf16.mxu0 0
          %4787 = vmatmul.mubr.bf16.gmra.mrb[0].mxu0 %v4648
          %v4788 = vpop.f32.mrb[0].mxu0
          %v4789 = vadd.f32 0.0, %v4788
          %v4790 = vpop.f32.mrb[0].mxu0
          %v4791 = vpop.f32.mrb[0].mxu0
          %v4792 = vadd.f32 0.0, %v4791
          %v4793 = vpop.f32.mrb[0].mxu0
          %4794 = vmatprep.mubr.bf16.mxu0 0
          %4795 = vmatmul.mubr.bf16.gmra.mrb[0].mxu0 %v4649
          %v4796 = vpop.f32.mrb[0].mxu0
          %v4797 = vadd.f32 0.0, %v4796
          %v4798 = vpop.f32.mrb[0].mxu0
          %v4799 = vpop.f32.mrb[0].mxu0
          %v4800 = vadd.f32 0.0, %v4799
          %v4801 = vpop.f32.mrb[0].mxu0
          %4802 = vdwg.mxu0
          %v4803 = vadd.f32 %v4557, %v4741
          %v4804 = vadd.f32 %v4558, %v4744
          %v4805 = vadd.f32 %v4559, %v4749
          %v4806 = vadd.f32 %v4560, %v4752
          %v4807 = vadd.f32 %v4561, %v4757
          %v4808 = vadd.f32 %v4562, %v4760
          %v4809 = vadd.f32 %v4563, %v4765
          %v4810 = vadd.f32 %v4564, %v4768
          %v4811 = vadd.f32 %v4565, %v4773
          %v4812 = vadd.f32 %v4566, %v4776
          %v4813 = vadd.f32 %v4567, %v4781
          %v4814 = vadd.f32 %v4568, %v4784
          %v4815 = vadd.f32 %v4569, %v4789
          %v4816 = vadd.f32 %v4570, %v4792
          %v4817 = vadd.f32 %v4571, %v4797
          %v4818 = vadd.f32 %v4572, %v4800
          %v4819 = vld [vmem:[%s4576] sm:$0xf]
          %v4820 = vld [vmem:[%s4576 + $0x4] sm:$0xf]
          %v4821 = vld [vmem:[%s4576 + $0x8] sm:$0x1]
          %v4822 = vld [vmem:[%s4576 + $0xc] sm:$0xf]
          %v4823 = vld [vmem:[%s4576 + $0x10] sm:$0xf]
          %v4824 = vld [vmem:[%s4576 + $0x14] sm:$0x1]
          %v4825 = vld [vmem:[%s4576 + $0x18] sm:$0xf]
          %v4826 = vld [vmem:[%s4576 + $0x1c] sm:$0xf]
          %v4827 = vld [vmem:[%s4576 + $0x20] sm:$0x1]
          %v4828 = vld [vmem:[%s4576 + $0x24] sm:$0xf]
          %v4829 = vld [vmem:[%s4576 + $0x28] sm:$0xf]
          %v4830 = vld [vmem:[%s4576 + $0x2c] sm:$0x1]
          %v4831 = vld [vmem:[%s4576 + $0x30] sm:$0xf]
          %v4832 = vld [vmem:[%s4576 + $0x34] sm:$0xf]
          %v4833 = vld [vmem:[%s4576 + $0x38] sm:$0x1]
          %v4834 = vld [vmem:[%s4576 + $0x3c] sm:$0xf]
          %v4835 = vld [vmem:[%s4576 + $0x40] sm:$0xf]
          %v4836 = vld [vmem:[%s4576 + $0x44] sm:$0x1]
          %v4837 = vld [vmem:[%s4576 + $0x48] sm:$0xf]
          %v4838 = vld [vmem:[%s4576 + $0x4c] sm:$0xf]
          %v4839 = vld [vmem:[%s4576 + $0x50] sm:$0x1]
          %v4840 = vld [vmem:[%s4576 + $0x54] sm:$0xf]
          %v4841 = vld [vmem:[%s4576 + $0x58] sm:$0xf]
          %v4842 = vld [vmem:[%s4576 + $0x5c] sm:$0x1]
          %v4844 = vshrl.u32 %v4819, 16
          %v4846 = vrot.slane %v4844, 4
          %v4847 = vshll.u32 %v4819, 16
          %v4849 = vrot.slane %v4847, 5
          %v4850 = vor.u32 %v4846, %v4849
          %v4851 = vrot.slane %v4850, 4
          %v4853 = vshll.u32 %v4820, 16
          %v4855 = vrot.slane %v4853, 5
          %v4856 = vsel %vm3700, %v4851, %v4855
          %v4857 = vshrl.u32 %v4820, 16
          %v4859 = vrot.slane %v4857, 4
          %v4860 = vor.u32 %v4859, %v4855
          %v4861 = vrot.slane %v4860, 4
          %v4863 = vshll.u32 %v4821, 16
          %v4865 = vrot.slane %v4863, 5
          %v4866 = vsel %vm3700, %v4861, %v4865
          %v4868 = vshrl.u32 %v4822, 16
          %v4870 = vrot.slane %v4868, 4
          %v4871 = vshll.u32 %v4822, 16
          %v4873 = vrot.slane %v4871, 5
          %v4874 = vor.u32 %v4870, %v4873
          %v4875 = vrot.slane %v4874, 4
          %v4877 = vshll.u32 %v4823, 16
          %v4879 = vrot.slane %v4877, 5
          %v4880 = vsel %vm3700, %v4875, %v4879
          %v4881 = vshrl.u32 %v4823, 16
          %v4883 = vrot.slane %v4881, 4
          %v4884 = vor.u32 %v4883, %v4879
          %v4885 = vrot.slane %v4884, 4
          %v4887 = vshll.u32 %v4824, 16
          %v4889 = vrot.slane %v4887, 5
          %v4890 = vsel %vm3700, %v4885, %v4889
          %v4892 = vshrl.u32 %v4825, 16
          %v4894 = vrot.slane %v4892, 4
          %v4895 = vshll.u32 %v4825, 16
          %v4897 = vrot.slane %v4895, 5
          %v4898 = vor.u32 %v4894, %v4897
          %v4899 = vrot.slane %v4898, 4
          %v4901 = vshll.u32 %v4826, 16
          %v4903 = vrot.slane %v4901, 5
          %v4904 = vsel %vm3700, %v4899, %v4903
          %v4905 = vshrl.u32 %v4826, 16
          %v4907 = vrot.slane %v4905, 4
          %v4908 = vor.u32 %v4907, %v4903
          %v4909 = vrot.slane %v4908, 4
          %v4911 = vshll.u32 %v4827, 16
          %v4913 = vrot.slane %v4911, 5
          %v4914 = vsel %vm3700, %v4909, %v4913
          %v4916 = vshrl.u32 %v4828, 16
          %v4918 = vrot.slane %v4916, 4
          %v4919 = vshll.u32 %v4828, 16
          %v4921 = vrot.slane %v4919, 5
          %v4922 = vor.u32 %v4918, %v4921
          %v4923 = vrot.slane %v4922, 4
          %v4925 = vshll.u32 %v4829, 16
          %v4927 = vrot.slane %v4925, 5
          %v4928 = vsel %vm3700, %v4923, %v4927
          %v4929 = vshrl.u32 %v4829, 16
          %v4931 = vrot.slane %v4929, 4
          %v4932 = vor.u32 %v4931, %v4927
          %v4933 = vrot.slane %v4932, 4
          %v4935 = vshll.u32 %v4830, 16
          %v4937 = vrot.slane %v4935, 5
          %v4938 = vsel %vm3700, %v4933, %v4937
          %v4940 = vshrl.u32 %v4831, 16
          %v4942 = vrot.slane %v4940, 4
          %v4943 = vshll.u32 %v4831, 16
          %v4945 = vrot.slane %v4943, 5
          %v4946 = vor.u32 %v4942, %v4945
          %v4947 = vrot.slane %v4946, 4
          %v4949 = vshll.u32 %v4832, 16
          %v4951 = vrot.slane %v4949, 5
          %v4952 = vsel %vm3700, %v4947, %v4951
          %v4953 = vshrl.u32 %v4832, 16
          %v4955 = vrot.slane %v4953, 4
          %v4956 = vor.u32 %v4955, %v4951
          %v4957 = vrot.slane %v4956, 4
          %v4959 = vshll.u32 %v4833, 16
          %v4961 = vrot.slane %v4959, 5
          %v4962 = vsel %vm3700, %v4957, %v4961
          %v4964 = vshrl.u32 %v4834, 16
          %v4966 = vrot.slane %v4964, 4
          %v4967 = vshll.u32 %v4834, 16
          %v4969 = vrot.slane %v4967, 5
          %v4970 = vor.u32 %v4966, %v4969
          %v4971 = vrot.slane %v4970, 4
          %v4973 = vshll.u32 %v4835, 16
          %v4975 = vrot.slane %v4973, 5
          %v4976 = vsel %vm3700, %v4971, %v4975
          %v4977 = vshrl.u32 %v4835, 16
          %v4979 = vrot.slane %v4977, 4
          %v4980 = vor.u32 %v4979, %v4975
          %v4981 = vrot.slane %v4980, 4
          %v4983 = vshll.u32 %v4836, 16
          %v4985 = vrot.slane %v4983, 5
          %v4986 = vsel %vm3700, %v4981, %v4985
          %v4988 = vshrl.u32 %v4837, 16
          %v4990 = vrot.slane %v4988, 4
          %v4991 = vshll.u32 %v4837, 16
          %v4993 = vrot.slane %v4991, 5
          %v4994 = vor.u32 %v4990, %v4993
          %v4995 = vrot.slane %v4994, 4
          %v4997 = vshll.u32 %v4838, 16
          %v4999 = vrot.slane %v4997, 5
          %v5000 = vsel %vm3700, %v4995, %v4999
          %v5001 = vshrl.u32 %v4838, 16
          %v5003 = vrot.slane %v5001, 4
          %v5004 = vor.u32 %v5003, %v4999
          %v5005 = vrot.slane %v5004, 4
          %v5007 = vshll.u32 %v4839, 16
          %v5009 = vrot.slane %v5007, 5
          %v5010 = vsel %vm3700, %v5005, %v5009
          %v5012 = vshrl.u32 %v4840, 16
          %v5014 = vrot.slane %v5012, 4
          %v5015 = vshll.u32 %v4840, 16
          %v5017 = vrot.slane %v5015, 5
          %v5018 = vor.u32 %v5014, %v5017
          %v5019 = vrot.slane %v5018, 4
          %v5021 = vshll.u32 %v4841, 16
          %v5023 = vrot.slane %v5021, 5
          %v5024 = vsel %vm3700, %v5019, %v5023
          %v5025 = vshrl.u32 %v4841, 16
          %v5027 = vrot.slane %v5025, 4
          %v5028 = vor.u32 %v5027, %v5023
          %v5029 = vrot.slane %v5028, 4
          %v5031 = vshll.u32 %v4842, 16
          %v5033 = vrot.slane %v5031, 5
          %v5034 = vsel %vm3700, %v5029, %v5033
          %s5035 = scalar_lea.vmem [#allocation4], 256
          %v5036 = vld [vmem:[%s5035] sm:$0xf]
          %v5037 = vld [vmem:[%s5035 + $0x4] sm:$0xf]
          %v5038 = vld [vmem:[%s5035 + $0x8] sm:$0xf]
          %v5039 = vld [vmem:[%s5035 + $0xc] sm:$0xf]
          %v5040 = vld [vmem:[%s5035 + $0x10] sm:$0xf]
          %v5041 = vld [vmem:[%s5035 + $0x14] sm:$0xf]
          %v5042 = vld [vmem:[%s5035 + $0x18] sm:$0xf]
          %v5043 = vld [vmem:[%s5035 + $0x1c] sm:$0xf]
          %v5044 = vld [vmem:[%s5035 + $0x20] sm:$0xf]
          %v5045 = vld [vmem:[%s5035 + $0x24] sm:$0xf]
          %v5046 = vld [vmem:[%s5035 + $0x28] sm:$0xf]
          %v5047 = vld [vmem:[%s5035 + $0x2c] sm:$0xf]
          %v5048 = vld [vmem:[%s5035 + $0x30] sm:$0xf]
          %v5049 = vld [vmem:[%s5035 + $0x34] sm:$0xf]
          %v5050 = vld [vmem:[%s5035 + $0x38] sm:$0xf]
          %v5051 = vld [vmem:[%s5035 + $0x3c] sm:$0xf]
          %v5052 = vunpack.c.l.b16 %v4856
          %v5053 = vunpack.c.l.b16 %v4866
          %v5054 = vunpack.c.l.b16 %v4880
          %v5055 = vunpack.c.l.b16 %v4890
          %v5056 = vunpack.c.l.b16 %v4904
          %v5057 = vunpack.c.l.b16 %v4914
          %v5058 = vunpack.c.l.b16 %v4928
          %v5059 = vunpack.c.l.b16 %v4938
          %v5060 = vunpack.c.l.b16 %v4952
          %v5061 = vunpack.c.l.b16 %v4962
          %v5062 = vunpack.c.l.b16 %v4976
          %v5063 = vunpack.c.l.b16 %v4986
          %v5064 = vunpack.c.l.b16 %v5000
          %v5065 = vunpack.c.l.b16 %v5010
          %v5066 = vunpack.c.l.b16 %v5024
          %v5067 = vunpack.c.l.b16 %v5034
          %v5068 = vpack.c.b16 %v5053, %v5052
          %v5069 = vpack.c.b16 %v5055, %v5054
          %v5070 = vpack.c.b16 %v5057, %v5056
          %v5071 = vpack.c.b16 %v5059, %v5058
          %v5072 = vpack.c.b16 %v5061, %v5060
          %v5073 = vpack.c.b16 %v5063, %v5062
          %v5074 = vpack.c.b16 %v5065, %v5064
          %v5075 = vpack.c.b16 %v5067, %v5066
          %v5100 = vunpack.c.l.b16 %v5036
          %v5101 = vunpack.c.l.b16 %v5037
          %v5102 = vunpack.c.l.b16 %v5038
          %v5103 = vunpack.c.l.b16 %v5039
          %v5104 = vunpack.c.l.b16 %v5040
          %v5105 = vunpack.c.l.b16 %v5041
          %v5106 = vunpack.c.l.b16 %v5042
          %v5107 = vunpack.c.l.b16 %v5043
          %v5108 = vunpack.c.l.b16 %v5044
          %v5109 = vunpack.c.l.b16 %v5045
          %v5110 = vunpack.c.l.b16 %v5046
          %v5111 = vunpack.c.l.b16 %v5047
          %v5112 = vunpack.c.l.b16 %v5048
          %v5113 = vunpack.c.l.b16 %v5049
          %v5114 = vunpack.c.l.b16 %v5050
          %v5115 = vunpack.c.l.b16 %v5051
          %v5116 = vpack.c.b16 %v5101, %v5100
          %v5117 = vpack.c.b16 %v5103, %v5102
          %v5118 = vpack.c.b16 %v5105, %v5104
          %v5119 = vpack.c.b16 %v5107, %v5106
          %v5120 = vpack.c.b16 %v5109, %v5108
          %v5121 = vpack.c.b16 %v5111, %v5110
          %v5122 = vpack.c.b16 %v5113, %v5112
          %v5123 = vpack.c.b16 %v5115, %v5114
          %5132 = vmatprep.subr.bf16.mxu0 0
          %5133 = vmatpush1.bf16.msra.mxu0 %v5116
          %5134 = vmatprep.subr.bf16.mxu0 0
          %5135 = vmatpush1.bf16.msra.mxu0 %v5117
          %5136 = vmatprep.subr.bf16.mxu0 0
          %5137 = vmatpush1.bf16.msra.mxu0 %v5118
          %5138 = vmatprep.subr.bf16.mxu0 0
          %5139 = vmatpush1.bf16.msra.mxu0 %v5119
          %5140 = vmatprep.subr.bf16.mxu0 0
          %5141 = vmatpush1.bf16.msra.mxu0 %v5120
          %5142 = vmatprep.subr.bf16.mxu0 0
          %5143 = vmatpush1.bf16.msra.mxu0 %v5121
          %5144 = vmatprep.subr.bf16.mxu0 0
          %5145 = vmatpush1.bf16.msra.mxu0 %v5122
          %5146 = vmatprep.subr.bf16.mxu0 0
          %5147 = vmatpush1.bf16.msra.mxu0 %v5123
          %5148 = vmatprep.subr.bf16.mxu0 0
          %5149 = vmatpush1.bf16.msra.mxu0 0
          %5150 = vmatprep.subr.bf16.mxu0 0
          %5151 = vmatpush1.bf16.msra.mxu0 0
          %5152 = vmatprep.subr.bf16.mxu0 0
          %5153 = vmatpush1.bf16.msra.mxu0 0
          %5154 = vmatprep.subr.bf16.mxu0 0
          %5155 = vmatpush1.bf16.msra.mxu0 0
          %5156 = vmatprep.subr.bf16.mxu0 0
          %5157 = vmatpush1.bf16.msra.mxu0 0
          %5158 = vmatprep.subr.bf16.mxu0 0
          %5159 = vmatpush1.bf16.msra.mxu0 0
          %5160 = vmatprep.subr.bf16.mxu0 0
          %5161 = vmatpush1.bf16.msra.mxu0 0
          %5162 = vmatprep.subr.bf16.mxu0 0
          %5163 = vmatpush1.bf16.msra.mxu0 0
          %5164 = vmatprep.mubr.bf16.mxu0 0
          %5165 = vmatmul.mubr.bf16.gmra.mrb[0].mxu0 %v5068
          %v5166 = vpop.f32.mrb[0].mxu0
          %v5167 = vadd.f32 0.0, %v5166
          %v5168 = vpop.f32.mrb[0].mxu0
          %v5169 = vpop.f32.mrb[0].mxu0
          %v5170 = vadd.f32 0.0, %v5169
          %v5171 = vpop.f32.mrb[0].mxu0
          %5172 = vmatprep.mubr.bf16.mxu0 0
          %5173 = vmatmul.mubr.bf16.gmra.mrb[0].mxu0 %v5069
          %v5174 = vpop.f32.mrb[0].mxu0
          %v5175 = vadd.f32 0.0, %v5174
          %v5176 = vpop.f32.mrb[0].mxu0
          %v5177 = vpop.f32.mrb[0].mxu0
          %v5178 = vadd.f32 0.0, %v5177
          %v5179 = vpop.f32.mrb[0].mxu0
          %5180 = vmatprep.mubr.bf16.mxu0 0
          %5181 = vmatmul.mubr.bf16.gmra.mrb[0].mxu0 %v5070
          %v5182 = vpop.f32.mrb[0].mxu0
          %v5183 = vadd.f32 0.0, %v5182
          %v5184 = vpop.f32.mrb[0].mxu0
          %v5185 = vpop.f32.mrb[0].mxu0
          %v5186 = vadd.f32 0.0, %v5185
          %v5187 = vpop.f32.mrb[0].mxu0
          %5188 = vmatprep.mubr.bf16.mxu0 0
          %5189 = vmatmul.mubr.bf16.gmra.mrb[0].mxu0 %v5071
          %v5190 = vpop.f32.mrb[0].mxu0
          %v5191 = vadd.f32 0.0, %v5190
          %v5192 = vpop.f32.mrb[0].mxu0
          %v5193 = vpop.f32.mrb[0].mxu0
          %v5194 = vadd.f32 0.0, %v5193
          %v5195 = vpop.f32.mrb[0].mxu0
          %5196 = vmatprep.mubr.bf16.mxu0 0
          %5197 = vmatmul.mubr.bf16.gmra.mrb[0].mxu0 %v5072
          %v5198 = vpop.f32.mrb[0].mxu0
          %v5199 = vadd.f32 0.0, %v5198
          %v5200 = vpop.f32.mrb[0].mxu0
          %v5201 = vpop.f32.mrb[0].mxu0
          %v5202 = vadd.f32 0.0, %v5201
          %v5203 = vpop.f32.mrb[0].mxu0
          %5204 = vmatprep.mubr.bf16.mxu0 0
          %5205 = vmatmul.mubr.bf16.gmra.mrb[0].mxu0 %v5073
          %v5206 = vpop.f32.mrb[0].mxu0
          %v5207 = vadd.f32 0.0, %v5206
          %v5208 = vpop.f32.mrb[0].mxu0
          %v5209 = vpop.f32.mrb[0].mxu0
          %v5210 = vadd.f32 0.0, %v5209
          %v5211 = vpop.f32.mrb[0].mxu0
          %5212 = vmatprep.mubr.bf16.mxu0 0
          %5213 = vmatmul.mubr.bf16.gmra.mrb[0].mxu0 %v5074
          %v5214 = vpop.f32.mrb[0].mxu0
          %v5215 = vadd.f32 0.0, %v5214
          %v5216 = vpop.f32.mrb[0].mxu0
          %v5217 = vpop.f32.mrb[0].mxu0
          %v5218 = vadd.f32 0.0, %v5217
          %v5219 = vpop.f32.mrb[0].mxu0
          %5220 = vmatprep.mubr.bf16.mxu0 0
          %5221 = vmatmul.mubr.bf16.gmra.mrb[0].mxu0 %v5075
          %v5222 = vpop.f32.mrb[0].mxu0
          %v5223 = vadd.f32 0.0, %v5222
          %v5224 = vpop.f32.mrb[0].mxu0
          %v5225 = vpop.f32.mrb[0].mxu0
          %v5226 = vadd.f32 0.0, %v5225
          %v5227 = vpop.f32.mrb[0].mxu0
          %5228 = vdwg.mxu0
          %v5229 = vadd.f32 %v4803, %v5167
          %v5230 = vadd.f32 %v4804, %v5170
          %v5231 = vadd.f32 %v4805, %v5175
          %v5232 = vadd.f32 %v4806, %v5178
          %v5233 = vadd.f32 %v4807, %v5183
          %v5234 = vadd.f32 %v4808, %v5186
          %v5235 = vadd.f32 %v4809, %v5191
          %v5236 = vadd.f32 %v4810, %v5194
          %v5237 = vadd.f32 %v4811, %v5199
          %v5238 = vadd.f32 %v4812, %v5202
          %v5239 = vadd.f32 %v4813, %v5207
          %v5240 = vadd.f32 %v4814, %v5210
          %v5241 = vadd.f32 %v4815, %v5215
          %v5242 = vadd.f32 %v4816, %v5218
          %v5243 = vadd.f32 %v4817, %v5223
          %v5244 = vadd.f32 %v4818, %v5226
          %v5245 = vld [vmem:[%s4576] sm:$0xe]
          %v5246 = vld [vmem:[%s4576 + $0xc] sm:$0xe]
          %v5247 = vld [vmem:[%s4576 + $0x18] sm:$0xe]
          %v5248 = vld [vmem:[%s4576 + $0x24] sm:$0xe]
          %v5249 = vld [vmem:[%s4576 + $0x30] sm:$0xe]
          %v5250 = vld [vmem:[%s4576 + $0x3c] sm:$0xe]
          %v5251 = vld [vmem:[%s4576 + $0x48] sm:$0xe]
          %v5252 = vld [vmem:[%s4576 + $0x54] sm:$0xe]
          %v5277 = vrot.slane %v5245, 5
          %v5278 = vrot.slane %v5277, 4
          %v5279 = vrot.slane %v4820, 5
          %v5280 = vsel %vm4306, %v5278, %v5279
          %v5281 = vrot.slane %v5279, 4
          %v5282 = vrot.slane %v4821, 5
          %v5283 = vsel %vm4306, %v5281, %v5282
          %v5284 = vrot.slane %v5246, 5
          %v5285 = vrot.slane %v5284, 4
          %v5286 = vrot.slane %v4823, 5
          %v5287 = vsel %vm4306, %v5285, %v5286
          %v5288 = vrot.slane %v5286, 4
          %v5289 = vrot.slane %v4824, 5
          %v5290 = vsel %vm4306, %v5288, %v5289
          %v5291 = vrot.slane %v5247, 5
          %v5292 = vrot.slane %v5291, 4
          %v5293 = vrot.slane %v4826, 5
          %v5294 = vsel %vm4306, %v5292, %v5293
          %v5295 = vrot.slane %v5293, 4
          %v5296 = vrot.slane %v4827, 5
          %v5297 = vsel %vm4306, %v5295, %v5296
          %v5298 = vrot.slane %v5248, 5
          %v5299 = vrot.slane %v5298, 4
          %v5300 = vrot.slane %v4829, 5
          %v5301 = vsel %vm4306, %v5299, %v5300
          %v5302 = vrot.slane %v5300, 4
          %v5303 = vrot.slane %v4830, 5
          %v5304 = vsel %vm4306, %v5302, %v5303
          %v5305 = vrot.slane %v5249, 5
          %v5306 = vrot.slane %v5305, 4
          %v5307 = vrot.slane %v4832, 5
          %v5308 = vsel %vm4306, %v5306, %v5307
          %v5309 = vrot.slane %v5307, 4
          %v5310 = vrot.slane %v4833, 5
          %v5311 = vsel %vm4306, %v5309, %v5310
          %v5312 = vrot.slane %v5250, 5
          %v5313 = vrot.slane %v5312, 4
          %v5314 = vrot.slane %v4835, 5
          %v5315 = vsel %vm4306, %v5313, %v5314
          %v5316 = vrot.slane %v5314, 4
          %v5317 = vrot.slane %v4836, 5
          %v5318 = vsel %vm4306, %v5316, %v5317
          %v5319 = vrot.slane %v5251, 5
          %v5320 = vrot.slane %v5319, 4
          %v5321 = vrot.slane %v4838, 5
          %v5322 = vsel %vm4306, %v5320, %v5321
          %v5323 = vrot.slane %v5321, 4
          %v5324 = vrot.slane %v4839, 5
          %v5325 = vsel %vm4306, %v5323, %v5324
          %v5326 = vrot.slane %v5252, 5
          %v5327 = vrot.slane %v5326, 4
          %v5328 = vrot.slane %v4841, 5
          %v5329 = vsel %vm4306, %v5327, %v5328
          %v5330 = vrot.slane %v5328, 4
          %v5331 = vrot.slane %v4842, 5
          %v5332 = vsel %vm4306, %v5330, %v5331
          %s5333 = scalar_lea.vmem [#allocation4], 320
          %v5334 = vld [vmem:[%s5333] sm:$0xf]
          %v5335 = vld [vmem:[%s5333 + $0x4] sm:$0xf]
          %v5336 = vld [vmem:[%s5333 + $0x8] sm:$0xf]
          %v5337 = vld [vmem:[%s5333 + $0xc] sm:$0xf]
          %v5338 = vld [vmem:[%s5333 + $0x10] sm:$0xf]
          %v5339 = vld [vmem:[%s5333 + $0x14] sm:$0xf]
          %v5340 = vld [vmem:[%s5333 + $0x18] sm:$0xf]
          %v5341 = vld [vmem:[%s5333 + $0x1c] sm:$0xf]
          %v5342 = vld [vmem:[%s5333 + $0x20] sm:$0xf]
          %v5343 = vld [vmem:[%s5333 + $0x24] sm:$0xf]
          %v5344 = vld [vmem:[%s5333 + $0x28] sm:$0xf]
          %v5345 = vld [vmem:[%s5333 + $0x2c] sm:$0xf]
          %v5346 = vld [vmem:[%s5333 + $0x30] sm:$0xf]
          %v5347 = vld [vmem:[%s5333 + $0x34] sm:$0xf]
          %v5348 = vld [vmem:[%s5333 + $0x38] sm:$0xf]
          %v5349 = vld [vmem:[%s5333 + $0x3c] sm:$0xf]
          %v5350 = vunpack.c.l.b16 %v5280
          %v5351 = vunpack.c.l.b16 %v5283
          %v5352 = vunpack.c.l.b16 %v5287
          %v5353 = vunpack.c.l.b16 %v5290
          %v5354 = vunpack.c.l.b16 %v5294
          %v5355 = vunpack.c.l.b16 %v5297
          %v5356 = vunpack.c.l.b16 %v5301
          %v5357 = vunpack.c.l.b16 %v5304
          %v5358 = vunpack.c.l.b16 %v5308
          %v5359 = vunpack.c.l.b16 %v5311
          %v5360 = vunpack.c.l.b16 %v5315
          %v5361 = vunpack.c.l.b16 %v5318
          %v5362 = vunpack.c.l.b16 %v5322
          %v5363 = vunpack.c.l.b16 %v5325
          %v5364 = vunpack.c.l.b16 %v5329
          %v5365 = vunpack.c.l.b16 %v5332
          %v5366 = vpack.c.b16 %v5351, %v5350
          %v5367 = vpack.c.b16 %v5353, %v5352
          %v5368 = vpack.c.b16 %v5355, %v5354
          %v5369 = vpack.c.b16 %v5357, %v5356
          %v5370 = vpack.c.b16 %v5359, %v5358
          %v5371 = vpack.c.b16 %v5361, %v5360
          %v5372 = vpack.c.b16 %v5363, %v5362
          %v5373 = vpack.c.b16 %v5365, %v5364
          %v5398 = vunpack.c.l.b16 %v5334
          %v5399 = vunpack.c.l.b16 %v5335
          %v5400 = vunpack.c.l.b16 %v5336
          %v5401 = vunpack.c.l.b16 %v5337
          %v5402 = vunpack.c.l.b16 %v5338
          %v5403 = vunpack.c.l.b16 %v5339
          %v5404 = vunpack.c.l.b16 %v5340
          %v5405 = vunpack.c.l.b16 %v5341
          %v5406 = vunpack.c.l.b16 %v5342
          %v5407 = vunpack.c.l.b16 %v5343
          %v5408 = vunpack.c.l.b16 %v5344
          %v5409 = vunpack.c.l.b16 %v5345
          %v5410 = vunpack.c.l.b16 %v5346
          %v5411 = vunpack.c.l.b16 %v5347
          %v5412 = vunpack.c.l.b16 %v5348
          %v5413 = vunpack.c.l.b16 %v5349
          %v5414 = vpack.c.b16 %v5399, %v5398
          %v5415 = vpack.c.b16 %v5401, %v5400
          %v5416 = vpack.c.b16 %v5403, %v5402
          %v5417 = vpack.c.b16 %v5405, %v5404
          %v5418 = vpack.c.b16 %v5407, %v5406
          %v5419 = vpack.c.b16 %v5409, %v5408
          %v5420 = vpack.c.b16 %v5411, %v5410
          %v5421 = vpack.c.b16 %v5413, %v5412
          %5430 = vmatprep.subr.bf16.mxu0 0
          %5431 = vmatpush1.bf16.msra.mxu0 %v5414
          %5432 = vmatprep.subr.bf16.mxu0 0
          %5433 = vmatpush1.bf16.msra.mxu0 %v5415
          %5434 = vmatprep.subr.bf16.mxu0 0
          %5435 = vmatpush1.bf16.msra.mxu0 %v5416
          %5436 = vmatprep.subr.bf16.mxu0 0
          %5437 = vmatpush1.bf16.msra.mxu0 %v5417
          %5438 = vmatprep.subr.bf16.mxu0 0
          %5439 = vmatpush1.bf16.msra.mxu0 %v5418
          %5440 = vmatprep.subr.bf16.mxu0 0
          %5441 = vmatpush1.bf16.msra.mxu0 %v5419
          %5442 = vmatprep.subr.bf16.mxu0 0
          %5443 = vmatpush1.bf16.msra.mxu0 %v5420
          %5444 = vmatprep.subr.bf16.mxu0 0
          %5445 = vmatpush1.bf16.msra.mxu0 %v5421
          %5446 = vmatprep.subr.bf16.mxu0 0
          %5447 = vmatpush1.bf16.msra.mxu0 0
          %5448 = vmatprep.subr.bf16.mxu0 0
          %5449 = vmatpush1.bf16.msra.mxu0 0
          %5450 = vmatprep.subr.bf16.mxu0 0
          %5451 = vmatpush1.bf16.msra.mxu0 0
          %5452 = vmatprep.subr.bf16.mxu0 0
          %5453 = vmatpush1.bf16.msra.mxu0 0
          %5454 = vmatprep.subr.bf16.mxu0 0
          %5455 = vmatpush1.bf16.msra.mxu0 0
          %5456 = vmatprep.subr.bf16.mxu0 0
          %5457 = vmatpush1.bf16.msra.mxu0 0
          %5458 = vmatprep.subr.bf16.mxu0 0
          %5459 = vmatpush1.bf16.msra.mxu0 0
          %5460 = vmatprep.subr.bf16.mxu0 0
          %5461 = vmatpush1.bf16.msra.mxu0 0
          %5462 = vmatprep.mubr.bf16.mxu0 0
          %5463 = vmatmul.mubr.bf16.gmra.mrb[0].mxu0 %v5366
          %v5464 = vpop.f32.mrb[0].mxu0
          %v5465 = vadd.f32 0.0, %v5464
          %v5466 = vpop.f32.mrb[0].mxu0
          %v5467 = vpop.f32.mrb[0].mxu0
          %v5468 = vadd.f32 0.0, %v5467
          %v5469 = vpop.f32.mrb[0].mxu0
          %5470 = vmatprep.mubr.bf16.mxu0 0
          %5471 = vmatmul.mubr.bf16.gmra.mrb[0].mxu0 %v5367
          %v5472 = vpop.f32.mrb[0].mxu0
          %v5473 = vadd.f32 0.0, %v5472
          %v5474 = vpop.f32.mrb[0].mxu0
          %v5475 = vpop.f32.mrb[0].mxu0
          %v5476 = vadd.f32 0.0, %v5475
          %v5477 = vpop.f32.mrb[0].mxu0
          %5478 = vmatprep.mubr.bf16.mxu0 0
          %5479 = vmatmul.mubr.bf16.gmra.mrb[0].mxu0 %v5368
          %v5480 = vpop.f32.mrb[0].mxu0
          %v5481 = vadd.f32 0.0, %v5480
          %v5482 = vpop.f32.mrb[0].mxu0
          %v5483 = vpop.f32.mrb[0].mxu0
          %v5484 = vadd.f32 0.0, %v5483
          %v5485 = vpop.f32.mrb[0].mxu0
          %5486 = vmatprep.mubr.bf16.mxu0 0
          %5487 = vmatmul.mubr.bf16.gmra.mrb[0].mxu0 %v5369
          %v5488 = vpop.f32.mrb[0].mxu0
          %v5489 = vadd.f32 0.0, %v5488
          %v5490 = vpop.f32.mrb[0].mxu0
          %v5491 = vpop.f32.mrb[0].mxu0
          %v5492 = vadd.f32 0.0, %v5491
          %v5493 = vpop.f32.mrb[0].mxu0
          %5494 = vmatprep.mubr.bf16.mxu0 0
          %5495 = vmatmul.mubr.bf16.gmra.mrb[0].mxu0 %v5370
          %v5496 = vpop.f32.mrb[0].mxu0
          %v5497 = vadd.f32 0.0, %v5496
          %v5498 = vpop.f32.mrb[0].mxu0
          %v5499 = vpop.f32.mrb[0].mxu0
          %v5500 = vadd.f32 0.0, %v5499
          %v5501 = vpop.f32.mrb[0].mxu0
          %5502 = vmatprep.mubr.bf16.mxu0 0
          %5503 = vmatmul.mubr.bf16.gmra.mrb[0].mxu0 %v5371
          %v5504 = vpop.f32.mrb[0].mxu0
          %v5505 = vadd.f32 0.0, %v5504
          %v5506 = vpop.f32.mrb[0].mxu0
          %v5507 = vpop.f32.mrb[0].mxu0
          %v5508 = vadd.f32 0.0, %v5507
          %v5509 = vpop.f32.mrb[0].mxu0
          %5510 = vmatprep.mubr.bf16.mxu0 0
          %5511 = vmatmul.mubr.bf16.gmra.mrb[0].mxu0 %v5372
          %v5512 = vpop.f32.mrb[0].mxu0
          %v5513 = vadd.f32 0.0, %v5512
          %v5514 = vpop.f32.mrb[0].mxu0
          %v5515 = vpop.f32.mrb[0].mxu0
          %v5516 = vadd.f32 0.0, %v5515
          %v5517 = vpop.f32.mrb[0].mxu0
          %5518 = vmatprep.mubr.bf16.mxu0 0
          %5519 = vmatmul.mubr.bf16.gmra.mrb[0].mxu0 %v5373
          %v5520 = vpop.f32.mrb[0].mxu0
          %v5521 = vadd.f32 0.0, %v5520
          %v5522 = vpop.f32.mrb[0].mxu0
          %v5523 = vpop.f32.mrb[0].mxu0
          %v5524 = vadd.f32 0.0, %v5523
          %v5525 = vpop.f32.mrb[0].mxu0
          %5526 = vdwg.mxu0
          %v5527 = vadd.f32 %v5229, %v5465
          %v5528 = vadd.f32 %v5230, %v5468
          %v5529 = vadd.f32 %v5231, %v5473
          %v5530 = vadd.f32 %v5232, %v5476
          %v5531 = vadd.f32 %v5233, %v5481
          %v5532 = vadd.f32 %v5234, %v5484
          %v5533 = vadd.f32 %v5235, %v5489
          %v5534 = vadd.f32 %v5236, %v5492
          %v5535 = vadd.f32 %v5237, %v5497
          %v5536 = vadd.f32 %v5238, %v5500
          %v5537 = vadd.f32 %v5239, %v5505
          %v5538 = vadd.f32 %v5240, %v5508
          %v5539 = vadd.f32 %v5241, %v5513
          %v5540 = vadd.f32 %v5242, %v5516
          %v5541 = vadd.f32 %v5243, %v5521
          %v5542 = vadd.f32 %v5244, %v5524
          %s5543 = sadd.s32 %s3654, 2
          %s5544 = smul.u32 %s5543, 3
          %s5545 = smul.addr %s5544, 4
          %s5546 = scalar_lea.vmem [#allocation3], %s5545
          %v5547 = vld [vmem:[%s5546] sm:$0xf]
          %v5548 = vld [vmem:[%s5546 + $0x4] sm:$0xf]
          %v5549 = vld [vmem:[%s5546 + $0xc] sm:$0xf]
          %v5550 = vld [vmem:[%s5546 + $0x10] sm:$0xf]
          %v5551 = vld [vmem:[%s5546 + $0x18] sm:$0xf]
          %v5552 = vld [vmem:[%s5546 + $0x1c] sm:$0xf]
          %v5553 = vld [vmem:[%s5546 + $0x24] sm:$0xf]
          %v5554 = vld [vmem:[%s5546 + $0x28] sm:$0xf]
          %v5555 = vld [vmem:[%s5546 + $0x30] sm:$0xf]
          %v5556 = vld [vmem:[%s5546 + $0x34] sm:$0xf]
          %v5557 = vld [vmem:[%s5546 + $0x3c] sm:$0xf]
          %v5558 = vld [vmem:[%s5546 + $0x40] sm:$0xf]
          %v5559 = vld [vmem:[%s5546 + $0x48] sm:$0xf]
          %v5560 = vld [vmem:[%s5546 + $0x4c] sm:$0xf]
          %v5561 = vld [vmem:[%s5546 + $0x54] sm:$0xf]
          %v5562 = vld [vmem:[%s5546 + $0x58] sm:$0xf]
          %s5563 = scalar_lea.vmem [#allocation4], 384
          %v5564 = vld [vmem:[%s5563] sm:$0xf]
          %v5565 = vld [vmem:[%s5563 + $0x4] sm:$0xf]
          %v5566 = vld [vmem:[%s5563 + $0x8] sm:$0xf]
          %v5567 = vld [vmem:[%s5563 + $0xc] sm:$0xf]
          %v5568 = vld [vmem:[%s5563 + $0x10] sm:$0xf]
          %v5569 = vld [vmem:[%s5563 + $0x14] sm:$0xf]
          %v5570 = vld [vmem:[%s5563 + $0x18] sm:$0xf]
          %v5571 = vld [vmem:[%s5563 + $0x1c] sm:$0xf]
          %v5572 = vld [vmem:[%s5563 + $0x20] sm:$0xf]
          %v5573 = vld [vmem:[%s5563 + $0x24] sm:$0xf]
          %v5574 = vld [vmem:[%s5563 + $0x28] sm:$0xf]
          %v5575 = vld [vmem:[%s5563 + $0x2c] sm:$0xf]
          %v5576 = vld [vmem:[%s5563 + $0x30] sm:$0xf]
          %v5577 = vld [vmem:[%s5563 + $0x34] sm:$0xf]
          %v5578 = vld [vmem:[%s5563 + $0x38] sm:$0xf]
          %v5579 = vld [vmem:[%s5563 + $0x3c] sm:$0xf]
          %v5596 = vunpack.c.l.b16 %v5547
          %v5597 = vunpack.c.l.b16 %v5548
          %v5598 = vunpack.c.l.b16 %v5549
          %v5599 = vunpack.c.l.b16 %v5550
          %v5600 = vunpack.c.l.b16 %v5551
          %v5601 = vunpack.c.l.b16 %v5552
          %v5602 = vunpack.c.l.b16 %v5553
          %v5603 = vunpack.c.l.b16 %v5554
          %v5604 = vunpack.c.l.b16 %v5555
          %v5605 = vunpack.c.l.b16 %v5556
          %v5606 = vunpack.c.l.b16 %v5557
          %v5607 = vunpack.c.l.b16 %v5558
          %v5608 = vunpack.c.l.b16 %v5559
          %v5609 = vunpack.c.l.b16 %v5560
          %v5610 = vunpack.c.l.b16 %v5561
          %v5611 = vunpack.c.l.b16 %v5562
          %v5612 = vpack.c.b16 %v5597, %v5596
          %v5613 = vpack.c.b16 %v5599, %v5598
          %v5614 = vpack.c.b16 %v5601, %v5600
          %v5615 = vpack.c.b16 %v5603, %v5602
          %v5616 = vpack.c.b16 %v5605, %v5604
          %v5617 = vpack.c.b16 %v5607, %v5606
          %v5618 = vpack.c.b16 %v5609, %v5608
          %v5619 = vpack.c.b16 %v5611, %v5610
          %v5644 = vunpack.c.l.b16 %v5564
          %v5645 = vunpack.c.l.b16 %v5565
          %v5646 = vunpack.c.l.b16 %v5566
          %v5647 = vunpack.c.l.b16 %v5567
          %v5648 = vunpack.c.l.b16 %v5568
          %v5649 = vunpack.c.l.b16 %v5569
          %v5650 = vunpack.c.l.b16 %v5570
          %v5651 = vunpack.c.l.b16 %v5571
          %v5652 = vunpack.c.l.b16 %v5572
          %v5653 = vunpack.c.l.b16 %v5573
          %v5654 = vunpack.c.l.b16 %v5574
          %v5655 = vunpack.c.l.b16 %v5575
          %v5656 = vunpack.c.l.b16 %v5576
          %v5657 = vunpack.c.l.b16 %v5577
          %v5658 = vunpack.c.l.b16 %v5578
          %v5659 = vunpack.c.l.b16 %v5579
          %v5660 = vpack.c.b16 %v5645, %v5644
          %v5661 = vpack.c.b16 %v5647, %v5646
          %v5662 = vpack.c.b16 %v5649, %v5648
          %v5663 = vpack.c.b16 %v5651, %v5650
          %v5664 = vpack.c.b16 %v5653, %v5652
          %v5665 = vpack.c.b16 %v5655, %v5654
          %v5666 = vpack.c.b16 %v5657, %v5656
          %v5667 = vpack.c.b16 %v5659, %v5658
          %5676 = vmatprep.subr.bf16.mxu0 0
          %5677 = vmatpush1.bf16.msra.mxu0 %v5660
          %5678 = vmatprep.subr.bf16.mxu0 0
          %5679 = vmatpush1.bf16.msra.mxu0 %v5661
          %5680 = vmatprep.subr.bf16.mxu0 0
          %5681 = vmatpush1.bf16.msra.mxu0 %v5662
          %5682 = vmatprep.subr.bf16.mxu0 0
          %5683 = vmatpush1.bf16.msra.mxu0 %v5663
          %5684 = vmatprep.subr.bf16.mxu0 0
          %5685 = vmatpush1.bf16.msra.mxu0 %v5664
          %5686 = vmatprep.subr.bf16.mxu0 0
          %5687 = vmatpush1.bf16.msra.mxu0 %v5665
          %5688 = vmatprep.subr.bf16.mxu0 0
          %5689 = vmatpush1.bf16.msra.mxu0 %v5666
          %5690 = vmatprep.subr.bf16.mxu0 0
          %5691 = vmatpush1.bf16.msra.mxu0 %v5667
          %5692 = vmatprep.subr.bf16.mxu0 0
          %5693 = vmatpush1.bf16.msra.mxu0 0
          %5694 = vmatprep.subr.bf16.mxu0 0
          %5695 = vmatpush1.bf16.msra.mxu0 0
          %5696 = vmatprep.subr.bf16.mxu0 0
          %5697 = vmatpush1.bf16.msra.mxu0 0
          %5698 = vmatprep.subr.bf16.mxu0 0
          %5699 = vmatpush1.bf16.msra.mxu0 0
          %5700 = vmatprep.subr.bf16.mxu0 0
          %5701 = vmatpush1.bf16.msra.mxu0 0
          %5702 = vmatprep.subr.bf16.mxu0 0
          %5703 = vmatpush1.bf16.msra.mxu0 0
          %5704 = vmatprep.subr.bf16.mxu0 0
          %5705 = vmatpush1.bf16.msra.mxu0 0
          %5706 = vmatprep.subr.bf16.mxu0 0
          %5707 = vmatpush1.bf16.msra.mxu0 0
          %5708 = vmatprep.mubr.bf16.mxu0 0
          %5709 = vmatmul.mubr.bf16.gmra.mrb[0].mxu0 %v5612
          %v5710 = vpop.f32.mrb[0].mxu0
          %v5711 = vadd.f32 0.0, %v5710
          %v5712 = vpop.f32.mrb[0].mxu0
          %v5713 = vpop.f32.mrb[0].mxu0
          %v5714 = vadd.f32 0.0, %v5713
          %v5715 = vpop.f32.mrb[0].mxu0
          %5716 = vmatprep.mubr.bf16.mxu0 0
          %5717 = vmatmul.mubr.bf16.gmra.mrb[0].mxu0 %v5613
          %v5718 = vpop.f32.mrb[0].mxu0
          %v5719 = vadd.f32 0.0, %v5718
          %v5720 = vpop.f32.mrb[0].mxu0
          %v5721 = vpop.f32.mrb[0].mxu0
          %v5722 = vadd.f32 0.0, %v5721
          %v5723 = vpop.f32.mrb[0].mxu0
          %5724 = vmatprep.mubr.bf16.mxu0 0
          %5725 = vmatmul.mubr.bf16.gmra.mrb[0].mxu0 %v5614
          %v5726 = vpop.f32.mrb[0].mxu0
          %v5727 = vadd.f32 0.0, %v5726
          %v5728 = vpop.f32.mrb[0].mxu0
          %v5729 = vpop.f32.mrb[0].mxu0
          %v5730 = vadd.f32 0.0, %v5729
          %v5731 = vpop.f32.mrb[0].mxu0
          %5732 = vmatprep.mubr.bf16.mxu0 0
          %5733 = vmatmul.mubr.bf16.gmra.mrb[0].mxu0 %v5615
          %v5734 = vpop.f32.mrb[0].mxu0
          %v5735 = vadd.f32 0.0, %v5734
          %v5736 = vpop.f32.mrb[0].mxu0
          %v5737 = vpop.f32.mrb[0].mxu0
          %v5738 = vadd.f32 0.0, %v5737
          %v5739 = vpop.f32.mrb[0].mxu0
          %5740 = vmatprep.mubr.bf16.mxu0 0
          %5741 = vmatmul.mubr.bf16.gmra.mrb[0].mxu0 %v5616
          %v5742 = vpop.f32.mrb[0].mxu0
          %v5743 = vadd.f32 0.0, %v5742
          %v5744 = vpop.f32.mrb[0].mxu0
          %v5745 = vpop.f32.mrb[0].mxu0
          %v5746 = vadd.f32 0.0, %v5745
          %v5747 = vpop.f32.mrb[0].mxu0
          %5748 = vmatprep.mubr.bf16.mxu0 0
          %5749 = vmatmul.mubr.bf16.gmra.mrb[0].mxu0 %v5617
          %v5750 = vpop.f32.mrb[0].mxu0
          %v5751 = vadd.f32 0.0, %v5750
          %v5752 = vpop.f32.mrb[0].mxu0
          %v5753 = vpop.f32.mrb[0].mxu0
          %v5754 = vadd.f32 0.0, %v5753
          %v5755 = vpop.f32.mrb[0].mxu0
          %5756 = vmatprep.mubr.bf16.mxu0 0
          %5757 = vmatmul.mubr.bf16.gmra.mrb[0].mxu0 %v5618
          %v5758 = vpop.f32.mrb[0].mxu0
          %v5759 = vadd.f32 0.0, %v5758
          %v5760 = vpop.f32.mrb[0].mxu0
          %v5761 = vpop.f32.mrb[0].mxu0
          %v5762 = vadd.f32 0.0, %v5761
          %v5763 = vpop.f32.mrb[0].mxu0
          %5764 = vmatprep.mubr.bf16.mxu0 0
          %5765 = vmatmul.mubr.bf16.gmra.mrb[0].mxu0 %v5619
          %v5766 = vpop.f32.mrb[0].mxu0
          %v5767 = vadd.f32 0.0, %v5766
          %v5768 = vpop.f32.mrb[0].mxu0
          %v5769 = vpop.f32.mrb[0].mxu0
          %v5770 = vadd.f32 0.0, %v5769
          %v5771 = vpop.f32.mrb[0].mxu0
          %5772 = vdwg.mxu0
          %v5773 = vadd.f32 %v5527, %v5711
          %v5774 = vadd.f32 %v5528, %v5714
          %v5775 = vadd.f32 %v5529, %v5719
          %v5776 = vadd.f32 %v5530, %v5722
          %v5777 = vadd.f32 %v5531, %v5727
          %v5778 = vadd.f32 %v5532, %v5730
          %v5779 = vadd.f32 %v5533, %v5735
          %v5780 = vadd.f32 %v5534, %v5738
          %v5781 = vadd.f32 %v5535, %v5743
          %v5782 = vadd.f32 %v5536, %v5746
          %v5783 = vadd.f32 %v5537, %v5751
          %v5784 = vadd.f32 %v5538, %v5754
          %v5785 = vadd.f32 %v5539, %v5759
          %v5786 = vadd.f32 %v5540, %v5762
          %v5787 = vadd.f32 %v5541, %v5767
          %v5788 = vadd.f32 %v5542, %v5770
          %v5789 = vld [vmem:[%s5546] sm:$0xf]
          %v5790 = vld [vmem:[%s5546 + $0x4] sm:$0xf]
          %v5791 = vld [vmem:[%s5546 + $0x8] sm:$0x1]
          %v5792 = vld [vmem:[%s5546 + $0xc] sm:$0xf]
          %v5793 = vld [vmem:[%s5546 + $0x10] sm:$0xf]
          %v5794 = vld [vmem:[%s5546 + $0x14] sm:$0x1]
          %v5795 = vld [vmem:[%s5546 + $0x18] sm:$0xf]
          %v5796 = vld [vmem:[%s5546 + $0x1c] sm:$0xf]
          %v5797 = vld [vmem:[%s5546 + $0x20] sm:$0x1]
          %v5798 = vld [vmem:[%s5546 + $0x24] sm:$0xf]
          %v5799 = vld [vmem:[%s5546 + $0x28] sm:$0xf]
          %v5800 = vld [vmem:[%s5546 + $0x2c] sm:$0x1]
          %v5801 = vld [vmem:[%s5546 + $0x30] sm:$0xf]
          %v5802 = vld [vmem:[%s5546 + $0x34] sm:$0xf]
          %v5803 = vld [vmem:[%s5546 + $0x38] sm:$0x1]
          %v5804 = vld [vmem:[%s5546 + $0x3c] sm:$0xf]
          %v5805 = vld [vmem:[%s5546 + $0x40] sm:$0xf]
          %v5806 = vld [vmem:[%s5546 + $0x44] sm:$0x1]
          %v5807 = vld [vmem:[%s5546 + $0x48] sm:$0xf]
          %v5808 = vld [vmem:[%s5546 + $0x4c] sm:$0xf]
          %v5809 = vld [vmem:[%s5546 + $0x50] sm:$0x1]
          %v5810 = vld [vmem:[%s5546 + $0x54] sm:$0xf]
          %v5811 = vld [vmem:[%s5546 + $0x58] sm:$0xf]
          %v5812 = vld [vmem:[%s5546 + $0x5c] sm:$0x1]
          %v5814 = vshrl.u32 %v5789, 16
          %v5816 = vrot.slane %v5814, 4
          %v5817 = vshll.u32 %v5789, 16
          %v5819 = vrot.slane %v5817, 5
          %v5820 = vor.u32 %v5816, %v5819
          %v5821 = vrot.slane %v5820, 4
          %v5823 = vshll.u32 %v5790, 16
          %v5825 = vrot.slane %v5823, 5
          %v5826 = vsel %vm3700, %v5821, %v5825
          %v5827 = vshrl.u32 %v5790, 16
          %v5829 = vrot.slane %v5827, 4
          %v5830 = vor.u32 %v5829, %v5825
          %v5831 = vrot.slane %v5830, 4
          %v5833 = vshll.u32 %v5791, 16
          %v5835 = vrot.slane %v5833, 5
          %v5836 = vsel %vm3700, %v5831, %v5835
          %v5838 = vshrl.u32 %v5792, 16
          %v5840 = vrot.slane %v5838, 4
          %v5841 = vshll.u32 %v5792, 16
          %v5843 = vrot.slane %v5841, 5
          %v5844 = vor.u32 %v5840, %v5843
          %v5845 = vrot.slane %v5844, 4
          %v5847 = vshll.u32 %v5793, 16
          %v5849 = vrot.slane %v5847, 5
          %v5850 = vsel %vm3700, %v5845, %v5849
          %v5851 = vshrl.u32 %v5793, 16
          %v5853 = vrot.slane %v5851, 4
          %v5854 = vor.u32 %v5853, %v5849
          %v5855 = vrot.slane %v5854, 4
          %v5857 = vshll.u32 %v5794, 16
          %v5859 = vrot.slane %v5857, 5
          %v5860 = vsel %vm3700, %v5855, %v5859
          %v5862 = vshrl.u32 %v5795, 16
          %v5864 = vrot.slane %v5862, 4
          %v5865 = vshll.u32 %v5795, 16
          %v5867 = vrot.slane %v5865, 5
          %v5868 = vor.u32 %v5864, %v5867
          %v5869 = vrot.slane %v5868, 4
          %v5871 = vshll.u32 %v5796, 16
          %v5873 = vrot.slane %v5871, 5
          %v5874 = vsel %vm3700, %v5869, %v5873
          %v5875 = vshrl.u32 %v5796, 16
          %v5877 = vrot.slane %v5875, 4
          %v5878 = vor.u32 %v5877, %v5873
          %v5879 = vrot.slane %v5878, 4
          %v5881 = vshll.u32 %v5797, 16
          %v5883 = vrot.slane %v5881, 5
          %v5884 = vsel %vm3700, %v5879, %v5883
          %v5886 = vshrl.u32 %v5798, 16
          %v5888 = vrot.slane %v5886, 4
          %v5889 = vshll.u32 %v5798, 16
          %v5891 = vrot.slane %v5889, 5
          %v5892 = vor.u32 %v5888, %v5891
          %v5893 = vrot.slane %v5892, 4
          %v5895 = vshll.u32 %v5799, 16
          %v5897 = vrot.slane %v5895, 5
          %v5898 = vsel %vm3700, %v5893, %v5897
          %v5899 = vshrl.u32 %v5799, 16
          %v5901 = vrot.slane %v5899, 4
          %v5902 = vor.u32 %v5901, %v5897
          %v5903 = vrot.slane %v5902, 4
          %v5905 = vshll.u32 %v5800, 16
          %v5907 = vrot.slane %v5905, 5
          %v5908 = vsel %vm3700, %v5903, %v5907
          %v5910 = vshrl.u32 %v5801, 16
          %v5912 = vrot.slane %v5910, 4
          %v5913 = vshll.u32 %v5801, 16
          %v5915 = vrot.slane %v5913, 5
          %v5916 = vor.u32 %v5912, %v5915
          %v5917 = vrot.slane %v5916, 4
          %v5919 = vshll.u32 %v5802, 16
          %v5921 = vrot.slane %v5919, 5
          %v5922 = vsel %vm3700, %v5917, %v5921
          %v5923 = vshrl.u32 %v5802, 16
          %v5925 = vrot.slane %v5923, 4
          %v5926 = vor.u32 %v5925, %v5921
          %v5927 = vrot.slane %v5926, 4
          %v5929 = vshll.u32 %v5803, 16
          %v5931 = vrot.slane %v5929, 5
          %v5932 = vsel %vm3700, %v5927, %v5931
          %v5934 = vshrl.u32 %v5804, 16
          %v5936 = vrot.slane %v5934, 4
          %v5937 = vshll.u32 %v5804, 16
          %v5939 = vrot.slane %v5937, 5
          %v5940 = vor.u32 %v5936, %v5939
          %v5941 = vrot.slane %v5940, 4
          %v5943 = vshll.u32 %v5805, 16
          %v5945 = vrot.slane %v5943, 5
          %v5946 = vsel %vm3700, %v5941, %v5945
          %v5947 = vshrl.u32 %v5805, 16
          %v5949 = vrot.slane %v5947, 4
          %v5950 = vor.u32 %v5949, %v5945
          %v5951 = vrot.slane %v5950, 4
          %v5953 = vshll.u32 %v5806, 16
          %v5955 = vrot.slane %v5953, 5
          %v5956 = vsel %vm3700, %v5951, %v5955
          %v5958 = vshrl.u32 %v5807, 16
          %v5960 = vrot.slane %v5958, 4
          %v5961 = vshll.u32 %v5807, 16
          %v5963 = vrot.slane %v5961, 5
          %v5964 = vor.u32 %v5960, %v5963
          %v5965 = vrot.slane %v5964, 4
          %v5967 = vshll.u32 %v5808, 16
          %v5969 = vrot.slane %v5967, 5
          %v5970 = vsel %vm3700, %v5965, %v5969
          %v5971 = vshrl.u32 %v5808, 16
          %v5973 = vrot.slane %v5971, 4
          %v5974 = vor.u32 %v5973, %v5969
          %v5975 = vrot.slane %v5974, 4
          %v5977 = vshll.u32 %v5809, 16
          %v5979 = vrot.slane %v5977, 5
          %v5980 = vsel %vm3700, %v5975, %v5979
          %v5982 = vshrl.u32 %v5810, 16
          %v5984 = vrot.slane %v5982, 4
          %v5985 = vshll.u32 %v5810, 16
          %v5987 = vrot.slane %v5985, 5
          %v5988 = vor.u32 %v5984, %v5987
          %v5989 = vrot.slane %v5988, 4
          %v5991 = vshll.u32 %v5811, 16
          %v5993 = vrot.slane %v5991, 5
          %v5994 = vsel %vm3700, %v5989, %v5993
          %v5995 = vshrl.u32 %v5811, 16
          %v5997 = vrot.slane %v5995, 4
          %v5998 = vor.u32 %v5997, %v5993
          %v5999 = vrot.slane %v5998, 4
          %v6001 = vshll.u32 %v5812, 16
          %v6003 = vrot.slane %v6001, 5
          %v6004 = vsel %vm3700, %v5999, %v6003
          %s6005 = scalar_lea.vmem [#allocation4], 448
          %v6006 = vld [vmem:[%s6005] sm:$0xf]
          %v6007 = vld [vmem:[%s6005 + $0x4] sm:$0xf]
          %v6008 = vld [vmem:[%s6005 + $0x8] sm:$0xf]
          %v6009 = vld [vmem:[%s6005 + $0xc] sm:$0xf]
          %v6010 = vld [vmem:[%s6005 + $0x10] sm:$0xf]
          %v6011 = vld [vmem:[%s6005 + $0x14] sm:$0xf]
          %v6012 = vld [vmem:[%s6005 + $0x18] sm:$0xf]
          %v6013 = vld [vmem:[%s6005 + $0x1c] sm:$0xf]
          %v6014 = vld [vmem:[%s6005 + $0x20] sm:$0xf]
          %v6015 = vld [vmem:[%s6005 + $0x24] sm:$0xf]
          %v6016 = vld [vmem:[%s6005 + $0x28] sm:$0xf]
          %v6017 = vld [vmem:[%s6005 + $0x2c] sm:$0xf]
          %v6018 = vld [vmem:[%s6005 + $0x30] sm:$0xf]
          %v6019 = vld [vmem:[%s6005 + $0x34] sm:$0xf]
          %v6020 = vld [vmem:[%s6005 + $0x38] sm:$0xf]
          %v6021 = vld [vmem:[%s6005 + $0x3c] sm:$0xf]
          %v6022 = vunpack.c.l.b16 %v5826
          %v6023 = vunpack.c.l.b16 %v5836
          %v6024 = vunpack.c.l.b16 %v5850
          %v6025 = vunpack.c.l.b16 %v5860
          %v6026 = vunpack.c.l.b16 %v5874
          %v6027 = vunpack.c.l.b16 %v5884
          %v6028 = vunpack.c.l.b16 %v5898
          %v6029 = vunpack.c.l.b16 %v5908
          %v6030 = vunpack.c.l.b16 %v5922
          %v6031 = vunpack.c.l.b16 %v5932
          %v6032 = vunpack.c.l.b16 %v5946
          %v6033 = vunpack.c.l.b16 %v5956
          %v6034 = vunpack.c.l.b16 %v5970
          %v6035 = vunpack.c.l.b16 %v5980
          %v6036 = vunpack.c.l.b16 %v5994
          %v6037 = vunpack.c.l.b16 %v6004
          %v6038 = vpack.c.b16 %v6023, %v6022
          %v6039 = vpack.c.b16 %v6025, %v6024
          %v6040 = vpack.c.b16 %v6027, %v6026
          %v6041 = vpack.c.b16 %v6029, %v6028
          %v6042 = vpack.c.b16 %v6031, %v6030
          %v6043 = vpack.c.b16 %v6033, %v6032
          %v6044 = vpack.c.b16 %v6035, %v6034
          %v6045 = vpack.c.b16 %v6037, %v6036
          %v6070 = vunpack.c.l.b16 %v6006
          %v6071 = vunpack.c.l.b16 %v6007
          %v6072 = vunpack.c.l.b16 %v6008
          %v6073 = vunpack.c.l.b16 %v6009
          %v6074 = vunpack.c.l.b16 %v6010
          %v6075 = vunpack.c.l.b16 %v6011
          %v6076 = vunpack.c.l.b16 %v6012
          %v6077 = vunpack.c.l.b16 %v6013
          %v6078 = vunpack.c.l.b16 %v6014
          %v6079 = vunpack.c.l.b16 %v6015
          %v6080 = vunpack.c.l.b16 %v6016
          %v6081 = vunpack.c.l.b16 %v6017
          %v6082 = vunpack.c.l.b16 %v6018
          %v6083 = vunpack.c.l.b16 %v6019
          %v6084 = vunpack.c.l.b16 %v6020
          %v6085 = vunpack.c.l.b16 %v6021
          %v6086 = vpack.c.b16 %v6071, %v6070
          %v6087 = vpack.c.b16 %v6073, %v6072
          %v6088 = vpack.c.b16 %v6075, %v6074
          %v6089 = vpack.c.b16 %v6077, %v6076
          %v6090 = vpack.c.b16 %v6079, %v6078
          %v6091 = vpack.c.b16 %v6081, %v6080
          %v6092 = vpack.c.b16 %v6083, %v6082
          %v6093 = vpack.c.b16 %v6085, %v6084
          %6102 = vmatprep.subr.bf16.mxu0 0
          %6103 = vmatpush1.bf16.msra.mxu0 %v6086
          %6104 = vmatprep.subr.bf16.mxu0 0
          %6105 = vmatpush1.bf16.msra.mxu0 %v6087
          %6106 = vmatprep.subr.bf16.mxu0 0
          %6107 = vmatpush1.bf16.msra.mxu0 %v6088
          %6108 = vmatprep.subr.bf16.mxu0 0
          %6109 = vmatpush1.bf16.msra.mxu0 %v6089
          %6110 = vmatprep.subr.bf16.mxu0 0
          %6111 = vmatpush1.bf16.msra.mxu0 %v6090
          %6112 = vmatprep.subr.bf16.mxu0 0
          %6113 = vmatpush1.bf16.msra.mxu0 %v6091
          %6114 = vmatprep.subr.bf16.mxu0 0
          %6115 = vmatpush1.bf16.msra.mxu0 %v6092
          %6116 = vmatprep.subr.bf16.mxu0 0
          %6117 = vmatpush1.bf16.msra.mxu0 %v6093
          %6118 = vmatprep.subr.bf16.mxu0 0
          %6119 = vmatpush1.bf16.msra.mxu0 0
          %6120 = vmatprep.subr.bf16.mxu0 0
          %6121 = vmatpush1.bf16.msra.mxu0 0
          %6122 = vmatprep.subr.bf16.mxu0 0
          %6123 = vmatpush1.bf16.msra.mxu0 0
          %6124 = vmatprep.subr.bf16.mxu0 0
          %6125 = vmatpush1.bf16.msra.mxu0 0
          %6126 = vmatprep.subr.bf16.mxu0 0
          %6127 = vmatpush1.bf16.msra.mxu0 0
          %6128 = vmatprep.subr.bf16.mxu0 0
          %6129 = vmatpush1.bf16.msra.mxu0 0
          %6130 = vmatprep.subr.bf16.mxu0 0
          %6131 = vmatpush1.bf16.msra.mxu0 0
          %6132 = vmatprep.subr.bf16.mxu0 0
          %6133 = vmatpush1.bf16.msra.mxu0 0
          %6134 = vmatprep.mubr.bf16.mxu0 0
          %6135 = vmatmul.mubr.bf16.gmra.mrb[0].mxu0 %v6038
          %v6136 = vpop.f32.mrb[0].mxu0
          %v6137 = vadd.f32 0.0, %v6136
          %v6138 = vpop.f32.mrb[0].mxu0
          %v6139 = vpop.f32.mrb[0].mxu0
          %v6140 = vadd.f32 0.0, %v6139
          %v6141 = vpop.f32.mrb[0].mxu0
          %6142 = vmatprep.mubr.bf16.mxu0 0
          %6143 = vmatmul.mubr.bf16.gmra.mrb[0].mxu0 %v6039
          %v6144 = vpop.f32.mrb[0].mxu0
          %v6145 = vadd.f32 0.0, %v6144
          %v6146 = vpop.f32.mrb[0].mxu0
          %v6147 = vpop.f32.mrb[0].mxu0
          %v6148 = vadd.f32 0.0, %v6147
          %v6149 = vpop.f32.mrb[0].mxu0
          %6150 = vmatprep.mubr.bf16.mxu0 0
          %6151 = vmatmul.mubr.bf16.gmra.mrb[0].mxu0 %v6040
          %v6152 = vpop.f32.mrb[0].mxu0
          %v6153 = vadd.f32 0.0, %v6152
          %v6154 = vpop.f32.mrb[0].mxu0
          %v6155 = vpop.f32.mrb[0].mxu0
          %v6156 = vadd.f32 0.0, %v6155
          %v6157 = vpop.f32.mrb[0].mxu0
          %6158 = vmatprep.mubr.bf16.mxu0 0
          %6159 = vmatmul.mubr.bf16.gmra.mrb[0].mxu0 %v6041
          %v6160 = vpop.f32.mrb[0].mxu0
          %v6161 = vadd.f32 0.0, %v6160
          %v6162 = vpop.f32.mrb[0].mxu0
          %v6163 = vpop.f32.mrb[0].mxu0
          %v6164 = vadd.f32 0.0, %v6163
          %v6165 = vpop.f32.mrb[0].mxu0
          %6166 = vmatprep.mubr.bf16.mxu0 0
          %6167 = vmatmul.mubr.bf16.gmra.mrb[0].mxu0 %v6042
          %v6168 = vpop.f32.mrb[0].mxu0
          %v6169 = vadd.f32 0.0, %v6168
          %v6170 = vpop.f32.mrb[0].mxu0
          %v6171 = vpop.f32.mrb[0].mxu0
          %v6172 = vadd.f32 0.0, %v6171
          %v6173 = vpop.f32.mrb[0].mxu0
          %6174 = vmatprep.mubr.bf16.mxu0 0
          %6175 = vmatmul.mubr.bf16.gmra.mrb[0].mxu0 %v6043
          %v6176 = vpop.f32.mrb[0].mxu0
          %v6177 = vadd.f32 0.0, %v6176
          %v6178 = vpop.f32.mrb[0].mxu0
          %v6179 = vpop.f32.mrb[0].mxu0
          %v6180 = vadd.f32 0.0, %v6179
          %v6181 = vpop.f32.mrb[0].mxu0
          %6182 = vmatprep.mubr.bf16.mxu0 0
          %6183 = vmatmul.mubr.bf16.gmra.mrb[0].mxu0 %v6044
          %v6184 = vpop.f32.mrb[0].mxu0
          %v6185 = vadd.f32 0.0, %v6184
          %v6186 = vpop.f32.mrb[0].mxu0
          %v6187 = vpop.f32.mrb[0].mxu0
          %v6188 = vadd.f32 0.0, %v6187
          %v6189 = vpop.f32.mrb[0].mxu0
          %6190 = vmatprep.mubr.bf16.mxu0 0
          %6191 = vmatmul.mubr.bf16.gmra.mrb[0].mxu0 %v6045
          %v6192 = vpop.f32.mrb[0].mxu0
          %v6193 = vadd.f32 0.0, %v6192
          %v6194 = vpop.f32.mrb[0].mxu0
          %v6195 = vpop.f32.mrb[0].mxu0
          %v6196 = vadd.f32 0.0, %v6195
          %v6197 = vpop.f32.mrb[0].mxu0
          %6198 = vdwg.mxu0
          %v6199 = vadd.f32 %v5773, %v6137
          %v6200 = vadd.f32 %v5774, %v6140
          %v6201 = vadd.f32 %v5775, %v6145
          %v6202 = vadd.f32 %v5776, %v6148
          %v6203 = vadd.f32 %v5777, %v6153
          %v6204 = vadd.f32 %v5778, %v6156
          %v6205 = vadd.f32 %v5779, %v6161
          %v6206 = vadd.f32 %v5780, %v6164
          %v6207 = vadd.f32 %v5781, %v6169
          %v6208 = vadd.f32 %v5782, %v6172
          %v6209 = vadd.f32 %v5783, %v6177
          %v6210 = vadd.f32 %v5784, %v6180
          %v6211 = vadd.f32 %v5785, %v6185
          %v6212 = vadd.f32 %v5786, %v6188
          %v6213 = vadd.f32 %v5787, %v6193
          %v6214 = vadd.f32 %v5788, %v6196
          %v6215 = vld [vmem:[%s5546] sm:$0xe]
          %v6216 = vld [vmem:[%s5546 + $0xc] sm:$0xe]
          %v6217 = vld [vmem:[%s5546 + $0x18] sm:$0xe]
          %v6218 = vld [vmem:[%s5546 + $0x24] sm:$0xe]
          %v6219 = vld [vmem:[%s5546 + $0x30] sm:$0xe]
          %v6220 = vld [vmem:[%s5546 + $0x3c] sm:$0xe]
          %v6221 = vld [vmem:[%s5546 + $0x48] sm:$0xe]
          %v6222 = vld [vmem:[%s5546 + $0x54] sm:$0xe]
          %v6247 = vrot.slane %v6215, 5
          %v6248 = vrot.slane %v6247, 4
          %v6249 = vrot.slane %v5790, 5
          %v6250 = vsel %vm4306, %v6248, %v6249
          %v6251 = vrot.slane %v6249, 4
          %v6252 = vrot.slane %v5791, 5
          %v6253 = vsel %vm4306, %v6251, %v6252
          %v6254 = vrot.slane %v6216, 5
          %v6255 = vrot.slane %v6254, 4
          %v6256 = vrot.slane %v5793, 5
          %v6257 = vsel %vm4306, %v6255, %v6256
          %v6258 = vrot.slane %v6256, 4
          %v6259 = vrot.slane %v5794, 5
          %v6260 = vsel %vm4306, %v6258, %v6259
          %v6261 = vrot.slane %v6217, 5
          %v6262 = vrot.slane %v6261, 4
          %v6263 = vrot.slane %v5796, 5
          %v6264 = vsel %vm4306, %v6262, %v6263
          %v6265 = vrot.slane %v6263, 4
          %v6266 = vrot.slane %v5797, 5
          %v6267 = vsel %vm4306, %v6265, %v6266
          %v6268 = vrot.slane %v6218, 5
          %v6269 = vrot.slane %v6268, 4
          %v6270 = vrot.slane %v5799, 5
          %v6271 = vsel %vm4306, %v6269, %v6270
          %v6272 = vrot.slane %v6270, 4
          %v6273 = vrot.slane %v5800, 5
          %v6274 = vsel %vm4306, %v6272, %v6273
          %v6275 = vrot.slane %v6219, 5
          %v6276 = vrot.slane %v6275, 4
          %v6277 = vrot.slane %v5802, 5
          %v6278 = vsel %vm4306, %v6276, %v6277
          %v6279 = vrot.slane %v6277, 4
          %v6280 = vrot.slane %v5803, 5
          %v6281 = vsel %vm4306, %v6279, %v6280
          %v6282 = vrot.slane %v6220, 5
          %v6283 = vrot.slane %v6282, 4
          %v6284 = vrot.slane %v5805, 5
          %v6285 = vsel %vm4306, %v6283, %v6284
          %v6286 = vrot.slane %v6284, 4
          %v6287 = vrot.slane %v5806, 5
          %v6288 = vsel %vm4306, %v6286, %v6287
          %v6289 = vrot.slane %v6221, 5
          %v6290 = vrot.slane %v6289, 4
          %v6291 = vrot.slane %v5808, 5
          %v6292 = vsel %vm4306, %v6290, %v6291
          %v6293 = vrot.slane %v6291, 4
          %v6294 = vrot.slane %v5809, 5
          %v6295 = vsel %vm4306, %v6293, %v6294
          %v6296 = vrot.slane %v6222, 5
          %v6297 = vrot.slane %v6296, 4
          %v6298 = vrot.slane %v5811, 5
          %v6299 = vsel %vm4306, %v6297, %v6298
          %v6300 = vrot.slane %v6298, 4
          %v6301 = vrot.slane %v5812, 5
          %v6302 = vsel %vm4306, %v6300, %v6301
          %s6303 = scalar_lea.vmem [#allocation4], 512
          %v6304 = vld [vmem:[%s6303] sm:$0xf]
          %v6305 = vld [vmem:[%s6303 + $0x4] sm:$0xf]
          %v6306 = vld [vmem:[%s6303 + $0x8] sm:$0xf]
          %v6307 = vld [vmem:[%s6303 + $0xc] sm:$0xf]
          %v6308 = vld [vmem:[%s6303 + $0x10] sm:$0xf]
          %v6309 = vld [vmem:[%s6303 + $0x14] sm:$0xf]
          %v6310 = vld [vmem:[%s6303 + $0x18] sm:$0xf]
          %v6311 = vld [vmem:[%s6303 + $0x1c] sm:$0xf]
          %v6312 = vld [vmem:[%s6303 + $0x20] sm:$0xf]
          %v6313 = vld [vmem:[%s6303 + $0x24] sm:$0xf]
          %v6314 = vld [vmem:[%s6303 + $0x28] sm:$0xf]
          %v6315 = vld [vmem:[%s6303 + $0x2c] sm:$0xf]
          %v6316 = vld [vmem:[%s6303 + $0x30] sm:$0xf]
          %v6317 = vld [vmem:[%s6303 + $0x34] sm:$0xf]
          %v6318 = vld [vmem:[%s6303 + $0x38] sm:$0xf]
          %v6319 = vld [vmem:[%s6303 + $0x3c] sm:$0xf]
          %v6320 = vunpack.c.l.b16 %v6250
          %v6321 = vunpack.c.l.b16 %v6253
          %v6322 = vunpack.c.l.b16 %v6257
          %v6323 = vunpack.c.l.b16 %v6260
          %v6324 = vunpack.c.l.b16 %v6264
          %v6325 = vunpack.c.l.b16 %v6267
          %v6326 = vunpack.c.l.b16 %v6271
          %v6327 = vunpack.c.l.b16 %v6274
          %v6328 = vunpack.c.l.b16 %v6278
          %v6329 = vunpack.c.l.b16 %v6281
          %v6330 = vunpack.c.l.b16 %v6285
          %v6331 = vunpack.c.l.b16 %v6288
          %v6332 = vunpack.c.l.b16 %v6292
          %v6333 = vunpack.c.l.b16 %v6295
          %v6334 = vunpack.c.l.b16 %v6299
          %v6335 = vunpack.c.l.b16 %v6302
          %v6336 = vpack.c.b16 %v6321, %v6320
          %v6337 = vpack.c.b16 %v6323, %v6322
          %v6338 = vpack.c.b16 %v6325, %v6324
          %v6339 = vpack.c.b16 %v6327, %v6326
          %v6340 = vpack.c.b16 %v6329, %v6328
          %v6341 = vpack.c.b16 %v6331, %v6330
          %v6342 = vpack.c.b16 %v6333, %v6332
          %v6343 = vpack.c.b16 %v6335, %v6334
          %v6368 = vunpack.c.l.b16 %v6304
          %v6369 = vunpack.c.l.b16 %v6305
          %v6370 = vunpack.c.l.b16 %v6306
          %v6371 = vunpack.c.l.b16 %v6307
          %v6372 = vunpack.c.l.b16 %v6308
          %v6373 = vunpack.c.l.b16 %v6309
          %v6374 = vunpack.c.l.b16 %v6310
          %v6375 = vunpack.c.l.b16 %v6311
          %v6376 = vunpack.c.l.b16 %v6312
          %v6377 = vunpack.c.l.b16 %v6313
          %v6378 = vunpack.c.l.b16 %v6314
          %v6379 = vunpack.c.l.b16 %v6315
          %v6380 = vunpack.c.l.b16 %v6316
          %v6381 = vunpack.c.l.b16 %v6317
          %v6382 = vunpack.c.l.b16 %v6318
          %v6383 = vunpack.c.l.b16 %v6319
          %v6384 = vpack.c.b16 %v6369, %v6368
          %v6385 = vpack.c.b16 %v6371, %v6370
          %v6386 = vpack.c.b16 %v6373, %v6372
          %v6387 = vpack.c.b16 %v6375, %v6374
          %v6388 = vpack.c.b16 %v6377, %v6376
          %v6389 = vpack.c.b16 %v6379, %v6378
          %v6390 = vpack.c.b16 %v6381, %v6380
          %v6391 = vpack.c.b16 %v6383, %v6382
          %6400 = vmatprep.subr.bf16.mxu0 0
          %6401 = vmatpush1.bf16.msra.mxu0 %v6384
          %6402 = vmatprep.subr.bf16.mxu0 0
          %6403 = vmatpush1.bf16.msra.mxu0 %v6385
          %6404 = vmatprep.subr.bf16.mxu0 0
          %6405 = vmatpush1.bf16.msra.mxu0 %v6386
          %6406 = vmatprep.subr.bf16.mxu0 0
          %6407 = vmatpush1.bf16.msra.mxu0 %v6387
          %6408 = vmatprep.subr.bf16.mxu0 0
          %6409 = vmatpush1.bf16.msra.mxu0 %v6388
          %6410 = vmatprep.subr.bf16.mxu0 0
          %6411 = vmatpush1.bf16.msra.mxu0 %v6389
          %6412 = vmatprep.subr.bf16.mxu0 0
          %6413 = vmatpush1.bf16.msra.mxu0 %v6390
          %6414 = vmatprep.subr.bf16.mxu0 0
          %6415 = vmatpush1.bf16.msra.mxu0 %v6391
          %6416 = vmatprep.subr.bf16.mxu0 0
          %6417 = vmatpush1.bf16.msra.mxu0 0
          %6418 = vmatprep.subr.bf16.mxu0 0
          %6419 = vmatpush1.bf16.msra.mxu0 0
          %6420 = vmatprep.subr.bf16.mxu0 0
          %6421 = vmatpush1.bf16.msra.mxu0 0
          %6422 = vmatprep.subr.bf16.mxu0 0
          %6423 = vmatpush1.bf16.msra.mxu0 0
          %6424 = vmatprep.subr.bf16.mxu0 0
          %6425 = vmatpush1.bf16.msra.mxu0 0
          %6426 = vmatprep.subr.bf16.mxu0 0
          %6427 = vmatpush1.bf16.msra.mxu0 0
          %6428 = vmatprep.subr.bf16.mxu0 0
          %6429 = vmatpush1.bf16.msra.mxu0 0
          %6430 = vmatprep.subr.bf16.mxu0 0
          %6431 = vmatpush1.bf16.msra.mxu0 0
          %6432 = vmatprep.mubr.bf16.mxu0 0
          %6433 = vmatmul.mubr.bf16.gmra.mrb[0].mxu0 %v6336
          %v6434 = vpop.f32.mrb[0].mxu0
          %v6435 = vadd.f32 0.0, %v6434
          %v6436 = vpop.f32.mrb[0].mxu0
          %v6437 = vpop.f32.mrb[0].mxu0
          %v6438 = vadd.f32 0.0, %v6437
          %v6439 = vpop.f32.mrb[0].mxu0
          %6440 = vmatprep.mubr.bf16.mxu0 0
          %6441 = vmatmul.mubr.bf16.gmra.mrb[0].mxu0 %v6337
          %v6442 = vpop.f32.mrb[0].mxu0
          %v6443 = vadd.f32 0.0, %v6442
          %v6444 = vpop.f32.mrb[0].mxu0
          %v6445 = vpop.f32.mrb[0].mxu0
          %v6446 = vadd.f32 0.0, %v6445
          %v6447 = vpop.f32.mrb[0].mxu0
          %6448 = vmatprep.mubr.bf16.mxu0 0
          %6449 = vmatmul.mubr.bf16.gmra.mrb[0].mxu0 %v6338
          %v6450 = vpop.f32.mrb[0].mxu0
          %v6451 = vadd.f32 0.0, %v6450
          %v6452 = vpop.f32.mrb[0].mxu0
          %v6453 = vpop.f32.mrb[0].mxu0
          %v6454 = vadd.f32 0.0, %v6453
          %v6455 = vpop.f32.mrb[0].mxu0
          %6456 = vmatprep.mubr.bf16.mxu0 0
          %6457 = vmatmul.mubr.bf16.gmra.mrb[0].mxu0 %v6339
          %v6458 = vpop.f32.mrb[0].mxu0
          %v6459 = vadd.f32 0.0, %v6458
          %v6460 = vpop.f32.mrb[0].mxu0
          %v6461 = vpop.f32.mrb[0].mxu0
          %v6462 = vadd.f32 0.0, %v6461
          %v6463 = vpop.f32.mrb[0].mxu0
          %6464 = vmatprep.mubr.bf16.mxu0 0
          %6465 = vmatmul.mubr.bf16.gmra.mrb[0].mxu0 %v6340
          %v6466 = vpop.f32.mrb[0].mxu0
          %v6467 = vadd.f32 0.0, %v6466
          %v6468 = vpop.f32.mrb[0].mxu0
          %v6469 = vpop.f32.mrb[0].mxu0
          %v6470 = vadd.f32 0.0, %v6469
          %v6471 = vpop.f32.mrb[0].mxu0
          %6472 = vmatprep.mubr.bf16.mxu0 0
          %6473 = vmatmul.mubr.bf16.gmra.mrb[0].mxu0 %v6341
          %v6474 = vpop.f32.mrb[0].mxu0
          %v6475 = vadd.f32 0.0, %v6474
          %v6476 = vpop.f32.mrb[0].mxu0
          %v6477 = vpop.f32.mrb[0].mxu0
          %v6478 = vadd.f32 0.0, %v6477
          %v6479 = vpop.f32.mrb[0].mxu0
          %6480 = vmatprep.mubr.bf16.mxu0 0
          %6481 = vmatmul.mubr.bf16.gmra.mrb[0].mxu0 %v6342
          %v6482 = vpop.f32.mrb[0].mxu0
          %v6483 = vadd.f32 0.0, %v6482
          %v6484 = vpop.f32.mrb[0].mxu0
          %v6485 = vpop.f32.mrb[0].mxu0
          %v6486 = vadd.f32 0.0, %v6485
          %v6487 = vpop.f32.mrb[0].mxu0
          %6488 = vmatprep.mubr.bf16.mxu0 0
          %6489 = vmatmul.mubr.bf16.gmra.mrb[0].mxu0 %v6343
          %v6490 = vpop.f32.mrb[0].mxu0
          %v6491 = vadd.f32 0.0, %v6490
          %v6492 = vpop.f32.mrb[0].mxu0
          %v6493 = vpop.f32.mrb[0].mxu0
          %v6494 = vadd.f32 0.0, %v6493
          %v6495 = vpop.f32.mrb[0].mxu0
          %6496 = vdwg.mxu0
          %v6497 = vadd.f32 %v6199, %v6435
          %v6498 = vadd.f32 %v6200, %v6438
          %v6499 = vadd.f32 %v6201, %v6443
          %v6500 = vadd.f32 %v6202, %v6446
          %v6501 = vadd.f32 %v6203, %v6451
          %v6502 = vadd.f32 %v6204, %v6454
          %v6503 = vadd.f32 %v6205, %v6459
          %v6504 = vadd.f32 %v6206, %v6462
          %v6505 = vadd.f32 %v6207, %v6467
          %v6506 = vadd.f32 %v6208, %v6470
          %v6507 = vadd.f32 %v6209, %v6475
          %v6508 = vadd.f32 %v6210, %v6478
          %v6509 = vadd.f32 %v6211, %v6483
          %v6510 = vadd.f32 %v6212, %v6486
          %v6511 = vadd.f32 %v6213, %v6491
          %v6512 = vadd.f32 %v6214, %v6494
          %v6513 = vld [vmem:[%s5] sm:$0x1]
          %v6515 = vlaneseq
          %v6516 = vshrl.u32 %v6515, 7
          %v6517 = vsub.s32 0, %v6516
          %v6518 = vrot.slane %v6513, %v6517
          %v6520 = vmul.f32 %v6497, %v6518
          %v6521 = vmul.f32 %v6498, %v6518
          %v6522 = vmul.f32 %v6499, %v6518
          %v6523 = vmul.f32 %v6500, %v6518
          %v6524 = vmul.f32 %v6501, %v6518
          %v6525 = vmul.f32 %v6502, %v6518
          %v6526 = vmul.f32 %v6503, %v6518
          %v6527 = vmul.f32 %v6504, %v6518
          %v6528 = vmul.f32 %v6505, %v6518
          %v6529 = vmul.f32 %v6506, %v6518
          %v6530 = vmul.f32 %v6507, %v6518
          %v6531 = vmul.f32 %v6508, %v6518
          %v6532 = vmul.f32 %v6509, %v6518
          %v6533 = vmul.f32 %v6510, %v6518
          %v6534 = vmul.f32 %v6511, %v6518
          %v6535 = vmul.f32 %v6512, %v6518
          %v6536 = vld [vmem:[%s6] sm:$0x1]
          %v6538 = vlaneseq
          %v6539 = vshrl.u32 %v6538, 7
          %v6540 = vsub.s32 0, %v6539
          %v6541 = vrot.slane %v6536, %v6540
          %v6543 = vadd.f32 %v6520, %v6541
          %v6544 = vadd.f32 %v6521, %v6541
          %v6545 = vadd.f32 %v6522, %v6541
          %v6546 = vadd.f32 %v6523, %v6541
          %v6547 = vadd.f32 %v6524, %v6541
          %v6548 = vadd.f32 %v6525, %v6541
          %v6549 = vadd.f32 %v6526, %v6541
          %v6550 = vadd.f32 %v6527, %v6541
          %v6551 = vadd.f32 %v6528, %v6541
          %v6552 = vadd.f32 %v6529, %v6541
          %v6553 = vadd.f32 %v6530, %v6541
          %v6554 = vadd.f32 %v6531, %v6541
          %v6555 = vadd.f32 %v6532, %v6541
          %v6556 = vadd.f32 %v6533, %v6541
          %v6557 = vadd.f32 %v6534, %v6541
          %v6558 = vadd.f32 %v6535, %v6541
          %s6559 = smul.addr %s4574, 4
          %s6560 = scalar_lea.vmem [#allocation2], %s6559
          %v6561 = vld [vmem:[%s6560] sm:$0xf]
          %v6562 = vld [vmem:[%s6560 + $0x4] sm:$0xf]
          %v6563 = vld [vmem:[%s6560 + $0x8] sm:$0x1]
          %v6564 = vld [vmem:[%s6560 + $0xc] sm:$0xf]
          %v6565 = vld [vmem:[%s6560 + $0x10] sm:$0xf]
          %v6566 = vld [vmem:[%s6560 + $0x14] sm:$0x1]
          %v6567 = vld [vmem:[%s6560 + $0x18] sm:$0xf]
          %v6568 = vld [vmem:[%s6560 + $0x1c] sm:$0xf]
          %v6569 = vld [vmem:[%s6560 + $0x20] sm:$0x1]
          %v6570 = vld [vmem:[%s6560 + $0x24] sm:$0xf]
          %v6571 = vld [vmem:[%s6560 + $0x28] sm:$0xf]
          %v6572 = vld [vmem:[%s6560 + $0x2c] sm:$0x1]
          %v6573 = vld [vmem:[%s6560 + $0x30] sm:$0xf]
          %v6574 = vld [vmem:[%s6560 + $0x34] sm:$0xf]
          %v6575 = vld [vmem:[%s6560 + $0x38] sm:$0x1]
          %v6576 = vld [vmem:[%s6560 + $0x3c] sm:$0xf]
          %v6577 = vld [vmem:[%s6560 + $0x40] sm:$0xf]
          %v6578 = vld [vmem:[%s6560 + $0x44] sm:$0x1]
          %v6579 = vld [vmem:[%s6560 + $0x48] sm:$0xf]
          %v6580 = vld [vmem:[%s6560 + $0x4c] sm:$0xf]
          %v6581 = vld [vmem:[%s6560 + $0x50] sm:$0x1]
          %v6582 = vld [vmem:[%s6560 + $0x54] sm:$0xf]
          %v6583 = vld [vmem:[%s6560 + $0x58] sm:$0xf]
          %v6584 = vld [vmem:[%s6560 + $0x5c] sm:$0x1]
          %v6586 = vshrl.u32 %v6561, 16
          %v6588 = vrot.slane %v6586, 4
          %v6589 = vshll.u32 %v6561, 16
          %v6591 = vrot.slane %v6589, 5
          %v6592 = vor.u32 %v6588, %v6591
          %v6593 = vrot.slane %v6592, 4
          %v6595 = vshll.u32 %v6562, 16
          %v6597 = vrot.slane %v6595, 5
          %v6598 = vsel %vm3700, %v6593, %v6597
          %v6599 = vshrl.u32 %v6562, 16
          %v6601 = vrot.slane %v6599, 4
          %v6602 = vor.u32 %v6601, %v6597
          %v6603 = vrot.slane %v6602, 4
          %v6605 = vshll.u32 %v6563, 16
          %v6607 = vrot.slane %v6605, 5
          %v6608 = vsel %vm3700, %v6603, %v6607
          %v6610 = vshrl.u32 %v6564, 16
          %v6612 = vrot.slane %v6610, 4
          %v6613 = vshll.u32 %v6564, 16
          %v6615 = vrot.slane %v6613, 5
          %v6616 = vor.u32 %v6612, %v6615
          %v6617 = vrot.slane %v6616, 4
          %v6619 = vshll.u32 %v6565, 16
          %v6621 = vrot.slane %v6619, 5
          %v6622 = vsel %vm3700, %v6617, %v6621
          %v6623 = vshrl.u32 %v6565, 16
          %v6625 = vrot.slane %v6623, 4
          %v6626 = vor.u32 %v6625, %v6621
          %v6627 = vrot.slane %v6626, 4
          %v6629 = vshll.u32 %v6566, 16
          %v6631 = vrot.slane %v6629, 5
          %v6632 = vsel %vm3700, %v6627, %v6631
          %v6634 = vshrl.u32 %v6567, 16
          %v6636 = vrot.slane %v6634, 4
          %v6637 = vshll.u32 %v6567, 16
          %v6639 = vrot.slane %v6637, 5
          %v6640 = vor.u32 %v6636, %v6639
          %v6641 = vrot.slane %v6640, 4
          %v6643 = vshll.u32 %v6568, 16
          %v6645 = vrot.slane %v6643, 5
          %v6646 = vsel %vm3700, %v6641, %v6645
          %v6647 = vshrl.u32 %v6568, 16
          %v6649 = vrot.slane %v6647, 4
          %v6650 = vor.u32 %v6649, %v6645
          %v6651 = vrot.slane %v6650, 4
          %v6653 = vshll.u32 %v6569, 16
          %v6655 = vrot.slane %v6653, 5
          %v6656 = vsel %vm3700, %v6651, %v6655
          %v6658 = vshrl.u32 %v6570, 16
          %v6660 = vrot.slane %v6658, 4
          %v6661 = vshll.u32 %v6570, 16
          %v6663 = vrot.slane %v6661, 5
          %v6664 = vor.u32 %v6660, %v6663
          %v6665 = vrot.slane %v6664, 4
          %v6667 = vshll.u32 %v6571, 16
          %v6669 = vrot.slane %v6667, 5
          %v6670 = vsel %vm3700, %v6665, %v6669
          %v6671 = vshrl.u32 %v6571, 16
          %v6673 = vrot.slane %v6671, 4
          %v6674 = vor.u32 %v6673, %v6669
          %v6675 = vrot.slane %v6674, 4
          %v6677 = vshll.u32 %v6572, 16
          %v6679 = vrot.slane %v6677, 5
          %v6680 = vsel %vm3700, %v6675, %v6679
          %v6682 = vshrl.u32 %v6573, 16
          %v6684 = vrot.slane %v6682, 4
          %v6685 = vshll.u32 %v6573, 16
          %v6687 = vrot.slane %v6685, 5
          %v6688 = vor.u32 %v6684, %v6687
          %v6689 = vrot.slane %v6688, 4
          %v6691 = vshll.u32 %v6574, 16
          %v6693 = vrot.slane %v6691, 5
          %v6694 = vsel %vm3700, %v6689, %v6693
          %v6695 = vshrl.u32 %v6574, 16
          %v6697 = vrot.slane %v6695, 4
          %v6698 = vor.u32 %v6697, %v6693
          %v6699 = vrot.slane %v6698, 4
          %v6701 = vshll.u32 %v6575, 16
          %v6703 = vrot.slane %v6701, 5
          %v6704 = vsel %vm3700, %v6699, %v6703
          %v6706 = vshrl.u32 %v6576, 16
          %v6708 = vrot.slane %v6706, 4
          %v6709 = vshll.u32 %v6576, 16
          %v6711 = vrot.slane %v6709, 5
          %v6712 = vor.u32 %v6708, %v6711
          %v6713 = vrot.slane %v6712, 4
          %v6715 = vshll.u32 %v6577, 16
          %v6717 = vrot.slane %v6715, 5
          %v6718 = vsel %vm3700, %v6713, %v6717
          %v6719 = vshrl.u32 %v6577, 16
          %v6721 = vrot.slane %v6719, 4
          %v6722 = vor.u32 %v6721, %v6717
          %v6723 = vrot.slane %v6722, 4
          %v6725 = vshll.u32 %v6578, 16
          %v6727 = vrot.slane %v6725, 5
          %v6728 = vsel %vm3700, %v6723, %v6727
          %v6730 = vshrl.u32 %v6579, 16
          %v6732 = vrot.slane %v6730, 4
          %v6733 = vshll.u32 %v6579, 16
          %v6735 = vrot.slane %v6733, 5
          %v6736 = vor.u32 %v6732, %v6735
          %v6737 = vrot.slane %v6736, 4
          %v6739 = vshll.u32 %v6580, 16
          %v6741 = vrot.slane %v6739, 5
          %v6742 = vsel %vm3700, %v6737, %v6741
          %v6743 = vshrl.u32 %v6580, 16
          %v6745 = vrot.slane %v6743, 4
          %v6746 = vor.u32 %v6745, %v6741
          %v6747 = vrot.slane %v6746, 4
          %v6749 = vshll.u32 %v6581, 16
          %v6751 = vrot.slane %v6749, 5
          %v6752 = vsel %vm3700, %v6747, %v6751
          %v6754 = vshrl.u32 %v6582, 16
          %v6756 = vrot.slane %v6754, 4
          %v6757 = vshll.u32 %v6582, 16
          %v6759 = vrot.slane %v6757, 5
          %v6760 = vor.u32 %v6756, %v6759
          %v6761 = vrot.slane %v6760, 4
          %v6763 = vshll.u32 %v6583, 16
          %v6765 = vrot.slane %v6763, 5
          %v6766 = vsel %vm3700, %v6761, %v6765
          %v6767 = vshrl.u32 %v6583, 16
          %v6769 = vrot.slane %v6767, 4
          %v6770 = vor.u32 %v6769, %v6765
          %v6771 = vrot.slane %v6770, 4
          %v6773 = vshll.u32 %v6584, 16
          %v6775 = vrot.slane %v6773, 5
          %v6776 = vsel %vm3700, %v6771, %v6775
          %v6777 = vld [vmem:[%s7] sm:$0xf]
          %v6778 = vld [vmem:[%s7 + $0x4] sm:$0xf]
          %v6779 = vld [vmem:[%s7 + $0x8] sm:$0xf]
          %v6780 = vld [vmem:[%s7 + $0xc] sm:$0xf]
          %v6781 = vld [vmem:[%s7 + $0x10] sm:$0xf]
          %v6782 = vld [vmem:[%s7 + $0x14] sm:$0xf]
          %v6783 = vld [vmem:[%s7 + $0x18] sm:$0xf]
          %v6784 = vld [vmem:[%s7 + $0x1c] sm:$0xf]
          %v6785 = vld [vmem:[%s7 + $0x20] sm:$0xf]
          %v6786 = vld [vmem:[%s7 + $0x24] sm:$0xf]
          %v6787 = vld [vmem:[%s7 + $0x28] sm:$0xf]
          %v6788 = vld [vmem:[%s7 + $0x2c] sm:$0xf]
          %v6789 = vld [vmem:[%s7 + $0x30] sm:$0xf]
          %v6790 = vld [vmem:[%s7 + $0x34] sm:$0xf]
          %v6791 = vld [vmem:[%s7 + $0x38] sm:$0xf]
          %v6792 = vld [vmem:[%s7 + $0x3c] sm:$0xf]
          %v6793 = vunpack.c.l.b16 %v6598
          %v6794 = vunpack.c.l.b16 %v6608
          %v6795 = vunpack.c.l.b16 %v6622
          %v6796 = vunpack.c.l.b16 %v6632
          %v6797 = vunpack.c.l.b16 %v6646
          %v6798 = vunpack.c.l.b16 %v6656
          %v6799 = vunpack.c.l.b16 %v6670
          %v6800 = vunpack.c.l.b16 %v6680
          %v6801 = vunpack.c.l.b16 %v6694
          %v6802 = vunpack.c.l.b16 %v6704
          %v6803 = vunpack.c.l.b16 %v6718
          %v6804 = vunpack.c.l.b16 %v6728
          %v6805 = vunpack.c.l.b16 %v6742
          %v6806 = vunpack.c.l.b16 %v6752
          %v6807 = vunpack.c.l.b16 %v6766
          %v6808 = vunpack.c.l.b16 %v6776
          %v6809 = vpack.c.b16 %v6794, %v6793
          %v6810 = vpack.c.b16 %v6796, %v6795
          %v6811 = vpack.c.b16 %v6798, %v6797
          %v6812 = vpack.c.b16 %v6800, %v6799
          %v6813 = vpack.c.b16 %v6802, %v6801
          %v6814 = vpack.c.b16 %v6804, %v6803
          %v6815 = vpack.c.b16 %v6806, %v6805
          %v6816 = vpack.c.b16 %v6808, %v6807
          %v6841 = vunpack.c.l.b16 %v6777
          %v6842 = vunpack.c.l.b16 %v6778
          %v6843 = vunpack.c.l.b16 %v6779
          %v6844 = vunpack.c.l.b16 %v6780
          %v6845 = vunpack.c.l.b16 %v6781
          %v6846 = vunpack.c.l.b16 %v6782
          %v6847 = vunpack.c.l.b16 %v6783
          %v6848 = vunpack.c.l.b16 %v6784
          %v6849 = vunpack.c.l.b16 %v6785
          %v6850 = vunpack.c.l.b16 %v6786
          %v6851 = vunpack.c.l.b16 %v6787
          %v6852 = vunpack.c.l.b16 %v6788
          %v6853 = vunpack.c.l.b16 %v6789
          %v6854 = vunpack.c.l.b16 %v6790
          %v6855 = vunpack.c.l.b16 %v6791
          %v6856 = vunpack.c.l.b16 %v6792
          %v6857 = vpack.c.b16 %v6842, %v6841
          %v6858 = vpack.c.b16 %v6844, %v6843
          %v6859 = vpack.c.b16 %v6846, %v6845
          %v6860 = vpack.c.b16 %v6848, %v6847
          %v6861 = vpack.c.b16 %v6850, %v6849
          %v6862 = vpack.c.b16 %v6852, %v6851
          %v6863 = vpack.c.b16 %v6854, %v6853
          %v6864 = vpack.c.b16 %v6856, %v6855
          %6873 = vmatprep.subr.bf16.mxu0 0
          %6874 = vmatpush1.bf16.msra.mxu0 %v6857
          %6875 = vmatprep.subr.bf16.mxu0 0
          %6876 = vmatpush1.bf16.msra.mxu0 %v6858
          %6877 = vmatprep.subr.bf16.mxu0 0
          %6878 = vmatpush1.bf16.msra.mxu0 %v6859
          %6879 = vmatprep.subr.bf16.mxu0 0
          %6880 = vmatpush1.bf16.msra.mxu0 %v6860
          %6881 = vmatprep.subr.bf16.mxu0 0
          %6882 = vmatpush1.bf16.msra.mxu0 %v6861
          %6883 = vmatprep.subr.bf16.mxu0 0
          %6884 = vmatpush1.bf16.msra.mxu0 %v6862
          %6885 = vmatprep.subr.bf16.mxu0 0
          %6886 = vmatpush1.bf16.msra.mxu0 %v6863
          %6887 = vmatprep.subr.bf16.mxu0 0
          %6888 = vmatpush1.bf16.msra.mxu0 %v6864
          %6889 = vmatprep.subr.bf16.mxu0 0
          %6890 = vmatpush1.bf16.msra.mxu0 0
          %6891 = vmatprep.subr.bf16.mxu0 0
          %6892 = vmatpush1.bf16.msra.mxu0 0
          %6893 = vmatprep.subr.bf16.mxu0 0
          %6894 = vmatpush1.bf16.msra.mxu0 0
          %6895 = vmatprep.subr.bf16.mxu0 0
          %6896 = vmatpush1.bf16.msra.mxu0 0
          %6897 = vmatprep.subr.bf16.mxu0 0
          %6898 = vmatpush1.bf16.msra.mxu0 0
          %6899 = vmatprep.subr.bf16.mxu0 0
          %6900 = vmatpush1.bf16.msra.mxu0 0
          %6901 = vmatprep.subr.bf16.mxu0 0
          %6902 = vmatpush1.bf16.msra.mxu0 0
          %6903 = vmatprep.subr.bf16.mxu0 0
          %6904 = vmatpush1.bf16.msra.mxu0 0
          %6905 = vmatprep.mubr.bf16.mxu0 0
          %6906 = vmatmul.mubr.bf16.gmra.mrb[0].mxu0 %v6809
          %v6907 = vpop.f32.mrb[0].mxu0
          %v6908 = vadd.f32 0.0, %v6907
          %v6909 = vpop.f32.mrb[0].mxu0
          %v6910 = vpop.f32.mrb[0].mxu0
          %v6911 = vadd.f32 0.0, %v6910
          %v6912 = vpop.f32.mrb[0].mxu0
          %6913 = vmatprep.mubr.bf16.mxu0 0
          %6914 = vmatmul.mubr.bf16.gmra.mrb[0].mxu0 %v6810
          %v6915 = vpop.f32.mrb[0].mxu0
          %v6916 = vadd.f32 0.0, %v6915
          %v6917 = vpop.f32.mrb[0].mxu0
          %v6918 = vpop.f32.mrb[0].mxu0
          %v6919 = vadd.f32 0.0, %v6918
          %v6920 = vpop.f32.mrb[0].mxu0
          %6921 = vmatprep.mubr.bf16.mxu0 0
          %6922 = vmatmul.mubr.bf16.gmra.mrb[0].mxu0 %v6811
          %v6923 = vpop.f32.mrb[0].mxu0
          %v6924 = vadd.f32 0.0, %v6923
          %v6925 = vpop.f32.mrb[0].mxu0
          %v6926 = vpop.f32.mrb[0].mxu0
          %v6927 = vadd.f32 0.0, %v6926
          %v6928 = vpop.f32.mrb[0].mxu0
          %6929 = vmatprep.mubr.bf16.mxu0 0
          %6930 = vmatmul.mubr.bf16.gmra.mrb[0].mxu0 %v6812
          %v6931 = vpop.f32.mrb[0].mxu0
          %v6932 = vadd.f32 0.0, %v6931
          %v6933 = vpop.f32.mrb[0].mxu0
          %v6934 = vpop.f32.mrb[0].mxu0
          %v6935 = vadd.f32 0.0, %v6934
          %v6936 = vpop.f32.mrb[0].mxu0
          %6937 = vmatprep.mubr.bf16.mxu0 0
          %6938 = vmatmul.mubr.bf16.gmra.mrb[0].mxu0 %v6813
          %v6939 = vpop.f32.mrb[0].mxu0
          %v6940 = vadd.f32 0.0, %v6939
          %v6941 = vpop.f32.mrb[0].mxu0
          %v6942 = vpop.f32.mrb[0].mxu0
          %v6943 = vadd.f32 0.0, %v6942
          %v6944 = vpop.f32.mrb[0].mxu0
          %6945 = vmatprep.mubr.bf16.mxu0 0
          %6946 = vmatmul.mubr.bf16.gmra.mrb[0].mxu0 %v6814
          %v6947 = vpop.f32.mrb[0].mxu0
          %v6948 = vadd.f32 0.0, %v6947
          %v6949 = vpop.f32.mrb[0].mxu0
          %v6950 = vpop.f32.mrb[0].mxu0
          %v6951 = vadd.f32 0.0, %v6950
          %v6952 = vpop.f32.mrb[0].mxu0
          %6953 = vmatprep.mubr.bf16.mxu0 0
          %6954 = vmatmul.mubr.bf16.gmra.mrb[0].mxu0 %v6815
          %v6955 = vpop.f32.mrb[0].mxu0
          %v6956 = vadd.f32 0.0, %v6955
          %v6957 = vpop.f32.mrb[0].mxu0
          %v6958 = vpop.f32.mrb[0].mxu0
          %v6959 = vadd.f32 0.0, %v6958
          %v6960 = vpop.f32.mrb[0].mxu0
          %6961 = vmatprep.mubr.bf16.mxu0 0
          %6962 = vmatmul.mubr.bf16.gmra.mrb[0].mxu0 %v6816
          %v6963 = vpop.f32.mrb[0].mxu0
          %v6964 = vadd.f32 0.0, %v6963
          %v6965 = vpop.f32.mrb[0].mxu0
          %v6966 = vpop.f32.mrb[0].mxu0
          %v6967 = vadd.f32 0.0, %v6966
          %v6968 = vpop.f32.mrb[0].mxu0
          %6969 = vdwg.mxu0
          %v6970 = vld [vmem:[%s8] sm:$0x1]
          %v6972 = vlaneseq
          %v6973 = vshrl.u32 %v6972, 7
          %v6974 = vsub.s32 0, %v6973
          %v6975 = vrot.slane %v6970, %v6974
          %v6977 = vmul.f32 %v6908, %v6975
          %v6978 = vmul.f32 %v6911, %v6975
          %v6979 = vmul.f32 %v6916, %v6975
          %v6980 = vmul.f32 %v6919, %v6975
          %v6981 = vmul.f32 %v6924, %v6975
          %v6982 = vmul.f32 %v6927, %v6975
          %v6983 = vmul.f32 %v6932, %v6975
          %v6984 = vmul.f32 %v6935, %v6975
          %v6985 = vmul.f32 %v6940, %v6975
          %v6986 = vmul.f32 %v6943, %v6975
          %v6987 = vmul.f32 %v6948, %v6975
          %v6988 = vmul.f32 %v6951, %v6975
          %v6989 = vmul.f32 %v6956, %v6975
          %v6990 = vmul.f32 %v6959, %v6975
          %v6991 = vmul.f32 %v6964, %v6975
          %v6992 = vmul.f32 %v6967, %v6975
          %v6993 = vld [vmem:[%s9] sm:$0x1]
          %v6995 = vlaneseq
          %v6996 = vshrl.u32 %v6995, 7
          %v6997 = vsub.s32 0, %v6996
          %v6998 = vrot.slane %v6993, %v6997
          %v7000 = vadd.f32 %v6977, %v6998
          %v7001 = vadd.f32 %v6978, %v6998
          %v7002 = vadd.f32 %v6979, %v6998
          %v7003 = vadd.f32 %v6980, %v6998
          %v7004 = vadd.f32 %v6981, %v6998
          %v7005 = vadd.f32 %v6982, %v6998
          %v7006 = vadd.f32 %v6983, %v6998
          %v7007 = vadd.f32 %v6984, %v6998
          %v7008 = vadd.f32 %v6985, %v6998
          %v7009 = vadd.f32 %v6986, %v6998
          %v7010 = vadd.f32 %v6987, %v6998
          %v7011 = vadd.f32 %v6988, %v6998
          %v7012 = vadd.f32 %v6989, %v6998
          %v7013 = vadd.f32 %v6990, %v6998
          %v7014 = vadd.f32 %v6991, %v6998
          %v7015 = vadd.f32 %v6992, %v6998
          %v7016 = vadd.f32 %v6543, %v7000
          %v7017 = vadd.f32 %v6544, %v7001
          %v7018 = vadd.f32 %v6545, %v7002
          %v7019 = vadd.f32 %v6546, %v7003
          %v7020 = vadd.f32 %v6547, %v7004
          %v7021 = vadd.f32 %v6548, %v7005
          %v7022 = vadd.f32 %v6549, %v7006
          %v7023 = vadd.f32 %v6550, %v7007
          %v7024 = vadd.f32 %v6551, %v7008
          %v7025 = vadd.f32 %v6552, %v7009
          %v7026 = vadd.f32 %v6553, %v7010
          %v7027 = vadd.f32 %v6554, %v7011
          %v7028 = vadd.f32 %v6555, %v7012
          %v7029 = vadd.f32 %v6556, %v7013
          %v7030 = vadd.f32 %v6557, %v7014
          %v7031 = vadd.f32 %v6558, %v7015
          %v7032 = vmax.f32 %v7016, 0.0
          %v7033 = vmax.f32 %v7017, 0.0
          %v7034 = vmax.f32 %v7018, 0.0
          %v7035 = vmax.f32 %v7019, 0.0
          %v7036 = vmax.f32 %v7020, 0.0
          %v7037 = vmax.f32 %v7021, 0.0
          %v7038 = vmax.f32 %v7022, 0.0
          %v7039 = vmax.f32 %v7023, 0.0
          %v7040 = vmax.f32 %v7024, 0.0
          %v7041 = vmax.f32 %v7025, 0.0
          %v7042 = vmax.f32 %v7026, 0.0
          %v7043 = vmax.f32 %v7027, 0.0
          %v7044 = vmax.f32 %v7028, 0.0
          %v7045 = vmax.f32 %v7029, 0.0
          %v7046 = vmax.f32 %v7030, 0.0
          %v7047 = vmax.f32 %v7031, 0.0
          %v7048 = vpack.c.bf16 %v7033, %v7032
          %v7049 = vpack.c.bf16 %v7035, %v7034
          %v7050 = vpack.c.bf16 %v7037, %v7036
          %v7051 = vpack.c.bf16 %v7039, %v7038
          %v7052 = vpack.c.bf16 %v7041, %v7040
          %v7053 = vpack.c.bf16 %v7043, %v7042
          %v7054 = vpack.c.bf16 %v7045, %v7044
          %v7055 = vpack.c.bf16 %v7047, %v7046
          %v7064 = vunpack.c.l.b16 %v7048
          %v7065 = vunpack.c.h.b16 %v7048
          %v7066 = vunpack.c.l.b16 %v7049
          %v7067 = vunpack.c.h.b16 %v7049
          %v7068 = vunpack.c.l.b16 %v7050
          %v7069 = vunpack.c.h.b16 %v7050
          %v7070 = vunpack.c.l.b16 %v7051
          %v7071 = vunpack.c.h.b16 %v7051
          %v7072 = vunpack.c.l.b16 %v7052
          %v7073 = vunpack.c.h.b16 %v7052
          %v7074 = vunpack.c.l.b16 %v7053
          %v7075 = vunpack.c.h.b16 %v7053
          %v7076 = vunpack.c.l.b16 %v7054
          %v7077 = vunpack.c.h.b16 %v7054
          %v7078 = vunpack.c.l.b16 %v7055
          %v7079 = vunpack.c.h.b16 %v7055
          %v7080 = vpack.c.b16 %v7064, %v7064
          %v7081 = vpack.c.b16 %v7065, %v7065
          %v7082 = vpack.c.b16 %v7066, %v7066
          %v7083 = vpack.c.b16 %v7067, %v7067
          %v7084 = vpack.c.b16 %v7068, %v7068
          %v7085 = vpack.c.b16 %v7069, %v7069
          %v7086 = vpack.c.b16 %v7070, %v7070
          %v7087 = vpack.c.b16 %v7071, %v7071
          %v7088 = vpack.c.b16 %v7072, %v7072
          %v7089 = vpack.c.b16 %v7073, %v7073
          %v7090 = vpack.c.b16 %v7074, %v7074
          %v7091 = vpack.c.b16 %v7075, %v7075
          %v7092 = vpack.c.b16 %v7076, %v7076
          %v7093 = vpack.c.b16 %v7077, %v7077
          %v7094 = vpack.c.b16 %v7078, %v7078
          %v7095 = vpack.c.b16 %v7079, %v7079
          %7112 = vst [vmem:[%s387] sm:$0xf] %v7080
          %7113 = vst [vmem:[%s387 + $0x4] sm:$0xf] %v7081
          %7114 = vst [vmem:[%s387 + $0x8] sm:$0xf] %v7082
          %7115 = vst [vmem:[%s387 + $0xc] sm:$0xf] %v7083
          %7116 = vst [vmem:[%s387 + $0x10] sm:$0xf] %v7084
          %7117 = vst [vmem:[%s387 + $0x14] sm:$0xf] %v7085
          %7118 = vst [vmem:[%s387 + $0x18] sm:$0xf] %v7086
          %7119 = vst [vmem:[%s387 + $0x1c] sm:$0xf] %v7087
          %7120 = vst [vmem:[%s387 + $0x20] sm:$0xf] %v7088
          %7121 = vst [vmem:[%s387 + $0x24] sm:$0xf] %v7089
          %7122 = vst [vmem:[%s387 + $0x28] sm:$0xf] %v7090
          %7123 = vst [vmem:[%s387 + $0x2c] sm:$0xf] %v7091
          %7124 = vst [vmem:[%s387 + $0x30] sm:$0xf] %v7092
          %7125 = vst [vmem:[%s387 + $0x34] sm:$0xf] %v7093
          %7126 = vst [vmem:[%s387 + $0x38] sm:$0xf] %v7094
          %7127 = vst [vmem:[%s387 + $0x3c] sm:$0xf] %v7095
        $region76: #{tpu_custom_call.1} parent=59 // pred_fallthru
          _
        %s7128 = sand.u32 %s268, 1
        %s7129 = scalar_lea.sflag [#allocation6], %s7128
        %s7130 = sand.u32 %s268, 1
        %s7131 = smul.addr %s7130, 64
        %s7132 = scalar_lea.vmem [#allocation7], %s7131
        // Predicated region
        $region77: #{tpu_custom_call.1} parent=59 // pred_check
          %p7133 = pneg %p278
        $region78: #{tpu_custom_call.1} parent=59 // pred_check_branch
          %7135 = sbr.rel (%p7133) target = $region80
        $region79: #{tpu_custom_call.1} parent=59 // pred_region
          %s7136 = ssub.s32 %s30, 1
          %p7137 = scmp.gt.s32.totalorder %s7136, 0
          %s7138 = scalar_select %p7137, %s7136, 0
          %s7139 = smul.u32 8, %s7138
          %s7141 = ssub.s32 1024, 1024
          %7142 = vsyncadd %s7129, %s7141
          %s7143 = smul.addr %s7139, 2
          %s7144 = smul.addr %s29, 32
          %s7145 = sadd.s32 %s7143, %s7144
          %s7146 = smul.addr %s7145, 64
          %s7147 = scalar_lea.hbm %s10, %s7146
          %s7148 = sshll.u32 %s7132, 4
          %s7149 = int_to_ptr.vmem [resolvable:$true] %s7148
          %7154 = dma.vmem_to_hbm [thread:$0]  %s7149, 1024, %s7147, %s7129, 64, 64, 4
        $region80: #{tpu_custom_call.1} parent=59 // pred_fallthru
          _
      $region60: #{tpu_custom_call.1} parent=5 // pred_fallthru
        _
      %p7155 = scmp.le.s32.totalorder 2, %s20
      // Predicated region
      $region81: #{tpu_custom_call.1} parent=5 // pred_check
        %p7156 = pneg %p7155
      $region82: #{tpu_custom_call.1} parent=5 // pred_check_branch
        %7158 = sbr.rel (%p7156) target = $region84
      $region83: #{tpu_custom_call.1} parent=5 // pred_region
        %s7159 = ssub.s32 %s20, 2
        // Predicated region
        $region85: #{tpu_custom_call.1} parent=83 // pred_check
          %p7160 = pneg %p284
        $region86: #{tpu_custom_call.1} parent=83 // pred_check_branch
          %7162 = sbr.rel (%p7160) target = $region88
        $region87: #{tpu_custom_call.1} parent=83 // pred_region
          %s7163 = sand.u32 %s269, 1
          %s7164 = scalar_lea.sflag [#allocation6], %s7163
          %s7165 = sand.u32 %s269, 1
          %s7166 = smul.addr %s7165, 64
          %s7167 = scalar_lea.vmem [#allocation7], %s7166
          %7168 = dma.done %s7164, 1024
        $region88: #{tpu_custom_call.1} parent=83 // pred_fallthru
          _
      $region84: #{tpu_custom_call.1} parent=5 // pred_fallthru
        _
    $region6: #{tpu_custom_call.1} parent=1 // loop_footer
      %s24 = sadd.s32 1, %s20
    $region7: #{tpu_custom_call.1} parent=1 // loop_footer_branch
      %19 = sbr.rel target = $region3
    $region8: #{tpu_custom_call.1} parent=1 // loop_exit
      _
    %7169 = vsyncpa [#allocation5], 1
    %s7170 = scalar_lea.sflag [#allocation5], 1
    %7171 = vsyncpa %s7170, 1
    %7172 = vsyncpa [#allocation6], 1
    %s7173 = scalar_lea.sflag [#allocation6], 1
    %7174 = vsyncpa %s7173, 1

</llo_original>
